<compile_context>
chip_gen: v7x
topology: tpu7x:2x2x1
jax: 0.10.0
libtpu: 0.0.40
codegen_flags: <defaults>
</compile_context>

<pallas_src>
import functools

import jax
import jax.numpy as jnp
from jax import lax
from jax.experimental import pallas as pl
from jax.experimental.pallas import tpu as pltpu

_LANE = 128        # channel dims padded to multiples of the lane width
_BN_EPS = 1e-5
_DIST_EPS = 1e-6
_FAR = 1e6         # coordinate for padded up points (never selected)


def _round_up(x, m):
    return ((x + m - 1) // m) * m


def _vmem_limit_bytes():
    """3/4 of physical VMEM, capped at 96 MiB (48 MiB on v7x, 96 MiB v5e/v6e)."""
    try:
        cap = int(pltpu.get_tpu_info().vmem_capacity_bytes)
    except Exception:
        cap = 128 * 1024 * 1024
    return int(min(cap * 3 // 4, 96 * 1024 * 1024))


# ----------------------------------------------------------------------------
# Kernel 1: 3-NN selection + inverse-squared-distance interpolation
# ----------------------------------------------------------------------------
def _interp_kernel(xq_ref, recv_ref, xu_ref, feat_ref, z_ref, s1_ref, s2_ref, *, k):
    """One tile of TM query points against all S (VMEM-resident) up points.

    xq_ref   [TM, 3]       query positions (all points; padding rows are 0)
    recv_ref [TM, 1]       1.0 for rows that receive interpolation (real down rows)
    xu_ref   [8,  S]       up positions, coordinate-major (rows 0..2 = x/y/z)
    feat_ref [S,  Dp]      up features, bf16, channel-padded
    z_ref    [TM, Dp]      bf16 interpolated features (this tile)
    s1_ref   [1, 1, Dp]    per-tile sum_n z (f32)
    s2_ref   [1, Dp, Dp]   per-tile z^T z   (f32)
    """
    tm = xq_ref.shape[0]
    s = xu_ref.shape[1]

    # Exact per-coordinate squared distances: 3 subtract+FMA passes on the VPU.
    d = jnp.zeros((tm, s), jnp.float32)
    for c in range(3):
        diff = xq_ref[:, c:c + 1] - xu_ref[c:c + 1, :]
        d = d + diff * diff

    # Pack (distance, column) into one int32 key: the bit pattern of a
    # non-negative f32 is order-preserving as int32; the low 12 bits carry the
    # column index (requires S <= 4096).  One lane-min per neighbor gives both
    # the (truncated) min distance and its argmin column.
    col = lax.broadcasted_iota(jnp.int32, (1, s), 1)          # broadcast, not [TM,S]
    key = (pltpu.bitcast(d, jnp.int32) & jnp.int32(-4096)) | col
    int_max = jnp.int32(2 ** 31 - 1)

    wmat = jnp.zeros((tm, s), jnp.float32)
    wsum = jnp.zeros((tm, 1), jnp.float32)
    for _ in range(k):
        kmin = jnp.min(key, axis=-1, keepdims=True)            # 1 XLU reduction
        onehot = col == (kmin & jnp.int32(4095))                # argmin column
        d_k = pltpu.bitcast(kmin & jnp.int32(-4096), jnp.float32)  # from key bits
        w_k = pl.reciprocal(d_k + _DIST_EPS, approx=True)       # 1 EUP recip / row
        wmat = wmat + jnp.where(onehot, w_k, 0.0)
        wsum = wsum + w_k
        key = jnp.where(onehot, int_max, key)                   # drop selected col

    wmat = wmat * (1.0 / wsum)                                  # normalize weights
    z = jnp.dot(wmat.astype(jnp.bfloat16), feat_ref[...],
                preferred_element_type=jnp.float32)             # MXU, f32 accum
    z = z * recv_ref[...]                                       # up/pad rows -> 0
    z_bf = z.astype(jnp.bfloat16)
    z_ref[...] = z_bf

    # Per-tile BatchNorm statistics of the bf16-rounded slab (exactly what the
    # first MLP layer's matmul will consume).
    s1_ref[0] = jnp.sum(z_bf.astype(jnp.float32), axis=0, keepdims=True)
    s2_ref[0] = lax.dot_general(z_bf, z_bf,
                                dimension_numbers=(((0,), (0,)), ((), ())),
                                preferred_element_type=jnp.float32)


def _interpolate(x_all, recv, xu_t, feat_up, *, tile_m, dp, k, vmem_limit):
    n_pad = x_all.shape[0]
    s_pad = xu_t.shape[1]
    n_tiles = n_pad // tile_m
    return pl.pallas_call(
        functools.partial(_interp_kernel, k=k),
        out_shape=(jax.ShapeDtypeStruct((n_pad, dp), jnp.bfloat16),
                   jax.ShapeDtypeStruct((n_tiles, 1, dp), jnp.float32),
                   jax.ShapeDtypeStruct((n_tiles, dp, dp), jnp.float32)),
        grid=(n_tiles,),
        in_specs=[
            pl.BlockSpec((tile_m, 3), lambda t: (t, 0)),        # streamed queries
            pl.BlockSpec((tile_m, 1), lambda t: (t, 0)),        # streamed recv mask
            pl.BlockSpec((8, s_pad), lambda t: (0, 0)),         # resident up pos
            pl.BlockSpec((s_pad, dp), lambda t: (0, 0)),        # resident up feat
        ],
        out_specs=(pl.BlockSpec((tile_m, dp), lambda t: (t, 0)),
                   pl.BlockSpec((1, 1, dp), lambda t: (t, 0, 0)),
                   pl.BlockSpec((1, dp, dp), lambda t: (t, 0, 0))),
        compiler_params=pltpu.CompilerParams(
            dimension_semantics=("parallel",),                  # megacore split
            vmem_limit_bytes=vmem_limit),
    )(x_all, recv, xu_t, feat_up)


# ----------------------------------------------------------------------------
# Kernel 2: one Conv1d(k=1) -> BatchNorm1d -> ReLU layer (+ stats for the next)
# ----------------------------------------------------------------------------
def _mlp_layer(h, valid, w_bf, scale, shift, *, tile_m, compute_stats, vmem_limit):
    """One fused Conv1d(k=1)->BN->ReLU pass over the point slab.

    BN scale/shift are precomputed in XLA from the layer input's (sum, gram);
    when `compute_stats`, this kernel also accumulates (sum, gram) of its own
    bf16 output (for the NEXT layer's BN) directly in constant-index output
    refs across the point-tile axis (hence "arbitrary").  The final layer skips
    the stats entirely (no gram matmul -> half the MXU work there).
    """
    n_pad, dp = h.shape
    n_tiles = n_pad // tile_m

    def kernel(h_ref, valid_ref, w_ref, scale_ref, shift_ref, out_ref, *stat_refs):
        y = jnp.dot(h_ref[...], w_ref[...],
                    preferred_element_type=jnp.float32)         # bf16 x bf16 -> f32
        out = jnp.maximum(y * scale_ref[...] + shift_ref[...], 0.0)
        out = out * valid_ref[...]                               # zero padding rows
        out_bf = out.astype(jnp.bfloat16)
        out_ref[...] = out_bf

        if compute_stats:
            s1_ref, s2_ref = stat_refs
            t = pl.program_id(0)

            @pl.when(t == 0)
            def _():
                s1_ref[...] = jnp.zeros_like(s1_ref)
                s2_ref[...] = jnp.zeros_like(s2_ref)

            s1_ref[...] += jnp.sum(out_bf.astype(jnp.float32), axis=0, keepdims=True)
            s2_ref[...] += lax.dot_general(
                out_bf, out_bf, dimension_numbers=(((0,), (0,)), ((), ())),
                preferred_element_type=jnp.float32)

    slab_shape = jax.ShapeDtypeStruct((n_pad, dp), jnp.bfloat16)
    slab_spec = pl.BlockSpec((tile_m, dp), lambda t: (t, 0))
    if compute_stats:
        out_shape = (slab_shape,
                     jax.ShapeDtypeStruct((1, dp), jnp.float32),
                     jax.ShapeDtypeStruct((dp, dp), jnp.float32))
        out_specs = (slab_spec,
                     pl.BlockSpec((1, dp), lambda t: (0, 0)),
                     pl.BlockSpec((dp, dp), lambda t: (0, 0)))
        semantics = ("arbitrary",)       # carried stats accumulator across tiles
    else:
        out_shape = slab_shape
        out_specs = slab_spec
        semantics = ("parallel",)        # final layer: fully independent tiles

    return pl.pallas_call(
        kernel,
        out_shape=out_shape,
        grid=(n_tiles,),
        in_specs=[
            pl.BlockSpec((tile_m, dp), lambda t: (t, 0)),       # activations (bf16)
            pl.BlockSpec((tile_m, 1), lambda t: (t, 0)),        # valid-row mask
            pl.BlockSpec((dp, dp), lambda t: (0, 0)),           # weight (bf16)
            pl.BlockSpec((1, dp), lambda t: (0, 0)),            # BN scale
            pl.BlockSpec((1, dp), lambda t: (0, 0)),            # BN shift (bias folded)
        ],
        out_specs=out_specs,
        compiler_params=pltpu.CompilerParams(
            dimension_semantics=semantics,
            vmem_limit_bytes=vmem_limit),
    )(h, valid, w_bf, scale, shift)


def _bn_affine(s1, s2, w_f32, b, gamma, beta, inv_n):
    """Analytic training-mode BatchNorm affine for y = h @ w + b.

    s1 = sum_n h_n  [1,Dp],  s2 = sum_n h_n h_n^T  [Dp,Dp]  (f32, bf16-rounded h).
    Returns (scale, shift) with the conv bias folded into shift:
        out = relu((h @ w) * scale + shift).
    """
    s1w = jnp.dot(s1, w_f32, preferred_element_type=jnp.float32)      # [1, Dp]
    mean = s1w * inv_n + b
    quad = jnp.sum(jnp.dot(s2, w_f32, preferred_element_type=jnp.float32) * w_f32,
                   axis=0, keepdims=True)                             # diag(w^T S2 w)
    e_y2 = quad * inv_n + 2.0 * b * (s1w * inv_n) + b * b
    var = jnp.maximum(e_y2 - mean * mean, 0.0)                        # biased, clamped
    scale = gamma * lax.rsqrt(var + _BN_EPS)
    shift = (b - mean) * scale + beta
    return scale, shift


# ----------------------------------------------------------------------------
# FeaturePropagation module (JAX glue around the Pallas kernels)
# ----------------------------------------------------------------------------
class FeaturePropagation:
    def __init__(self, input_dims, sizes, key, tile_m_interp=256, tile_m_mlp=512):
        # tile_m_interp=256 fills the 256x256 MXU on v6e/v7x; tile_m_mlp=512
        # keeps the memory-bound MLP pass near the HBM roofline on all gens.
        dims = [input_dims] + list(sizes)
        self.input_dims = input_dims
        self.sizes = list(sizes)
        self.tile_m_interp = tile_m_interp
        self.tile_m_mlp = tile_m_mlp
        self.dp = _round_up(max(dims), _LANE)   # one lane-padded width for all layers
        self.vmem_limit = _vmem_limit_bytes()

        n_layers = len(self.sizes)
        w_stack = jnp.zeros((n_layers, self.dp, self.dp), jnp.float32)
        b_stack = jnp.zeros((n_layers, 1, self.dp), jnp.float32)
        for i in range(n_layers):
            key, kw, kb = jax.random.split(key, 3)
            w = 0.1 * jax.random.normal(kw, (dims[i], dims[i + 1]), jnp.float32)
            b = 0.1 * jax.random.normal(kb, (dims[i + 1],), jnp.float32)
            w_stack = w_stack.at[i, :dims[i], :dims[i + 1]].set(w)
            b_stack = b_stack.at[i, 0, :dims[i + 1]].set(b)
        self.w_stack = w_stack.astype(jnp.bfloat16)   # bf16 MXU operands
        self.b_stack = b_stack
        self.g_stack = jnp.ones((n_layers, 1, self.dp), jnp.float32)
        self.beta_stack = jnp.zeros((n_layers, 1, self.dp), jnp.float32)

    def __call__(self, x1, x2, feat1, feat2, center_mask):
        """
        x1: [N, 3] all point positions, x2: [S, 3] sampled (up/center) positions,
        feat1: [N, D] (unused, as in the reference forward),
        feat2: [S, D] up-point features, center_mask: [N] bool (True = up node).
        Returns [N, sizes[-1]] point-wise features (channels-last, f32).
        """
        del feat1  # unused by the reference forward pass
        n = x1.shape[0]
        s, d = feat2.shape
        assert d == self.input_dims and s >= 1
        dp = self.dp
        tm_i, tm_m = self.tile_m_interp, self.tile_m_mlp
        assert tm_m % tm_i == 0
        n_layers = len(self.sizes)

        # --- static, jit-friendly padding (no nonzero / boolean gathers) ---
        n_pad = _round_up(max(n, tm_m), tm_m)
        s_pad = max(_LANE, _round_up(s, _LANE))
        assert s_pad <= 4096, "kNN kernel packs the column index into 12 bits"
        k = min(3, s)  # guard against fewer up nodes than neighbors

        x_all = jnp.zeros((n_pad, 3), jnp.float32).at[:n].set(x1.astype(jnp.float32))
        recv = jnp.zeros((n_pad, 1), jnp.float32).at[:n, 0].set(
            1.0 - center_mask.astype(jnp.float32))
        valid = jnp.zeros((n_pad, 1), jnp.float32).at[:n, 0].set(1.0)

        # Up positions coordinate-major; padded columns pushed far away so they
        # are never selected.  Features bf16, channel-padded.
        xu_t = jnp.zeros((8, s_pad), jnp.float32)
        xu_t = xu_t.at[:3, s:].set(_FAR)
        xu_t = xu_t.at[:3, :s].set(x2.astype(jnp.float32).T)
        feat_up = jnp.zeros((s_pad, dp), jnp.bfloat16).at[:s, :d].set(
            feat2.astype(jnp.bfloat16))

        # Hot path 1: kNN interpolation -> bf16 slab + per-tile BN stat partials.
        z, s1_part, s2_part = _interpolate(
            x_all, recv, xu_t, feat_up,
            tile_m=tm_i, dp=dp, k=k, vmem_limit=self.vmem_limit)
        s1 = jnp.sum(s1_part[:, 0, :], axis=0, keepdims=True)   # [1, Dp]
        s2 = jnp.sum(s2_part, axis=0)                            # [Dp, Dp]

        # Hot path 2: per-layer fused Conv1d(k=1) -> BatchNorm1d -> ReLU.
        # BN normalizes over all N real points (including the zeroed up rows),
        # matching the previous semantics; padding rows contribute 0 to stats.
        inv_n = 1.0 / float(n)
        h = z
        for i in range(n_layers):
            w_bf = self.w_stack[i]
            scale, shift = _bn_affine(s1, s2, w_bf.astype(jnp.float32),
                                      self.b_stack[i], self.g_stack[i],
                                      self.beta_stack[i], inv_n)
            last = (i == n_layers - 1)
            res = _mlp_layer(h, valid, w_bf, scale, shift,
                             tile_m=tm_m, compute_stats=not last,
                             vmem_limit=self.vmem_limit)
            if last:
                h = res
            else:
                h, s1, s2 = res

        return h[:n, :self.sizes[-1]].astype(jnp.float32)


if __name__ == "__main__":
    key = jax.random.PRNGKey(0)
    k_pos, k_feat2, k_feat1, k_params = jax.random.split(key, 4)

    n_points = 300
    d_in = 8
    sizes = [16, 8]

    up_idx = jnp.arange(0, n_points, 4)                    # every 4th point is "up"
    center_mask = jnp.zeros((n_points,), jnp.bool_).at[up_idx].set(True)
    s_up = int(up_idx.shape[0])

    x1 = jax.random.normal(k_pos, (n_points, 3), jnp.float32)
    x2 = x1[up_idx]                                        # sampled (up) positions
    feat1 = jax.random.normal(k_feat1, (n_points, d_in), jnp.float32)   # unused
    feat2 = jax.random.normal(k_feat2, (s_up, d_in), jnp.float32)

    fp = FeaturePropagation(d_in, sizes, k_params)
    fwd = jax.jit(lambda a, b, c, e, m: fp(a, b, c, e, m))
    out = jax.block_until_ready(fwd(x1, x2, feat1, feat2, center_mask))

    assert out.shape == (n_points, sizes[-1]), out.shape
    assert bool(jnp.all(jnp.isfinite(out)))
    print("KERNEL_OK")
</pallas_src>

<mosaic_0001>
module attributes {stable_mosaic.version = 11 : i64} {
  func.func @_interp_kernel(%arg0: i32, %arg1: memref<256x3xf32, #tpu.memory_space<vmem>>, %arg2: memref<256x1xf32, #tpu.memory_space<vmem>>, %arg3: memref<8x128xf32, #tpu.memory_space<vmem>>, %arg4: memref<128x128xbf16, #tpu.memory_space<vmem>>, %arg5: memref<256x128xbf16, #tpu.memory_space<vmem>>, %arg6: memref<1x1x128xf32, #tpu.memory_space<vmem>>, %arg7: memref<1x128x128xf32, #tpu.memory_space<vmem>>) attributes {dimension_semantics = [#tpu.dimension_semantics<parallel>], iteration_bounds = array<i64: 2>, scalar_prefetch = 0 : i64, scratch_operands = 0 : i64, tpu.core_type = #tpu.core_type<tc>, window_params = [{transform_indices = @transform_0, window_bounds = array<i64: 256, 3>}, {transform_indices = @transform_1, window_bounds = array<i64: 256, 1>}, {pipeline_mode = #tpu.pipeline_mode<synchronous>, transform_indices = @transform_2, window_bounds = array<i64: 8, 128>}, {pipeline_mode = #tpu.pipeline_mode<synchronous>, transform_indices = @transform_3, window_bounds = array<i64: 128, 128>}, {transform_indices = @transform_4, window_bounds = array<i64: 256, 128>}, {transform_indices = @transform_5, window_bounds = array<i64: 1, 1, 128>}, {transform_indices = @transform_6, window_bounds = array<i64: 1, 128, 128>}]} {
    %cst = arith.constant 0.000000e+00 : f32
    %0 = vector.broadcast %cst : f32 to vector<256x128xf32>
    %c0 = arith.constant 0 : index
    %c0_0 = arith.constant 0 : index
    %1 = vector.load %arg1[%c0, %c0_0] : memref<256x3xf32, #tpu.memory_space<vmem>>, vector<256x1xf32>
    %c0_1 = arith.constant 0 : index
    %c0_2 = arith.constant 0 : index
    %2 = vector.load %arg3[%c0_1, %c0_2] : memref<8x128xf32, #tpu.memory_space<vmem>>, vector<1x128xf32>
    %3 = vector.broadcast %1 : vector<256x1xf32> to vector<256x128xf32>
    %4 = vector.broadcast %2 : vector<1x128xf32> to vector<256x128xf32>
    %5 = arith.subf %3, %4 : vector<256x128xf32>
    %6 = arith.mulf %5, %5 : vector<256x128xf32>
    %7 = arith.addf %0, %6 : vector<256x128xf32>
    %c0_3 = arith.constant 0 : index
    %c1 = arith.constant 1 : index
    %8 = vector.load %arg1[%c0_3, %c1] : memref<256x3xf32, #tpu.memory_space<vmem>>, vector<256x1xf32>
    %c1_4 = arith.constant 1 : index
    %c0_5 = arith.constant 0 : index
    %9 = vector.load %arg3[%c1_4, %c0_5] : memref<8x128xf32, #tpu.memory_space<vmem>>, vector<1x128xf32>
    %10 = vector.broadcast %8 : vector<256x1xf32> to vector<256x128xf32>
    %11 = vector.broadcast %9 : vector<1x128xf32> to vector<256x128xf32>
    %12 = arith.subf %10, %11 : vector<256x128xf32>
    %13 = arith.mulf %12, %12 : vector<256x128xf32>
    %14 = arith.addf %7, %13 : vector<256x128xf32>
    %c0_6 = arith.constant 0 : index
    %c2 = arith.constant 2 : index
    %15 = vector.load %arg1[%c0_6, %c2] : memref<256x3xf32, #tpu.memory_space<vmem>>, vector<256x1xf32>
    %c2_7 = arith.constant 2 : index
    %c0_8 = arith.constant 0 : index
    %16 = vector.load %arg3[%c2_7, %c0_8] : memref<8x128xf32, #tpu.memory_space<vmem>>, vector<1x128xf32>
    %17 = vector.broadcast %15 : vector<256x1xf32> to vector<256x128xf32>
    %18 = vector.broadcast %16 : vector<1x128xf32> to vector<256x128xf32>
    %19 = arith.subf %17, %18 : vector<256x128xf32>
    %20 = arith.mulf %19, %19 : vector<256x128xf32>
    %21 = arith.addf %14, %20 : vector<256x128xf32>
    %22 = tpu.iota {dimensions = array<i32: 1>} : vector<1x128xi32>
    %23 = tpu.bitcast %21 : vector<256x128xf32> -> vector<256x128xi32>
    %c-4096_i32 = arith.constant -4096 : i32
    %24 = vector.broadcast %c-4096_i32 : i32 to vector<256x128xi32>
    %25 = arith.andi %23, %24 : vector<256x128xi32>
    %26 = vector.broadcast %22 : vector<1x128xi32> to vector<256x128xi32>
    %27 = arith.ori %25, %26 : vector<256x128xi32>
    %cst_9 = arith.constant 0.000000e+00 : f32
    %28 = vector.broadcast %cst_9 : f32 to vector<256x128xf32>
    %cst_10 = arith.constant 0.000000e+00 : f32
    %29 = vector.broadcast %cst_10 : f32 to vector<256x1xf32>
    %cst_11 = arith.constant dense<2147483647> : vector<256xi32>
    %30 = vector.multi_reduction <minsi>, %27, %cst_11 [1] : vector<256x128xi32> to vector<256xi32>
    %31 = vector.shape_cast %30 : vector<256xi32> to vector<256x1xi32>
    %c4095_i32 = arith.constant 4095 : i32
    %32 = vector.broadcast %c4095_i32 : i32 to vector<256x1xi32>
    %33 = arith.andi %31, %32 : vector<256x1xi32>
    %34 = vector.broadcast %22 : vector<1x128xi32> to vector<256x128xi32>
    %35 = vector.broadcast %33 : vector<256x1xi32> to vector<256x128xi32>
    %36 = arith.cmpi eq, %34, %35 : vector<256x128xi32>
    %c-4096_i32_12 = arith.constant -4096 : i32
    %37 = vector.broadcast %c-4096_i32_12 : i32 to vector<256x1xi32>
    %38 = arith.andi %31, %37 : vector<256x1xi32>
    %39 = tpu.bitcast %38 : vector<256x1xi32> -> vector<256x1xf32>
    %cst_13 = arith.constant 9.99999997E-7 : f32
    %40 = vector.broadcast %cst_13 : f32 to vector<256x1xf32>
    %41 = arith.addf %39, %40 : vector<256x1xf32>
    %42 = tpu.reciprocal %41 {approx = true} : vector<256x1xf32> -> vector<256x1xf32>
    %cst_14 = arith.constant 0.000000e+00 : f32
    %43 = vector.shape_cast %42 : vector<256x1xf32> to vector<256x1xf32>
    %44 = vector.broadcast %43 : vector<256x1xf32> to vector<256x128xf32>
    %45 = vector.broadcast %cst_14 : f32 to vector<256x128xf32>
    %46 = arith.select %36, %44, %45 : vector<256x128xi1>, vector<256x128xf32>
    %47 = arith.addf %28, %46 : vector<256x128xf32>
    %48 = arith.addf %29, %42 : vector<256x1xf32>
    %c2147483647_i32 = arith.constant 2147483647 : i32
    %49 = vector.broadcast %c2147483647_i32 : i32 to vector<256x128xi32>
    %50 = arith.select %36, %49, %27 : vector<256x128xi1>, vector<256x128xi32>
    %cst_15 = arith.constant dense<2147483647> : vector<256xi32>
    %51 = vector.multi_reduction <minsi>, %50, %cst_15 [1] : vector<256x128xi32> to vector<256xi32>
    %52 = vector.shape_cast %51 : vector<256xi32> to vector<256x1xi32>
    %c4095_i32_16 = arith.constant 4095 : i32
    %53 = vector.broadcast %c4095_i32_16 : i32 to vector<256x1xi32>
    %54 = arith.andi %52, %53 : vector<256x1xi32>
    %55 = vector.broadcast %22 : vector<1x128xi32> to vector<256x128xi32>
    %56 = vector.broadcast %54 : vector<256x1xi32> to vector<256x128xi32>
    %57 = arith.cmpi eq, %55, %56 : vector<256x128xi32>
    %c-4096_i32_17 = arith.constant -4096 : i32
    %58 = vector.broadcast %c-4096_i32_17 : i32 to vector<256x1xi32>
    %59 = arith.andi %52, %58 : vector<256x1xi32>
    %60 = tpu.bitcast %59 : vector<256x1xi32> -> vector<256x1xf32>
    %cst_18 = arith.constant 9.99999997E-7 : f32
    %61 = vector.broadcast %cst_18 : f32 to vector<256x1xf32>
    %62 = arith.addf %60, %61 : vector<256x1xf32>
    %63 = tpu.reciprocal %62 {approx = true} : vector<256x1xf32> -> vector<256x1xf32>
    %cst_19 = arith.constant 0.000000e+00 : f32
    %64 = vector.shape_cast %63 : vector<256x1xf32> to vector<256x1xf32>
    %65 = vector.broadcast %64 : vector<256x1xf32> to vector<256x128xf32>
    %66 = vector.broadcast %cst_19 : f32 to vector<256x128xf32>
    %67 = arith.select %57, %65, %66 : vector<256x128xi1>, vector<256x128xf32>
    %68 = arith.addf %47, %67 : vector<256x128xf32>
    %69 = arith.addf %48, %63 : vector<256x1xf32>
    %c2147483647_i32_20 = arith.constant 2147483647 : i32
    %70 = vector.broadcast %c2147483647_i32_20 : i32 to vector<256x128xi32>
    %71 = arith.select %57, %70, %50 : vector<256x128xi1>, vector<256x128xi32>
    %cst_21 = arith.constant dense<2147483647> : vector<256xi32>
    %72 = vector.multi_reduction <minsi>, %71, %cst_21 [1] : vector<256x128xi32> to vector<256xi32>
    %73 = vector.shape_cast %72 : vector<256xi32> to vector<256x1xi32>
    %c4095_i32_22 = arith.constant 4095 : i32
    %74 = vector.broadcast %c4095_i32_22 : i32 to vector<256x1xi32>
    %75 = arith.andi %73, %74 : vector<256x1xi32>
    %76 = vector.broadcast %22 : vector<1x128xi32> to vector<256x128xi32>
    %77 = vector.broadcast %75 : vector<256x1xi32> to vector<256x128xi32>
    %78 = arith.cmpi eq, %76, %77 : vector<256x128xi32>
    %c-4096_i32_23 = arith.constant -4096 : i32
    %79 = vector.broadcast %c-4096_i32_23 : i32 to vector<256x1xi32>
    %80 = arith.andi %73, %79 : vector<256x1xi32>
    %81 = tpu.bitcast %80 : vector<256x1xi32> -> vector<256x1xf32>
    %cst_24 = arith.constant 9.99999997E-7 : f32
    %82 = vector.broadcast %cst_24 : f32 to vector<256x1xf32>
    %83 = arith.addf %81, %82 : vector<256x1xf32>
    %84 = tpu.reciprocal %83 {approx = true} : vector<256x1xf32> -> vector<256x1xf32>
    %cst_25 = arith.constant 0.000000e+00 : f32
    %85 = vector.shape_cast %84 : vector<256x1xf32> to vector<256x1xf32>
    %86 = vector.broadcast %85 : vector<256x1xf32> to vector<256x128xf32>
    %87 = vector.broadcast %cst_25 : f32 to vector<256x128xf32>
    %88 = arith.select %78, %86, %87 : vector<256x128xi1>, vector<256x128xf32>
    %89 = arith.addf %68, %88 : vector<256x128xf32>
    %90 = arith.addf %69, %84 : vector<256x1xf32>
    %cst_26 = arith.constant 1.000000e+00 : f32
    %91 = vector.broadcast %cst_26 : f32 to vector<256x1xf32>
    %92 = arith.divf %91, %90 : vector<256x1xf32>
    %93 = vector.broadcast %92 : vector<256x1xf32> to vector<256x128xf32>
    %94 = arith.mulf %89, %93 : vector<256x128xf32>
    %95 = arith.truncf %94 : vector<256x128xf32> to vector<256x128xbf16>
    %c0_27 = arith.constant 0 : index
    %c0_28 = arith.constant 0 : index
    %96 = vector.load %arg4[%c0_27, %c0_28] : memref<128x128xbf16, #tpu.memory_space<vmem>>, vector<128x128xbf16>
    %cst_29 = arith.constant dense<0.000000e+00> : vector<256x128xf32>
    %97 = tpu.matmul %95, %96, %cst_29 {dimension_numbers = #tpu.dot_dimension_numbers<[1], [0], [0], [1], [0, 0, 1, 1], [], []>} : vector<256x128xbf16>, vector<128x128xbf16>, vector<256x128xf32> -> vector<256x128xf32>
    %c0_30 = arith.constant 0 : index
    %c0_31 = arith.constant 0 : index
    %98 = vector.load %arg2[%c0_30, %c0_31] : memref<256x1xf32, #tpu.memory_space<vmem>>, vector<256x1xf32>
    %99 = vector.broadcast %98 : vector<256x1xf32> to vector<256x128xf32>
    %100 = arith.mulf %97, %99 : vector<256x128xf32>
    %101 = arith.truncf %100 : vector<256x128xf32> to vector<256x128xbf16>
    %c0_32 = arith.constant 0 : index
    %c0_33 = arith.constant 0 : index
    %102 = vector.load %arg5[%c0_32, %c0_33] : memref<256x128xbf16, #tpu.memory_space<vmem>>, vector<256x128xbf16>
    tpu.vector_store %arg5[%c0_32, %c0_33], %101 {strides = array<i32>} : memref<256x128xbf16, #tpu.memory_space<vmem>>, vector<256x128xbf16>,
    %103 = arith.extf %101 : vector<256x128xbf16> to vector<256x128xf32>
    %cst_34 = arith.constant dense<0.000000e+00> : vector<128xf32>
    %104 = vector.multi_reduction <add>, %103, %cst_34 [0] : vector<256x128xf32> to vector<128xf32>
    %105 = vector.shape_cast %104 : vector<128xf32> to vector<1x128xf32>
    %c0_35 = arith.constant 0 : index
    %c0_36 = arith.constant 0 : index
    %c0_37 = arith.constant 0 : index
    %106 = vector.load %arg6[%c0_35, %c0_36, %c0_37] : memref<1x1x128xf32, #tpu.memory_space<vmem>>, vector<1x1x128xf32>
    %107 = vector.shape_cast %106 : vector<1x1x128xf32> to vector<1x128xf32>
    %108 = vector.shape_cast %105 : vector<1x128xf32> to vector<1x1x128xf32>
    tpu.vector_store %arg6[%c0_35, %c0_36, %c0_37], %108 {strides = array<i32>} : memref<1x1x128xf32, #tpu.memory_space<vmem>>, vector<1x1x128xf32>,
    %cst_38 = arith.constant dense<0.000000e+00> : vector<128x128xf32>
    %109 = tpu.matmul %101, %101, %cst_38 {dimension_numbers = #tpu.dot_dimension_numbers<[0], [0], [1], [1], [0, 1, 1, 1], [], []>} : vector<256x128xbf16>, vector<256x128xbf16>, vector<128x128xf32> -> vector<128x128xf32>
    %c0_39 = arith.constant 0 : index
    %c0_40 = arith.constant 0 : index
    %c0_41 = arith.constant 0 : index
    %110 = vector.load %arg7[%c0_39, %c0_40, %c0_41] : memref<1x128x128xf32, #tpu.memory_space<vmem>>, vector<1x128x128xf32>
    %111 = vector.shape_cast %110 : vector<1x128x128xf32> to vector<128x128xf32>
    %112 = vector.shape_cast %109 : vector<128x128xf32> to vector<1x128x128xf32>
    tpu.vector_store %arg7[%c0_39, %c0_40, %c0_41], %112 {strides = array<i32>} : memref<1x128x128xf32, #tpu.memory_space<vmem>>, vector<1x128x128xf32>,
    return
  }
  func.func @transform_0(%arg0: i32) -> (i32, i32) {
    %c0_i32 = arith.constant 0 : i32
    %c0_i32_0 = arith.constant 0 : i32
    return %arg0, %c0_i32 : i32, i32
  }
  func.func @transform_1(%arg0: i32) -> (i32, i32) {
    %c0_i32 = arith.constant 0 : i32
    %c0_i32_0 = arith.constant 0 : i32
    return %arg0, %c0_i32 : i32, i32
  }
  func.func @transform_2(%arg0: i32) -> (i32, i32) {
    %c0_i32 = arith.constant 0 : i32
    %c0_i32_0 = arith.constant 0 : i32
    %c0_i32_1 = arith.constant 0 : i32
    return %c0_i32, %c0_i32_0 : i32, i32
  }
  func.func @transform_3(%arg0: i32) -> (i32, i32) {
    %c0_i32 = arith.constant 0 : i32
    %c0_i32_0 = arith.constant 0 : i32
    %c0_i32_1 = arith.constant 0 : i32
    return %c0_i32, %c0_i32_0 : i32, i32
  }
  func.func @transform_4(%arg0: i32) -> (i32, i32) {
    %c0_i32 = arith.constant 0 : i32
    %c0_i32_0 = arith.constant 0 : i32
    return %arg0, %c0_i32 : i32, i32
  }
  func.func @transform_5(%arg0: i32) -> (i32, i32, i32) {
    %c0_i32 = arith.constant 0 : i32
    %c0_i32_0 = arith.constant 0 : i32
    %c0_i32_1 = arith.constant 0 : i32
    return %arg0, %c0_i32, %c0_i32_0 : i32, i32, i32
  }
  func.func @transform_6(%arg0: i32) -> (i32, i32, i32) {
    %c0_i32 = arith.constant 0 : i32
    %c0_i32_0 = arith.constant 0 : i32
    %c0_i32_1 = arith.constant 0 : i32
    return %arg0, %c0_i32, %c0_i32_0 : i32, i32, i32
  }
}

module attributes {stable_mosaic.version = 11 : i64} {
  func.func @kernel(%arg0: i32, %arg1: memref<512x128xbf16, #tpu.memory_space<vmem>>, %arg2: memref<512x1xf32, #tpu.memory_space<vmem>>, %arg3: memref<128x128xbf16, #tpu.memory_space<vmem>>, %arg4: memref<1x128xf32, #tpu.memory_space<vmem>>, %arg5: memref<1x128xf32, #tpu.memory_space<vmem>>, %arg6: memref<512x128xbf16, #tpu.memory_space<vmem>>, %arg7: memref<1x128xf32, #tpu.memory_space<vmem>>, %arg8: memref<128x128xf32, #tpu.memory_space<vmem>>) attributes {dimension_semantics = [#tpu.dimension_semantics<arbitrary>], iteration_bounds = array<i64: 1>, scalar_prefetch = 0 : i64, scratch_operands = 0 : i64, tpu.core_type = #tpu.core_type<tc>, window_params = [{transform_indices = @transform_0, window_bounds = array<i64: 512, 128>}, {transform_indices = @transform_1, window_bounds = array<i64: 512, 1>}, {pipeline_mode = #tpu.pipeline_mode<synchronous>, transform_indices = @transform_2, window_bounds = array<i64: 128, 128>}, {pipeline_mode = #tpu.pipeline_mode<synchronous>, transform_indices = @transform_3, window_bounds = array<i64: 1, 128>}, {pipeline_mode = #tpu.pipeline_mode<synchronous>, transform_indices = @transform_4, window_bounds = array<i64: 1, 128>}, {transform_indices = @transform_5, window_bounds = array<i64: 512, 128>}, {pipeline_mode = #tpu.pipeline_mode<synchronous>, transform_indices = @transform_6, window_bounds = array<i64: 1, 128>}, {pipeline_mode = #tpu.pipeline_mode<synchronous>, transform_indices = @transform_7, window_bounds = array<i64: 128, 128>}]} {
    %c0 = arith.constant 0 : index
    %c0_0 = arith.constant 0 : index
    %0 = vector.load %arg1[%c0, %c0_0] : memref<512x128xbf16, #tpu.memory_space<vmem>>, vector<512x128xbf16>
    %c0_1 = arith.constant 0 : index
    %c0_2 = arith.constant 0 : index
    %1 = vector.load %arg3[%c0_1, %c0_2] : memref<128x128xbf16, #tpu.memory_space<vmem>>, vector<128x128xbf16>
    %cst = arith.constant dense<0.000000e+00> : vector<512x128xf32>
    %2 = tpu.matmul %0, %1, %cst {dimension_numbers = #tpu.dot_dimension_numbers<[1], [0], [0], [1], [0, 0, 1, 1], [], []>} : vector<512x128xbf16>, vector<128x128xbf16>, vector<512x128xf32> -> vector<512x128xf32>
    %c0_3 = arith.constant 0 : index
    %c0_4 = arith.constant 0 : index
    %3 = vector.load %arg4[%c0_3, %c0_4] : memref<1x128xf32, #tpu.memory_space<vmem>>, vector<1x128xf32>
    %4 = vector.broadcast %3 : vector<1x128xf32> to vector<512x128xf32>
    %5 = arith.mulf %2, %4 : vector<512x128xf32>
    %c0_5 = arith.constant 0 : index
    %c0_6 = arith.constant 0 : index
    %6 = vector.load %arg5[%c0_5, %c0_6] : memref<1x128xf32, #tpu.memory_space<vmem>>, vector<1x128xf32>
    %7 = vector.broadcast %6 : vector<1x128xf32> to vector<512x128xf32>
    %8 = arith.addf %5, %7 : vector<512x128xf32>
    %cst_7 = arith.constant 0.000000e+00 : f32
    %9 = vector.broadcast %cst_7 : f32 to vector<512x128xf32>
    %10 = arith.maximumf %8, %9 : vector<512x128xf32>
    %c0_8 = arith.constant 0 : index
    %c0_9 = arith.constant 0 : index
    %11 = vector.load %arg2[%c0_8, %c0_9] : memref<512x1xf32, #tpu.memory_space<vmem>>, vector<512x1xf32>
    %12 = vector.broadcast %11 : vector<512x1xf32> to vector<512x128xf32>
    %13 = arith.mulf %10, %12 : vector<512x128xf32>
    %14 = arith.truncf %13 : vector<512x128xf32> to vector<512x128xbf16>
    %c0_10 = arith.constant 0 : index
    %c0_11 = arith.constant 0 : index
    %15 = vector.load %arg6[%c0_10, %c0_11] : memref<512x128xbf16, #tpu.memory_space<vmem>>, vector<512x128xbf16>
    tpu.vector_store %arg6[%c0_10, %c0_11], %14 {strides = array<i32>} : memref<512x128xbf16, #tpu.memory_space<vmem>>, vector<512x128xbf16>,
    %c0_i32 = arith.constant 0 : i32
    %16 = arith.cmpi eq, %arg0, %c0_i32 : i32
    %17 = arith.extui %16 : i1 to i32
    %c0_i32_12 = arith.constant 0 : i32
    %18 = arith.cmpi ne, %17, %c0_i32_12 : i32
    scf.if %18 {
      %cst_23 = arith.constant 0.000000e+00 : f32
      %29 = vector.broadcast %cst_23 : f32 to vector<1x128xf32>
      %c0_24 = arith.constant 0 : index
      %c0_25 = arith.constant 0 : index
      %30 = vector.load %arg7[%c0_24, %c0_25] : memref<1x128xf32, #tpu.memory_space<vmem>>, vector<1x128xf32>
      tpu.vector_store %arg7[%c0_24, %c0_25], %29 {strides = array<i32>} : memref<1x128xf32, #tpu.memory_space<vmem>>, vector<1x128xf32>,
      %cst_26 = arith.constant 0.000000e+00 : f32
      %31 = vector.broadcast %cst_26 : f32 to vector<128x128xf32>
      %c0_27 = arith.constant 0 : index
      %c0_28 = arith.constant 0 : index
      %32 = vector.load %arg8[%c0_27, %c0_28] : memref<128x128xf32, #tpu.memory_space<vmem>>, vector<128x128xf32>
      tpu.vector_store %arg8[%c0_27, %c0_28], %31 {strides = array<i32>} : memref<128x128xf32, #tpu.memory_space<vmem>>, vector<128x128xf32>,
    } else {
    }
    %c0_13 = arith.constant 0 : index
    %c0_14 = arith.constant 0 : index
    %19 = vector.load %arg7[%c0_13, %c0_14] : memref<1x128xf32, #tpu.memory_space<vmem>>, vector<1x128xf32>
    %20 = arith.extf %14 : vector<512x128xbf16> to vector<512x128xf32>
    %cst_15 = arith.constant dense<0.000000e+00> : vector<128xf32>
    %21 = vector.multi_reduction <add>, %20, %cst_15 [0] : vector<512x128xf32> to vector<128xf32>
    %22 = vector.shape_cast %21 : vector<128xf32> to vector<1x128xf32>
    %23 = arith.addf %19, %22 : vector<1x128xf32>
    %c0_16 = arith.constant 0 : index
    %c0_17 = arith.constant 0 : index
    %24 = vector.load %arg7[%c0_16, %c0_17] : memref<1x128xf32, #tpu.memory_space<vmem>>, vector<1x128xf32>
    tpu.vector_store %arg7[%c0_16, %c0_17], %23 {strides = array<i32>} : memref<1x128xf32, #tpu.memory_space<vmem>>, vector<1x128xf32>,
    %c0_18 = arith.constant 0 : index
    %c0_19 = arith.constant 0 : index
    %25 = vector.load %arg8[%c0_18, %c0_19] : memref<128x128xf32, #tpu.memory_space<vmem>>, vector<128x128xf32>
    %cst_20 = arith.constant dense<0.000000e+00> : vector<128x128xf32>
    %26 = tpu.matmul %14, %14, %cst_20 {dimension_numbers = #tpu.dot_dimension_numbers<[0], [0], [1], [1], [0, 1, 1, 1], [], []>} : vector<512x128xbf16>, vector<512x128xbf16>, vector<128x128xf32> -> vector<128x128xf32>
    %27 = arith.addf %25, %26 : vector<128x128xf32>
    %c0_21 = arith.constant 0 : index
    %c0_22 = arith.constant 0 : index
    %28 = vector.load %arg8[%c0_21, %c0_22] : memref<128x128xf32, #tpu.memory_space<vmem>>, vector<128x128xf32>
    tpu.vector_store %arg8[%c0_21, %c0_22], %27 {strides = array<i32>} : memref<128x128xf32, #tpu.memory_space<vmem>>, vector<128x128xf32>,
    return
  }
  func.func @transform_0(%arg0: i32) -> (i32, i32) {
    %c0_i32 = arith.constant 0 : i32
    %c0_i32_0 = arith.constant 0 : i32
    return %arg0, %c0_i32 : i32, i32
  }
  func.func @transform_1(%arg0: i32) -> (i32, i32) {
    %c0_i32 = arith.constant 0 : i32
    %c0_i32_0 = arith.constant 0 : i32
    return %arg0, %c0_i32 : i32, i32
  }
  func.func @transform_2(%arg0: i32) -> (i32, i32) {
    %c0_i32 = arith.constant 0 : i32
    %c0_i32_0 = arith.constant 0 : i32
    %c0_i32_1 = arith.constant 0 : i32
    return %c0_i32, %c0_i32_0 : i32, i32
  }
  func.func @transform_3(%arg0: i32) -> (i32, i32) {
    %c0_i32 = arith.constant 0 : i32
    %c0_i32_0 = arith.constant 0 : i32
    %c0_i32_1 = arith.constant 0 : i32
    return %c0_i32, %c0_i32_0 : i32, i32
  }
  func.func @transform_4(%arg0: i32) -> (i32, i32) {
    %c0_i32 = arith.constant 0 : i32
    %c0_i32_0 = arith.constant 0 : i32
    %c0_i32_1 = arith.constant 0 : i32
    return %c0_i32, %c0_i32_0 : i32, i32
  }
  func.func @transform_5(%arg0: i32) -> (i32, i32) {
    %c0_i32 = arith.constant 0 : i32
    %c0_i32_0 = arith.constant 0 : i32
    return %arg0, %c0_i32 : i32, i32
  }
  func.func @transform_6(%arg0: i32) -> (i32, i32) {
    %c0_i32 = arith.constant 0 : i32
    %c0_i32_0 = arith.constant 0 : i32
    %c0_i32_1 = arith.constant 0 : i32
    return %c0_i32, %c0_i32_0 : i32, i32
  }
  func.func @transform_7(%arg0: i32) -> (i32, i32) {
    %c0_i32 = arith.constant 0 : i32
    %c0_i32_0 = arith.constant 0 : i32
    %c0_i32_1 = arith.constant 0 : i32
    return %c0_i32, %c0_i32_0 : i32, i32
  }
}

module attributes {stable_mosaic.version = 11 : i64} {
  func.func @kernel(%arg0: i32, %arg1: memref<512x128xbf16, #tpu.memory_space<vmem>>, %arg2: memref<512x1xf32, #tpu.memory_space<vmem>>, %arg3: memref<128x128xbf16, #tpu.memory_space<vmem>>, %arg4: memref<1x128xf32, #tpu.memory_space<vmem>>, %arg5: memref<1x128xf32, #tpu.memory_space<vmem>>, %arg6: memref<512x128xbf16, #tpu.memory_space<vmem>>) attributes {dimension_semantics = [#tpu.dimension_semantics<parallel>], iteration_bounds = array<i64: 1>, scalar_prefetch = 0 : i64, scratch_operands = 0 : i64, tpu.core_type = #tpu.core_type<tc>, window_params = [{transform_indices = @transform_0, window_bounds = array<i64: 512, 128>}, {transform_indices = @transform_1, window_bounds = array<i64: 512, 1>}, {pipeline_mode = #tpu.pipeline_mode<synchronous>, transform_indices = @transform_2, window_bounds = array<i64: 128, 128>}, {pipeline_mode = #tpu.pipeline_mode<synchronous>, transform_indices = @transform_3, window_bounds = array<i64: 1, 128>}, {pipeline_mode = #tpu.pipeline_mode<synchronous>, transform_indices = @transform_4, window_bounds = array<i64: 1, 128>}, {transform_indices = @transform_5, window_bounds = array<i64: 512, 128>}]} {
    %c0 = arith.constant 0 : index
    %c0_0 = arith.constant 0 : index
    %0 = vector.load %arg1[%c0, %c0_0] : memref<512x128xbf16, #tpu.memory_space<vmem>>, vector<512x128xbf16>
    %c0_1 = arith.constant 0 : index
    %c0_2 = arith.constant 0 : index
    %1 = vector.load %arg3[%c0_1, %c0_2] : memref<128x128xbf16, #tpu.memory_space<vmem>>, vector<128x128xbf16>
    %cst = arith.constant dense<0.000000e+00> : vector<512x128xf32>
    %2 = tpu.matmul %0, %1, %cst {dimension_numbers = #tpu.dot_dimension_numbers<[1], [0], [0], [1], [0, 0, 1, 1], [], []>} : vector<512x128xbf16>, vector<128x128xbf16>, vector<512x128xf32> -> vector<512x128xf32>
    %c0_3 = arith.constant 0 : index
    %c0_4 = arith.constant 0 : index
    %3 = vector.load %arg4[%c0_3, %c0_4] : memref<1x128xf32, #tpu.memory_space<vmem>>, vector<1x128xf32>
    %4 = vector.broadcast %3 : vector<1x128xf32> to vector<512x128xf32>
    %5 = arith.mulf %2, %4 : vector<512x128xf32>
    %c0_5 = arith.constant 0 : index
    %c0_6 = arith.constant 0 : index
    %6 = vector.load %arg5[%c0_5, %c0_6] : memref<1x128xf32, #tpu.memory_space<vmem>>, vector<1x128xf32>
    %7 = vector.broadcast %6 : vector<1x128xf32> to vector<512x128xf32>
    %8 = arith.addf %5, %7 : vector<512x128xf32>
    %cst_7 = arith.constant 0.000000e+00 : f32
    %9 = vector.broadcast %cst_7 : f32 to vector<512x128xf32>
    %10 = arith.maximumf %8, %9 : vector<512x128xf32>
    %c0_8 = arith.constant 0 : index
    %c0_9 = arith.constant 0 : index
    %11 = vector.load %arg2[%c0_8, %c0_9] : memref<512x1xf32, #tpu.memory_space<vmem>>, vector<512x1xf32>
    %12 = vector.broadcast %11 : vector<512x1xf32> to vector<512x128xf32>
    %13 = arith.mulf %10, %12 : vector<512x128xf32>
    %14 = arith.truncf %13 : vector<512x128xf32> to vector<512x128xbf16>
    %c0_10 = arith.constant 0 : index
    %c0_11 = arith.constant 0 : index
    %15 = vector.load %arg6[%c0_10, %c0_11] : memref<512x128xbf16, #tpu.memory_space<vmem>>, vector<512x128xbf16>
    tpu.vector_store %arg6[%c0_10, %c0_11], %14 {strides = array<i32>} : memref<512x128xbf16, #tpu.memory_space<vmem>>, vector<512x128xbf16>,
    return
  }
  func.func @transform_0(%arg0: i32) -> (i32, i32) {
    %c0_i32 = arith.constant 0 : i32
    %c0_i32_0 = arith.constant 0 : i32
    return %arg0, %c0_i32 : i32, i32
  }
  func.func @transform_1(%arg0: i32) -> (i32, i32) {
    %c0_i32 = arith.constant 0 : i32
    %c0_i32_0 = arith.constant 0 : i32
    return %arg0, %c0_i32 : i32, i32
  }
  func.func @transform_2(%arg0: i32) -> (i32, i32) {
    %c0_i32 = arith.constant 0 : i32
    %c0_i32_0 = arith.constant 0 : i32
    %c0_i32_1 = arith.constant 0 : i32
    return %c0_i32, %c0_i32_0 : i32, i32
  }
  func.func @transform_3(%arg0: i32) -> (i32, i32) {
    %c0_i32 = arith.constant 0 : i32
    %c0_i32_0 = arith.constant 0 : i32
    %c0_i32_1 = arith.constant 0 : i32
    return %c0_i32, %c0_i32_0 : i32, i32
  }
  func.func @transform_4(%arg0: i32) -> (i32, i32) {
    %c0_i32 = arith.constant 0 : i32
    %c0_i32_0 = arith.constant 0 : i32
    %c0_i32_1 = arith.constant 0 : i32
    return %c0_i32, %c0_i32_0 : i32, i32
  }
  func.func @transform_5(%arg0: i32) -> (i32, i32) {
    %c0_i32 = arith.constant 0 : i32
    %c0_i32_0 = arith.constant 0 : i32
    return %arg0, %c0_i32 : i32, i32
  }
}

</mosaic_0001>

<llo_original>
// kernel: _lambda_.5
$region0: #{_lambda_.5}
  #allocation0 [shape = 'u32[]', space=smem, size = 0x4, offset = 0x4, fixed_abs, tag = 'smem constant byte address 0x4 - core index']
  #allocation1 [shape = 'u32[144,128]{1,0:T(1,128)}', space=vmem, size = 0x12000, scoped, tag = 'internal scratch']
  %s0 = inlined_call_operand.hbm [shape: bf16[512,128], index: 0, kind: input, shape index: {}]
  %s1 = inlined_call_operand.hbm [shape: f32[512,1], index: 1, kind: input, shape index: {}]
  %s2 = inlined_call_operand.hbm [shape: bf16[128,128], index: 2, kind: input, shape index: {}]
  %s3 = inlined_call_operand.hbm [shape: f32[1,128], index: 3, kind: input, shape index: {}]
  %s4 = inlined_call_operand.hbm [shape: f32[1,128], index: 4, kind: input, shape index: {}]
  %s5 = inlined_call_operand.hbm [shape: bf16[512,128], index: 5, kind: output, shape index: {}]
  %s6 = sld [smem:[#allocation0]]
  $region50: #{_lambda_.5} parent=0
    _
  %s8 = ssub.s32 1, %s6
  %s9 = scalar_select 0, %s8, %s6
  $region1: #{_lambda_.5} parent=0
    #allocation2 [shape = 'u8[131072]{0}', space=vmem, size = 0x20000, scoped, tag = 'input window, operand 0, single buffered']
    #allocation3 [shape = 's32[1]{0}', space=sflag, size = 0x4, scoped, tag = 'scoped memory for _lambda_.5']
    #allocation4 [shape = 's32[1]{0}', space=sflag, size = 0x4, scoped, tag = 'scoped memory for _lambda_.5']
    #allocation5 [shape = 'u8[262144]{0}', space=vmem, size = 0x40000, scoped, tag = 'input window, operand 1, single buffered']
    #allocation6 [shape = 's32[1]{0}', space=sflag, size = 0x4, scoped, tag = 'scoped memory for _lambda_.5']
    #allocation7 [shape = 'u8[32768]{0}', space=vmem, size = 0x8000, scoped, tag = 'input window, operand 2, single buffered']
    #allocation8 [shape = 'u8[512]{0}', space=vmem, size = 0x400, scoped, tag = 'input window, operand 3, single buffered']
    #allocation9 [shape = 's32[1]{0}', space=sflag, size = 0x4, scoped, tag = 'scoped memory for _lambda_.5']
    #allocation10 [shape = 'u8[512]{0}', space=vmem, size = 0x400, scoped, tag = 'input window, operand 4, single buffered']
    #allocation11 [shape = 'u8[131072]{0}', space=vmem, size = 0x20000, scoped, tag = 'output window, operand 0, single buffered']
    %10 = vsyncpa [#allocation3], 0
    %11 = vsyncpa [#allocation6], 0
    %12 = vsyncpa [#allocation9], 0
    %13 = vsyncpa [#allocation4], 0
    // Predicated region
    $region2: #{_lambda_.5} parent=1 // pred_check
      _
    $region3: #{_lambda_.5} parent=1 // pred_check_branch
      %15 = sbr.rel (0) target = $region5
    $region4: #{_lambda_.5} parent=1 // pred_region
      %s17 = ssub.s32 4096, 4096
      %18 = vsyncadd [#allocation3], %s17
      %s19 = sshll.u32 [#allocation2], 4
      %s20 = int_to_ptr.vmem [resolvable:$true] %s19
      %25 = dma.hbm_to_vmem [thread:$0]  %s0, 4096, %s20, [#allocation3], 64, 64, 4
    $region5: #{_lambda_.5} parent=1 // pred_fallthru
      _
    // Predicated region
    $region6: #{_lambda_.5} parent=1 // pred_check
      _
    $region7: #{_lambda_.5} parent=1 // pred_check_branch
      %27 = sbr.rel (0) target = $region9
    $region8: #{_lambda_.5} parent=1 // pred_region
      %s29 = ssub.s32 8192, 8192
      %30 = vsyncadd [#allocation6], %s29
      %s31 = sshll.u32 [#allocation5], 4
      %s32 = int_to_ptr.vmem [resolvable:$true] %s31
      %37 = dma.hbm_to_vmem [thread:$0]  %s1, 8192, %s32, [#allocation6], 128, 128, 8
    $region9: #{_lambda_.5} parent=1 // pred_fallthru
      _
    // Predicated region
    $region10: #{_lambda_.5} parent=1 // pred_check
      _
    $region11: #{_lambda_.5} parent=1 // pred_check_branch
      %39 = sbr.rel (0) target = $region13
    $region12: #{_lambda_.5} parent=1 // pred_region
      %s41 = ssub.s32 1024, 1024
      %42 = vsyncadd [#allocation6], %s41
      %s43 = sshll.u32 [#allocation7], 4
      %s44 = int_to_ptr.vmem [resolvable:$true] %s43
      %49 = dma.hbm_to_vmem [thread:$0]  %s2, 1024, %s44, [#allocation6], 64, 64, 4
    $region13: #{_lambda_.5} parent=1 // pred_fallthru
      _
    // Predicated region
    $region14: #{_lambda_.5} parent=1 // pred_check
      _
    $region15: #{_lambda_.5} parent=1 // pred_check_branch
      %51 = sbr.rel (0) target = $region17
    $region16: #{_lambda_.5} parent=1 // pred_region
      %s53 = ssub.s32 16, 16
      %54 = vsyncadd [#allocation9], %s53
      %s56 = sshll.u32 [#allocation8], 4
      %s57 = int_to_ptr.vmem [resolvable:$true] %s56
      %59 = dma.hbm_to_vmem [thread:$0]  %s3, 16, %s57, [#allocation9]
    $region17: #{_lambda_.5} parent=1 // pred_fallthru
      _
    // Predicated region
    $region18: #{_lambda_.5} parent=1 // pred_check
      _
    $region19: #{_lambda_.5} parent=1 // pred_check_branch
      %61 = sbr.rel (0) target = $region21
    $region20: #{_lambda_.5} parent=1 // pred_region
      %s63 = ssub.s32 16, 16
      %64 = vsyncadd [#allocation9], %s63
      %s66 = sshll.u32 [#allocation10], 4
      %s67 = int_to_ptr.vmem [resolvable:$true] %s66
      %69 = dma.hbm_to_vmem [thread:$0]  %s4, 16, %s67, [#allocation9]
    $region21: #{_lambda_.5} parent=1 // pred_fallthru
      _
    // Predicated region
    $region22: #{_lambda_.5} parent=1 // pred_check
      _
    $region23: #{_lambda_.5} parent=1 // pred_check_branch
      %71 = sbr.rel (0) target = $region25
    $region24: #{_lambda_.5} parent=1 // pred_region
      %72 = dma.done [#allocation3], 4096
    $region25: #{_lambda_.5} parent=1 // pred_fallthru
      _
    // Predicated region
    $region26: #{_lambda_.5} parent=1 // pred_check
      _
    $region27: #{_lambda_.5} parent=1 // pred_check_branch
      %74 = sbr.rel (0) target = $region29
    $region28: #{_lambda_.5} parent=1 // pred_region
      %75 = dma.done [#allocation6], 8192
    $region29: #{_lambda_.5} parent=1 // pred_fallthru
      _
    // Predicated region
    $region30: #{_lambda_.5} parent=1 // pred_check
      _
    $region31: #{_lambda_.5} parent=1 // pred_check_branch
      %77 = sbr.rel (0) target = $region33
    $region32: #{_lambda_.5} parent=1 // pred_region
      %78 = dma.done [#allocation6], 1024
    $region33: #{_lambda_.5} parent=1 // pred_fallthru
      _
    // Predicated region
    $region34: #{_lambda_.5} parent=1 // pred_check
      _
    $region35: #{_lambda_.5} parent=1 // pred_check_branch
      %80 = sbr.rel (0) target = $region37
    $region36: #{_lambda_.5} parent=1 // pred_region
      %81 = dma.done [#allocation9], 16
    $region37: #{_lambda_.5} parent=1 // pred_fallthru
      _
    // Predicated region
    $region38: #{_lambda_.5} parent=1 // pred_check
      _
    $region39: #{_lambda_.5} parent=1 // pred_check_branch
      %83 = sbr.rel (0) target = $region41
    $region40: #{_lambda_.5} parent=1 // pred_region
      %84 = dma.done [#allocation9], 16
    $region41: #{_lambda_.5} parent=1 // pred_fallthru
      _
    %v86 = vld [vmem:[#allocation2] sm:$0xf]
    %v87 = vld [vmem:[#allocation2 + $0x4] sm:$0xf]
    %v88 = vld [vmem:[#allocation2 + $0x8] sm:$0xf]
    %v89 = vld [vmem:[#allocation2 + $0xc] sm:$0xf]
    %v90 = vld [vmem:[#allocation2 + $0x10] sm:$0xf]
    %v91 = vld [vmem:[#allocation2 + $0x14] sm:$0xf]
    %v92 = vld [vmem:[#allocation2 + $0x18] sm:$0xf]
    %v93 = vld [vmem:[#allocation2 + $0x1c] sm:$0xf]
    %v94 = vld [vmem:[#allocation2 + $0x20] sm:$0xf]
    %v95 = vld [vmem:[#allocation2 + $0x24] sm:$0xf]
    %v96 = vld [vmem:[#allocation2 + $0x28] sm:$0xf]
    %v97 = vld [vmem:[#allocation2 + $0x2c] sm:$0xf]
    %v98 = vld [vmem:[#allocation2 + $0x30] sm:$0xf]
    %v99 = vld [vmem:[#allocation2 + $0x34] sm:$0xf]
    %v100 = vld [vmem:[#allocation2 + $0x38] sm:$0xf]
    %v101 = vld [vmem:[#allocation2 + $0x3c] sm:$0xf]
    %v102 = vld [vmem:[#allocation2 + $0x40] sm:$0xf]
    %v103 = vld [vmem:[#allocation2 + $0x44] sm:$0xf]
    %v104 = vld [vmem:[#allocation2 + $0x48] sm:$0xf]
    %v105 = vld [vmem:[#allocation2 + $0x4c] sm:$0xf]
    %v106 = vld [vmem:[#allocation2 + $0x50] sm:$0xf]
    %v107 = vld [vmem:[#allocation2 + $0x54] sm:$0xf]
    %v108 = vld [vmem:[#allocation2 + $0x58] sm:$0xf]
    %v109 = vld [vmem:[#allocation2 + $0x5c] sm:$0xf]
    %v110 = vld [vmem:[#allocation2 + $0x60] sm:$0xf]
    %v111 = vld [vmem:[#allocation2 + $0x64] sm:$0xf]
    %v112 = vld [vmem:[#allocation2 + $0x68] sm:$0xf]
    %v113 = vld [vmem:[#allocation2 + $0x6c] sm:$0xf]
    %v114 = vld [vmem:[#allocation2 + $0x70] sm:$0xf]
    %v115 = vld [vmem:[#allocation2 + $0x74] sm:$0xf]
    %v116 = vld [vmem:[#allocation2 + $0x78] sm:$0xf]
    %v117 = vld [vmem:[#allocation2 + $0x7c] sm:$0xf]
    %v118 = vld [vmem:[#allocation2 + $0x80] sm:$0xf]
    %v119 = vld [vmem:[#allocation2 + $0x84] sm:$0xf]
    %v120 = vld [vmem:[#allocation2 + $0x88] sm:$0xf]
    %v121 = vld [vmem:[#allocation2 + $0x8c] sm:$0xf]
    %v122 = vld [vmem:[#allocation2 + $0x90] sm:$0xf]
    %v123 = vld [vmem:[#allocation2 + $0x94] sm:$0xf]
    %v124 = vld [vmem:[#allocation2 + $0x98] sm:$0xf]
    %v125 = vld [vmem:[#allocation2 + $0x9c] sm:$0xf]
    %v126 = vld [vmem:[#allocation2 + $0xa0] sm:$0xf]
    %v127 = vld [vmem:[#allocation2 + $0xa4] sm:$0xf]
    %v128 = vld [vmem:[#allocation2 + $0xa8] sm:$0xf]
    %v129 = vld [vmem:[#allocation2 + $0xac] sm:$0xf]
    %v130 = vld [vmem:[#allocation2 + $0xb0] sm:$0xf]
    %v131 = vld [vmem:[#allocation2 + $0xb4] sm:$0xf]
    %v132 = vld [vmem:[#allocation2 + $0xb8] sm:$0xf]
    %v133 = vld [vmem:[#allocation2 + $0xbc] sm:$0xf]
    %v134 = vld [vmem:[#allocation2 + $0xc0] sm:$0xf]
    %v135 = vld [vmem:[#allocation2 + $0xc4] sm:$0xf]
    %v136 = vld [vmem:[#allocation2 + $0xc8] sm:$0xf]
    %v137 = vld [vmem:[#allocation2 + $0xcc] sm:$0xf]
    %v138 = vld [vmem:[#allocation2 + $0xd0] sm:$0xf]
    %v139 = vld [vmem:[#allocation2 + $0xd4] sm:$0xf]
    %v140 = vld [vmem:[#allocation2 + $0xd8] sm:$0xf]
    %v141 = vld [vmem:[#allocation2 + $0xdc] sm:$0xf]
    %v142 = vld [vmem:[#allocation2 + $0xe0] sm:$0xf]
    %v143 = vld [vmem:[#allocation2 + $0xe4] sm:$0xf]
    %v144 = vld [vmem:[#allocation2 + $0xe8] sm:$0xf]
    %v145 = vld [vmem:[#allocation2 + $0xec] sm:$0xf]
    %v146 = vld [vmem:[#allocation2 + $0xf0] sm:$0xf]
    %v147 = vld [vmem:[#allocation2 + $0xf4] sm:$0xf]
    %v148 = vld [vmem:[#allocation2 + $0xf8] sm:$0xf]
    %v149 = vld [vmem:[#allocation2 + $0xfc] sm:$0xf]
    %v150 = vld [vmem:[#allocation7] sm:$0xf]
    %v151 = vld [vmem:[#allocation7 + $0x4] sm:$0xf]
    %v152 = vld [vmem:[#allocation7 + $0x8] sm:$0xf]
    %v153 = vld [vmem:[#allocation7 + $0xc] sm:$0xf]
    %v154 = vld [vmem:[#allocation7 + $0x10] sm:$0xf]
    %v155 = vld [vmem:[#allocation7 + $0x14] sm:$0xf]
    %v156 = vld [vmem:[#allocation7 + $0x18] sm:$0xf]
    %v157 = vld [vmem:[#allocation7 + $0x1c] sm:$0xf]
    %v158 = vld [vmem:[#allocation7 + $0x20] sm:$0xf]
    %v159 = vld [vmem:[#allocation7 + $0x24] sm:$0xf]
    %v160 = vld [vmem:[#allocation7 + $0x28] sm:$0xf]
    %v161 = vld [vmem:[#allocation7 + $0x2c] sm:$0xf]
    %v162 = vld [vmem:[#allocation7 + $0x30] sm:$0xf]
    %v163 = vld [vmem:[#allocation7 + $0x34] sm:$0xf]
    %v164 = vld [vmem:[#allocation7 + $0x38] sm:$0xf]
    %v165 = vld [vmem:[#allocation7 + $0x3c] sm:$0xf]
    %v230 = vunpack.c.l.b16 %v86
    %v231 = vunpack.c.l.b16 %v87
    %v232 = vunpack.c.l.b16 %v88
    %v233 = vunpack.c.l.b16 %v89
    %v234 = vunpack.c.l.b16 %v90
    %v235 = vunpack.c.l.b16 %v91
    %v236 = vunpack.c.l.b16 %v92
    %v237 = vunpack.c.l.b16 %v93
    %v238 = vunpack.c.l.b16 %v94
    %v239 = vunpack.c.l.b16 %v95
    %v240 = vunpack.c.l.b16 %v96
    %v241 = vunpack.c.l.b16 %v97
    %v242 = vunpack.c.l.b16 %v98
    %v243 = vunpack.c.l.b16 %v99
    %v244 = vunpack.c.l.b16 %v100
    %v245 = vunpack.c.l.b16 %v101
    %v246 = vunpack.c.l.b16 %v102
    %v247 = vunpack.c.l.b16 %v103
    %v248 = vunpack.c.l.b16 %v104
    %v249 = vunpack.c.l.b16 %v105
    %v250 = vunpack.c.l.b16 %v106
    %v251 = vunpack.c.l.b16 %v107
    %v252 = vunpack.c.l.b16 %v108
    %v253 = vunpack.c.l.b16 %v109
    %v254 = vunpack.c.l.b16 %v110
    %v255 = vunpack.c.l.b16 %v111
    %v256 = vunpack.c.l.b16 %v112
    %v257 = vunpack.c.l.b16 %v113
    %v258 = vunpack.c.l.b16 %v114
    %v259 = vunpack.c.l.b16 %v115
    %v260 = vunpack.c.l.b16 %v116
    %v261 = vunpack.c.l.b16 %v117
    %v262 = vunpack.c.l.b16 %v118
    %v263 = vunpack.c.l.b16 %v119
    %v264 = vunpack.c.l.b16 %v120
    %v265 = vunpack.c.l.b16 %v121
    %v266 = vunpack.c.l.b16 %v122
    %v267 = vunpack.c.l.b16 %v123
    %v268 = vunpack.c.l.b16 %v124
    %v269 = vunpack.c.l.b16 %v125
    %v270 = vunpack.c.l.b16 %v126
    %v271 = vunpack.c.l.b16 %v127
    %v272 = vunpack.c.l.b16 %v128
    %v273 = vunpack.c.l.b16 %v129
    %v274 = vunpack.c.l.b16 %v130
    %v275 = vunpack.c.l.b16 %v131
    %v276 = vunpack.c.l.b16 %v132
    %v277 = vunpack.c.l.b16 %v133
    %v278 = vunpack.c.l.b16 %v134
    %v279 = vunpack.c.l.b16 %v135
    %v280 = vunpack.c.l.b16 %v136
    %v281 = vunpack.c.l.b16 %v137
    %v282 = vunpack.c.l.b16 %v138
    %v283 = vunpack.c.l.b16 %v139
    %v284 = vunpack.c.l.b16 %v140
    %v285 = vunpack.c.l.b16 %v141
    %v286 = vunpack.c.l.b16 %v142
    %v287 = vunpack.c.l.b16 %v143
    %v288 = vunpack.c.l.b16 %v144
    %v289 = vunpack.c.l.b16 %v145
    %v290 = vunpack.c.l.b16 %v146
    %v291 = vunpack.c.l.b16 %v147
    %v292 = vunpack.c.l.b16 %v148
    %v293 = vunpack.c.l.b16 %v149
    %v294 = vpack.c.b16 %v231, %v230
    %v295 = vpack.c.b16 %v233, %v232
    %v296 = vpack.c.b16 %v235, %v234
    %v297 = vpack.c.b16 %v237, %v236
    %v298 = vpack.c.b16 %v239, %v238
    %v299 = vpack.c.b16 %v241, %v240
    %v300 = vpack.c.b16 %v243, %v242
    %v301 = vpack.c.b16 %v245, %v244
    %v302 = vpack.c.b16 %v247, %v246
    %v303 = vpack.c.b16 %v249, %v248
    %v304 = vpack.c.b16 %v251, %v250
    %v305 = vpack.c.b16 %v253, %v252
    %v306 = vpack.c.b16 %v255, %v254
    %v307 = vpack.c.b16 %v257, %v256
    %v308 = vpack.c.b16 %v259, %v258
    %v309 = vpack.c.b16 %v261, %v260
    %v310 = vpack.c.b16 %v263, %v262
    %v311 = vpack.c.b16 %v265, %v264
    %v312 = vpack.c.b16 %v267, %v266
    %v313 = vpack.c.b16 %v269, %v268
    %v314 = vpack.c.b16 %v271, %v270
    %v315 = vpack.c.b16 %v273, %v272
    %v316 = vpack.c.b16 %v275, %v274
    %v317 = vpack.c.b16 %v277, %v276
    %v318 = vpack.c.b16 %v279, %v278
    %v319 = vpack.c.b16 %v281, %v280
    %v320 = vpack.c.b16 %v283, %v282
    %v321 = vpack.c.b16 %v285, %v284
    %v322 = vpack.c.b16 %v287, %v286
    %v323 = vpack.c.b16 %v289, %v288
    %v324 = vpack.c.b16 %v291, %v290
    %v325 = vpack.c.b16 %v293, %v292
    %v374 = vunpack.c.l.b16 %v150
    %v375 = vunpack.c.l.b16 %v151
    %v376 = vunpack.c.l.b16 %v152
    %v377 = vunpack.c.l.b16 %v153
    %v378 = vunpack.c.l.b16 %v154
    %v379 = vunpack.c.l.b16 %v155
    %v380 = vunpack.c.l.b16 %v156
    %v381 = vunpack.c.l.b16 %v157
    %v382 = vunpack.c.l.b16 %v158
    %v383 = vunpack.c.l.b16 %v159
    %v384 = vunpack.c.l.b16 %v160
    %v385 = vunpack.c.l.b16 %v161
    %v386 = vunpack.c.l.b16 %v162
    %v387 = vunpack.c.l.b16 %v163
    %v388 = vunpack.c.l.b16 %v164
    %v389 = vunpack.c.l.b16 %v165
    %v390 = vpack.c.b16 %v375, %v374
    %v391 = vpack.c.b16 %v377, %v376
    %v392 = vpack.c.b16 %v379, %v378
    %v393 = vpack.c.b16 %v381, %v380
    %v394 = vpack.c.b16 %v383, %v382
    %v395 = vpack.c.b16 %v385, %v384
    %v396 = vpack.c.b16 %v387, %v386
    %v397 = vpack.c.b16 %v389, %v388
    %406 = vmatprep.subr.bf16.mxu0 0
    %407 = vmatpush1.bf16.msra.mxu0 %v390
    %408 = vmatprep.subr.bf16.mxu0 0
    %409 = vmatpush1.bf16.msra.mxu0 %v391
    %410 = vmatprep.subr.bf16.mxu0 0
    %411 = vmatpush1.bf16.msra.mxu0 %v392
    %412 = vmatprep.subr.bf16.mxu0 0
    %413 = vmatpush1.bf16.msra.mxu0 %v393
    %414 = vmatprep.subr.bf16.mxu0 0
    %415 = vmatpush1.bf16.msra.mxu0 %v394
    %416 = vmatprep.subr.bf16.mxu0 0
    %417 = vmatpush1.bf16.msra.mxu0 %v395
    %418 = vmatprep.subr.bf16.mxu0 0
    %419 = vmatpush1.bf16.msra.mxu0 %v396
    %420 = vmatprep.subr.bf16.mxu0 0
    %421 = vmatpush1.bf16.msra.mxu0 %v397
    %422 = vmatprep.subr.bf16.mxu0 0
    %423 = vmatpush1.bf16.msra.mxu0 0
    %424 = vmatprep.subr.bf16.mxu0 0
    %425 = vmatpush1.bf16.msra.mxu0 0
    %426 = vmatprep.subr.bf16.mxu0 0
    %427 = vmatpush1.bf16.msra.mxu0 0
    %428 = vmatprep.subr.bf16.mxu0 0
    %429 = vmatpush1.bf16.msra.mxu0 0
    %430 = vmatprep.subr.bf16.mxu0 0
    %431 = vmatpush1.bf16.msra.mxu0 0
    %432 = vmatprep.subr.bf16.mxu0 0
    %433 = vmatpush1.bf16.msra.mxu0 0
    %434 = vmatprep.subr.bf16.mxu0 0
    %435 = vmatpush1.bf16.msra.mxu0 0
    %436 = vmatprep.subr.bf16.mxu0 0
    %437 = vmatpush1.bf16.msra.mxu0 0
    %438 = vmatprep.mubr.bf16.mxu0 0
    %439 = vmatmul.mubr.bf16.gmra.mrb[0].mxu0 %v294
    %v440 = vpop.f32.mrb[0].mxu0
    %v441 = vadd.f32 0.0, %v440
    %v442 = vpop.f32.mrb[0].mxu0
    %v443 = vpop.f32.mrb[0].mxu0
    %v444 = vadd.f32 0.0, %v443
    %v445 = vpop.f32.mrb[0].mxu0
    %446 = vmatprep.mubr.bf16.mxu0 0
    %447 = vmatmul.mubr.bf16.gmra.mrb[0].mxu0 %v295
    %v448 = vpop.f32.mrb[0].mxu0
    %v449 = vadd.f32 0.0, %v448
    %v450 = vpop.f32.mrb[0].mxu0
    %v451 = vpop.f32.mrb[0].mxu0
    %v452 = vadd.f32 0.0, %v451
    %v453 = vpop.f32.mrb[0].mxu0
    %454 = vmatprep.mubr.bf16.mxu0 0
    %455 = vmatmul.mubr.bf16.gmra.mrb[0].mxu0 %v296
    %v456 = vpop.f32.mrb[0].mxu0
    %v457 = vadd.f32 0.0, %v456
    %v458 = vpop.f32.mrb[0].mxu0
    %v459 = vpop.f32.mrb[0].mxu0
    %v460 = vadd.f32 0.0, %v459
    %v461 = vpop.f32.mrb[0].mxu0
    %462 = vmatprep.mubr.bf16.mxu0 0
    %463 = vmatmul.mubr.bf16.gmra.mrb[0].mxu0 %v297
    %v464 = vpop.f32.mrb[0].mxu0
    %v465 = vadd.f32 0.0, %v464
    %v466 = vpop.f32.mrb[0].mxu0
    %v467 = vpop.f32.mrb[0].mxu0
    %v468 = vadd.f32 0.0, %v467
    %v469 = vpop.f32.mrb[0].mxu0
    %470 = vmatprep.mubr.bf16.mxu0 0
    %471 = vmatmul.mubr.bf16.gmra.mrb[0].mxu0 %v298
    %v472 = vpop.f32.mrb[0].mxu0
    %v473 = vadd.f32 0.0, %v472
    %v474 = vpop.f32.mrb[0].mxu0
    %v475 = vpop.f32.mrb[0].mxu0
    %v476 = vadd.f32 0.0, %v475
    %v477 = vpop.f32.mrb[0].mxu0
    %478 = vmatprep.mubr.bf16.mxu0 0
    %479 = vmatmul.mubr.bf16.gmra.mrb[0].mxu0 %v299
    %v480 = vpop.f32.mrb[0].mxu0
    %v481 = vadd.f32 0.0, %v480
    %v482 = vpop.f32.mrb[0].mxu0
    %v483 = vpop.f32.mrb[0].mxu0
    %v484 = vadd.f32 0.0, %v483
    %v485 = vpop.f32.mrb[0].mxu0
    %486 = vmatprep.mubr.bf16.mxu0 0
    %487 = vmatmul.mubr.bf16.gmra.mrb[0].mxu0 %v300
    %v488 = vpop.f32.mrb[0].mxu0
    %v489 = vadd.f32 0.0, %v488
    %v490 = vpop.f32.mrb[0].mxu0
    %v491 = vpop.f32.mrb[0].mxu0
    %v492 = vadd.f32 0.0, %v491
    %v493 = vpop.f32.mrb[0].mxu0
    %494 = vmatprep.mubr.bf16.mxu0 0
    %495 = vmatmul.mubr.bf16.gmra.mrb[0].mxu0 %v301
    %v496 = vpop.f32.mrb[0].mxu0
    %v497 = vadd.f32 0.0, %v496
    %v498 = vpop.f32.mrb[0].mxu0
    %v499 = vpop.f32.mrb[0].mxu0
    %v500 = vadd.f32 0.0, %v499
    %v501 = vpop.f32.mrb[0].mxu0
    %502 = vmatprep.mubr.bf16.mxu0 0
    %503 = vmatmul.mubr.bf16.gmra.mrb[0].mxu0 %v302
    %v504 = vpop.f32.mrb[0].mxu0
    %v505 = vadd.f32 0.0, %v504
    %v506 = vpop.f32.mrb[0].mxu0
    %v507 = vpop.f32.mrb[0].mxu0
    %v508 = vadd.f32 0.0, %v507
    %v509 = vpop.f32.mrb[0].mxu0
    %510 = vmatprep.mubr.bf16.mxu0 0
    %511 = vmatmul.mubr.bf16.gmra.mrb[0].mxu0 %v303
    %v512 = vpop.f32.mrb[0].mxu0
    %v513 = vadd.f32 0.0, %v512
    %v514 = vpop.f32.mrb[0].mxu0
    %v515 = vpop.f32.mrb[0].mxu0
    %v516 = vadd.f32 0.0, %v515
    %v517 = vpop.f32.mrb[0].mxu0
    %518 = vmatprep.mubr.bf16.mxu0 0
    %519 = vmatmul.mubr.bf16.gmra.mrb[0].mxu0 %v304
    %v520 = vpop.f32.mrb[0].mxu0
    %v521 = vadd.f32 0.0, %v520
    %v522 = vpop.f32.mrb[0].mxu0
    %v523 = vpop.f32.mrb[0].mxu0
    %v524 = vadd.f32 0.0, %v523
    %v525 = vpop.f32.mrb[0].mxu0
    %526 = vmatprep.mubr.bf16.mxu0 0
    %527 = vmatmul.mubr.bf16.gmra.mrb[0].mxu0 %v305
    %v528 = vpop.f32.mrb[0].mxu0
    %v529 = vadd.f32 0.0, %v528
    %v530 = vpop.f32.mrb[0].mxu0
    %v531 = vpop.f32.mrb[0].mxu0
    %v532 = vadd.f32 0.0, %v531
    %v533 = vpop.f32.mrb[0].mxu0
    %534 = vmatprep.mubr.bf16.mxu0 0
    %535 = vmatmul.mubr.bf16.gmra.mrb[0].mxu0 %v306
    %v536 = vpop.f32.mrb[0].mxu0
    %v537 = vadd.f32 0.0, %v536
    %v538 = vpop.f32.mrb[0].mxu0
    %v539 = vpop.f32.mrb[0].mxu0
    %v540 = vadd.f32 0.0, %v539
    %v541 = vpop.f32.mrb[0].mxu0
    %542 = vmatprep.mubr.bf16.mxu0 0
    %543 = vmatmul.mubr.bf16.gmra.mrb[0].mxu0 %v307
    %v544 = vpop.f32.mrb[0].mxu0
    %v545 = vadd.f32 0.0, %v544
    %v546 = vpop.f32.mrb[0].mxu0
    %v547 = vpop.f32.mrb[0].mxu0
    %v548 = vadd.f32 0.0, %v547
    %v549 = vpop.f32.mrb[0].mxu0
    %550 = vmatprep.mubr.bf16.mxu0 0
    %551 = vmatmul.mubr.bf16.gmra.mrb[0].mxu0 %v308
    %v552 = vpop.f32.mrb[0].mxu0
    %v553 = vadd.f32 0.0, %v552
    %v554 = vpop.f32.mrb[0].mxu0
    %v555 = vpop.f32.mrb[0].mxu0
    %v556 = vadd.f32 0.0, %v555
    %v557 = vpop.f32.mrb[0].mxu0
    %558 = vmatprep.mubr.bf16.mxu0 0
    %559 = vmatmul.mubr.bf16.gmra.mrb[0].mxu0 %v309
    %v560 = vpop.f32.mrb[0].mxu0
    %v561 = vadd.f32 0.0, %v560
    %v562 = vpop.f32.mrb[0].mxu0
    %v563 = vpop.f32.mrb[0].mxu0
    %v564 = vadd.f32 0.0, %v563
    %v565 = vpop.f32.mrb[0].mxu0
    %566 = vmatprep.mubr.bf16.mxu0 0
    %567 = vmatmul.mubr.bf16.gmra.mrb[0].mxu0 %v310
    %v568 = vpop.f32.mrb[0].mxu0
    %v569 = vadd.f32 0.0, %v568
    %v570 = vpop.f32.mrb[0].mxu0
    %v571 = vpop.f32.mrb[0].mxu0
    %v572 = vadd.f32 0.0, %v571
    %v573 = vpop.f32.mrb[0].mxu0
    %574 = vmatprep.mubr.bf16.mxu0 0
    %575 = vmatmul.mubr.bf16.gmra.mrb[0].mxu0 %v311
    %v576 = vpop.f32.mrb[0].mxu0
    %v577 = vadd.f32 0.0, %v576
    %v578 = vpop.f32.mrb[0].mxu0
    %v579 = vpop.f32.mrb[0].mxu0
    %v580 = vadd.f32 0.0, %v579
    %v581 = vpop.f32.mrb[0].mxu0
    %582 = vmatprep.mubr.bf16.mxu0 0
    %583 = vmatmul.mubr.bf16.gmra.mrb[0].mxu0 %v312
    %v584 = vpop.f32.mrb[0].mxu0
    %v585 = vadd.f32 0.0, %v584
    %v586 = vpop.f32.mrb[0].mxu0
    %v587 = vpop.f32.mrb[0].mxu0
    %v588 = vadd.f32 0.0, %v587
    %v589 = vpop.f32.mrb[0].mxu0
    %590 = vmatprep.mubr.bf16.mxu0 0
    %591 = vmatmul.mubr.bf16.gmra.mrb[0].mxu0 %v313
    %v592 = vpop.f32.mrb[0].mxu0
    %v593 = vadd.f32 0.0, %v592
    %v594 = vpop.f32.mrb[0].mxu0
    %v595 = vpop.f32.mrb[0].mxu0
    %v596 = vadd.f32 0.0, %v595
    %v597 = vpop.f32.mrb[0].mxu0
    %598 = vmatprep.mubr.bf16.mxu0 0
    %599 = vmatmul.mubr.bf16.gmra.mrb[0].mxu0 %v314
    %v600 = vpop.f32.mrb[0].mxu0
    %v601 = vadd.f32 0.0, %v600
    %v602 = vpop.f32.mrb[0].mxu0
    %v603 = vpop.f32.mrb[0].mxu0
    %v604 = vadd.f32 0.0, %v603
    %v605 = vpop.f32.mrb[0].mxu0
    %606 = vmatprep.mubr.bf16.mxu0 0
    %607 = vmatmul.mubr.bf16.gmra.mrb[0].mxu0 %v315
    %v608 = vpop.f32.mrb[0].mxu0
    %v609 = vadd.f32 0.0, %v608
    %v610 = vpop.f32.mrb[0].mxu0
    %v611 = vpop.f32.mrb[0].mxu0
    %v612 = vadd.f32 0.0, %v611
    %v613 = vpop.f32.mrb[0].mxu0
    %614 = vmatprep.mubr.bf16.mxu0 0
    %615 = vmatmul.mubr.bf16.gmra.mrb[0].mxu0 %v316
    %v616 = vpop.f32.mrb[0].mxu0
    %v617 = vadd.f32 0.0, %v616
    %v618 = vpop.f32.mrb[0].mxu0
    %v619 = vpop.f32.mrb[0].mxu0
    %v620 = vadd.f32 0.0, %v619
    %v621 = vpop.f32.mrb[0].mxu0
    %622 = vmatprep.mubr.bf16.mxu0 0
    %623 = vmatmul.mubr.bf16.gmra.mrb[0].mxu0 %v317
    %v624 = vpop.f32.mrb[0].mxu0
    %v625 = vadd.f32 0.0, %v624
    %v626 = vpop.f32.mrb[0].mxu0
    %v627 = vpop.f32.mrb[0].mxu0
    %v628 = vadd.f32 0.0, %v627
    %v629 = vpop.f32.mrb[0].mxu0
    %630 = vmatprep.mubr.bf16.mxu0 0
    %631 = vmatmul.mubr.bf16.gmra.mrb[0].mxu0 %v318
    %v632 = vpop.f32.mrb[0].mxu0
    %v633 = vadd.f32 0.0, %v632
    %v634 = vpop.f32.mrb[0].mxu0
    %v635 = vpop.f32.mrb[0].mxu0
    %v636 = vadd.f32 0.0, %v635
    %v637 = vpop.f32.mrb[0].mxu0
    %638 = vmatprep.mubr.bf16.mxu0 0
    %639 = vmatmul.mubr.bf16.gmra.mrb[0].mxu0 %v319
    %v640 = vpop.f32.mrb[0].mxu0
    %v641 = vadd.f32 0.0, %v640
    %v642 = vpop.f32.mrb[0].mxu0
    %v643 = vpop.f32.mrb[0].mxu0
    %v644 = vadd.f32 0.0, %v643
    %v645 = vpop.f32.mrb[0].mxu0
    %646 = vmatprep.mubr.bf16.mxu0 0
    %647 = vmatmul.mubr.bf16.gmra.mrb[0].mxu0 %v320
    %v648 = vpop.f32.mrb[0].mxu0
    %v649 = vadd.f32 0.0, %v648
    %v650 = vpop.f32.mrb[0].mxu0
    %v651 = vpop.f32.mrb[0].mxu0
    %v652 = vadd.f32 0.0, %v651
    %v653 = vpop.f32.mrb[0].mxu0
    %654 = vmatprep.mubr.bf16.mxu0 0
    %655 = vmatmul.mubr.bf16.gmra.mrb[0].mxu0 %v321
    %v656 = vpop.f32.mrb[0].mxu0
    %v657 = vadd.f32 0.0, %v656
    %v658 = vpop.f32.mrb[0].mxu0
    %v659 = vpop.f32.mrb[0].mxu0
    %v660 = vadd.f32 0.0, %v659
    %v661 = vpop.f32.mrb[0].mxu0
    %662 = vmatprep.mubr.bf16.mxu0 0
    %663 = vmatmul.mubr.bf16.gmra.mrb[0].mxu0 %v322
    %v664 = vpop.f32.mrb[0].mxu0
    %v665 = vadd.f32 0.0, %v664
    %v666 = vpop.f32.mrb[0].mxu0
    %v667 = vpop.f32.mrb[0].mxu0
    %v668 = vadd.f32 0.0, %v667
    %v669 = vpop.f32.mrb[0].mxu0
    %670 = vmatprep.mubr.bf16.mxu0 0
    %671 = vmatmul.mubr.bf16.gmra.mrb[0].mxu0 %v323
    %v672 = vpop.f32.mrb[0].mxu0
    %v673 = vadd.f32 0.0, %v672
    %v674 = vpop.f32.mrb[0].mxu0
    %v675 = vpop.f32.mrb[0].mxu0
    %v676 = vadd.f32 0.0, %v675
    %v677 = vpop.f32.mrb[0].mxu0
    %678 = vmatprep.mubr.bf16.mxu0 0
    %679 = vmatmul.mubr.bf16.gmra.mrb[0].mxu0 %v324
    %v680 = vpop.f32.mrb[0].mxu0
    %v681 = vadd.f32 0.0, %v680
    %v682 = vpop.f32.mrb[0].mxu0
    %v683 = vpop.f32.mrb[0].mxu0
    %v684 = vadd.f32 0.0, %v683
    %v685 = vpop.f32.mrb[0].mxu0
    %686 = vmatprep.mubr.bf16.mxu0 0
    %687 = vmatmul.mubr.bf16.gmra.mrb[0].mxu0 %v325
    %v688 = vpop.f32.mrb[0].mxu0
    %v689 = vadd.f32 0.0, %v688
    %v690 = vpop.f32.mrb[0].mxu0
    %v691 = vpop.f32.mrb[0].mxu0
    %v692 = vadd.f32 0.0, %v691
    %v693 = vpop.f32.mrb[0].mxu0
    %694 = vdwg.mxu0
    %v695 = vld [vmem:[#allocation8] sm:$0x1]
    %v697 = vlaneseq
    %v698 = vshrl.u32 %v697, 7
    %v699 = vsub.s32 0, %v698
    %v700 = vrot.slane %v695, %v699
    %v702 = vmul.f32 %v441, %v700
    %v703 = vmul.f32 %v444, %v700
    %v704 = vmul.f32 %v449, %v700
    %v705 = vmul.f32 %v452, %v700
    %v706 = vmul.f32 %v457, %v700
    %v707 = vmul.f32 %v460, %v700
    %v708 = vmul.f32 %v465, %v700
    %v709 = vmul.f32 %v468, %v700
    %v710 = vmul.f32 %v473, %v700
    %v711 = vmul.f32 %v476, %v700
    %v712 = vmul.f32 %v481, %v700
    %v713 = vmul.f32 %v484, %v700
    %v714 = vmul.f32 %v489, %v700
    %v715 = vmul.f32 %v492, %v700
    %v716 = vmul.f32 %v497, %v700
    %v717 = vmul.f32 %v500, %v700
    %v718 = vmul.f32 %v505, %v700
    %v719 = vmul.f32 %v508, %v700
    %v720 = vmul.f32 %v513, %v700
    %v721 = vmul.f32 %v516, %v700
    %v722 = vmul.f32 %v521, %v700
    %v723 = vmul.f32 %v524, %v700
    %v724 = vmul.f32 %v529, %v700
    %v725 = vmul.f32 %v532, %v700
    %v726 = vmul.f32 %v537, %v700
    %v727 = vmul.f32 %v540, %v700
    %v728 = vmul.f32 %v545, %v700
    %v729 = vmul.f32 %v548, %v700
    %v730 = vmul.f32 %v553, %v700
    %v731 = vmul.f32 %v556, %v700
    %v732 = vmul.f32 %v561, %v700
    %v733 = vmul.f32 %v564, %v700
    %v734 = vmul.f32 %v569, %v700
    %v735 = vmul.f32 %v572, %v700
    %v736 = vmul.f32 %v577, %v700
    %v737 = vmul.f32 %v580, %v700
    %v738 = vmul.f32 %v585, %v700
    %v739 = vmul.f32 %v588, %v700
    %v740 = vmul.f32 %v593, %v700
    %v741 = vmul.f32 %v596, %v700
    %v742 = vmul.f32 %v601, %v700
    %v743 = vmul.f32 %v604, %v700
    %v744 = vmul.f32 %v609, %v700
    %v745 = vmul.f32 %v612, %v700
    %v746 = vmul.f32 %v617, %v700
    %v747 = vmul.f32 %v620, %v700
    %v748 = vmul.f32 %v625, %v700
    %v749 = vmul.f32 %v628, %v700
    %v750 = vmul.f32 %v633, %v700
    %v751 = vmul.f32 %v636, %v700
    %v752 = vmul.f32 %v641, %v700
    %v753 = vmul.f32 %v644, %v700
    %v754 = vmul.f32 %v649, %v700
    %v755 = vmul.f32 %v652, %v700
    %v756 = vmul.f32 %v657, %v700
    %v757 = vmul.f32 %v660, %v700
    %v758 = vmul.f32 %v665, %v700
    %v759 = vmul.f32 %v668, %v700
    %v760 = vmul.f32 %v673, %v700
    %v761 = vmul.f32 %v676, %v700
    %v762 = vmul.f32 %v681, %v700
    %v763 = vmul.f32 %v684, %v700
    %v764 = vmul.f32 %v689, %v700
    %v765 = vmul.f32 %v692, %v700
    %v766 = vld [vmem:[#allocation10] sm:$0x1]
    %v768 = vlaneseq
    %v769 = vshrl.u32 %v768, 7
    %v770 = vsub.s32 0, %v769
    %v771 = vrot.slane %v766, %v770
    %v773 = vadd.f32 %v702, %v771
    %v774 = vadd.f32 %v703, %v771
    %v775 = vadd.f32 %v704, %v771
    %v776 = vadd.f32 %v705, %v771
    %v777 = vadd.f32 %v706, %v771
    %v778 = vadd.f32 %v707, %v771
    %v779 = vadd.f32 %v708, %v771
    %v780 = vadd.f32 %v709, %v771
    %v781 = vadd.f32 %v710, %v771
    %v782 = vadd.f32 %v711, %v771
    %v783 = vadd.f32 %v712, %v771
    %v784 = vadd.f32 %v713, %v771
    %v785 = vadd.f32 %v714, %v771
    %v786 = vadd.f32 %v715, %v771
    %v787 = vadd.f32 %v716, %v771
    %v788 = vadd.f32 %v717, %v771
    %v789 = vadd.f32 %v718, %v771
    %v790 = vadd.f32 %v719, %v771
    %v791 = vadd.f32 %v720, %v771
    %v792 = vadd.f32 %v721, %v771
    %v793 = vadd.f32 %v722, %v771
    %v794 = vadd.f32 %v723, %v771
    %v795 = vadd.f32 %v724, %v771
    %v796 = vadd.f32 %v725, %v771
    %v797 = vadd.f32 %v726, %v771
    %v798 = vadd.f32 %v727, %v771
    %v799 = vadd.f32 %v728, %v771
    %v800 = vadd.f32 %v729, %v771
    %v801 = vadd.f32 %v730, %v771
    %v802 = vadd.f32 %v731, %v771
    %v803 = vadd.f32 %v732, %v771
    %v804 = vadd.f32 %v733, %v771
    %v805 = vadd.f32 %v734, %v771
    %v806 = vadd.f32 %v735, %v771
    %v807 = vadd.f32 %v736, %v771
    %v808 = vadd.f32 %v737, %v771
    %v809 = vadd.f32 %v738, %v771
    %v810 = vadd.f32 %v739, %v771
    %v811 = vadd.f32 %v740, %v771
    %v812 = vadd.f32 %v741, %v771
    %v813 = vadd.f32 %v742, %v771
    %v814 = vadd.f32 %v743, %v771
    %v815 = vadd.f32 %v744, %v771
    %v816 = vadd.f32 %v745, %v771
    %v817 = vadd.f32 %v746, %v771
    %v818 = vadd.f32 %v747, %v771
    %v819 = vadd.f32 %v748, %v771
    %v820 = vadd.f32 %v749, %v771
    %v821 = vadd.f32 %v750, %v771
    %v822 = vadd.f32 %v751, %v771
    %v823 = vadd.f32 %v752, %v771
    %v824 = vadd.f32 %v753, %v771
    %v825 = vadd.f32 %v754, %v771
    %v826 = vadd.f32 %v755, %v771
    %v827 = vadd.f32 %v756, %v771
    %v828 = vadd.f32 %v757, %v771
    %v829 = vadd.f32 %v758, %v771
    %v830 = vadd.f32 %v759, %v771
    %v831 = vadd.f32 %v760, %v771
    %v832 = vadd.f32 %v761, %v771
    %v833 = vadd.f32 %v762, %v771
    %v834 = vadd.f32 %v763, %v771
    %v835 = vadd.f32 %v764, %v771
    %v836 = vadd.f32 %v765, %v771
    %v837 = vmax.f32 %v773, 0.0
    %v838 = vmax.f32 %v774, 0.0
    %v839 = vmax.f32 %v775, 0.0
    %v840 = vmax.f32 %v776, 0.0
    %v841 = vmax.f32 %v777, 0.0
    %v842 = vmax.f32 %v778, 0.0
    %v843 = vmax.f32 %v779, 0.0
    %v844 = vmax.f32 %v780, 0.0
    %v845 = vmax.f32 %v781, 0.0
    %v846 = vmax.f32 %v782, 0.0
    %v847 = vmax.f32 %v783, 0.0
    %v848 = vmax.f32 %v784, 0.0
    %v849 = vmax.f32 %v785, 0.0
    %v850 = vmax.f32 %v786, 0.0
    %v851 = vmax.f32 %v787, 0.0
    %v852 = vmax.f32 %v788, 0.0
    %v853 = vmax.f32 %v789, 0.0
    %v854 = vmax.f32 %v790, 0.0
    %v855 = vmax.f32 %v791, 0.0
    %v856 = vmax.f32 %v792, 0.0
    %v857 = vmax.f32 %v793, 0.0
    %v858 = vmax.f32 %v794, 0.0
    %v859 = vmax.f32 %v795, 0.0
    %v860 = vmax.f32 %v796, 0.0
    %v861 = vmax.f32 %v797, 0.0
    %v862 = vmax.f32 %v798, 0.0
    %v863 = vmax.f32 %v799, 0.0
    %v864 = vmax.f32 %v800, 0.0
    %v865 = vmax.f32 %v801, 0.0
    %v866 = vmax.f32 %v802, 0.0
    %v867 = vmax.f32 %v803, 0.0
    %v868 = vmax.f32 %v804, 0.0
    %v869 = vmax.f32 %v805, 0.0
    %v870 = vmax.f32 %v806, 0.0
    %v871 = vmax.f32 %v807, 0.0
    %v872 = vmax.f32 %v808, 0.0
    %v873 = vmax.f32 %v809, 0.0
    %v874 = vmax.f32 %v810, 0.0
    %v875 = vmax.f32 %v811, 0.0
    %v876 = vmax.f32 %v812, 0.0
    %v877 = vmax.f32 %v813, 0.0
    %v878 = vmax.f32 %v814, 0.0
    %v879 = vmax.f32 %v815, 0.0
    %v880 = vmax.f32 %v816, 0.0
    %v881 = vmax.f32 %v817, 0.0
    %v882 = vmax.f32 %v818, 0.0
    %v883 = vmax.f32 %v819, 0.0
    %v884 = vmax.f32 %v820, 0.0
    %v885 = vmax.f32 %v821, 0.0
    %v886 = vmax.f32 %v822, 0.0
    %v887 = vmax.f32 %v823, 0.0
    %v888 = vmax.f32 %v824, 0.0
    %v889 = vmax.f32 %v825, 0.0
    %v890 = vmax.f32 %v826, 0.0
    %v891 = vmax.f32 %v827, 0.0
    %v892 = vmax.f32 %v828, 0.0
    %v893 = vmax.f32 %v829, 0.0
    %v894 = vmax.f32 %v830, 0.0
    %v895 = vmax.f32 %v831, 0.0
    %v896 = vmax.f32 %v832, 0.0
    %v897 = vmax.f32 %v833, 0.0
    %v898 = vmax.f32 %v834, 0.0
    %v899 = vmax.f32 %v835, 0.0
    %v900 = vmax.f32 %v836, 0.0
    %v901 = vld [vmem:[#allocation5] sm:$0xff]
    %v902 = vld [vmem:[#allocation5 + $0x8] sm:$0xff]
    %v903 = vld [vmem:[#allocation5 + $0x10] sm:$0xff]
    %v904 = vld [vmem:[#allocation5 + $0x18] sm:$0xff]
    %v905 = vld [vmem:[#allocation5 + $0x20] sm:$0xff]
    %v906 = vld [vmem:[#allocation5 + $0x28] sm:$0xff]
    %v907 = vld [vmem:[#allocation5 + $0x30] sm:$0xff]
    %v908 = vld [vmem:[#allocation5 + $0x38] sm:$0xff]
    %v909 = vld [vmem:[#allocation5 + $0x40] sm:$0xff]
    %v910 = vld [vmem:[#allocation5 + $0x48] sm:$0xff]
    %v911 = vld [vmem:[#allocation5 + $0x50] sm:$0xff]
    %v912 = vld [vmem:[#allocation5 + $0x58] sm:$0xff]
    %v913 = vld [vmem:[#allocation5 + $0x60] sm:$0xff]
    %v914 = vld [vmem:[#allocation5 + $0x68] sm:$0xff]
    %v915 = vld [vmem:[#allocation5 + $0x70] sm:$0xff]
    %v916 = vld [vmem:[#allocation5 + $0x78] sm:$0xff]
    %v917 = vld [vmem:[#allocation5 + $0x80] sm:$0xff]
    %v918 = vld [vmem:[#allocation5 + $0x88] sm:$0xff]
    %v919 = vld [vmem:[#allocation5 + $0x90] sm:$0xff]
    %v920 = vld [vmem:[#allocation5 + $0x98] sm:$0xff]
    %v921 = vld [vmem:[#allocation5 + $0xa0] sm:$0xff]
    %v922 = vld [vmem:[#allocation5 + $0xa8] sm:$0xff]
    %v923 = vld [vmem:[#allocation5 + $0xb0] sm:$0xff]
    %v924 = vld [vmem:[#allocation5 + $0xb8] sm:$0xff]
    %v925 = vld [vmem:[#allocation5 + $0xc0] sm:$0xff]
    %v926 = vld [vmem:[#allocation5 + $0xc8] sm:$0xff]
    %v927 = vld [vmem:[#allocation5 + $0xd0] sm:$0xff]
    %v928 = vld [vmem:[#allocation5 + $0xd8] sm:$0xff]
    %v929 = vld [vmem:[#allocation5 + $0xe0] sm:$0xff]
    %v930 = vld [vmem:[#allocation5 + $0xe8] sm:$0xff]
    %v931 = vld [vmem:[#allocation5 + $0xf0] sm:$0xff]
    %v932 = vld [vmem:[#allocation5 + $0xf8] sm:$0xff]
    %v933 = vld [vmem:[#allocation5 + $0x100] sm:$0xff]
    %v934 = vld [vmem:[#allocation5 + $0x108] sm:$0xff]
    %v935 = vld [vmem:[#allocation5 + $0x110] sm:$0xff]
    %v936 = vld [vmem:[#allocation5 + $0x118] sm:$0xff]
    %v937 = vld [vmem:[#allocation5 + $0x120] sm:$0xff]
    %v938 = vld [vmem:[#allocation5 + $0x128] sm:$0xff]
    %v939 = vld [vmem:[#allocation5 + $0x130] sm:$0xff]
    %v940 = vld [vmem:[#allocation5 + $0x138] sm:$0xff]
    %v941 = vld [vmem:[#allocation5 + $0x140] sm:$0xff]
    %v942 = vld [vmem:[#allocation5 + $0x148] sm:$0xff]
    %v943 = vld [vmem:[#allocation5 + $0x150] sm:$0xff]
    %v944 = vld [vmem:[#allocation5 + $0x158] sm:$0xff]
    %v945 = vld [vmem:[#allocation5 + $0x160] sm:$0xff]
    %v946 = vld [vmem:[#allocation5 + $0x168] sm:$0xff]
    %v947 = vld [vmem:[#allocation5 + $0x170] sm:$0xff]
    %v948 = vld [vmem:[#allocation5 + $0x178] sm:$0xff]
    %v949 = vld [vmem:[#allocation5 + $0x180] sm:$0xff]
    %v950 = vld [vmem:[#allocation5 + $0x188] sm:$0xff]
    %v951 = vld [vmem:[#allocation5 + $0x190] sm:$0xff]
    %v952 = vld [vmem:[#allocation5 + $0x198] sm:$0xff]
    %v953 = vld [vmem:[#allocation5 + $0x1a0] sm:$0xff]
    %v954 = vld [vmem:[#allocation5 + $0x1a8] sm:$0xff]
    %v955 = vld [vmem:[#allocation5 + $0x1b0] sm:$0xff]
    %v956 = vld [vmem:[#allocation5 + $0x1b8] sm:$0xff]
    %v957 = vld [vmem:[#allocation5 + $0x1c0] sm:$0xff]
    %v958 = vld [vmem:[#allocation5 + $0x1c8] sm:$0xff]
    %v959 = vld [vmem:[#allocation5 + $0x1d0] sm:$0xff]
    %v960 = vld [vmem:[#allocation5 + $0x1d8] sm:$0xff]
    %v961 = vld [vmem:[#allocation5 + $0x1e0] sm:$0xff]
    %v962 = vld [vmem:[#allocation5 + $0x1e8] sm:$0xff]
    %v963 = vld [vmem:[#allocation5 + $0x1f0] sm:$0xff]
    %v964 = vld [vmem:[#allocation5 + $0x1f8] sm:$0xff]
    %966 = vset.pattern.permute.xlu0 0
    %967 = vperm.xlu0 %966, %v901
    %v968 = vpop.permute.xlu0 %967
    %971 = vset.pattern.permute.xlu0 0
    %972 = vperm.xlu0 %971, %v902
    %v973 = vpop.permute.xlu0 %972
    %976 = vset.pattern.permute.xlu0 0
    %977 = vperm.xlu0 %976, %v903
    %v978 = vpop.permute.xlu0 %977
    %981 = vset.pattern.permute.xlu0 0
    %982 = vperm.xlu0 %981, %v904
    %v983 = vpop.permute.xlu0 %982
    %986 = vset.pattern.permute.xlu0 0
    %987 = vperm.xlu0 %986, %v905
    %v988 = vpop.permute.xlu0 %987
    %991 = vset.pattern.permute.xlu0 0
    %992 = vperm.xlu0 %991, %v906
    %v993 = vpop.permute.xlu0 %992
    %996 = vset.pattern.permute.xlu0 0
    %997 = vperm.xlu0 %996, %v907
    %v998 = vpop.permute.xlu0 %997
    %1001 = vset.pattern.permute.xlu0 0
    %1002 = vperm.xlu0 %1001, %v908
    %v1003 = vpop.permute.xlu0 %1002
    %1006 = vset.pattern.permute.xlu0 0
    %1007 = vperm.xlu0 %1006, %v909
    %v1008 = vpop.permute.xlu0 %1007
    %1011 = vset.pattern.permute.xlu0 0
    %1012 = vperm.xlu0 %1011, %v910
    %v1013 = vpop.permute.xlu0 %1012
    %1016 = vset.pattern.permute.xlu0 0
    %1017 = vperm.xlu0 %1016, %v911
    %v1018 = vpop.permute.xlu0 %1017
    %1021 = vset.pattern.permute.xlu0 0
    %1022 = vperm.xlu0 %1021, %v912
    %v1023 = vpop.permute.xlu0 %1022
    %1026 = vset.pattern.permute.xlu0 0
    %1027 = vperm.xlu0 %1026, %v913
    %v1028 = vpop.permute.xlu0 %1027
    %1031 = vset.pattern.permute.xlu0 0
    %1032 = vperm.xlu0 %1031, %v914
    %v1033 = vpop.permute.xlu0 %1032
    %1036 = vset.pattern.permute.xlu0 0
    %1037 = vperm.xlu0 %1036, %v915
    %v1038 = vpop.permute.xlu0 %1037
    %1041 = vset.pattern.permute.xlu0 0
    %1042 = vperm.xlu0 %1041, %v916
    %v1043 = vpop.permute.xlu0 %1042
    %1046 = vset.pattern.permute.xlu0 0
    %1047 = vperm.xlu0 %1046, %v917
    %v1048 = vpop.permute.xlu0 %1047
    %1051 = vset.pattern.permute.xlu0 0
    %1052 = vperm.xlu0 %1051, %v918
    %v1053 = vpop.permute.xlu0 %1052
    %1056 = vset.pattern.permute.xlu0 0
    %1057 = vperm.xlu0 %1056, %v919
    %v1058 = vpop.permute.xlu0 %1057
    %1061 = vset.pattern.permute.xlu0 0
    %1062 = vperm.xlu0 %1061, %v920
    %v1063 = vpop.permute.xlu0 %1062
    %1066 = vset.pattern.permute.xlu0 0
    %1067 = vperm.xlu0 %1066, %v921
    %v1068 = vpop.permute.xlu0 %1067
    %1071 = vset.pattern.permute.xlu0 0
    %1072 = vperm.xlu0 %1071, %v922
    %v1073 = vpop.permute.xlu0 %1072
    %1076 = vset.pattern.permute.xlu0 0
    %1077 = vperm.xlu0 %1076, %v923
    %v1078 = vpop.permute.xlu0 %1077
    %1081 = vset.pattern.permute.xlu0 0
    %1082 = vperm.xlu0 %1081, %v924
    %v1083 = vpop.permute.xlu0 %1082
    %1086 = vset.pattern.permute.xlu0 0
    %1087 = vperm.xlu0 %1086, %v925
    %v1088 = vpop.permute.xlu0 %1087
    %1091 = vset.pattern.permute.xlu0 0
    %1092 = vperm.xlu0 %1091, %v926
    %v1093 = vpop.permute.xlu0 %1092
    %1096 = vset.pattern.permute.xlu0 0
    %1097 = vperm.xlu0 %1096, %v927
    %v1098 = vpop.permute.xlu0 %1097
    %1101 = vset.pattern.permute.xlu0 0
    %1102 = vperm.xlu0 %1101, %v928
    %v1103 = vpop.permute.xlu0 %1102
    %1106 = vset.pattern.permute.xlu0 0
    %1107 = vperm.xlu0 %1106, %v929
    %v1108 = vpop.permute.xlu0 %1107
    %1111 = vset.pattern.permute.xlu0 0
    %1112 = vperm.xlu0 %1111, %v930
    %v1113 = vpop.permute.xlu0 %1112
    %1116 = vset.pattern.permute.xlu0 0
    %1117 = vperm.xlu0 %1116, %v931
    %v1118 = vpop.permute.xlu0 %1117
    %1121 = vset.pattern.permute.xlu0 0
    %1122 = vperm.xlu0 %1121, %v932
    %v1123 = vpop.permute.xlu0 %1122
    %1126 = vset.pattern.permute.xlu0 0
    %1127 = vperm.xlu0 %1126, %v933
    %v1128 = vpop.permute.xlu0 %1127
    %1131 = vset.pattern.permute.xlu0 0
    %1132 = vperm.xlu0 %1131, %v934
    %v1133 = vpop.permute.xlu0 %1132
    %1136 = vset.pattern.permute.xlu0 0
    %1137 = vperm.xlu0 %1136, %v935
    %v1138 = vpop.permute.xlu0 %1137
    %1141 = vset.pattern.permute.xlu0 0
    %1142 = vperm.xlu0 %1141, %v936
    %v1143 = vpop.permute.xlu0 %1142
    %1146 = vset.pattern.permute.xlu0 0
    %1147 = vperm.xlu0 %1146, %v937
    %v1148 = vpop.permute.xlu0 %1147
    %1151 = vset.pattern.permute.xlu0 0
    %1152 = vperm.xlu0 %1151, %v938
    %v1153 = vpop.permute.xlu0 %1152
    %1156 = vset.pattern.permute.xlu0 0
    %1157 = vperm.xlu0 %1156, %v939
    %v1158 = vpop.permute.xlu0 %1157
    %1161 = vset.pattern.permute.xlu0 0
    %1162 = vperm.xlu0 %1161, %v940
    %v1163 = vpop.permute.xlu0 %1162
    %1166 = vset.pattern.permute.xlu0 0
    %1167 = vperm.xlu0 %1166, %v941
    %v1168 = vpop.permute.xlu0 %1167
    %1171 = vset.pattern.permute.xlu0 0
    %1172 = vperm.xlu0 %1171, %v942
    %v1173 = vpop.permute.xlu0 %1172
    %1176 = vset.pattern.permute.xlu0 0
    %1177 = vperm.xlu0 %1176, %v943
    %v1178 = vpop.permute.xlu0 %1177
    %1181 = vset.pattern.permute.xlu0 0
    %1182 = vperm.xlu0 %1181, %v944
    %v1183 = vpop.permute.xlu0 %1182
    %1186 = vset.pattern.permute.xlu0 0
    %1187 = vperm.xlu0 %1186, %v945
    %v1188 = vpop.permute.xlu0 %1187
    %1191 = vset.pattern.permute.xlu0 0
    %1192 = vperm.xlu0 %1191, %v946
    %v1193 = vpop.permute.xlu0 %1192
    %1196 = vset.pattern.permute.xlu0 0
    %1197 = vperm.xlu0 %1196, %v947
    %v1198 = vpop.permute.xlu0 %1197
    %1201 = vset.pattern.permute.xlu0 0
    %1202 = vperm.xlu0 %1201, %v948
    %v1203 = vpop.permute.xlu0 %1202
    %1206 = vset.pattern.permute.xlu0 0
    %1207 = vperm.xlu0 %1206, %v949
    %v1208 = vpop.permute.xlu0 %1207
    %1211 = vset.pattern.permute.xlu0 0
    %1212 = vperm.xlu0 %1211, %v950
    %v1213 = vpop.permute.xlu0 %1212
    %1216 = vset.pattern.permute.xlu0 0
    %1217 = vperm.xlu0 %1216, %v951
    %v1218 = vpop.permute.xlu0 %1217
    %1221 = vset.pattern.permute.xlu0 0
    %1222 = vperm.xlu0 %1221, %v952
    %v1223 = vpop.permute.xlu0 %1222
    %1226 = vset.pattern.permute.xlu0 0
    %1227 = vperm.xlu0 %1226, %v953
    %v1228 = vpop.permute.xlu0 %1227
    %1231 = vset.pattern.permute.xlu0 0
    %1232 = vperm.xlu0 %1231, %v954
    %v1233 = vpop.permute.xlu0 %1232
    %1236 = vset.pattern.permute.xlu0 0
    %1237 = vperm.xlu0 %1236, %v955
    %v1238 = vpop.permute.xlu0 %1237
    %1241 = vset.pattern.permute.xlu0 0
    %1242 = vperm.xlu0 %1241, %v956
    %v1243 = vpop.permute.xlu0 %1242
    %1246 = vset.pattern.permute.xlu0 0
    %1247 = vperm.xlu0 %1246, %v957
    %v1248 = vpop.permute.xlu0 %1247
    %1251 = vset.pattern.permute.xlu0 0
    %1252 = vperm.xlu0 %1251, %v958
    %v1253 = vpop.permute.xlu0 %1252
    %1256 = vset.pattern.permute.xlu0 0
    %1257 = vperm.xlu0 %1256, %v959
    %v1258 = vpop.permute.xlu0 %1257
    %1261 = vset.pattern.permute.xlu0 0
    %1262 = vperm.xlu0 %1261, %v960
    %v1263 = vpop.permute.xlu0 %1262
    %1266 = vset.pattern.permute.xlu0 0
    %1267 = vperm.xlu0 %1266, %v961
    %v1268 = vpop.permute.xlu0 %1267
    %1271 = vset.pattern.permute.xlu0 0
    %1272 = vperm.xlu0 %1271, %v962
    %v1273 = vpop.permute.xlu0 %1272
    %1276 = vset.pattern.permute.xlu0 0
    %1277 = vperm.xlu0 %1276, %v963
    %v1278 = vpop.permute.xlu0 %1277
    %1281 = vset.pattern.permute.xlu0 0
    %1282 = vperm.xlu0 %1281, %v964
    %v1283 = vpop.permute.xlu0 %1282
    %v1285 = vmul.f32 %v837, %v968
    %v1286 = vmul.f32 %v838, %v973
    %v1287 = vmul.f32 %v839, %v978
    %v1288 = vmul.f32 %v840, %v983
    %v1289 = vmul.f32 %v841, %v988
    %v1290 = vmul.f32 %v842, %v993
    %v1291 = vmul.f32 %v843, %v998
    %v1292 = vmul.f32 %v844, %v1003
    %v1293 = vmul.f32 %v845, %v1008
    %v1294 = vmul.f32 %v846, %v1013
    %v1295 = vmul.f32 %v847, %v1018
    %v1296 = vmul.f32 %v848, %v1023
    %v1297 = vmul.f32 %v849, %v1028
    %v1298 = vmul.f32 %v850, %v1033
    %v1299 = vmul.f32 %v851, %v1038
    %v1300 = vmul.f32 %v852, %v1043
    %v1301 = vmul.f32 %v853, %v1048
    %v1302 = vmul.f32 %v854, %v1053
    %v1303 = vmul.f32 %v855, %v1058
    %v1304 = vmul.f32 %v856, %v1063
    %v1305 = vmul.f32 %v857, %v1068
    %v1306 = vmul.f32 %v858, %v1073
    %v1307 = vmul.f32 %v859, %v1078
    %v1308 = vmul.f32 %v860, %v1083
    %v1309 = vmul.f32 %v861, %v1088
    %v1310 = vmul.f32 %v862, %v1093
    %v1311 = vmul.f32 %v863, %v1098
    %v1312 = vmul.f32 %v864, %v1103
    %v1313 = vmul.f32 %v865, %v1108
    %v1314 = vmul.f32 %v866, %v1113
    %v1315 = vmul.f32 %v867, %v1118
    %v1316 = vmul.f32 %v868, %v1123
    %v1317 = vmul.f32 %v869, %v1128
    %v1318 = vmul.f32 %v870, %v1133
    %v1319 = vmul.f32 %v871, %v1138
    %v1320 = vmul.f32 %v872, %v1143
    %v1321 = vmul.f32 %v873, %v1148
    %v1322 = vmul.f32 %v874, %v1153
    %v1323 = vmul.f32 %v875, %v1158
    %v1324 = vmul.f32 %v876, %v1163
    %v1325 = vmul.f32 %v877, %v1168
    %v1326 = vmul.f32 %v878, %v1173
    %v1327 = vmul.f32 %v879, %v1178
    %v1328 = vmul.f32 %v880, %v1183
    %v1329 = vmul.f32 %v881, %v1188
    %v1330 = vmul.f32 %v882, %v1193
    %v1331 = vmul.f32 %v883, %v1198
    %v1332 = vmul.f32 %v884, %v1203
    %v1333 = vmul.f32 %v885, %v1208
    %v1334 = vmul.f32 %v886, %v1213
    %v1335 = vmul.f32 %v887, %v1218
    %v1336 = vmul.f32 %v888, %v1223
    %v1337 = vmul.f32 %v889, %v1228
    %v1338 = vmul.f32 %v890, %v1233
    %v1339 = vmul.f32 %v891, %v1238
    %v1340 = vmul.f32 %v892, %v1243
    %v1341 = vmul.f32 %v893, %v1248
    %v1342 = vmul.f32 %v894, %v1253
    %v1343 = vmul.f32 %v895, %v1258
    %v1344 = vmul.f32 %v896, %v1263
    %v1345 = vmul.f32 %v897, %v1268
    %v1346 = vmul.f32 %v898, %v1273
    %v1347 = vmul.f32 %v899, %v1278
    %v1348 = vmul.f32 %v900, %v1283
    %v1349 = vpack.c.bf16 %v1286, %v1285
    %v1350 = vpack.c.bf16 %v1288, %v1287
    %v1351 = vpack.c.bf16 %v1290, %v1289
    %v1352 = vpack.c.bf16 %v1292, %v1291
    %v1353 = vpack.c.bf16 %v1294, %v1293
    %v1354 = vpack.c.bf16 %v1296, %v1295
    %v1355 = vpack.c.bf16 %v1298, %v1297
    %v1356 = vpack.c.bf16 %v1300, %v1299
    %v1357 = vpack.c.bf16 %v1302, %v1301
    %v1358 = vpack.c.bf16 %v1304, %v1303
    %v1359 = vpack.c.bf16 %v1306, %v1305
    %v1360 = vpack.c.bf16 %v1308, %v1307
    %v1361 = vpack.c.bf16 %v1310, %v1309
    %v1362 = vpack.c.bf16 %v1312, %v1311
    %v1363 = vpack.c.bf16 %v1314, %v1313
    %v1364 = vpack.c.bf16 %v1316, %v1315
    %v1365 = vpack.c.bf16 %v1318, %v1317
    %v1366 = vpack.c.bf16 %v1320, %v1319
    %v1367 = vpack.c.bf16 %v1322, %v1321
    %v1368 = vpack.c.bf16 %v1324, %v1323
    %v1369 = vpack.c.bf16 %v1326, %v1325
    %v1370 = vpack.c.bf16 %v1328, %v1327
    %v1371 = vpack.c.bf16 %v1330, %v1329
    %v1372 = vpack.c.bf16 %v1332, %v1331
    %v1373 = vpack.c.bf16 %v1334, %v1333
    %v1374 = vpack.c.bf16 %v1336, %v1335
    %v1375 = vpack.c.bf16 %v1338, %v1337
    %v1376 = vpack.c.bf16 %v1340, %v1339
    %v1377 = vpack.c.bf16 %v1342, %v1341
    %v1378 = vpack.c.bf16 %v1344, %v1343
    %v1379 = vpack.c.bf16 %v1346, %v1345
    %v1380 = vpack.c.bf16 %v1348, %v1347
    %v1413 = vunpack.c.l.b16 %v1349
    %v1414 = vunpack.c.h.b16 %v1349
    %v1415 = vunpack.c.l.b16 %v1350
    %v1416 = vunpack.c.h.b16 %v1350
    %v1417 = vunpack.c.l.b16 %v1351
    %v1418 = vunpack.c.h.b16 %v1351
    %v1419 = vunpack.c.l.b16 %v1352
    %v1420 = vunpack.c.h.b16 %v1352
    %v1421 = vunpack.c.l.b16 %v1353
    %v1422 = vunpack.c.h.b16 %v1353
    %v1423 = vunpack.c.l.b16 %v1354
    %v1424 = vunpack.c.h.b16 %v1354
    %v1425 = vunpack.c.l.b16 %v1355
    %v1426 = vunpack.c.h.b16 %v1355
    %v1427 = vunpack.c.l.b16 %v1356
    %v1428 = vunpack.c.h.b16 %v1356
    %v1429 = vunpack.c.l.b16 %v1357
    %v1430 = vunpack.c.h.b16 %v1357
    %v1431 = vunpack.c.l.b16 %v1358
    %v1432 = vunpack.c.h.b16 %v1358
    %v1433 = vunpack.c.l.b16 %v1359
    %v1434 = vunpack.c.h.b16 %v1359
    %v1435 = vunpack.c.l.b16 %v1360
    %v1436 = vunpack.c.h.b16 %v1360
    %v1437 = vunpack.c.l.b16 %v1361
    %v1438 = vunpack.c.h.b16 %v1361
    %v1439 = vunpack.c.l.b16 %v1362
    %v1440 = vunpack.c.h.b16 %v1362
    %v1441 = vunpack.c.l.b16 %v1363
    %v1442 = vunpack.c.h.b16 %v1363
    %v1443 = vunpack.c.l.b16 %v1364
    %v1444 = vunpack.c.h.b16 %v1364
    %v1445 = vunpack.c.l.b16 %v1365
    %v1446 = vunpack.c.h.b16 %v1365
    %v1447 = vunpack.c.l.b16 %v1366
    %v1448 = vunpack.c.h.b16 %v1366
    %v1449 = vunpack.c.l.b16 %v1367
    %v1450 = vunpack.c.h.b16 %v1367
    %v1451 = vunpack.c.l.b16 %v1368
    %v1452 = vunpack.c.h.b16 %v1368
    %v1453 = vunpack.c.l.b16 %v1369
    %v1454 = vunpack.c.h.b16 %v1369
    %v1455 = vunpack.c.l.b16 %v1370
    %v1456 = vunpack.c.h.b16 %v1370
    %v1457 = vunpack.c.l.b16 %v1371
    %v1458 = vunpack.c.h.b16 %v1371
    %v1459 = vunpack.c.l.b16 %v1372
    %v1460 = vunpack.c.h.b16 %v1372
    %v1461 = vunpack.c.l.b16 %v1373
    %v1462 = vunpack.c.h.b16 %v1373
    %v1463 = vunpack.c.l.b16 %v1374
    %v1464 = vunpack.c.h.b16 %v1374
    %v1465 = vunpack.c.l.b16 %v1375
    %v1466 = vunpack.c.h.b16 %v1375
    %v1467 = vunpack.c.l.b16 %v1376
    %v1468 = vunpack.c.h.b16 %v1376
    %v1469 = vunpack.c.l.b16 %v1377
    %v1470 = vunpack.c.h.b16 %v1377
    %v1471 = vunpack.c.l.b16 %v1378
    %v1472 = vunpack.c.h.b16 %v1378
    %v1473 = vunpack.c.l.b16 %v1379
    %v1474 = vunpack.c.h.b16 %v1379
    %v1475 = vunpack.c.l.b16 %v1380
    %v1476 = vunpack.c.h.b16 %v1380
    %v1477 = vpack.c.b16 %v1413, %v1413
    %v1478 = vpack.c.b16 %v1414, %v1414
    %v1479 = vpack.c.b16 %v1415, %v1415
    %v1480 = vpack.c.b16 %v1416, %v1416
    %v1481 = vpack.c.b16 %v1417, %v1417
    %v1482 = vpack.c.b16 %v1418, %v1418
    %v1483 = vpack.c.b16 %v1419, %v1419
    %v1484 = vpack.c.b16 %v1420, %v1420
    %v1485 = vpack.c.b16 %v1421, %v1421
    %v1486 = vpack.c.b16 %v1422, %v1422
    %v1487 = vpack.c.b16 %v1423, %v1423
    %v1488 = vpack.c.b16 %v1424, %v1424
    %v1489 = vpack.c.b16 %v1425, %v1425
    %v1490 = vpack.c.b16 %v1426, %v1426
    %v1491 = vpack.c.b16 %v1427, %v1427
    %v1492 = vpack.c.b16 %v1428, %v1428
    %v1493 = vpack.c.b16 %v1429, %v1429
    %v1494 = vpack.c.b16 %v1430, %v1430
    %v1495 = vpack.c.b16 %v1431, %v1431
    %v1496 = vpack.c.b16 %v1432, %v1432
    %v1497 = vpack.c.b16 %v1433, %v1433
    %v1498 = vpack.c.b16 %v1434, %v1434
    %v1499 = vpack.c.b16 %v1435, %v1435
    %v1500 = vpack.c.b16 %v1436, %v1436
    %v1501 = vpack.c.b16 %v1437, %v1437
    %v1502 = vpack.c.b16 %v1438, %v1438
    %v1503 = vpack.c.b16 %v1439, %v1439
    %v1504 = vpack.c.b16 %v1440, %v1440
    %v1505 = vpack.c.b16 %v1441, %v1441
    %v1506 = vpack.c.b16 %v1442, %v1442
    %v1507 = vpack.c.b16 %v1443, %v1443
    %v1508 = vpack.c.b16 %v1444, %v1444
    %v1509 = vpack.c.b16 %v1445, %v1445
    %v1510 = vpack.c.b16 %v1446, %v1446
    %v1511 = vpack.c.b16 %v1447, %v1447
    %v1512 = vpack.c.b16 %v1448, %v1448
    %v1513 = vpack.c.b16 %v1449, %v1449
    %v1514 = vpack.c.b16 %v1450, %v1450
    %v1515 = vpack.c.b16 %v1451, %v1451
    %v1516 = vpack.c.b16 %v1452, %v1452
    %v1517 = vpack.c.b16 %v1453, %v1453
    %v1518 = vpack.c.b16 %v1454, %v1454
    %v1519 = vpack.c.b16 %v1455, %v1455
    %v1520 = vpack.c.b16 %v1456, %v1456
    %v1521 = vpack.c.b16 %v1457, %v1457
    %v1522 = vpack.c.b16 %v1458, %v1458
    %v1523 = vpack.c.b16 %v1459, %v1459
    %v1524 = vpack.c.b16 %v1460, %v1460
    %v1525 = vpack.c.b16 %v1461, %v1461
    %v1526 = vpack.c.b16 %v1462, %v1462
    %v1527 = vpack.c.b16 %v1463, %v1463
    %v1528 = vpack.c.b16 %v1464, %v1464
    %v1529 = vpack.c.b16 %v1465, %v1465
    %v1530 = vpack.c.b16 %v1466, %v1466
    %v1531 = vpack.c.b16 %v1467, %v1467
    %v1532 = vpack.c.b16 %v1468, %v1468
    %v1533 = vpack.c.b16 %v1469, %v1469
    %v1534 = vpack.c.b16 %v1470, %v1470
    %v1535 = vpack.c.b16 %v1471, %v1471
    %v1536 = vpack.c.b16 %v1472, %v1472
    %v1537 = vpack.c.b16 %v1473, %v1473
    %v1538 = vpack.c.b16 %v1474, %v1474
    %v1539 = vpack.c.b16 %v1475, %v1475
    %v1540 = vpack.c.b16 %v1476, %v1476
    %1605 = vst [vmem:[#allocation11] sm:$0xf] %v1477
    %1606 = vst [vmem:[#allocation11 + $0x4] sm:$0xf] %v1478
    %1607 = vst [vmem:[#allocation11 + $0x8] sm:$0xf] %v1479
    %1608 = vst [vmem:[#allocation11 + $0xc] sm:$0xf] %v1480
    %1609 = vst [vmem:[#allocation11 + $0x10] sm:$0xf] %v1481
    %1610 = vst [vmem:[#allocation11 + $0x14] sm:$0xf] %v1482
    %1611 = vst [vmem:[#allocation11 + $0x18] sm:$0xf] %v1483
    %1612 = vst [vmem:[#allocation11 + $0x1c] sm:$0xf] %v1484
    %1613 = vst [vmem:[#allocation11 + $0x20] sm:$0xf] %v1485
    %1614 = vst [vmem:[#allocation11 + $0x24] sm:$0xf] %v1486
    %1615 = vst [vmem:[#allocation11 + $0x28] sm:$0xf] %v1487
    %1616 = vst [vmem:[#allocation11 + $0x2c] sm:$0xf] %v1488
    %1617 = vst [vmem:[#allocation11 + $0x30] sm:$0xf] %v1489
    %1618 = vst [vmem:[#allocation11 + $0x34] sm:$0xf] %v1490
    %1619 = vst [vmem:[#allocation11 + $0x38] sm:$0xf] %v1491
    %1620 = vst [vmem:[#allocation11 + $0x3c] sm:$0xf] %v1492
    %1621 = vst [vmem:[#allocation11 + $0x40] sm:$0xf] %v1493
    %1622 = vst [vmem:[#allocation11 + $0x44] sm:$0xf] %v1494
    %1623 = vst [vmem:[#allocation11 + $0x48] sm:$0xf] %v1495
    %1624 = vst [vmem:[#allocation11 + $0x4c] sm:$0xf] %v1496
    %1625 = vst [vmem:[#allocation11 + $0x50] sm:$0xf] %v1497
    %1626 = vst [vmem:[#allocation11 + $0x54] sm:$0xf] %v1498
    %1627 = vst [vmem:[#allocation11 + $0x58] sm:$0xf] %v1499
    %1628 = vst [vmem:[#allocation11 + $0x5c] sm:$0xf] %v1500
    %1629 = vst [vmem:[#allocation11 + $0x60] sm:$0xf] %v1501
    %1630 = vst [vmem:[#allocation11 + $0x64] sm:$0xf] %v1502
    %1631 = vst [vmem:[#allocation11 + $0x68] sm:$0xf] %v1503
    %1632 = vst [vmem:[#allocation11 + $0x6c] sm:$0xf] %v1504
    %1633 = vst [vmem:[#allocation11 + $0x70] sm:$0xf] %v1505
    %1634 = vst [vmem:[#allocation11 + $0x74] sm:$0xf] %v1506
    %1635 = vst [vmem:[#allocation11 + $0x78] sm:$0xf] %v1507
    %1636 = vst [vmem:[#allocation11 + $0x7c] sm:$0xf] %v1508
    %1637 = vst [vmem:[#allocation11 + $0x80] sm:$0xf] %v1509
    %1638 = vst [vmem:[#allocation11 + $0x84] sm:$0xf] %v1510
    %1639 = vst [vmem:[#allocation11 + $0x88] sm:$0xf] %v1511
    %1640 = vst [vmem:[#allocation11 + $0x8c] sm:$0xf] %v1512
    %1641 = vst [vmem:[#allocation11 + $0x90] sm:$0xf] %v1513
    %1642 = vst [vmem:[#allocation11 + $0x94] sm:$0xf] %v1514
    %1643 = vst [vmem:[#allocation11 + $0x98] sm:$0xf] %v1515
    %1644 = vst [vmem:[#allocation11 + $0x9c] sm:$0xf] %v1516
    %1645 = vst [vmem:[#allocation11 + $0xa0] sm:$0xf] %v1517
    %1646 = vst [vmem:[#allocation11 + $0xa4] sm:$0xf] %v1518
    %1647 = vst [vmem:[#allocation11 + $0xa8] sm:$0xf] %v1519
    %1648 = vst [vmem:[#allocation11 + $0xac] sm:$0xf] %v1520
    %1649 = vst [vmem:[#allocation11 + $0xb0] sm:$0xf] %v1521
    %1650 = vst [vmem:[#allocation11 + $0xb4] sm:$0xf] %v1522
    %1651 = vst [vmem:[#allocation11 + $0xb8] sm:$0xf] %v1523
    %1652 = vst [vmem:[#allocation11 + $0xbc] sm:$0xf] %v1524
    %1653 = vst [vmem:[#allocation11 + $0xc0] sm:$0xf] %v1525
    %1654 = vst [vmem:[#allocation11 + $0xc4] sm:$0xf] %v1526
    %1655 = vst [vmem:[#allocation11 + $0xc8] sm:$0xf] %v1527
    %1656 = vst [vmem:[#allocation11 + $0xcc] sm:$0xf] %v1528
    %1657 = vst [vmem:[#allocation11 + $0xd0] sm:$0xf] %v1529
    %1658 = vst [vmem:[#allocation11 + $0xd4] sm:$0xf] %v1530
    %1659 = vst [vmem:[#allocation11 + $0xd8] sm:$0xf] %v1531
    %1660 = vst [vmem:[#allocation11 + $0xdc] sm:$0xf] %v1532
    %1661 = vst [vmem:[#allocation11 + $0xe0] sm:$0xf] %v1533
    %1662 = vst [vmem:[#allocation11 + $0xe4] sm:$0xf] %v1534
    %1663 = vst [vmem:[#allocation11 + $0xe8] sm:$0xf] %v1535
    %1664 = vst [vmem:[#allocation11 + $0xec] sm:$0xf] %v1536
    %1665 = vst [vmem:[#allocation11 + $0xf0] sm:$0xf] %v1537
    %1666 = vst [vmem:[#allocation11 + $0xf4] sm:$0xf] %v1538
    %1667 = vst [vmem:[#allocation11 + $0xf8] sm:$0xf] %v1539
    %1668 = vst [vmem:[#allocation11 + $0xfc] sm:$0xf] %v1540
    // Predicated region
    $region42: #{_lambda_.5} parent=1 // pred_check
      _
    $region43: #{_lambda_.5} parent=1 // pred_check_branch
      %1670 = sbr.rel (0) target = $region45
    $region44: #{_lambda_.5} parent=1 // pred_region
      %s1672 = ssub.s32 4096, 4096
      %1673 = vsyncadd [#allocation4], %s1672
      %s1674 = sshll.u32 [#allocation11], 4
      %s1675 = int_to_ptr.vmem [resolvable:$true] %s1674
      %1680 = dma.vmem_to_hbm [thread:$0]  %s1675, 4096, %s5, [#allocation4], 64, 64, 4
    $region45: #{_lambda_.5} parent=1 // pred_fallthru
      _
    // Predicated region
    $region46: #{_lambda_.5} parent=1 // pred_check
      _
    $region47: #{_lambda_.5} parent=1 // pred_check_branch
      %1682 = sbr.rel (0) target = $region49
    $region48: #{_lambda_.5} parent=1 // pred_region
      %1683 = dma.done [#allocation4], 4096
    $region49: #{_lambda_.5} parent=1 // pred_fallthru
      _
    %1684 = vsyncpa [#allocation3], 1
    %1685 = vsyncpa [#allocation6], 1
    %1686 = vsyncpa [#allocation9], 1
    %1687 = vsyncpa [#allocation4], 1

// kernel: _lambda_.4
$region0: #{_lambda_.4}
  #allocation0 [shape = 'u32[]', space=smem, size = 0x4, offset = 0x4, fixed_abs, tag = 'smem constant byte address 0x4 - core index']
  #allocation1 [shape = 'u32[144,128]{1,0:T(1,128)}', space=vmem, size = 0x12000, scoped, tag = 'internal scratch']
  %s0 = inlined_call_operand.hbm [shape: bf16[512,128], index: 0, kind: input, shape index: {}]
  %s1 = inlined_call_operand.hbm [shape: f32[512,1], index: 1, kind: input, shape index: {}]
  %s2 = inlined_call_operand.hbm [shape: bf16[128,128], index: 2, kind: input, shape index: {}]
  %s3 = inlined_call_operand.hbm [shape: f32[1,128], index: 3, kind: input, shape index: {}]
  %s4 = inlined_call_operand.hbm [shape: f32[1,128], index: 4, kind: input, shape index: {}]
  %s5 = inlined_call_operand.hbm [shape: bf16[512,128], index: 5, kind: output, shape index: {0}]
  %s6 = inlined_call_operand.hbm [shape: f32[1,128], index: 6, kind: output, shape index: {1}]
  %s7 = inlined_call_operand.hbm [shape: f32[128,128], index: 7, kind: output, shape index: {2}]
  %8 = xla_tuple %s5, %s6, %s7
  %s9 = sld [smem:[#allocation0]]
  $region70: #{_lambda_.4} parent=0
    _
  %s11 = ssub.s32 1, %s9
  %s12 = scalar_select 0, %s11, %s9
  $region1: #{_lambda_.4} parent=0
    #allocation2 [shape = 'u8[131072]{0}', space=vmem, size = 0x20000, scoped, tag = 'input window, operand 0, single buffered']
    #allocation3 [shape = 's32[1]{0}', space=sflag, size = 0x4, scoped, tag = 'scoped memory for _lambda_.4']
    #allocation4 [shape = 's32[1]{0}', space=sflag, size = 0x4, scoped, tag = 'scoped memory for _lambda_.4']
    #allocation5 [shape = 'u8[262144]{0}', space=vmem, size = 0x40000, scoped, tag = 'input window, operand 1, single buffered']
    #allocation6 [shape = 's32[1]{0}', space=sflag, size = 0x4, scoped, tag = 'scoped memory for _lambda_.4']
    #allocation7 [shape = 'u8[32768]{0}', space=vmem, size = 0x8000, scoped, tag = 'input window, operand 2, single buffered']
    #allocation8 [shape = 'u8[512]{0}', space=vmem, size = 0x400, scoped, tag = 'input window, operand 3, single buffered']
    #allocation9 [shape = 's32[1]{0}', space=sflag, size = 0x4, scoped, tag = 'scoped memory for _lambda_.4']
    #allocation10 [shape = 'u8[512]{0}', space=vmem, size = 0x400, scoped, tag = 'input window, operand 4, single buffered']
    #allocation11 [shape = 'u8[131072]{0}', space=vmem, size = 0x20000, scoped, tag = 'output window, operand 0, single buffered']
    #allocation12 [shape = 'u8[512]{0}', space=vmem, size = 0x400, scoped, tag = 'output window, operand 1, single buffered']
    #allocation13 [shape = 's32[1]{0}', space=sflag, size = 0x4, scoped, tag = 'scoped memory for _lambda_.4']
    #allocation14 [shape = 'u8[65536]{0}', space=vmem, size = 0x10000, scoped, tag = 'output window, operand 2, single buffered']
    %13 = vsyncpa [#allocation3], 0
    %14 = vsyncpa [#allocation6], 0
    %15 = vsyncpa [#allocation9], 0
    %16 = vsyncpa [#allocation4], 0
    %17 = vsyncpa [#allocation13], 0
    // Predicated region
    $region2: #{_lambda_.4} parent=1 // pred_check
      _
    $region3: #{_lambda_.4} parent=1 // pred_check_branch
      %19 = sbr.rel (0) target = $region5
    $region4: #{_lambda_.4} parent=1 // pred_region
      %s21 = ssub.s32 4096, 4096
      %22 = vsyncadd [#allocation3], %s21
      %s23 = sshll.u32 [#allocation2], 4
      %s24 = int_to_ptr.vmem [resolvable:$true] %s23
      %29 = dma.hbm_to_vmem [thread:$0]  %s0, 4096, %s24, [#allocation3], 64, 64, 4
    $region5: #{_lambda_.4} parent=1 // pred_fallthru
      _
    // Predicated region
    $region6: #{_lambda_.4} parent=1 // pred_check
      _
    $region7: #{_lambda_.4} parent=1 // pred_check_branch
      %31 = sbr.rel (0) target = $region9
    $region8: #{_lambda_.4} parent=1 // pred_region
      %s33 = ssub.s32 8192, 8192
      %34 = vsyncadd [#allocation6], %s33
      %s35 = sshll.u32 [#allocation5], 4
      %s36 = int_to_ptr.vmem [resolvable:$true] %s35
      %41 = dma.hbm_to_vmem [thread:$0]  %s1, 8192, %s36, [#allocation6], 128, 128, 8
    $region9: #{_lambda_.4} parent=1 // pred_fallthru
      _
    // Predicated region
    $region10: #{_lambda_.4} parent=1 // pred_check
      _
    $region11: #{_lambda_.4} parent=1 // pred_check_branch
      %43 = sbr.rel (0) target = $region13
    $region12: #{_lambda_.4} parent=1 // pred_region
      %s45 = ssub.s32 1024, 1024
      %46 = vsyncadd [#allocation6], %s45
      %s47 = sshll.u32 [#allocation7], 4
      %s48 = int_to_ptr.vmem [resolvable:$true] %s47
      %53 = dma.hbm_to_vmem [thread:$0]  %s2, 1024, %s48, [#allocation6], 64, 64, 4
    $region13: #{_lambda_.4} parent=1 // pred_fallthru
      _
    // Predicated region
    $region14: #{_lambda_.4} parent=1 // pred_check
      _
    $region15: #{_lambda_.4} parent=1 // pred_check_branch
      %55 = sbr.rel (0) target = $region17
    $region16: #{_lambda_.4} parent=1 // pred_region
      %s57 = ssub.s32 16, 16
      %58 = vsyncadd [#allocation9], %s57
      %s60 = sshll.u32 [#allocation8], 4
      %s61 = int_to_ptr.vmem [resolvable:$true] %s60
      %63 = dma.hbm_to_vmem [thread:$0]  %s3, 16, %s61, [#allocation9]
    $region17: #{_lambda_.4} parent=1 // pred_fallthru
      _
    // Predicated region
    $region18: #{_lambda_.4} parent=1 // pred_check
      _
    $region19: #{_lambda_.4} parent=1 // pred_check_branch
      %65 = sbr.rel (0) target = $region21
    $region20: #{_lambda_.4} parent=1 // pred_region
      %s67 = ssub.s32 16, 16
      %68 = vsyncadd [#allocation9], %s67
      %s70 = sshll.u32 [#allocation10], 4
      %s71 = int_to_ptr.vmem [resolvable:$true] %s70
      %73 = dma.hbm_to_vmem [thread:$0]  %s4, 16, %s71, [#allocation9]
    $region21: #{_lambda_.4} parent=1 // pred_fallthru
      _
    // Predicated region
    $region22: #{_lambda_.4} parent=1 // pred_check
      _
    $region23: #{_lambda_.4} parent=1 // pred_check_branch
      %75 = sbr.rel (0) target = $region25
    $region24: #{_lambda_.4} parent=1 // pred_region
      %76 = dma.done [#allocation3], 4096
    $region25: #{_lambda_.4} parent=1 // pred_fallthru
      _
    // Predicated region
    $region26: #{_lambda_.4} parent=1 // pred_check
      _
    $region27: #{_lambda_.4} parent=1 // pred_check_branch
      %78 = sbr.rel (0) target = $region29
    $region28: #{_lambda_.4} parent=1 // pred_region
      %79 = dma.done [#allocation6], 8192
    $region29: #{_lambda_.4} parent=1 // pred_fallthru
      _
    // Predicated region
    $region30: #{_lambda_.4} parent=1 // pred_check
      _
    $region31: #{_lambda_.4} parent=1 // pred_check_branch
      %81 = sbr.rel (0) target = $region33
    $region32: #{_lambda_.4} parent=1 // pred_region
      %82 = dma.done [#allocation6], 1024
    $region33: #{_lambda_.4} parent=1 // pred_fallthru
      _
    // Predicated region
    $region34: #{_lambda_.4} parent=1 // pred_check
      _
    $region35: #{_lambda_.4} parent=1 // pred_check_branch
      %84 = sbr.rel (0) target = $region37
    $region36: #{_lambda_.4} parent=1 // pred_region
      %85 = dma.done [#allocation9], 16
    $region37: #{_lambda_.4} parent=1 // pred_fallthru
      _
    // Predicated region
    $region38: #{_lambda_.4} parent=1 // pred_check
      _
    $region39: #{_lambda_.4} parent=1 // pred_check_branch
      %87 = sbr.rel (0) target = $region41
    $region40: #{_lambda_.4} parent=1 // pred_region
      %88 = dma.done [#allocation9], 16
    $region41: #{_lambda_.4} parent=1 // pred_fallthru
      _
    %v90 = vld [vmem:[#allocation2] sm:$0xf]
    %v91 = vld [vmem:[#allocation2 + $0x4] sm:$0xf]
    %v92 = vld [vmem:[#allocation2 + $0x8] sm:$0xf]
    %v93 = vld [vmem:[#allocation2 + $0xc] sm:$0xf]
    %v94 = vld [vmem:[#allocation2 + $0x10] sm:$0xf]
    %v95 = vld [vmem:[#allocation2 + $0x14] sm:$0xf]
    %v96 = vld [vmem:[#allocation2 + $0x18] sm:$0xf]
    %v97 = vld [vmem:[#allocation2 + $0x1c] sm:$0xf]
    %v98 = vld [vmem:[#allocation2 + $0x20] sm:$0xf]
    %v99 = vld [vmem:[#allocation2 + $0x24] sm:$0xf]
    %v100 = vld [vmem:[#allocation2 + $0x28] sm:$0xf]
    %v101 = vld [vmem:[#allocation2 + $0x2c] sm:$0xf]
    %v102 = vld [vmem:[#allocation2 + $0x30] sm:$0xf]
    %v103 = vld [vmem:[#allocation2 + $0x34] sm:$0xf]
    %v104 = vld [vmem:[#allocation2 + $0x38] sm:$0xf]
    %v105 = vld [vmem:[#allocation2 + $0x3c] sm:$0xf]
    %v106 = vld [vmem:[#allocation2 + $0x40] sm:$0xf]
    %v107 = vld [vmem:[#allocation2 + $0x44] sm:$0xf]
    %v108 = vld [vmem:[#allocation2 + $0x48] sm:$0xf]
    %v109 = vld [vmem:[#allocation2 + $0x4c] sm:$0xf]
    %v110 = vld [vmem:[#allocation2 + $0x50] sm:$0xf]
    %v111 = vld [vmem:[#allocation2 + $0x54] sm:$0xf]
    %v112 = vld [vmem:[#allocation2 + $0x58] sm:$0xf]
    %v113 = vld [vmem:[#allocation2 + $0x5c] sm:$0xf]
    %v114 = vld [vmem:[#allocation2 + $0x60] sm:$0xf]
    %v115 = vld [vmem:[#allocation2 + $0x64] sm:$0xf]
    %v116 = vld [vmem:[#allocation2 + $0x68] sm:$0xf]
    %v117 = vld [vmem:[#allocation2 + $0x6c] sm:$0xf]
    %v118 = vld [vmem:[#allocation2 + $0x70] sm:$0xf]
    %v119 = vld [vmem:[#allocation2 + $0x74] sm:$0xf]
    %v120 = vld [vmem:[#allocation2 + $0x78] sm:$0xf]
    %v121 = vld [vmem:[#allocation2 + $0x7c] sm:$0xf]
    %v122 = vld [vmem:[#allocation2 + $0x80] sm:$0xf]
    %v123 = vld [vmem:[#allocation2 + $0x84] sm:$0xf]
    %v124 = vld [vmem:[#allocation2 + $0x88] sm:$0xf]
    %v125 = vld [vmem:[#allocation2 + $0x8c] sm:$0xf]
    %v126 = vld [vmem:[#allocation2 + $0x90] sm:$0xf]
    %v127 = vld [vmem:[#allocation2 + $0x94] sm:$0xf]
    %v128 = vld [vmem:[#allocation2 + $0x98] sm:$0xf]
    %v129 = vld [vmem:[#allocation2 + $0x9c] sm:$0xf]
    %v130 = vld [vmem:[#allocation2 + $0xa0] sm:$0xf]
    %v131 = vld [vmem:[#allocation2 + $0xa4] sm:$0xf]
    %v132 = vld [vmem:[#allocation2 + $0xa8] sm:$0xf]
    %v133 = vld [vmem:[#allocation2 + $0xac] sm:$0xf]
    %v134 = vld [vmem:[#allocation2 + $0xb0] sm:$0xf]
    %v135 = vld [vmem:[#allocation2 + $0xb4] sm:$0xf]
    %v136 = vld [vmem:[#allocation2 + $0xb8] sm:$0xf]
    %v137 = vld [vmem:[#allocation2 + $0xbc] sm:$0xf]
    %v138 = vld [vmem:[#allocation2 + $0xc0] sm:$0xf]
    %v139 = vld [vmem:[#allocation2 + $0xc4] sm:$0xf]
    %v140 = vld [vmem:[#allocation2 + $0xc8] sm:$0xf]
    %v141 = vld [vmem:[#allocation2 + $0xcc] sm:$0xf]
    %v142 = vld [vmem:[#allocation2 + $0xd0] sm:$0xf]
    %v143 = vld [vmem:[#allocation2 + $0xd4] sm:$0xf]
    %v144 = vld [vmem:[#allocation2 + $0xd8] sm:$0xf]
    %v145 = vld [vmem:[#allocation2 + $0xdc] sm:$0xf]
    %v146 = vld [vmem:[#allocation2 + $0xe0] sm:$0xf]
    %v147 = vld [vmem:[#allocation2 + $0xe4] sm:$0xf]
    %v148 = vld [vmem:[#allocation2 + $0xe8] sm:$0xf]
    %v149 = vld [vmem:[#allocation2 + $0xec] sm:$0xf]
    %v150 = vld [vmem:[#allocation2 + $0xf0] sm:$0xf]
    %v151 = vld [vmem:[#allocation2 + $0xf4] sm:$0xf]
    %v152 = vld [vmem:[#allocation2 + $0xf8] sm:$0xf]
    %v153 = vld [vmem:[#allocation2 + $0xfc] sm:$0xf]
    %v154 = vld [vmem:[#allocation7] sm:$0xf]
    %v155 = vld [vmem:[#allocation7 + $0x4] sm:$0xf]
    %v156 = vld [vmem:[#allocation7 + $0x8] sm:$0xf]
    %v157 = vld [vmem:[#allocation7 + $0xc] sm:$0xf]
    %v158 = vld [vmem:[#allocation7 + $0x10] sm:$0xf]
    %v159 = vld [vmem:[#allocation7 + $0x14] sm:$0xf]
    %v160 = vld [vmem:[#allocation7 + $0x18] sm:$0xf]
    %v161 = vld [vmem:[#allocation7 + $0x1c] sm:$0xf]
    %v162 = vld [vmem:[#allocation7 + $0x20] sm:$0xf]
    %v163 = vld [vmem:[#allocation7 + $0x24] sm:$0xf]
    %v164 = vld [vmem:[#allocation7 + $0x28] sm:$0xf]
    %v165 = vld [vmem:[#allocation7 + $0x2c] sm:$0xf]
    %v166 = vld [vmem:[#allocation7 + $0x30] sm:$0xf]
    %v167 = vld [vmem:[#allocation7 + $0x34] sm:$0xf]
    %v168 = vld [vmem:[#allocation7 + $0x38] sm:$0xf]
    %v169 = vld [vmem:[#allocation7 + $0x3c] sm:$0xf]
    %v234 = vunpack.c.l.b16 %v90
    %v235 = vunpack.c.l.b16 %v91
    %v236 = vunpack.c.l.b16 %v92
    %v237 = vunpack.c.l.b16 %v93
    %v238 = vunpack.c.l.b16 %v94
    %v239 = vunpack.c.l.b16 %v95
    %v240 = vunpack.c.l.b16 %v96
    %v241 = vunpack.c.l.b16 %v97
    %v242 = vunpack.c.l.b16 %v98
    %v243 = vunpack.c.l.b16 %v99
    %v244 = vunpack.c.l.b16 %v100
    %v245 = vunpack.c.l.b16 %v101
    %v246 = vunpack.c.l.b16 %v102
    %v247 = vunpack.c.l.b16 %v103
    %v248 = vunpack.c.l.b16 %v104
    %v249 = vunpack.c.l.b16 %v105
    %v250 = vunpack.c.l.b16 %v106
    %v251 = vunpack.c.l.b16 %v107
    %v252 = vunpack.c.l.b16 %v108
    %v253 = vunpack.c.l.b16 %v109
    %v254 = vunpack.c.l.b16 %v110
    %v255 = vunpack.c.l.b16 %v111
    %v256 = vunpack.c.l.b16 %v112
    %v257 = vunpack.c.l.b16 %v113
    %v258 = vunpack.c.l.b16 %v114
    %v259 = vunpack.c.l.b16 %v115
    %v260 = vunpack.c.l.b16 %v116
    %v261 = vunpack.c.l.b16 %v117
    %v262 = vunpack.c.l.b16 %v118
    %v263 = vunpack.c.l.b16 %v119
    %v264 = vunpack.c.l.b16 %v120
    %v265 = vunpack.c.l.b16 %v121
    %v266 = vunpack.c.l.b16 %v122
    %v267 = vunpack.c.l.b16 %v123
    %v268 = vunpack.c.l.b16 %v124
    %v269 = vunpack.c.l.b16 %v125
    %v270 = vunpack.c.l.b16 %v126
    %v271 = vunpack.c.l.b16 %v127
    %v272 = vunpack.c.l.b16 %v128
    %v273 = vunpack.c.l.b16 %v129
    %v274 = vunpack.c.l.b16 %v130
    %v275 = vunpack.c.l.b16 %v131
    %v276 = vunpack.c.l.b16 %v132
    %v277 = vunpack.c.l.b16 %v133
    %v278 = vunpack.c.l.b16 %v134
    %v279 = vunpack.c.l.b16 %v135
    %v280 = vunpack.c.l.b16 %v136
    %v281 = vunpack.c.l.b16 %v137
    %v282 = vunpack.c.l.b16 %v138
    %v283 = vunpack.c.l.b16 %v139
    %v284 = vunpack.c.l.b16 %v140
    %v285 = vunpack.c.l.b16 %v141
    %v286 = vunpack.c.l.b16 %v142
    %v287 = vunpack.c.l.b16 %v143
    %v288 = vunpack.c.l.b16 %v144
    %v289 = vunpack.c.l.b16 %v145
    %v290 = vunpack.c.l.b16 %v146
    %v291 = vunpack.c.l.b16 %v147
    %v292 = vunpack.c.l.b16 %v148
    %v293 = vunpack.c.l.b16 %v149
    %v294 = vunpack.c.l.b16 %v150
    %v295 = vunpack.c.l.b16 %v151
    %v296 = vunpack.c.l.b16 %v152
    %v297 = vunpack.c.l.b16 %v153
    %v298 = vpack.c.b16 %v235, %v234
    %v299 = vpack.c.b16 %v237, %v236
    %v300 = vpack.c.b16 %v239, %v238
    %v301 = vpack.c.b16 %v241, %v240
    %v302 = vpack.c.b16 %v243, %v242
    %v303 = vpack.c.b16 %v245, %v244
    %v304 = vpack.c.b16 %v247, %v246
    %v305 = vpack.c.b16 %v249, %v248
    %v306 = vpack.c.b16 %v251, %v250
    %v307 = vpack.c.b16 %v253, %v252
    %v308 = vpack.c.b16 %v255, %v254
    %v309 = vpack.c.b16 %v257, %v256
    %v310 = vpack.c.b16 %v259, %v258
    %v311 = vpack.c.b16 %v261, %v260
    %v312 = vpack.c.b16 %v263, %v262
    %v313 = vpack.c.b16 %v265, %v264
    %v314 = vpack.c.b16 %v267, %v266
    %v315 = vpack.c.b16 %v269, %v268
    %v316 = vpack.c.b16 %v271, %v270
    %v317 = vpack.c.b16 %v273, %v272
    %v318 = vpack.c.b16 %v275, %v274
    %v319 = vpack.c.b16 %v277, %v276
    %v320 = vpack.c.b16 %v279, %v278
    %v321 = vpack.c.b16 %v281, %v280
    %v322 = vpack.c.b16 %v283, %v282
    %v323 = vpack.c.b16 %v285, %v284
    %v324 = vpack.c.b16 %v287, %v286
    %v325 = vpack.c.b16 %v289, %v288
    %v326 = vpack.c.b16 %v291, %v290
    %v327 = vpack.c.b16 %v293, %v292
    %v328 = vpack.c.b16 %v295, %v294
    %v329 = vpack.c.b16 %v297, %v296
    %v378 = vunpack.c.l.b16 %v154
    %v379 = vunpack.c.l.b16 %v155
    %v380 = vunpack.c.l.b16 %v156
    %v381 = vunpack.c.l.b16 %v157
    %v382 = vunpack.c.l.b16 %v158
    %v383 = vunpack.c.l.b16 %v159
    %v384 = vunpack.c.l.b16 %v160
    %v385 = vunpack.c.l.b16 %v161
    %v386 = vunpack.c.l.b16 %v162
    %v387 = vunpack.c.l.b16 %v163
    %v388 = vunpack.c.l.b16 %v164
    %v389 = vunpack.c.l.b16 %v165
    %v390 = vunpack.c.l.b16 %v166
    %v391 = vunpack.c.l.b16 %v167
    %v392 = vunpack.c.l.b16 %v168
    %v393 = vunpack.c.l.b16 %v169
    %v394 = vpack.c.b16 %v379, %v378
    %v395 = vpack.c.b16 %v381, %v380
    %v396 = vpack.c.b16 %v383, %v382
    %v397 = vpack.c.b16 %v385, %v384
    %v398 = vpack.c.b16 %v387, %v386
    %v399 = vpack.c.b16 %v389, %v388
    %v400 = vpack.c.b16 %v391, %v390
    %v401 = vpack.c.b16 %v393, %v392
    %410 = vmatprep.subr.bf16.mxu0 0
    %411 = vmatpush1.bf16.msra.mxu0 %v394
    %412 = vmatprep.subr.bf16.mxu0 0
    %413 = vmatpush1.bf16.msra.mxu0 %v395
    %414 = vmatprep.subr.bf16.mxu0 0
    %415 = vmatpush1.bf16.msra.mxu0 %v396
    %416 = vmatprep.subr.bf16.mxu0 0
    %417 = vmatpush1.bf16.msra.mxu0 %v397
    %418 = vmatprep.subr.bf16.mxu0 0
    %419 = vmatpush1.bf16.msra.mxu0 %v398
    %420 = vmatprep.subr.bf16.mxu0 0
    %421 = vmatpush1.bf16.msra.mxu0 %v399
    %422 = vmatprep.subr.bf16.mxu0 0
    %423 = vmatpush1.bf16.msra.mxu0 %v400
    %424 = vmatprep.subr.bf16.mxu0 0
    %425 = vmatpush1.bf16.msra.mxu0 %v401
    %426 = vmatprep.subr.bf16.mxu0 0
    %427 = vmatpush1.bf16.msra.mxu0 0
    %428 = vmatprep.subr.bf16.mxu0 0
    %429 = vmatpush1.bf16.msra.mxu0 0
    %430 = vmatprep.subr.bf16.mxu0 0
    %431 = vmatpush1.bf16.msra.mxu0 0
    %432 = vmatprep.subr.bf16.mxu0 0
    %433 = vmatpush1.bf16.msra.mxu0 0
    %434 = vmatprep.subr.bf16.mxu0 0
    %435 = vmatpush1.bf16.msra.mxu0 0
    %436 = vmatprep.subr.bf16.mxu0 0
    %437 = vmatpush1.bf16.msra.mxu0 0
    %438 = vmatprep.subr.bf16.mxu0 0
    %439 = vmatpush1.bf16.msra.mxu0 0
    %440 = vmatprep.subr.bf16.mxu0 0
    %441 = vmatpush1.bf16.msra.mxu0 0
    %442 = vmatprep.mubr.bf16.mxu0 0
    %443 = vmatmul.mubr.bf16.gmra.mrb[0].mxu0 %v298
    %v444 = vpop.f32.mrb[0].mxu0
    %v445 = vadd.f32 0.0, %v444
    %v446 = vpop.f32.mrb[0].mxu0
    %v447 = vpop.f32.mrb[0].mxu0
    %v448 = vadd.f32 0.0, %v447
    %v449 = vpop.f32.mrb[0].mxu0
    %450 = vmatprep.mubr.bf16.mxu0 0
    %451 = vmatmul.mubr.bf16.gmra.mrb[0].mxu0 %v299
    %v452 = vpop.f32.mrb[0].mxu0
    %v453 = vadd.f32 0.0, %v452
    %v454 = vpop.f32.mrb[0].mxu0
    %v455 = vpop.f32.mrb[0].mxu0
    %v456 = vadd.f32 0.0, %v455
    %v457 = vpop.f32.mrb[0].mxu0
    %458 = vmatprep.mubr.bf16.mxu0 0
    %459 = vmatmul.mubr.bf16.gmra.mrb[0].mxu0 %v300
    %v460 = vpop.f32.mrb[0].mxu0
    %v461 = vadd.f32 0.0, %v460
    %v462 = vpop.f32.mrb[0].mxu0
    %v463 = vpop.f32.mrb[0].mxu0
    %v464 = vadd.f32 0.0, %v463
    %v465 = vpop.f32.mrb[0].mxu0
    %466 = vmatprep.mubr.bf16.mxu0 0
    %467 = vmatmul.mubr.bf16.gmra.mrb[0].mxu0 %v301
    %v468 = vpop.f32.mrb[0].mxu0
    %v469 = vadd.f32 0.0, %v468
    %v470 = vpop.f32.mrb[0].mxu0
    %v471 = vpop.f32.mrb[0].mxu0
    %v472 = vadd.f32 0.0, %v471
    %v473 = vpop.f32.mrb[0].mxu0
    %474 = vmatprep.mubr.bf16.mxu0 0
    %475 = vmatmul.mubr.bf16.gmra.mrb[0].mxu0 %v302
    %v476 = vpop.f32.mrb[0].mxu0
    %v477 = vadd.f32 0.0, %v476
    %v478 = vpop.f32.mrb[0].mxu0
    %v479 = vpop.f32.mrb[0].mxu0
    %v480 = vadd.f32 0.0, %v479
    %v481 = vpop.f32.mrb[0].mxu0
    %482 = vmatprep.mubr.bf16.mxu0 0
    %483 = vmatmul.mubr.bf16.gmra.mrb[0].mxu0 %v303
    %v484 = vpop.f32.mrb[0].mxu0
    %v485 = vadd.f32 0.0, %v484
    %v486 = vpop.f32.mrb[0].mxu0
    %v487 = vpop.f32.mrb[0].mxu0
    %v488 = vadd.f32 0.0, %v487
    %v489 = vpop.f32.mrb[0].mxu0
    %490 = vmatprep.mubr.bf16.mxu0 0
    %491 = vmatmul.mubr.bf16.gmra.mrb[0].mxu0 %v304
    %v492 = vpop.f32.mrb[0].mxu0
    %v493 = vadd.f32 0.0, %v492
    %v494 = vpop.f32.mrb[0].mxu0
    %v495 = vpop.f32.mrb[0].mxu0
    %v496 = vadd.f32 0.0, %v495
    %v497 = vpop.f32.mrb[0].mxu0
    %498 = vmatprep.mubr.bf16.mxu0 0
    %499 = vmatmul.mubr.bf16.gmra.mrb[0].mxu0 %v305
    %v500 = vpop.f32.mrb[0].mxu0
    %v501 = vadd.f32 0.0, %v500
    %v502 = vpop.f32.mrb[0].mxu0
    %v503 = vpop.f32.mrb[0].mxu0
    %v504 = vadd.f32 0.0, %v503
    %v505 = vpop.f32.mrb[0].mxu0
    %506 = vmatprep.mubr.bf16.mxu0 0
    %507 = vmatmul.mubr.bf16.gmra.mrb[0].mxu0 %v306
    %v508 = vpop.f32.mrb[0].mxu0
    %v509 = vadd.f32 0.0, %v508
    %v510 = vpop.f32.mrb[0].mxu0
    %v511 = vpop.f32.mrb[0].mxu0
    %v512 = vadd.f32 0.0, %v511
    %v513 = vpop.f32.mrb[0].mxu0
    %514 = vmatprep.mubr.bf16.mxu0 0
    %515 = vmatmul.mubr.bf16.gmra.mrb[0].mxu0 %v307
    %v516 = vpop.f32.mrb[0].mxu0
    %v517 = vadd.f32 0.0, %v516
    %v518 = vpop.f32.mrb[0].mxu0
    %v519 = vpop.f32.mrb[0].mxu0
    %v520 = vadd.f32 0.0, %v519
    %v521 = vpop.f32.mrb[0].mxu0
    %522 = vmatprep.mubr.bf16.mxu0 0
    %523 = vmatmul.mubr.bf16.gmra.mrb[0].mxu0 %v308
    %v524 = vpop.f32.mrb[0].mxu0
    %v525 = vadd.f32 0.0, %v524
    %v526 = vpop.f32.mrb[0].mxu0
    %v527 = vpop.f32.mrb[0].mxu0
    %v528 = vadd.f32 0.0, %v527
    %v529 = vpop.f32.mrb[0].mxu0
    %530 = vmatprep.mubr.bf16.mxu0 0
    %531 = vmatmul.mubr.bf16.gmra.mrb[0].mxu0 %v309
    %v532 = vpop.f32.mrb[0].mxu0
    %v533 = vadd.f32 0.0, %v532
    %v534 = vpop.f32.mrb[0].mxu0
    %v535 = vpop.f32.mrb[0].mxu0
    %v536 = vadd.f32 0.0, %v535
    %v537 = vpop.f32.mrb[0].mxu0
    %538 = vmatprep.mubr.bf16.mxu0 0
    %539 = vmatmul.mubr.bf16.gmra.mrb[0].mxu0 %v310
    %v540 = vpop.f32.mrb[0].mxu0
    %v541 = vadd.f32 0.0, %v540
    %v542 = vpop.f32.mrb[0].mxu0
    %v543 = vpop.f32.mrb[0].mxu0
    %v544 = vadd.f32 0.0, %v543
    %v545 = vpop.f32.mrb[0].mxu0
    %546 = vmatprep.mubr.bf16.mxu0 0
    %547 = vmatmul.mubr.bf16.gmra.mrb[0].mxu0 %v311
    %v548 = vpop.f32.mrb[0].mxu0
    %v549 = vadd.f32 0.0, %v548
    %v550 = vpop.f32.mrb[0].mxu0
    %v551 = vpop.f32.mrb[0].mxu0
    %v552 = vadd.f32 0.0, %v551
    %v553 = vpop.f32.mrb[0].mxu0
    %554 = vmatprep.mubr.bf16.mxu0 0
    %555 = vmatmul.mubr.bf16.gmra.mrb[0].mxu0 %v312
    %v556 = vpop.f32.mrb[0].mxu0
    %v557 = vadd.f32 0.0, %v556
    %v558 = vpop.f32.mrb[0].mxu0
    %v559 = vpop.f32.mrb[0].mxu0
    %v560 = vadd.f32 0.0, %v559
    %v561 = vpop.f32.mrb[0].mxu0
    %562 = vmatprep.mubr.bf16.mxu0 0
    %563 = vmatmul.mubr.bf16.gmra.mrb[0].mxu0 %v313
    %v564 = vpop.f32.mrb[0].mxu0
    %v565 = vadd.f32 0.0, %v564
    %v566 = vpop.f32.mrb[0].mxu0
    %v567 = vpop.f32.mrb[0].mxu0
    %v568 = vadd.f32 0.0, %v567
    %v569 = vpop.f32.mrb[0].mxu0
    %570 = vmatprep.mubr.bf16.mxu0 0
    %571 = vmatmul.mubr.bf16.gmra.mrb[0].mxu0 %v314
    %v572 = vpop.f32.mrb[0].mxu0
    %v573 = vadd.f32 0.0, %v572
    %v574 = vpop.f32.mrb[0].mxu0
    %v575 = vpop.f32.mrb[0].mxu0
    %v576 = vadd.f32 0.0, %v575
    %v577 = vpop.f32.mrb[0].mxu0
    %578 = vmatprep.mubr.bf16.mxu0 0
    %579 = vmatmul.mubr.bf16.gmra.mrb[0].mxu0 %v315
    %v580 = vpop.f32.mrb[0].mxu0
    %v581 = vadd.f32 0.0, %v580
    %v582 = vpop.f32.mrb[0].mxu0
    %v583 = vpop.f32.mrb[0].mxu0
    %v584 = vadd.f32 0.0, %v583
    %v585 = vpop.f32.mrb[0].mxu0
    %586 = vmatprep.mubr.bf16.mxu0 0
    %587 = vmatmul.mubr.bf16.gmra.mrb[0].mxu0 %v316
    %v588 = vpop.f32.mrb[0].mxu0
    %v589 = vadd.f32 0.0, %v588
    %v590 = vpop.f32.mrb[0].mxu0
    %v591 = vpop.f32.mrb[0].mxu0
    %v592 = vadd.f32 0.0, %v591
    %v593 = vpop.f32.mrb[0].mxu0
    %594 = vmatprep.mubr.bf16.mxu0 0
    %595 = vmatmul.mubr.bf16.gmra.mrb[0].mxu0 %v317
    %v596 = vpop.f32.mrb[0].mxu0
    %v597 = vadd.f32 0.0, %v596
    %v598 = vpop.f32.mrb[0].mxu0
    %v599 = vpop.f32.mrb[0].mxu0
    %v600 = vadd.f32 0.0, %v599
    %v601 = vpop.f32.mrb[0].mxu0
    %602 = vmatprep.mubr.bf16.mxu0 0
    %603 = vmatmul.mubr.bf16.gmra.mrb[0].mxu0 %v318
    %v604 = vpop.f32.mrb[0].mxu0
    %v605 = vadd.f32 0.0, %v604
    %v606 = vpop.f32.mrb[0].mxu0
    %v607 = vpop.f32.mrb[0].mxu0
    %v608 = vadd.f32 0.0, %v607
    %v609 = vpop.f32.mrb[0].mxu0
    %610 = vmatprep.mubr.bf16.mxu0 0
    %611 = vmatmul.mubr.bf16.gmra.mrb[0].mxu0 %v319
    %v612 = vpop.f32.mrb[0].mxu0
    %v613 = vadd.f32 0.0, %v612
    %v614 = vpop.f32.mrb[0].mxu0
    %v615 = vpop.f32.mrb[0].mxu0
    %v616 = vadd.f32 0.0, %v615
    %v617 = vpop.f32.mrb[0].mxu0
    %618 = vmatprep.mubr.bf16.mxu0 0
    %619 = vmatmul.mubr.bf16.gmra.mrb[0].mxu0 %v320
    %v620 = vpop.f32.mrb[0].mxu0
    %v621 = vadd.f32 0.0, %v620
    %v622 = vpop.f32.mrb[0].mxu0
    %v623 = vpop.f32.mrb[0].mxu0
    %v624 = vadd.f32 0.0, %v623
    %v625 = vpop.f32.mrb[0].mxu0
    %626 = vmatprep.mubr.bf16.mxu0 0
    %627 = vmatmul.mubr.bf16.gmra.mrb[0].mxu0 %v321
    %v628 = vpop.f32.mrb[0].mxu0
    %v629 = vadd.f32 0.0, %v628
    %v630 = vpop.f32.mrb[0].mxu0
    %v631 = vpop.f32.mrb[0].mxu0
    %v632 = vadd.f32 0.0, %v631
    %v633 = vpop.f32.mrb[0].mxu0
    %634 = vmatprep.mubr.bf16.mxu0 0
    %635 = vmatmul.mubr.bf16.gmra.mrb[0].mxu0 %v322
    %v636 = vpop.f32.mrb[0].mxu0
    %v637 = vadd.f32 0.0, %v636
    %v638 = vpop.f32.mrb[0].mxu0
    %v639 = vpop.f32.mrb[0].mxu0
    %v640 = vadd.f32 0.0, %v639
    %v641 = vpop.f32.mrb[0].mxu0
    %642 = vmatprep.mubr.bf16.mxu0 0
    %643 = vmatmul.mubr.bf16.gmra.mrb[0].mxu0 %v323
    %v644 = vpop.f32.mrb[0].mxu0
    %v645 = vadd.f32 0.0, %v644
    %v646 = vpop.f32.mrb[0].mxu0
    %v647 = vpop.f32.mrb[0].mxu0
    %v648 = vadd.f32 0.0, %v647
    %v649 = vpop.f32.mrb[0].mxu0
    %650 = vmatprep.mubr.bf16.mxu0 0
    %651 = vmatmul.mubr.bf16.gmra.mrb[0].mxu0 %v324
    %v652 = vpop.f32.mrb[0].mxu0
    %v653 = vadd.f32 0.0, %v652
    %v654 = vpop.f32.mrb[0].mxu0
    %v655 = vpop.f32.mrb[0].mxu0
    %v656 = vadd.f32 0.0, %v655
    %v657 = vpop.f32.mrb[0].mxu0
    %658 = vmatprep.mubr.bf16.mxu0 0
    %659 = vmatmul.mubr.bf16.gmra.mrb[0].mxu0 %v325
    %v660 = vpop.f32.mrb[0].mxu0
    %v661 = vadd.f32 0.0, %v660
    %v662 = vpop.f32.mrb[0].mxu0
    %v663 = vpop.f32.mrb[0].mxu0
    %v664 = vadd.f32 0.0, %v663
    %v665 = vpop.f32.mrb[0].mxu0
    %666 = vmatprep.mubr.bf16.mxu0 0
    %667 = vmatmul.mubr.bf16.gmra.mrb[0].mxu0 %v326
    %v668 = vpop.f32.mrb[0].mxu0
    %v669 = vadd.f32 0.0, %v668
    %v670 = vpop.f32.mrb[0].mxu0
    %v671 = vpop.f32.mrb[0].mxu0
    %v672 = vadd.f32 0.0, %v671
    %v673 = vpop.f32.mrb[0].mxu0
    %674 = vmatprep.mubr.bf16.mxu0 0
    %675 = vmatmul.mubr.bf16.gmra.mrb[0].mxu0 %v327
    %v676 = vpop.f32.mrb[0].mxu0
    %v677 = vadd.f32 0.0, %v676
    %v678 = vpop.f32.mrb[0].mxu0
    %v679 = vpop.f32.mrb[0].mxu0
    %v680 = vadd.f32 0.0, %v679
    %v681 = vpop.f32.mrb[0].mxu0
    %682 = vmatprep.mubr.bf16.mxu0 0
    %683 = vmatmul.mubr.bf16.gmra.mrb[0].mxu0 %v328
    %v684 = vpop.f32.mrb[0].mxu0
    %v685 = vadd.f32 0.0, %v684
    %v686 = vpop.f32.mrb[0].mxu0
    %v687 = vpop.f32.mrb[0].mxu0
    %v688 = vadd.f32 0.0, %v687
    %v689 = vpop.f32.mrb[0].mxu0
    %690 = vmatprep.mubr.bf16.mxu0 0
    %691 = vmatmul.mubr.bf16.gmra.mrb[0].mxu0 %v329
    %v692 = vpop.f32.mrb[0].mxu0
    %v693 = vadd.f32 0.0, %v692
    %v694 = vpop.f32.mrb[0].mxu0
    %v695 = vpop.f32.mrb[0].mxu0
    %v696 = vadd.f32 0.0, %v695
    %v697 = vpop.f32.mrb[0].mxu0
    %698 = vdwg.mxu0
    %v699 = vld [vmem:[#allocation8] sm:$0x1]
    %v701 = vlaneseq
    %v702 = vshrl.u32 %v701, 7
    %v703 = vsub.s32 0, %v702
    %v704 = vrot.slane %v699, %v703
    %v706 = vmul.f32 %v445, %v704
    %v707 = vmul.f32 %v448, %v704
    %v708 = vmul.f32 %v453, %v704
    %v709 = vmul.f32 %v456, %v704
    %v710 = vmul.f32 %v461, %v704
    %v711 = vmul.f32 %v464, %v704
    %v712 = vmul.f32 %v469, %v704
    %v713 = vmul.f32 %v472, %v704
    %v714 = vmul.f32 %v477, %v704
    %v715 = vmul.f32 %v480, %v704
    %v716 = vmul.f32 %v485, %v704
    %v717 = vmul.f32 %v488, %v704
    %v718 = vmul.f32 %v493, %v704
    %v719 = vmul.f32 %v496, %v704
    %v720 = vmul.f32 %v501, %v704
    %v721 = vmul.f32 %v504, %v704
    %v722 = vmul.f32 %v509, %v704
    %v723 = vmul.f32 %v512, %v704
    %v724 = vmul.f32 %v517, %v704
    %v725 = vmul.f32 %v520, %v704
    %v726 = vmul.f32 %v525, %v704
    %v727 = vmul.f32 %v528, %v704
    %v728 = vmul.f32 %v533, %v704
    %v729 = vmul.f32 %v536, %v704
    %v730 = vmul.f32 %v541, %v704
    %v731 = vmul.f32 %v544, %v704
    %v732 = vmul.f32 %v549, %v704
    %v733 = vmul.f32 %v552, %v704
    %v734 = vmul.f32 %v557, %v704
    %v735 = vmul.f32 %v560, %v704
    %v736 = vmul.f32 %v565, %v704
    %v737 = vmul.f32 %v568, %v704
    %v738 = vmul.f32 %v573, %v704
    %v739 = vmul.f32 %v576, %v704
    %v740 = vmul.f32 %v581, %v704
    %v741 = vmul.f32 %v584, %v704
    %v742 = vmul.f32 %v589, %v704
    %v743 = vmul.f32 %v592, %v704
    %v744 = vmul.f32 %v597, %v704
    %v745 = vmul.f32 %v600, %v704
    %v746 = vmul.f32 %v605, %v704
    %v747 = vmul.f32 %v608, %v704
    %v748 = vmul.f32 %v613, %v704
    %v749 = vmul.f32 %v616, %v704
    %v750 = vmul.f32 %v621, %v704
    %v751 = vmul.f32 %v624, %v704
    %v752 = vmul.f32 %v629, %v704
    %v753 = vmul.f32 %v632, %v704
    %v754 = vmul.f32 %v637, %v704
    %v755 = vmul.f32 %v640, %v704
    %v756 = vmul.f32 %v645, %v704
    %v757 = vmul.f32 %v648, %v704
    %v758 = vmul.f32 %v653, %v704
    %v759 = vmul.f32 %v656, %v704
    %v760 = vmul.f32 %v661, %v704
    %v761 = vmul.f32 %v664, %v704
    %v762 = vmul.f32 %v669, %v704
    %v763 = vmul.f32 %v672, %v704
    %v764 = vmul.f32 %v677, %v704
    %v765 = vmul.f32 %v680, %v704
    %v766 = vmul.f32 %v685, %v704
    %v767 = vmul.f32 %v688, %v704
    %v768 = vmul.f32 %v693, %v704
    %v769 = vmul.f32 %v696, %v704
    %v770 = vld [vmem:[#allocation10] sm:$0x1]
    %v772 = vlaneseq
    %v773 = vshrl.u32 %v772, 7
    %v774 = vsub.s32 0, %v773
    %v775 = vrot.slane %v770, %v774
    %v777 = vadd.f32 %v706, %v775
    %v778 = vadd.f32 %v707, %v775
    %v779 = vadd.f32 %v708, %v775
    %v780 = vadd.f32 %v709, %v775
    %v781 = vadd.f32 %v710, %v775
    %v782 = vadd.f32 %v711, %v775
    %v783 = vadd.f32 %v712, %v775
    %v784 = vadd.f32 %v713, %v775
    %v785 = vadd.f32 %v714, %v775
    %v786 = vadd.f32 %v715, %v775
    %v787 = vadd.f32 %v716, %v775
    %v788 = vadd.f32 %v717, %v775
    %v789 = vadd.f32 %v718, %v775
    %v790 = vadd.f32 %v719, %v775
    %v791 = vadd.f32 %v720, %v775
    %v792 = vadd.f32 %v721, %v775
    %v793 = vadd.f32 %v722, %v775
    %v794 = vadd.f32 %v723, %v775
    %v795 = vadd.f32 %v724, %v775
    %v796 = vadd.f32 %v725, %v775
    %v797 = vadd.f32 %v726, %v775
    %v798 = vadd.f32 %v727, %v775
    %v799 = vadd.f32 %v728, %v775
    %v800 = vadd.f32 %v729, %v775
    %v801 = vadd.f32 %v730, %v775
    %v802 = vadd.f32 %v731, %v775
    %v803 = vadd.f32 %v732, %v775
    %v804 = vadd.f32 %v733, %v775
    %v805 = vadd.f32 %v734, %v775
    %v806 = vadd.f32 %v735, %v775
    %v807 = vadd.f32 %v736, %v775
    %v808 = vadd.f32 %v737, %v775
    %v809 = vadd.f32 %v738, %v775
    %v810 = vadd.f32 %v739, %v775
    %v811 = vadd.f32 %v740, %v775
    %v812 = vadd.f32 %v741, %v775
    %v813 = vadd.f32 %v742, %v775
    %v814 = vadd.f32 %v743, %v775
    %v815 = vadd.f32 %v744, %v775
    %v816 = vadd.f32 %v745, %v775
    %v817 = vadd.f32 %v746, %v775
    %v818 = vadd.f32 %v747, %v775
    %v819 = vadd.f32 %v748, %v775
    %v820 = vadd.f32 %v749, %v775
    %v821 = vadd.f32 %v750, %v775
    %v822 = vadd.f32 %v751, %v775
    %v823 = vadd.f32 %v752, %v775
    %v824 = vadd.f32 %v753, %v775
    %v825 = vadd.f32 %v754, %v775
    %v826 = vadd.f32 %v755, %v775
    %v827 = vadd.f32 %v756, %v775
    %v828 = vadd.f32 %v757, %v775
    %v829 = vadd.f32 %v758, %v775
    %v830 = vadd.f32 %v759, %v775
    %v831 = vadd.f32 %v760, %v775
    %v832 = vadd.f32 %v761, %v775
    %v833 = vadd.f32 %v762, %v775
    %v834 = vadd.f32 %v763, %v775
    %v835 = vadd.f32 %v764, %v775
    %v836 = vadd.f32 %v765, %v775
    %v837 = vadd.f32 %v766, %v775
    %v838 = vadd.f32 %v767, %v775
    %v839 = vadd.f32 %v768, %v775
    %v840 = vadd.f32 %v769, %v775
    %v841 = vmax.f32 %v777, 0.0
    %v842 = vmax.f32 %v778, 0.0
    %v843 = vmax.f32 %v779, 0.0
    %v844 = vmax.f32 %v780, 0.0
    %v845 = vmax.f32 %v781, 0.0
    %v846 = vmax.f32 %v782, 0.0
    %v847 = vmax.f32 %v783, 0.0
    %v848 = vmax.f32 %v784, 0.0
    %v849 = vmax.f32 %v785, 0.0
    %v850 = vmax.f32 %v786, 0.0
    %v851 = vmax.f32 %v787, 0.0
    %v852 = vmax.f32 %v788, 0.0
    %v853 = vmax.f32 %v789, 0.0
    %v854 = vmax.f32 %v790, 0.0
    %v855 = vmax.f32 %v791, 0.0
    %v856 = vmax.f32 %v792, 0.0
    %v857 = vmax.f32 %v793, 0.0
    %v858 = vmax.f32 %v794, 0.0
    %v859 = vmax.f32 %v795, 0.0
    %v860 = vmax.f32 %v796, 0.0
    %v861 = vmax.f32 %v797, 0.0
    %v862 = vmax.f32 %v798, 0.0
    %v863 = vmax.f32 %v799, 0.0
    %v864 = vmax.f32 %v800, 0.0
    %v865 = vmax.f32 %v801, 0.0
    %v866 = vmax.f32 %v802, 0.0
    %v867 = vmax.f32 %v803, 0.0
    %v868 = vmax.f32 %v804, 0.0
    %v869 = vmax.f32 %v805, 0.0
    %v870 = vmax.f32 %v806, 0.0
    %v871 = vmax.f32 %v807, 0.0
    %v872 = vmax.f32 %v808, 0.0
    %v873 = vmax.f32 %v809, 0.0
    %v874 = vmax.f32 %v810, 0.0
    %v875 = vmax.f32 %v811, 0.0
    %v876 = vmax.f32 %v812, 0.0
    %v877 = vmax.f32 %v813, 0.0
    %v878 = vmax.f32 %v814, 0.0
    %v879 = vmax.f32 %v815, 0.0
    %v880 = vmax.f32 %v816, 0.0
    %v881 = vmax.f32 %v817, 0.0
    %v882 = vmax.f32 %v818, 0.0
    %v883 = vmax.f32 %v819, 0.0
    %v884 = vmax.f32 %v820, 0.0
    %v885 = vmax.f32 %v821, 0.0
    %v886 = vmax.f32 %v822, 0.0
    %v887 = vmax.f32 %v823, 0.0
    %v888 = vmax.f32 %v824, 0.0
    %v889 = vmax.f32 %v825, 0.0
    %v890 = vmax.f32 %v826, 0.0
    %v891 = vmax.f32 %v827, 0.0
    %v892 = vmax.f32 %v828, 0.0
    %v893 = vmax.f32 %v829, 0.0
    %v894 = vmax.f32 %v830, 0.0
    %v895 = vmax.f32 %v831, 0.0
    %v896 = vmax.f32 %v832, 0.0
    %v897 = vmax.f32 %v833, 0.0
    %v898 = vmax.f32 %v834, 0.0
    %v899 = vmax.f32 %v835, 0.0
    %v900 = vmax.f32 %v836, 0.0
    %v901 = vmax.f32 %v837, 0.0
    %v902 = vmax.f32 %v838, 0.0
    %v903 = vmax.f32 %v839, 0.0
    %v904 = vmax.f32 %v840, 0.0
    %v905 = vld [vmem:[#allocation5] sm:$0xff]
    %v906 = vld [vmem:[#allocation5 + $0x8] sm:$0xff]
    %v907 = vld [vmem:[#allocation5 + $0x10] sm:$0xff]
    %v908 = vld [vmem:[#allocation5 + $0x18] sm:$0xff]
    %v909 = vld [vmem:[#allocation5 + $0x20] sm:$0xff]
    %v910 = vld [vmem:[#allocation5 + $0x28] sm:$0xff]
    %v911 = vld [vmem:[#allocation5 + $0x30] sm:$0xff]
    %v912 = vld [vmem:[#allocation5 + $0x38] sm:$0xff]
    %v913 = vld [vmem:[#allocation5 + $0x40] sm:$0xff]
    %v914 = vld [vmem:[#allocation5 + $0x48] sm:$0xff]
    %v915 = vld [vmem:[#allocation5 + $0x50] sm:$0xff]
    %v916 = vld [vmem:[#allocation5 + $0x58] sm:$0xff]
    %v917 = vld [vmem:[#allocation5 + $0x60] sm:$0xff]
    %v918 = vld [vmem:[#allocation5 + $0x68] sm:$0xff]
    %v919 = vld [vmem:[#allocation5 + $0x70] sm:$0xff]
    %v920 = vld [vmem:[#allocation5 + $0x78] sm:$0xff]
    %v921 = vld [vmem:[#allocation5 + $0x80] sm:$0xff]
    %v922 = vld [vmem:[#allocation5 + $0x88] sm:$0xff]
    %v923 = vld [vmem:[#allocation5 + $0x90] sm:$0xff]
    %v924 = vld [vmem:[#allocation5 + $0x98] sm:$0xff]
    %v925 = vld [vmem:[#allocation5 + $0xa0] sm:$0xff]
    %v926 = vld [vmem:[#allocation5 + $0xa8] sm:$0xff]
    %v927 = vld [vmem:[#allocation5 + $0xb0] sm:$0xff]
    %v928 = vld [vmem:[#allocation5 + $0xb8] sm:$0xff]
    %v929 = vld [vmem:[#allocation5 + $0xc0] sm:$0xff]
    %v930 = vld [vmem:[#allocation5 + $0xc8] sm:$0xff]
    %v931 = vld [vmem:[#allocation5 + $0xd0] sm:$0xff]
    %v932 = vld [vmem:[#allocation5 + $0xd8] sm:$0xff]
    %v933 = vld [vmem:[#allocation5 + $0xe0] sm:$0xff]
    %v934 = vld [vmem:[#allocation5 + $0xe8] sm:$0xff]
    %v935 = vld [vmem:[#allocation5 + $0xf0] sm:$0xff]
    %v936 = vld [vmem:[#allocation5 + $0xf8] sm:$0xff]
    %v937 = vld [vmem:[#allocation5 + $0x100] sm:$0xff]
    %v938 = vld [vmem:[#allocation5 + $0x108] sm:$0xff]
    %v939 = vld [vmem:[#allocation5 + $0x110] sm:$0xff]
    %v940 = vld [vmem:[#allocation5 + $0x118] sm:$0xff]
    %v941 = vld [vmem:[#allocation5 + $0x120] sm:$0xff]
    %v942 = vld [vmem:[#allocation5 + $0x128] sm:$0xff]
    %v943 = vld [vmem:[#allocation5 + $0x130] sm:$0xff]
    %v944 = vld [vmem:[#allocation5 + $0x138] sm:$0xff]
    %v945 = vld [vmem:[#allocation5 + $0x140] sm:$0xff]
    %v946 = vld [vmem:[#allocation5 + $0x148] sm:$0xff]
    %v947 = vld [vmem:[#allocation5 + $0x150] sm:$0xff]
    %v948 = vld [vmem:[#allocation5 + $0x158] sm:$0xff]
    %v949 = vld [vmem:[#allocation5 + $0x160] sm:$0xff]
    %v950 = vld [vmem:[#allocation5 + $0x168] sm:$0xff]
    %v951 = vld [vmem:[#allocation5 + $0x170] sm:$0xff]
    %v952 = vld [vmem:[#allocation5 + $0x178] sm:$0xff]
    %v953 = vld [vmem:[#allocation5 + $0x180] sm:$0xff]
    %v954 = vld [vmem:[#allocation5 + $0x188] sm:$0xff]
    %v955 = vld [vmem:[#allocation5 + $0x190] sm:$0xff]
    %v956 = vld [vmem:[#allocation5 + $0x198] sm:$0xff]
    %v957 = vld [vmem:[#allocation5 + $0x1a0] sm:$0xff]
    %v958 = vld [vmem:[#allocation5 + $0x1a8] sm:$0xff]
    %v959 = vld [vmem:[#allocation5 + $0x1b0] sm:$0xff]
    %v960 = vld [vmem:[#allocation5 + $0x1b8] sm:$0xff]
    %v961 = vld [vmem:[#allocation5 + $0x1c0] sm:$0xff]
    %v962 = vld [vmem:[#allocation5 + $0x1c8] sm:$0xff]
    %v963 = vld [vmem:[#allocation5 + $0x1d0] sm:$0xff]
    %v964 = vld [vmem:[#allocation5 + $0x1d8] sm:$0xff]
    %v965 = vld [vmem:[#allocation5 + $0x1e0] sm:$0xff]
    %v966 = vld [vmem:[#allocation5 + $0x1e8] sm:$0xff]
    %v967 = vld [vmem:[#allocation5 + $0x1f0] sm:$0xff]
    %v968 = vld [vmem:[#allocation5 + $0x1f8] sm:$0xff]
    %970 = vset.pattern.permute.xlu0 0
    %971 = vperm.xlu0 %970, %v905
    %v972 = vpop.permute.xlu0 %971
    %975 = vset.pattern.permute.xlu0 0
    %976 = vperm.xlu0 %975, %v906
    %v977 = vpop.permute.xlu0 %976
    %980 = vset.pattern.permute.xlu0 0
    %981 = vperm.xlu0 %980, %v907
    %v982 = vpop.permute.xlu0 %981
    %985 = vset.pattern.permute.xlu0 0
    %986 = vperm.xlu0 %985, %v908
    %v987 = vpop.permute.xlu0 %986
    %990 = vset.pattern.permute.xlu0 0
    %991 = vperm.xlu0 %990, %v909
    %v992 = vpop.permute.xlu0 %991
    %995 = vset.pattern.permute.xlu0 0
    %996 = vperm.xlu0 %995, %v910
    %v997 = vpop.permute.xlu0 %996
    %1000 = vset.pattern.permute.xlu0 0
    %1001 = vperm.xlu0 %1000, %v911
    %v1002 = vpop.permute.xlu0 %1001
    %1005 = vset.pattern.permute.xlu0 0
    %1006 = vperm.xlu0 %1005, %v912
    %v1007 = vpop.permute.xlu0 %1006
    %1010 = vset.pattern.permute.xlu0 0
    %1011 = vperm.xlu0 %1010, %v913
    %v1012 = vpop.permute.xlu0 %1011
    %1015 = vset.pattern.permute.xlu0 0
    %1016 = vperm.xlu0 %1015, %v914
    %v1017 = vpop.permute.xlu0 %1016
    %1020 = vset.pattern.permute.xlu0 0
    %1021 = vperm.xlu0 %1020, %v915
    %v1022 = vpop.permute.xlu0 %1021
    %1025 = vset.pattern.permute.xlu0 0
    %1026 = vperm.xlu0 %1025, %v916
    %v1027 = vpop.permute.xlu0 %1026
    %1030 = vset.pattern.permute.xlu0 0
    %1031 = vperm.xlu0 %1030, %v917
    %v1032 = vpop.permute.xlu0 %1031
    %1035 = vset.pattern.permute.xlu0 0
    %1036 = vperm.xlu0 %1035, %v918
    %v1037 = vpop.permute.xlu0 %1036
    %1040 = vset.pattern.permute.xlu0 0
    %1041 = vperm.xlu0 %1040, %v919
    %v1042 = vpop.permute.xlu0 %1041
    %1045 = vset.pattern.permute.xlu0 0
    %1046 = vperm.xlu0 %1045, %v920
    %v1047 = vpop.permute.xlu0 %1046
    %1050 = vset.pattern.permute.xlu0 0
    %1051 = vperm.xlu0 %1050, %v921
    %v1052 = vpop.permute.xlu0 %1051
    %1055 = vset.pattern.permute.xlu0 0
    %1056 = vperm.xlu0 %1055, %v922
    %v1057 = vpop.permute.xlu0 %1056
    %1060 = vset.pattern.permute.xlu0 0
    %1061 = vperm.xlu0 %1060, %v923
    %v1062 = vpop.permute.xlu0 %1061
    %1065 = vset.pattern.permute.xlu0 0
    %1066 = vperm.xlu0 %1065, %v924
    %v1067 = vpop.permute.xlu0 %1066
    %1070 = vset.pattern.permute.xlu0 0
    %1071 = vperm.xlu0 %1070, %v925
    %v1072 = vpop.permute.xlu0 %1071
    %1075 = vset.pattern.permute.xlu0 0
    %1076 = vperm.xlu0 %1075, %v926
    %v1077 = vpop.permute.xlu0 %1076
    %1080 = vset.pattern.permute.xlu0 0
    %1081 = vperm.xlu0 %1080, %v927
    %v1082 = vpop.permute.xlu0 %1081
    %1085 = vset.pattern.permute.xlu0 0
    %1086 = vperm.xlu0 %1085, %v928
    %v1087 = vpop.permute.xlu0 %1086
    %1090 = vset.pattern.permute.xlu0 0
    %1091 = vperm.xlu0 %1090, %v929
    %v1092 = vpop.permute.xlu0 %1091
    %1095 = vset.pattern.permute.xlu0 0
    %1096 = vperm.xlu0 %1095, %v930
    %v1097 = vpop.permute.xlu0 %1096
    %1100 = vset.pattern.permute.xlu0 0
    %1101 = vperm.xlu0 %1100, %v931
    %v1102 = vpop.permute.xlu0 %1101
    %1105 = vset.pattern.permute.xlu0 0
    %1106 = vperm.xlu0 %1105, %v932
    %v1107 = vpop.permute.xlu0 %1106
    %1110 = vset.pattern.permute.xlu0 0
    %1111 = vperm.xlu0 %1110, %v933
    %v1112 = vpop.permute.xlu0 %1111
    %1115 = vset.pattern.permute.xlu0 0
    %1116 = vperm.xlu0 %1115, %v934
    %v1117 = vpop.permute.xlu0 %1116
    %1120 = vset.pattern.permute.xlu0 0
    %1121 = vperm.xlu0 %1120, %v935
    %v1122 = vpop.permute.xlu0 %1121
    %1125 = vset.pattern.permute.xlu0 0
    %1126 = vperm.xlu0 %1125, %v936
    %v1127 = vpop.permute.xlu0 %1126
    %1130 = vset.pattern.permute.xlu0 0
    %1131 = vperm.xlu0 %1130, %v937
    %v1132 = vpop.permute.xlu0 %1131
    %1135 = vset.pattern.permute.xlu0 0
    %1136 = vperm.xlu0 %1135, %v938
    %v1137 = vpop.permute.xlu0 %1136
    %1140 = vset.pattern.permute.xlu0 0
    %1141 = vperm.xlu0 %1140, %v939
    %v1142 = vpop.permute.xlu0 %1141
    %1145 = vset.pattern.permute.xlu0 0
    %1146 = vperm.xlu0 %1145, %v940
    %v1147 = vpop.permute.xlu0 %1146
    %1150 = vset.pattern.permute.xlu0 0
    %1151 = vperm.xlu0 %1150, %v941
    %v1152 = vpop.permute.xlu0 %1151
    %1155 = vset.pattern.permute.xlu0 0
    %1156 = vperm.xlu0 %1155, %v942
    %v1157 = vpop.permute.xlu0 %1156
    %1160 = vset.pattern.permute.xlu0 0
    %1161 = vperm.xlu0 %1160, %v943
    %v1162 = vpop.permute.xlu0 %1161
    %1165 = vset.pattern.permute.xlu0 0
    %1166 = vperm.xlu0 %1165, %v944
    %v1167 = vpop.permute.xlu0 %1166
    %1170 = vset.pattern.permute.xlu0 0
    %1171 = vperm.xlu0 %1170, %v945
    %v1172 = vpop.permute.xlu0 %1171
    %1175 = vset.pattern.permute.xlu0 0
    %1176 = vperm.xlu0 %1175, %v946
    %v1177 = vpop.permute.xlu0 %1176
    %1180 = vset.pattern.permute.xlu0 0
    %1181 = vperm.xlu0 %1180, %v947
    %v1182 = vpop.permute.xlu0 %1181
    %1185 = vset.pattern.permute.xlu0 0
    %1186 = vperm.xlu0 %1185, %v948
    %v1187 = vpop.permute.xlu0 %1186
    %1190 = vset.pattern.permute.xlu0 0
    %1191 = vperm.xlu0 %1190, %v949
    %v1192 = vpop.permute.xlu0 %1191
    %1195 = vset.pattern.permute.xlu0 0
    %1196 = vperm.xlu0 %1195, %v950
    %v1197 = vpop.permute.xlu0 %1196
    %1200 = vset.pattern.permute.xlu0 0
    %1201 = vperm.xlu0 %1200, %v951
    %v1202 = vpop.permute.xlu0 %1201
    %1205 = vset.pattern.permute.xlu0 0
    %1206 = vperm.xlu0 %1205, %v952
    %v1207 = vpop.permute.xlu0 %1206
    %1210 = vset.pattern.permute.xlu0 0
    %1211 = vperm.xlu0 %1210, %v953
    %v1212 = vpop.permute.xlu0 %1211
    %1215 = vset.pattern.permute.xlu0 0
    %1216 = vperm.xlu0 %1215, %v954
    %v1217 = vpop.permute.xlu0 %1216
    %1220 = vset.pattern.permute.xlu0 0
    %1221 = vperm.xlu0 %1220, %v955
    %v1222 = vpop.permute.xlu0 %1221
    %1225 = vset.pattern.permute.xlu0 0
    %1226 = vperm.xlu0 %1225, %v956
    %v1227 = vpop.permute.xlu0 %1226
    %1230 = vset.pattern.permute.xlu0 0
    %1231 = vperm.xlu0 %1230, %v957
    %v1232 = vpop.permute.xlu0 %1231
    %1235 = vset.pattern.permute.xlu0 0
    %1236 = vperm.xlu0 %1235, %v958
    %v1237 = vpop.permute.xlu0 %1236
    %1240 = vset.pattern.permute.xlu0 0
    %1241 = vperm.xlu0 %1240, %v959
    %v1242 = vpop.permute.xlu0 %1241
    %1245 = vset.pattern.permute.xlu0 0
    %1246 = vperm.xlu0 %1245, %v960
    %v1247 = vpop.permute.xlu0 %1246
    %1250 = vset.pattern.permute.xlu0 0
    %1251 = vperm.xlu0 %1250, %v961
    %v1252 = vpop.permute.xlu0 %1251
    %1255 = vset.pattern.permute.xlu0 0
    %1256 = vperm.xlu0 %1255, %v962
    %v1257 = vpop.permute.xlu0 %1256
    %1260 = vset.pattern.permute.xlu0 0
    %1261 = vperm.xlu0 %1260, %v963
    %v1262 = vpop.permute.xlu0 %1261
    %1265 = vset.pattern.permute.xlu0 0
    %1266 = vperm.xlu0 %1265, %v964
    %v1267 = vpop.permute.xlu0 %1266
    %1270 = vset.pattern.permute.xlu0 0
    %1271 = vperm.xlu0 %1270, %v965
    %v1272 = vpop.permute.xlu0 %1271
    %1275 = vset.pattern.permute.xlu0 0
    %1276 = vperm.xlu0 %1275, %v966
    %v1277 = vpop.permute.xlu0 %1276
    %1280 = vset.pattern.permute.xlu0 0
    %1281 = vperm.xlu0 %1280, %v967
    %v1282 = vpop.permute.xlu0 %1281
    %1285 = vset.pattern.permute.xlu0 0
    %1286 = vperm.xlu0 %1285, %v968
    %v1287 = vpop.permute.xlu0 %1286
    %v1289 = vmul.f32 %v841, %v972
    %v1290 = vmul.f32 %v842, %v977
    %v1291 = vmul.f32 %v843, %v982
    %v1292 = vmul.f32 %v844, %v987
    %v1293 = vmul.f32 %v845, %v992
    %v1294 = vmul.f32 %v846, %v997
    %v1295 = vmul.f32 %v847, %v1002
    %v1296 = vmul.f32 %v848, %v1007
    %v1297 = vmul.f32 %v849, %v1012
    %v1298 = vmul.f32 %v850, %v1017
    %v1299 = vmul.f32 %v851, %v1022
    %v1300 = vmul.f32 %v852, %v1027
    %v1301 = vmul.f32 %v853, %v1032
    %v1302 = vmul.f32 %v854, %v1037
    %v1303 = vmul.f32 %v855, %v1042
    %v1304 = vmul.f32 %v856, %v1047
    %v1305 = vmul.f32 %v857, %v1052
    %v1306 = vmul.f32 %v858, %v1057
    %v1307 = vmul.f32 %v859, %v1062
    %v1308 = vmul.f32 %v860, %v1067
    %v1309 = vmul.f32 %v861, %v1072
    %v1310 = vmul.f32 %v862, %v1077
    %v1311 = vmul.f32 %v863, %v1082
    %v1312 = vmul.f32 %v864, %v1087
    %v1313 = vmul.f32 %v865, %v1092
    %v1314 = vmul.f32 %v866, %v1097
    %v1315 = vmul.f32 %v867, %v1102
    %v1316 = vmul.f32 %v868, %v1107
    %v1317 = vmul.f32 %v869, %v1112
    %v1318 = vmul.f32 %v870, %v1117
    %v1319 = vmul.f32 %v871, %v1122
    %v1320 = vmul.f32 %v872, %v1127
    %v1321 = vmul.f32 %v873, %v1132
    %v1322 = vmul.f32 %v874, %v1137
    %v1323 = vmul.f32 %v875, %v1142
    %v1324 = vmul.f32 %v876, %v1147
    %v1325 = vmul.f32 %v877, %v1152
    %v1326 = vmul.f32 %v878, %v1157
    %v1327 = vmul.f32 %v879, %v1162
    %v1328 = vmul.f32 %v880, %v1167
    %v1329 = vmul.f32 %v881, %v1172
    %v1330 = vmul.f32 %v882, %v1177
    %v1331 = vmul.f32 %v883, %v1182
    %v1332 = vmul.f32 %v884, %v1187
    %v1333 = vmul.f32 %v885, %v1192
    %v1334 = vmul.f32 %v886, %v1197
    %v1335 = vmul.f32 %v887, %v1202
    %v1336 = vmul.f32 %v888, %v1207
    %v1337 = vmul.f32 %v889, %v1212
    %v1338 = vmul.f32 %v890, %v1217
    %v1339 = vmul.f32 %v891, %v1222
    %v1340 = vmul.f32 %v892, %v1227
    %v1341 = vmul.f32 %v893, %v1232
    %v1342 = vmul.f32 %v894, %v1237
    %v1343 = vmul.f32 %v895, %v1242
    %v1344 = vmul.f32 %v896, %v1247
    %v1345 = vmul.f32 %v897, %v1252
    %v1346 = vmul.f32 %v898, %v1257
    %v1347 = vmul.f32 %v899, %v1262
    %v1348 = vmul.f32 %v900, %v1267
    %v1349 = vmul.f32 %v901, %v1272
    %v1350 = vmul.f32 %v902, %v1277
    %v1351 = vmul.f32 %v903, %v1282
    %v1352 = vmul.f32 %v904, %v1287
    %v1353 = vpack.c.bf16 %v1290, %v1289
    %v1354 = vpack.c.bf16 %v1292, %v1291
    %v1355 = vpack.c.bf16 %v1294, %v1293
    %v1356 = vpack.c.bf16 %v1296, %v1295
    %v1357 = vpack.c.bf16 %v1298, %v1297
    %v1358 = vpack.c.bf16 %v1300, %v1299
    %v1359 = vpack.c.bf16 %v1302, %v1301
    %v1360 = vpack.c.bf16 %v1304, %v1303
    %v1361 = vpack.c.bf16 %v1306, %v1305
    %v1362 = vpack.c.bf16 %v1308, %v1307
    %v1363 = vpack.c.bf16 %v1310, %v1309
    %v1364 = vpack.c.bf16 %v1312, %v1311
    %v1365 = vpack.c.bf16 %v1314, %v1313
    %v1366 = vpack.c.bf16 %v1316, %v1315
    %v1367 = vpack.c.bf16 %v1318, %v1317
    %v1368 = vpack.c.bf16 %v1320, %v1319
    %v1369 = vpack.c.bf16 %v1322, %v1321
    %v1370 = vpack.c.bf16 %v1324, %v1323
    %v1371 = vpack.c.bf16 %v1326, %v1325
    %v1372 = vpack.c.bf16 %v1328, %v1327
    %v1373 = vpack.c.bf16 %v1330, %v1329
    %v1374 = vpack.c.bf16 %v1332, %v1331
    %v1375 = vpack.c.bf16 %v1334, %v1333
    %v1376 = vpack.c.bf16 %v1336, %v1335
    %v1377 = vpack.c.bf16 %v1338, %v1337
    %v1378 = vpack.c.bf16 %v1340, %v1339
    %v1379 = vpack.c.bf16 %v1342, %v1341
    %v1380 = vpack.c.bf16 %v1344, %v1343
    %v1381 = vpack.c.bf16 %v1346, %v1345
    %v1382 = vpack.c.bf16 %v1348, %v1347
    %v1383 = vpack.c.bf16 %v1350, %v1349
    %v1384 = vpack.c.bf16 %v1352, %v1351
    %v1417 = vunpack.c.l.b16 %v1353
    %v1418 = vunpack.c.h.b16 %v1353
    %v1419 = vunpack.c.l.b16 %v1354
    %v1420 = vunpack.c.h.b16 %v1354
    %v1421 = vunpack.c.l.b16 %v1355
    %v1422 = vunpack.c.h.b16 %v1355
    %v1423 = vunpack.c.l.b16 %v1356
    %v1424 = vunpack.c.h.b16 %v1356
    %v1425 = vunpack.c.l.b16 %v1357
    %v1426 = vunpack.c.h.b16 %v1357
    %v1427 = vunpack.c.l.b16 %v1358
    %v1428 = vunpack.c.h.b16 %v1358
    %v1429 = vunpack.c.l.b16 %v1359
    %v1430 = vunpack.c.h.b16 %v1359
    %v1431 = vunpack.c.l.b16 %v1360
    %v1432 = vunpack.c.h.b16 %v1360
    %v1433 = vunpack.c.l.b16 %v1361
    %v1434 = vunpack.c.h.b16 %v1361
    %v1435 = vunpack.c.l.b16 %v1362
    %v1436 = vunpack.c.h.b16 %v1362
    %v1437 = vunpack.c.l.b16 %v1363
    %v1438 = vunpack.c.h.b16 %v1363
    %v1439 = vunpack.c.l.b16 %v1364
    %v1440 = vunpack.c.h.b16 %v1364
    %v1441 = vunpack.c.l.b16 %v1365
    %v1442 = vunpack.c.h.b16 %v1365
    %v1443 = vunpack.c.l.b16 %v1366
    %v1444 = vunpack.c.h.b16 %v1366
    %v1445 = vunpack.c.l.b16 %v1367
    %v1446 = vunpack.c.h.b16 %v1367
    %v1447 = vunpack.c.l.b16 %v1368
    %v1448 = vunpack.c.h.b16 %v1368
    %v1449 = vunpack.c.l.b16 %v1369
    %v1450 = vunpack.c.h.b16 %v1369
    %v1451 = vunpack.c.l.b16 %v1370
    %v1452 = vunpack.c.h.b16 %v1370
    %v1453 = vunpack.c.l.b16 %v1371
    %v1454 = vunpack.c.h.b16 %v1371
    %v1455 = vunpack.c.l.b16 %v1372
    %v1456 = vunpack.c.h.b16 %v1372
    %v1457 = vunpack.c.l.b16 %v1373
    %v1458 = vunpack.c.h.b16 %v1373
    %v1459 = vunpack.c.l.b16 %v1374
    %v1460 = vunpack.c.h.b16 %v1374
    %v1461 = vunpack.c.l.b16 %v1375
    %v1462 = vunpack.c.h.b16 %v1375
    %v1463 = vunpack.c.l.b16 %v1376
    %v1464 = vunpack.c.h.b16 %v1376
    %v1465 = vunpack.c.l.b16 %v1377
    %v1466 = vunpack.c.h.b16 %v1377
    %v1467 = vunpack.c.l.b16 %v1378
    %v1468 = vunpack.c.h.b16 %v1378
    %v1469 = vunpack.c.l.b16 %v1379
    %v1470 = vunpack.c.h.b16 %v1379
    %v1471 = vunpack.c.l.b16 %v1380
    %v1472 = vunpack.c.h.b16 %v1380
    %v1473 = vunpack.c.l.b16 %v1381
    %v1474 = vunpack.c.h.b16 %v1381
    %v1475 = vunpack.c.l.b16 %v1382
    %v1476 = vunpack.c.h.b16 %v1382
    %v1477 = vunpack.c.l.b16 %v1383
    %v1478 = vunpack.c.h.b16 %v1383
    %v1479 = vunpack.c.l.b16 %v1384
    %v1480 = vunpack.c.h.b16 %v1384
    %v1481 = vpack.c.b16 %v1417, %v1417
    %v1482 = vpack.c.b16 %v1418, %v1418
    %v1483 = vpack.c.b16 %v1419, %v1419
    %v1484 = vpack.c.b16 %v1420, %v1420
    %v1485 = vpack.c.b16 %v1421, %v1421
    %v1486 = vpack.c.b16 %v1422, %v1422
    %v1487 = vpack.c.b16 %v1423, %v1423
    %v1488 = vpack.c.b16 %v1424, %v1424
    %v1489 = vpack.c.b16 %v1425, %v1425
    %v1490 = vpack.c.b16 %v1426, %v1426
    %v1491 = vpack.c.b16 %v1427, %v1427
    %v1492 = vpack.c.b16 %v1428, %v1428
    %v1493 = vpack.c.b16 %v1429, %v1429
    %v1494 = vpack.c.b16 %v1430, %v1430
    %v1495 = vpack.c.b16 %v1431, %v1431
    %v1496 = vpack.c.b16 %v1432, %v1432
    %v1497 = vpack.c.b16 %v1433, %v1433
    %v1498 = vpack.c.b16 %v1434, %v1434
    %v1499 = vpack.c.b16 %v1435, %v1435
    %v1500 = vpack.c.b16 %v1436, %v1436
    %v1501 = vpack.c.b16 %v1437, %v1437
    %v1502 = vpack.c.b16 %v1438, %v1438
    %v1503 = vpack.c.b16 %v1439, %v1439
    %v1504 = vpack.c.b16 %v1440, %v1440
    %v1505 = vpack.c.b16 %v1441, %v1441
    %v1506 = vpack.c.b16 %v1442, %v1442
    %v1507 = vpack.c.b16 %v1443, %v1443
    %v1508 = vpack.c.b16 %v1444, %v1444
    %v1509 = vpack.c.b16 %v1445, %v1445
    %v1510 = vpack.c.b16 %v1446, %v1446
    %v1511 = vpack.c.b16 %v1447, %v1447
    %v1512 = vpack.c.b16 %v1448, %v1448
    %v1513 = vpack.c.b16 %v1449, %v1449
    %v1514 = vpack.c.b16 %v1450, %v1450
    %v1515 = vpack.c.b16 %v1451, %v1451
    %v1516 = vpack.c.b16 %v1452, %v1452
    %v1517 = vpack.c.b16 %v1453, %v1453
    %v1518 = vpack.c.b16 %v1454, %v1454
    %v1519 = vpack.c.b16 %v1455, %v1455
    %v1520 = vpack.c.b16 %v1456, %v1456
    %v1521 = vpack.c.b16 %v1457, %v1457
    %v1522 = vpack.c.b16 %v1458, %v1458
    %v1523 = vpack.c.b16 %v1459, %v1459
    %v1524 = vpack.c.b16 %v1460, %v1460
    %v1525 = vpack.c.b16 %v1461, %v1461
    %v1526 = vpack.c.b16 %v1462, %v1462
    %v1527 = vpack.c.b16 %v1463, %v1463
    %v1528 = vpack.c.b16 %v1464, %v1464
    %v1529 = vpack.c.b16 %v1465, %v1465
    %v1530 = vpack.c.b16 %v1466, %v1466
    %v1531 = vpack.c.b16 %v1467, %v1467
    %v1532 = vpack.c.b16 %v1468, %v1468
    %v1533 = vpack.c.b16 %v1469, %v1469
    %v1534 = vpack.c.b16 %v1470, %v1470
    %v1535 = vpack.c.b16 %v1471, %v1471
    %v1536 = vpack.c.b16 %v1472, %v1472
    %v1537 = vpack.c.b16 %v1473, %v1473
    %v1538 = vpack.c.b16 %v1474, %v1474
    %v1539 = vpack.c.b16 %v1475, %v1475
    %v1540 = vpack.c.b16 %v1476, %v1476
    %v1541 = vpack.c.b16 %v1477, %v1477
    %v1542 = vpack.c.b16 %v1478, %v1478
    %v1543 = vpack.c.b16 %v1479, %v1479
    %v1544 = vpack.c.b16 %v1480, %v1480
    %1609 = vst [vmem:[#allocation11] sm:$0xf] %v1481
    %1610 = vst [vmem:[#allocation11 + $0x4] sm:$0xf] %v1482
    %1611 = vst [vmem:[#allocation11 + $0x8] sm:$0xf] %v1483
    %1612 = vst [vmem:[#allocation11 + $0xc] sm:$0xf] %v1484
    %1613 = vst [vmem:[#allocation11 + $0x10] sm:$0xf] %v1485
    %1614 = vst [vmem:[#allocation11 + $0x14] sm:$0xf] %v1486
    %1615 = vst [vmem:[#allocation11 + $0x18] sm:$0xf] %v1487
    %1616 = vst [vmem:[#allocation11 + $0x1c] sm:$0xf] %v1488
    %1617 = vst [vmem:[#allocation11 + $0x20] sm:$0xf] %v1489
    %1618 = vst [vmem:[#allocation11 + $0x24] sm:$0xf] %v1490
    %1619 = vst [vmem:[#allocation11 + $0x28] sm:$0xf] %v1491
    %1620 = vst [vmem:[#allocation11 + $0x2c] sm:$0xf] %v1492
    %1621 = vst [vmem:[#allocation11 + $0x30] sm:$0xf] %v1493
    %1622 = vst [vmem:[#allocation11 + $0x34] sm:$0xf] %v1494
    %1623 = vst [vmem:[#allocation11 + $0x38] sm:$0xf] %v1495
    %1624 = vst [vmem:[#allocation11 + $0x3c] sm:$0xf] %v1496
    %1625 = vst [vmem:[#allocation11 + $0x40] sm:$0xf] %v1497
    %1626 = vst [vmem:[#allocation11 + $0x44] sm:$0xf] %v1498
    %1627 = vst [vmem:[#allocation11 + $0x48] sm:$0xf] %v1499
    %1628 = vst [vmem:[#allocation11 + $0x4c] sm:$0xf] %v1500
    %1629 = vst [vmem:[#allocation11 + $0x50] sm:$0xf] %v1501
    %1630 = vst [vmem:[#allocation11 + $0x54] sm:$0xf] %v1502
    %1631 = vst [vmem:[#allocation11 + $0x58] sm:$0xf] %v1503
    %1632 = vst [vmem:[#allocation11 + $0x5c] sm:$0xf] %v1504
    %1633 = vst [vmem:[#allocation11 + $0x60] sm:$0xf] %v1505
    %1634 = vst [vmem:[#allocation11 + $0x64] sm:$0xf] %v1506
    %1635 = vst [vmem:[#allocation11 + $0x68] sm:$0xf] %v1507
    %1636 = vst [vmem:[#allocation11 + $0x6c] sm:$0xf] %v1508
    %1637 = vst [vmem:[#allocation11 + $0x70] sm:$0xf] %v1509
    %1638 = vst [vmem:[#allocation11 + $0x74] sm:$0xf] %v1510
    %1639 = vst [vmem:[#allocation11 + $0x78] sm:$0xf] %v1511
    %1640 = vst [vmem:[#allocation11 + $0x7c] sm:$0xf] %v1512
    %1641 = vst [vmem:[#allocation11 + $0x80] sm:$0xf] %v1513
    %1642 = vst [vmem:[#allocation11 + $0x84] sm:$0xf] %v1514
    %1643 = vst [vmem:[#allocation11 + $0x88] sm:$0xf] %v1515
    %1644 = vst [vmem:[#allocation11 + $0x8c] sm:$0xf] %v1516
    %1645 = vst [vmem:[#allocation11 + $0x90] sm:$0xf] %v1517
    %1646 = vst [vmem:[#allocation11 + $0x94] sm:$0xf] %v1518
    %1647 = vst [vmem:[#allocation11 + $0x98] sm:$0xf] %v1519
    %1648 = vst [vmem:[#allocation11 + $0x9c] sm:$0xf] %v1520
    %1649 = vst [vmem:[#allocation11 + $0xa0] sm:$0xf] %v1521
    %1650 = vst [vmem:[#allocation11 + $0xa4] sm:$0xf] %v1522
    %1651 = vst [vmem:[#allocation11 + $0xa8] sm:$0xf] %v1523
    %1652 = vst [vmem:[#allocation11 + $0xac] sm:$0xf] %v1524
    %1653 = vst [vmem:[#allocation11 + $0xb0] sm:$0xf] %v1525
    %1654 = vst [vmem:[#allocation11 + $0xb4] sm:$0xf] %v1526
    %1655 = vst [vmem:[#allocation11 + $0xb8] sm:$0xf] %v1527
    %1656 = vst [vmem:[#allocation11 + $0xbc] sm:$0xf] %v1528
    %1657 = vst [vmem:[#allocation11 + $0xc0] sm:$0xf] %v1529
    %1658 = vst [vmem:[#allocation11 + $0xc4] sm:$0xf] %v1530
    %1659 = vst [vmem:[#allocation11 + $0xc8] sm:$0xf] %v1531
    %1660 = vst [vmem:[#allocation11 + $0xcc] sm:$0xf] %v1532
    %1661 = vst [vmem:[#allocation11 + $0xd0] sm:$0xf] %v1533
    %1662 = vst [vmem:[#allocation11 + $0xd4] sm:$0xf] %v1534
    %1663 = vst [vmem:[#allocation11 + $0xd8] sm:$0xf] %v1535
    %1664 = vst [vmem:[#allocation11 + $0xdc] sm:$0xf] %v1536
    %1665 = vst [vmem:[#allocation11 + $0xe0] sm:$0xf] %v1537
    %1666 = vst [vmem:[#allocation11 + $0xe4] sm:$0xf] %v1538
    %1667 = vst [vmem:[#allocation11 + $0xe8] sm:$0xf] %v1539
    %1668 = vst [vmem:[#allocation11 + $0xec] sm:$0xf] %v1540
    %1669 = vst [vmem:[#allocation11 + $0xf0] sm:$0xf] %v1541
    %1670 = vst [vmem:[#allocation11 + $0xf4] sm:$0xf] %v1542
    %1671 = vst [vmem:[#allocation11 + $0xf8] sm:$0xf] %v1543
    %1672 = vst [vmem:[#allocation11 + $0xfc] sm:$0xf] %v1544
    %p1673 = scmp.eq.s32.totalorder 0, 0
    // Predicated region
    $region42: #{_lambda_.4} parent=1 // pred_check
      %p1674 = pneg %p1673
    $region43: #{_lambda_.4} parent=1 // pred_check_branch
      %1676 = sbr.rel (%p1674) target = $region45
    $region44: #{_lambda_.4} parent=1 // pred_region
      %1677 = vst [vmem:[#allocation12] sm:$0x1] 0.0
      %1678 = vst [vmem:[#allocation14] sm:$0xff] 0.0
      %1679 = vst [vmem:[#allocation14 + $0x8] sm:$0xff] 0.0
      %1680 = vst [vmem:[#allocation14 + $0x10] sm:$0xff] 0.0
      %1681 = vst [vmem:[#allocation14 + $0x18] sm:$0xff] 0.0
      %1682 = vst [vmem:[#allocation14 + $0x20] sm:$0xff] 0.0
      %1683 = vst [vmem:[#allocation14 + $0x28] sm:$0xff] 0.0
      %1684 = vst [vmem:[#allocation14 + $0x30] sm:$0xff] 0.0
      %1685 = vst [vmem:[#allocation14 + $0x38] sm:$0xff] 0.0
      %1686 = vst [vmem:[#allocation14 + $0x40] sm:$0xff] 0.0
      %1687 = vst [vmem:[#allocation14 + $0x48] sm:$0xff] 0.0
      %1688 = vst [vmem:[#allocation14 + $0x50] sm:$0xff] 0.0
      %1689 = vst [vmem:[#allocation14 + $0x58] sm:$0xff] 0.0
      %1690 = vst [vmem:[#allocation14 + $0x60] sm:$0xff] 0.0
      %1691 = vst [vmem:[#allocation14 + $0x68] sm:$0xff] 0.0
      %1692 = vst [vmem:[#allocation14 + $0x70] sm:$0xff] 0.0
      %1693 = vst [vmem:[#allocation14 + $0x78] sm:$0xff] 0.0
    $region45: #{_lambda_.4} parent=1 // pred_fallthru
      _
    %v1694 = vld [vmem:[#allocation12] sm:$0x1]
    %v1695 = vunpack.c.l.bf16 %v1353
    %v1696 = vunpack.c.h.bf16 %v1353
    %v1697 = vunpack.c.l.bf16 %v1354
    %v1698 = vunpack.c.h.bf16 %v1354
    %v1699 = vunpack.c.l.bf16 %v1355
    %v1700 = vunpack.c.h.bf16 %v1355
    %v1701 = vunpack.c.l.bf16 %v1356
    %v1702 = vunpack.c.h.bf16 %v1356
    %v1703 = vunpack.c.l.bf16 %v1357
    %v1704 = vunpack.c.h.bf16 %v1357
    %v1705 = vunpack.c.l.bf16 %v1358
    %v1706 = vunpack.c.h.bf16 %v1358
    %v1707 = vunpack.c.l.bf16 %v1359
    %v1708 = vunpack.c.h.bf16 %v1359
    %v1709 = vunpack.c.l.bf16 %v1360
    %v1710 = vunpack.c.h.bf16 %v1360
    %v1711 = vunpack.c.l.bf16 %v1361
    %v1712 = vunpack.c.h.bf16 %v1361
    %v1713 = vunpack.c.l.bf16 %v1362
    %v1714 = vunpack.c.h.bf16 %v1362
    %v1715 = vunpack.c.l.bf16 %v1363
    %v1716 = vunpack.c.h.bf16 %v1363
    %v1717 = vunpack.c.l.bf16 %v1364
    %v1718 = vunpack.c.h.bf16 %v1364
    %v1719 = vunpack.c.l.bf16 %v1365
    %v1720 = vunpack.c.h.bf16 %v1365
    %v1721 = vunpack.c.l.bf16 %v1366
    %v1722 = vunpack.c.h.bf16 %v1366
    %v1723 = vunpack.c.l.bf16 %v1367
    %v1724 = vunpack.c.h.bf16 %v1367
    %v1725 = vunpack.c.l.bf16 %v1368
    %v1726 = vunpack.c.h.bf16 %v1368
    %v1727 = vunpack.c.l.bf16 %v1369
    %v1728 = vunpack.c.h.bf16 %v1369
    %v1729 = vunpack.c.l.bf16 %v1370
    %v1730 = vunpack.c.h.bf16 %v1370
    %v1731 = vunpack.c.l.bf16 %v1371
    %v1732 = vunpack.c.h.bf16 %v1371
    %v1733 = vunpack.c.l.bf16 %v1372
    %v1734 = vunpack.c.h.bf16 %v1372
    %v1735 = vunpack.c.l.bf16 %v1373
    %v1736 = vunpack.c.h.bf16 %v1373
    %v1737 = vunpack.c.l.bf16 %v1374
    %v1738 = vunpack.c.h.bf16 %v1374
    %v1739 = vunpack.c.l.bf16 %v1375
    %v1740 = vunpack.c.h.bf16 %v1375
    %v1741 = vunpack.c.l.bf16 %v1376
    %v1742 = vunpack.c.h.bf16 %v1376
    %v1743 = vunpack.c.l.bf16 %v1377
    %v1744 = vunpack.c.h.bf16 %v1377
    %v1745 = vunpack.c.l.bf16 %v1378
    %v1746 = vunpack.c.h.bf16 %v1378
    %v1747 = vunpack.c.l.bf16 %v1379
    %v1748 = vunpack.c.h.bf16 %v1379
    %v1749 = vunpack.c.l.bf16 %v1380
    %v1750 = vunpack.c.h.bf16 %v1380
    %v1751 = vunpack.c.l.bf16 %v1381
    %v1752 = vunpack.c.h.bf16 %v1381
    %v1753 = vunpack.c.l.bf16 %v1382
    %v1754 = vunpack.c.h.bf16 %v1382
    %v1755 = vunpack.c.l.bf16 %v1383
    %v1756 = vunpack.c.h.bf16 %v1383
    %v1757 = vunpack.c.l.bf16 %v1384
    %v1758 = vunpack.c.h.bf16 %v1384
    %v1759 = vadd.f32 %v1695, %v1696
    %v1760 = vadd.f32 %v1759, %v1697
    %v1761 = vadd.f32 %v1760, %v1698
    %v1762 = vadd.f32 %v1761, %v1699
    %v1763 = vadd.f32 %v1762, %v1700
    %v1764 = vadd.f32 %v1763, %v1701
    %v1765 = vadd.f32 %v1764, %v1702
    %v1766 = vadd.f32 %v1765, %v1703
    %v1767 = vadd.f32 %v1766, %v1704
    %v1768 = vadd.f32 %v1767, %v1705
    %v1769 = vadd.f32 %v1768, %v1706
    %v1770 = vadd.f32 %v1769, %v1707
    %v1771 = vadd.f32 %v1770, %v1708
    %v1772 = vadd.f32 %v1771, %v1709
    %v1773 = vadd.f32 %v1772, %v1710
    %v1774 = vadd.f32 %v1773, %v1711
    %v1775 = vadd.f32 %v1774, %v1712
    %v1776 = vadd.f32 %v1775, %v1713
    %v1777 = vadd.f32 %v1776, %v1714
    %v1778 = vadd.f32 %v1777, %v1715
    %v1779 = vadd.f32 %v1778, %v1716
    %v1780 = vadd.f32 %v1779, %v1717
    %v1781 = vadd.f32 %v1780, %v1718
    %v1782 = vadd.f32 %v1781, %v1719
    %v1783 = vadd.f32 %v1782, %v1720
    %v1784 = vadd.f32 %v1783, %v1721
    %v1785 = vadd.f32 %v1784, %v1722
    %v1786 = vadd.f32 %v1785, %v1723
    %v1787 = vadd.f32 %v1786, %v1724
    %v1788 = vadd.f32 %v1787, %v1725
    %v1789 = vadd.f32 %v1788, %v1726
    %v1790 = vadd.f32 %v1789, %v1727
    %v1791 = vadd.f32 %v1790, %v1728
    %v1792 = vadd.f32 %v1791, %v1729
    %v1793 = vadd.f32 %v1792, %v1730
    %v1794 = vadd.f32 %v1793, %v1731
    %v1795 = vadd.f32 %v1794, %v1732
    %v1796 = vadd.f32 %v1795, %v1733
    %v1797 = vadd.f32 %v1796, %v1734
    %v1798 = vadd.f32 %v1797, %v1735
    %v1799 = vadd.f32 %v1798, %v1736
    %v1800 = vadd.f32 %v1799, %v1737
    %v1801 = vadd.f32 %v1800, %v1738
    %v1802 = vadd.f32 %v1801, %v1739
    %v1803 = vadd.f32 %v1802, %v1740
    %v1804 = vadd.f32 %v1803, %v1741
    %v1805 = vadd.f32 %v1804, %v1742
    %v1806 = vadd.f32 %v1805, %v1743
    %v1807 = vadd.f32 %v1806, %v1744
    %v1808 = vadd.f32 %v1807, %v1745
    %v1809 = vadd.f32 %v1808, %v1746
    %v1810 = vadd.f32 %v1809, %v1747
    %v1811 = vadd.f32 %v1810, %v1748
    %v1812 = vadd.f32 %v1811, %v1749
    %v1813 = vadd.f32 %v1812, %v1750
    %v1814 = vadd.f32 %v1813, %v1751
    %v1815 = vadd.f32 %v1814, %v1752
    %v1816 = vadd.f32 %v1815, %v1753
    %v1817 = vadd.f32 %v1816, %v1754
    %v1818 = vadd.f32 %v1817, %v1755
    %v1819 = vadd.f32 %v1818, %v1756
    %v1820 = vadd.f32 %v1819, %v1757
    %v1821 = vadd.f32 %v1820, %v1758
    %v1822 = vrot.slane %v1821, 4
    %v1823 = vadd.f32 %v1821, %v1822
    %v1824 = vrot.slane %v1823, 2
    %v1825 = vadd.f32 %v1823, %v1824
    %v1826 = vrot.slane %v1825, 1
    %v1827 = vadd.f32 %v1825, %v1826
    %v1828 = vadd.f32 %v1694, %v1827
    %1829 = vst [vmem:[#allocation12] sm:$0x1] %v1828
    %v1830 = vld [vmem:[#allocation14] sm:$0xff]
    %v1831 = vld [vmem:[#allocation14 + $0x8] sm:$0xff]
    %v1832 = vld [vmem:[#allocation14 + $0x10] sm:$0xff]
    %v1833 = vld [vmem:[#allocation14 + $0x18] sm:$0xff]
    %v1834 = vld [vmem:[#allocation14 + $0x20] sm:$0xff]
    %v1835 = vld [vmem:[#allocation14 + $0x28] sm:$0xff]
    %v1836 = vld [vmem:[#allocation14 + $0x30] sm:$0xff]
    %v1837 = vld [vmem:[#allocation14 + $0x38] sm:$0xff]
    %v1838 = vld [vmem:[#allocation14 + $0x40] sm:$0xff]
    %v1839 = vld [vmem:[#allocation14 + $0x48] sm:$0xff]
    %v1840 = vld [vmem:[#allocation14 + $0x50] sm:$0xff]
    %v1841 = vld [vmem:[#allocation14 + $0x58] sm:$0xff]
    %v1842 = vld [vmem:[#allocation14 + $0x60] sm:$0xff]
    %v1843 = vld [vmem:[#allocation14 + $0x68] sm:$0xff]
    %v1844 = vld [vmem:[#allocation14 + $0x70] sm:$0xff]
    %v1845 = vld [vmem:[#allocation14 + $0x78] sm:$0xff]
    %1846 = vxpose.xlu0.c.b16.start [1/8] %v1353, 128
    %1847 = vxpose.xlu0.c.b16.cont [2/8] %v1354, 128
    %1848 = vxpose.xlu0.c.b16.cont [3/8] %v1355, 128
    %1849 = vxpose.xlu0.c.b16.cont [4/8] %v1356, 128
    %1850 = vxpose.xlu0.c.b16.cont [5/8] %v1357, 128
    %1851 = vxpose.xlu0.c.b16.cont [6/8] %v1358, 128
    %1852 = vxpose.xlu0.c.b16.cont [7/8] %v1359, 128
    %1853 = vxpose.xlu0.c.b16.end [8/8] %v1360, 128
    %v1854 = vpop.trf.xlu0
    %v1855 = vpop.trf.xlu0
    %v1856 = vpop.trf.xlu0
    %v1857 = vpop.trf.xlu0
    %v1858 = vpop.trf.xlu0
    %v1859 = vpop.trf.xlu0
    %v1860 = vpop.trf.xlu0
    %v1861 = vpop.trf.xlu0
    %1862 = vxpose.xlu0.c.b16.start [1/8] %v1361, 128
    %1863 = vxpose.xlu0.c.b16.cont [2/8] %v1362, 128
    %1864 = vxpose.xlu0.c.b16.cont [3/8] %v1363, 128
    %1865 = vxpose.xlu0.c.b16.cont [4/8] %v1364, 128
    %1866 = vxpose.xlu0.c.b16.cont [5/8] %v1365, 128
    %1867 = vxpose.xlu0.c.b16.cont [6/8] %v1366, 128
    %1868 = vxpose.xlu0.c.b16.cont [7/8] %v1367, 128
    %1869 = vxpose.xlu0.c.b16.end [8/8] %v1368, 128
    %v1870 = vpop.trf.xlu0
    %v1871 = vpop.trf.xlu0
    %v1872 = vpop.trf.xlu0
    %v1873 = vpop.trf.xlu0
    %v1874 = vpop.trf.xlu0
    %v1875 = vpop.trf.xlu0
    %v1876 = vpop.trf.xlu0
    %v1877 = vpop.trf.xlu0
    %1878 = vxpose.xlu0.c.b16.start [1/8] %v1369, 128
    %1879 = vxpose.xlu0.c.b16.cont [2/8] %v1370, 128
    %1880 = vxpose.xlu0.c.b16.cont [3/8] %v1371, 128
    %1881 = vxpose.xlu0.c.b16.cont [4/8] %v1372, 128
    %1882 = vxpose.xlu0.c.b16.cont [5/8] %v1373, 128
    %1883 = vxpose.xlu0.c.b16.cont [6/8] %v1374, 128
    %1884 = vxpose.xlu0.c.b16.cont [7/8] %v1375, 128
    %1885 = vxpose.xlu0.c.b16.end [8/8] %v1376, 128
    %v1886 = vpop.trf.xlu0
    %v1887 = vpop.trf.xlu0
    %v1888 = vpop.trf.xlu0
    %v1889 = vpop.trf.xlu0
    %v1890 = vpop.trf.xlu0
    %v1891 = vpop.trf.xlu0
    %v1892 = vpop.trf.xlu0
    %v1893 = vpop.trf.xlu0
    %1894 = vxpose.xlu0.c.b16.start [1/8] %v1377, 128
    %1895 = vxpose.xlu0.c.b16.cont [2/8] %v1378, 128
    %1896 = vxpose.xlu0.c.b16.cont [3/8] %v1379, 128
    %1897 = vxpose.xlu0.c.b16.cont [4/8] %v1380, 128
    %1898 = vxpose.xlu0.c.b16.cont [5/8] %v1381, 128
    %1899 = vxpose.xlu0.c.b16.cont [6/8] %v1382, 128
    %1900 = vxpose.xlu0.c.b16.cont [7/8] %v1383, 128
    %1901 = vxpose.xlu0.c.b16.end [8/8] %v1384, 128
    %v1902 = vpop.trf.xlu0
    %v1903 = vpop.trf.xlu0
    %v1904 = vpop.trf.xlu0
    %v1905 = vpop.trf.xlu0
    %v1906 = vpop.trf.xlu0
    %v1907 = vpop.trf.xlu0
    %v1908 = vpop.trf.xlu0
    %v1909 = vpop.trf.xlu0
    %1910 = vmatprep.subr.bf16.mxu0 0
    %1911 = vmatpush1.bf16.msra.mxu0 %v1353
    %1912 = vmatprep.subr.bf16.mxu0 0
    %1913 = vmatpush1.bf16.msra.mxu0 %v1354
    %1914 = vmatprep.subr.bf16.mxu0 0
    %1915 = vmatpush1.bf16.msra.mxu0 %v1355
    %1916 = vmatprep.subr.bf16.mxu0 0
    %1917 = vmatpush1.bf16.msra.mxu0 %v1356
    %1918 = vmatprep.subr.bf16.mxu0 0
    %1919 = vmatpush1.bf16.msra.mxu0 %v1357
    %1920 = vmatprep.subr.bf16.mxu0 0
    %1921 = vmatpush1.bf16.msra.mxu0 %v1358
    %1922 = vmatprep.subr.bf16.mxu0 0
    %1923 = vmatpush1.bf16.msra.mxu0 %v1359
    %1924 = vmatprep.subr.bf16.mxu0 0
    %1925 = vmatpush1.bf16.msra.mxu0 %v1360
    %1926 = vmatprep.subr.bf16.mxu0 0
    %1927 = vmatpush1.bf16.msra.mxu0 %v1361
    %1928 = vmatprep.subr.bf16.mxu0 0
    %1929 = vmatpush1.bf16.msra.mxu0 %v1362
    %1930 = vmatprep.subr.bf16.mxu0 0
    %1931 = vmatpush1.bf16.msra.mxu0 %v1363
    %1932 = vmatprep.subr.bf16.mxu0 0
    %1933 = vmatpush1.bf16.msra.mxu0 %v1364
    %1934 = vmatprep.subr.bf16.mxu0 0
    %1935 = vmatpush1.bf16.msra.mxu0 %v1365
    %1936 = vmatprep.subr.bf16.mxu0 0
    %1937 = vmatpush1.bf16.msra.mxu0 %v1366
    %1938 = vmatprep.subr.bf16.mxu0 0
    %1939 = vmatpush1.bf16.msra.mxu0 %v1367
    %1940 = vmatprep.subr.bf16.mxu0 0
    %1941 = vmatpush1.bf16.msra.mxu0 %v1368
    %1942 = vmatprep.mubr.bf16.mxu0 %v1870
    %1943 = vmatmul.mubr.bf16.gmra.mrb[0].mxu0 %v1854
    %v1944 = vpop.f32.mrb[0].mxu0
    %v1945 = vadd.f32 0.0, %v1944
    %v1946 = vpop.f32.mrb[0].mxu0
    %v1947 = vpop.f32.mrb[0].mxu0
    %v1948 = vadd.f32 0.0, %v1947
    %v1949 = vpop.f32.mrb[0].mxu0
    %1950 = vmatprep.mubr.bf16.mxu0 %v1871
    %1951 = vmatmul.mubr.bf16.gmra.mrb[0].mxu0 %v1855
    %v1952 = vpop.f32.mrb[0].mxu0
    %v1953 = vadd.f32 0.0, %v1952
    %v1954 = vpop.f32.mrb[0].mxu0
    %v1955 = vpop.f32.mrb[0].mxu0
    %v1956 = vadd.f32 0.0, %v1955
    %v1957 = vpop.f32.mrb[0].mxu0
    %1958 = vmatprep.mubr.bf16.mxu0 %v1872
    %1959 = vmatmul.mubr.bf16.gmra.mrb[0].mxu0 %v1856
    %v1960 = vpop.f32.mrb[0].mxu0
    %v1961 = vadd.f32 0.0, %v1960
    %v1962 = vpop.f32.mrb[0].mxu0
    %v1963 = vpop.f32.mrb[0].mxu0
    %v1964 = vadd.f32 0.0, %v1963
    %v1965 = vpop.f32.mrb[0].mxu0
    %1966 = vmatprep.mubr.bf16.mxu0 %v1873
    %1967 = vmatmul.mubr.bf16.gmra.mrb[0].mxu0 %v1857
    %v1968 = vpop.f32.mrb[0].mxu0
    %v1969 = vadd.f32 0.0, %v1968
    %v1970 = vpop.f32.mrb[0].mxu0
    %v1971 = vpop.f32.mrb[0].mxu0
    %v1972 = vadd.f32 0.0, %v1971
    %v1973 = vpop.f32.mrb[0].mxu0
    %1974 = vmatprep.mubr.bf16.mxu0 %v1874
    %1975 = vmatmul.mubr.bf16.gmra.mrb[0].mxu0 %v1858
    %v1976 = vpop.f32.mrb[0].mxu0
    %v1977 = vadd.f32 0.0, %v1976
    %v1978 = vpop.f32.mrb[0].mxu0
    %v1979 = vpop.f32.mrb[0].mxu0
    %v1980 = vadd.f32 0.0, %v1979
    %v1981 = vpop.f32.mrb[0].mxu0
    %1982 = vmatprep.mubr.bf16.mxu0 %v1875
    %1983 = vmatmul.mubr.bf16.gmra.mrb[0].mxu0 %v1859
    %v1984 = vpop.f32.mrb[0].mxu0
    %v1985 = vadd.f32 0.0, %v1984
    %v1986 = vpop.f32.mrb[0].mxu0
    %v1987 = vpop.f32.mrb[0].mxu0
    %v1988 = vadd.f32 0.0, %v1987
    %v1989 = vpop.f32.mrb[0].mxu0
    %1990 = vmatprep.mubr.bf16.mxu0 %v1876
    %1991 = vmatmul.mubr.bf16.gmra.mrb[0].mxu0 %v1860
    %v1992 = vpop.f32.mrb[0].mxu0
    %v1993 = vadd.f32 0.0, %v1992
    %v1994 = vpop.f32.mrb[0].mxu0
    %v1995 = vpop.f32.mrb[0].mxu0
    %v1996 = vadd.f32 0.0, %v1995
    %v1997 = vpop.f32.mrb[0].mxu0
    %1998 = vmatprep.mubr.bf16.mxu0 %v1877
    %1999 = vmatmul.mubr.bf16.gmra.mrb[0].mxu0 %v1861
    %v2000 = vpop.f32.mrb[0].mxu0
    %v2001 = vadd.f32 0.0, %v2000
    %v2002 = vpop.f32.mrb[0].mxu0
    %v2003 = vpop.f32.mrb[0].mxu0
    %v2004 = vadd.f32 0.0, %v2003
    %v2005 = vpop.f32.mrb[0].mxu0
    %2006 = vdwg.mxu0
    %2007 = vmatprep.subr.bf16.mxu0 0
    %2008 = vmatpush1.bf16.msra.mxu0 %v1369
    %2009 = vmatprep.subr.bf16.mxu0 0
    %2010 = vmatpush1.bf16.msra.mxu0 %v1370
    %2011 = vmatprep.subr.bf16.mxu0 0
    %2012 = vmatpush1.bf16.msra.mxu0 %v1371
    %2013 = vmatprep.subr.bf16.mxu0 0
    %2014 = vmatpush1.bf16.msra.mxu0 %v1372
    %2015 = vmatprep.subr.bf16.mxu0 0
    %2016 = vmatpush1.bf16.msra.mxu0 %v1373
    %2017 = vmatprep.subr.bf16.mxu0 0
    %2018 = vmatpush1.bf16.msra.mxu0 %v1374
    %2019 = vmatprep.subr.bf16.mxu0 0
    %2020 = vmatpush1.bf16.msra.mxu0 %v1375
    %2021 = vmatprep.subr.bf16.mxu0 0
    %2022 = vmatpush1.bf16.msra.mxu0 %v1376
    %2023 = vmatprep.subr.bf16.mxu0 0
    %2024 = vmatpush1.bf16.msra.mxu0 %v1377
    %2025 = vmatprep.subr.bf16.mxu0 0
    %2026 = vmatpush1.bf16.msra.mxu0 %v1378
    %2027 = vmatprep.subr.bf16.mxu0 0
    %2028 = vmatpush1.bf16.msra.mxu0 %v1379
    %2029 = vmatprep.subr.bf16.mxu0 0
    %2030 = vmatpush1.bf16.msra.mxu0 %v1380
    %2031 = vmatprep.subr.bf16.mxu0 0
    %2032 = vmatpush1.bf16.msra.mxu0 %v1381
    %2033 = vmatprep.subr.bf16.mxu0 0
    %2034 = vmatpush1.bf16.msra.mxu0 %v1382
    %2035 = vmatprep.subr.bf16.mxu0 0
    %2036 = vmatpush1.bf16.msra.mxu0 %v1383
    %2037 = vmatprep.subr.bf16.mxu0 0
    %2038 = vmatpush1.bf16.msra.mxu0 %v1384
    %2039 = vmatprep.mubr.bf16.mxu0 %v1902
    %2040 = vmatmul.mubr.bf16.gmra.mrb[0].mxu0 %v1886
    %v2041 = vpop.f32.mrb[0].mxu0
    %v2042 = vadd.f32 %v1945, %v2041
    %v2043 = vpop.f32.mrb[0].mxu0
    %v2044 = vpop.f32.mrb[0].mxu0
    %v2045 = vadd.f32 %v1948, %v2044
    %v2046 = vpop.f32.mrb[0].mxu0
    %2047 = vmatprep.mubr.bf16.mxu0 %v1903
    %2048 = vmatmul.mubr.bf16.gmra.mrb[0].mxu0 %v1887
    %v2049 = vpop.f32.mrb[0].mxu0
    %v2050 = vadd.f32 %v1953, %v2049
    %v2051 = vpop.f32.mrb[0].mxu0
    %v2052 = vpop.f32.mrb[0].mxu0
    %v2053 = vadd.f32 %v1956, %v2052
    %v2054 = vpop.f32.mrb[0].mxu0
    %2055 = vmatprep.mubr.bf16.mxu0 %v1904
    %2056 = vmatmul.mubr.bf16.gmra.mrb[0].mxu0 %v1888
    %v2057 = vpop.f32.mrb[0].mxu0
    %v2058 = vadd.f32 %v1961, %v2057
    %v2059 = vpop.f32.mrb[0].mxu0
    %v2060 = vpop.f32.mrb[0].mxu0
    %v2061 = vadd.f32 %v1964, %v2060
    %v2062 = vpop.f32.mrb[0].mxu0
    %2063 = vmatprep.mubr.bf16.mxu0 %v1905
    %2064 = vmatmul.mubr.bf16.gmra.mrb[0].mxu0 %v1889
    %v2065 = vpop.f32.mrb[0].mxu0
    %v2066 = vadd.f32 %v1969, %v2065
    %v2067 = vpop.f32.mrb[0].mxu0
    %v2068 = vpop.f32.mrb[0].mxu0
    %v2069 = vadd.f32 %v1972, %v2068
    %v2070 = vpop.f32.mrb[0].mxu0
    %2071 = vmatprep.mubr.bf16.mxu0 %v1906
    %2072 = vmatmul.mubr.bf16.gmra.mrb[0].mxu0 %v1890
    %v2073 = vpop.f32.mrb[0].mxu0
    %v2074 = vadd.f32 %v1977, %v2073
    %v2075 = vpop.f32.mrb[0].mxu0
    %v2076 = vpop.f32.mrb[0].mxu0
    %v2077 = vadd.f32 %v1980, %v2076
    %v2078 = vpop.f32.mrb[0].mxu0
    %2079 = vmatprep.mubr.bf16.mxu0 %v1907
    %2080 = vmatmul.mubr.bf16.gmra.mrb[0].mxu0 %v1891
    %v2081 = vpop.f32.mrb[0].mxu0
    %v2082 = vadd.f32 %v1985, %v2081
    %v2083 = vpop.f32.mrb[0].mxu0
    %v2084 = vpop.f32.mrb[0].mxu0
    %v2085 = vadd.f32 %v1988, %v2084
    %v2086 = vpop.f32.mrb[0].mxu0
    %2087 = vmatprep.mubr.bf16.mxu0 %v1908
    %2088 = vmatmul.mubr.bf16.gmra.mrb[0].mxu0 %v1892
    %v2089 = vpop.f32.mrb[0].mxu0
    %v2090 = vadd.f32 %v1993, %v2089
    %v2091 = vpop.f32.mrb[0].mxu0
    %v2092 = vpop.f32.mrb[0].mxu0
    %v2093 = vadd.f32 %v1996, %v2092
    %v2094 = vpop.f32.mrb[0].mxu0
    %2095 = vmatprep.mubr.bf16.mxu0 %v1909
    %2096 = vmatmul.mubr.bf16.gmra.mrb[0].mxu0 %v1893
    %v2097 = vpop.f32.mrb[0].mxu0
    %v2098 = vadd.f32 %v2001, %v2097
    %v2099 = vpop.f32.mrb[0].mxu0
    %v2100 = vpop.f32.mrb[0].mxu0
    %v2101 = vadd.f32 %v2004, %v2100
    %v2102 = vpop.f32.mrb[0].mxu0
    %2103 = vdwg.mxu0
    %v2104 = vadd.f32 %v1830, %v2042
    %v2105 = vadd.f32 %v1831, %v2045
    %v2106 = vadd.f32 %v1832, %v2050
    %v2107 = vadd.f32 %v1833, %v2053
    %v2108 = vadd.f32 %v1834, %v2058
    %v2109 = vadd.f32 %v1835, %v2061
    %v2110 = vadd.f32 %v1836, %v2066
    %v2111 = vadd.f32 %v1837, %v2069
    %v2112 = vadd.f32 %v1838, %v2074
    %v2113 = vadd.f32 %v1839, %v2077
    %v2114 = vadd.f32 %v1840, %v2082
    %v2115 = vadd.f32 %v1841, %v2085
    %v2116 = vadd.f32 %v1842, %v2090
    %v2117 = vadd.f32 %v1843, %v2093
    %v2118 = vadd.f32 %v1844, %v2098
    %v2119 = vadd.f32 %v1845, %v2101
    %2120 = vst [vmem:[#allocation14] sm:$0xff] %v2104
    %2121 = vst [vmem:[#allocation14 + $0x8] sm:$0xff] %v2105
    %2122 = vst [vmem:[#allocation14 + $0x10] sm:$0xff] %v2106
    %2123 = vst [vmem:[#allocation14 + $0x18] sm:$0xff] %v2107
    %2124 = vst [vmem:[#allocation14 + $0x20] sm:$0xff] %v2108
    %2125 = vst [vmem:[#allocation14 + $0x28] sm:$0xff] %v2109
    %2126 = vst [vmem:[#allocation14 + $0x30] sm:$0xff] %v2110
    %2127 = vst [vmem:[#allocation14 + $0x38] sm:$0xff] %v2111
    %2128 = vst [vmem:[#allocation14 + $0x40] sm:$0xff] %v2112
    %2129 = vst [vmem:[#allocation14 + $0x48] sm:$0xff] %v2113
    %2130 = vst [vmem:[#allocation14 + $0x50] sm:$0xff] %v2114
    %2131 = vst [vmem:[#allocation14 + $0x58] sm:$0xff] %v2115
    %2132 = vst [vmem:[#allocation14 + $0x60] sm:$0xff] %v2116
    %2133 = vst [vmem:[#allocation14 + $0x68] sm:$0xff] %v2117
    %2134 = vst [vmem:[#allocation14 + $0x70] sm:$0xff] %v2118
    %2135 = vst [vmem:[#allocation14 + $0x78] sm:$0xff] %v2119
    // Predicated region
    $region46: #{_lambda_.4} parent=1 // pred_check
      _
    $region47: #{_lambda_.4} parent=1 // pred_check_branch
      %2137 = sbr.rel (0) target = $region49
    $region48: #{_lambda_.4} parent=1 // pred_region
      %s2139 = ssub.s32 4096, 4096
      %2140 = vsyncadd [#allocation4], %s2139
      %s2141 = sshll.u32 [#allocation11], 4
      %s2142 = int_to_ptr.vmem [resolvable:$true] %s2141
      %2147 = dma.vmem_to_hbm [thread:$0]  %s2142, 4096, %s5, [#allocation4], 64, 64, 4
    $region49: #{_lambda_.4} parent=1 // pred_fallthru
      _
    // Predicated region
    $region50: #{_lambda_.4} parent=1 // pred_check
      _
    $region51: #{_lambda_.4} parent=1 // pred_check_branch
      %2149 = sbr.rel (0) target = $region53
    $region52: #{_lambda_.4} parent=1 // pred_region
      %s2151 = ssub.s32 16, 16
      %2152 = vsyncadd [#allocation13], %s2151
      %s2154 = sshll.u32 [#allocation12], 4
      %s2155 = int_to_ptr.vmem [resolvable:$true] %s2154
      %2157 = dma.vmem_to_hbm [thread:$0]  %s2155, 16, %s6, [#allocation13]
    $region53: #{_lambda_.4} parent=1 // pred_fallthru
      _
    // Predicated region
    $region54: #{_lambda_.4} parent=1 // pred_check
      _
    $region55: #{_lambda_.4} parent=1 // pred_check_branch
      %2159 = sbr.rel (0) target = $region57
    $region56: #{_lambda_.4} parent=1 // pred_region
      %s2161 = ssub.s32 2048, 2048
      %2162 = vsyncadd [#allocation13], %s2161
      %s2163 = sshll.u32 [#allocation14], 4
      %s2164 = int_to_ptr.vmem [resolvable:$true] %s2163
      %2169 = dma.vmem_to_hbm [thread:$0]  %s2164, 2048, %s7, [#allocation13], 128, 128, 8
    $region57: #{_lambda_.4} parent=1 // pred_fallthru
      _
    // Predicated region
    $region58: #{_lambda_.4} parent=1 // pred_check
      _
    $region59: #{_lambda_.4} parent=1 // pred_check_branch
      %2171 = sbr.rel (0) target = $region61
    $region60: #{_lambda_.4} parent=1 // pred_region
      %2172 = dma.done [#allocation4], 4096
    $region61: #{_lambda_.4} parent=1 // pred_fallthru
      _
    // Predicated region
    $region62: #{_lambda_.4} parent=1 // pred_check
      _
    $region63: #{_lambda_.4} parent=1 // pred_check_branch
      %2174 = sbr.rel (0) target = $region65
    $region64: #{_lambda_.4} parent=1 // pred_region
      %2175 = dma.done [#allocation13], 16
    $region65: #{_lambda_.4} parent=1 // pred_fallthru
      _
    // Predicated region
    $region66: #{_lambda_.4} parent=1 // pred_check
      _
    $region67: #{_lambda_.4} parent=1 // pred_check_branch
      %2177 = sbr.rel (0) target = $region69
    $region68: #{_lambda_.4} parent=1 // pred_region
      %2178 = dma.done [#allocation13], 2048
    $region69: #{_lambda_.4} parent=1 // pred_fallthru
      _
    %2179 = vsyncpa [#allocation3], 1
    %2180 = vsyncpa [#allocation6], 1
    %2181 = vsyncpa [#allocation9], 1
    %2182 = vsyncpa [#allocation4], 1
    %2183 = vsyncpa [#allocation13], 1

// kernel: _lambda_.3
$region0: #{_lambda_.3}
  #allocation0 [shape = 'u32[]', space=smem, size = 0x4, offset = 0x4, fixed_abs, tag = 'smem constant byte address 0x4 - core index']
  #allocation1 [shape = 'u32[144,128]{1,0:T(1,128)}', space=vmem, size = 0x12000, scoped, tag = 'internal scratch']
  %s0 = inlined_call_operand.hbm [shape: f32[512,3], index: 0, kind: input, shape index: {}]
  %s1 = inlined_call_operand.hbm [shape: f32[512,1], index: 1, kind: input, shape index: {}]
  %s2 = inlined_call_operand.hbm [shape: f32[8,128], index: 2, kind: input, shape index: {}]
  %s3 = inlined_call_operand.hbm [shape: bf16[128,128], index: 3, kind: input, shape index: {}]
  %s4 = inlined_call_operand.hbm [shape: bf16[512,128], index: 4, kind: output, shape index: {0}]
  %s5 = inlined_call_operand.hbm [shape: f32[2,1,128], index: 5, kind: output, shape index: {1}]
  %s6 = inlined_call_operand.hbm [shape: f32[2,128,128], index: 6, kind: output, shape index: {2}]
  %7 = xla_tuple %s4, %s5, %s6
  %s8 = sld [smem:[#allocation0]]
  $region81: #{_lambda_.3} parent=0
    _
  %s10 = ssub.s32 1, %s8
  %s11 = scalar_select 0, %s10, %s8
  $region1: #{_lambda_.3} parent=0
    #allocation2 [shape = 'u8[262144]{0}', space=vmem, size = 0x40000, scoped, tag = 'input window, operand 0']
    #allocation3 [shape = 's32[2]{0}', space=sflag, size = 0x8, scoped, tag = 'scoped memory for _lambda_.3']
    #allocation4 [shape = 's32[2]{0}', space=sflag, size = 0x8, scoped, tag = 'scoped memory for _lambda_.3']
    #allocation5 [shape = 'u8[262144]{0}', space=vmem, size = 0x40000, scoped, tag = 'input window, operand 1']
    #allocation6 [shape = 's32[2]{0}', space=sflag, size = 0x8, scoped, tag = 'scoped memory for _lambda_.3']
    #allocation7 [shape = 'u8[4096]{0}', space=vmem, size = 0x1000, scoped, tag = 'input window, operand 2, single buffered']
    #allocation8 [shape = 'u8[32768]{0}', space=vmem, size = 0x8000, scoped, tag = 'input window, operand 3, single buffered']
    #allocation9 [shape = 's32[1]{0}', space=sflag, size = 0x4, scoped, tag = 'scoped memory for _lambda_.3']
    #allocation10 [shape = 'u8[131072]{0}', space=vmem, size = 0x20000, scoped, tag = 'output window, operand 0']
    #allocation11 [shape = 'u8[1024]{0}', space=vmem, size = 0x400, scoped, tag = 'output window, operand 1']
    #allocation12 [shape = 's32[2]{0}', space=sflag, size = 0x8, scoped, tag = 'scoped memory for _lambda_.3']
    #allocation13 [shape = 'u8[131072]{0}', space=vmem, size = 0x20000, scoped, tag = 'output window, operand 2']
    %12 = vsyncpa [#allocation3], 0
    %s13 = scalar_lea.sflag [#allocation3], 1
    %14 = vsyncpa %s13, 0
    %15 = vsyncpa [#allocation6], 0
    %s16 = scalar_lea.sflag [#allocation6], 1
    %17 = vsyncpa %s16, 0
    %18 = vsyncpa [#allocation9], 0
    %19 = vsyncpa [#allocation4], 0
    %s20 = scalar_lea.sflag [#allocation4], 1
    %21 = vsyncpa %s20, 0
    %22 = vsyncpa [#allocation12], 0
    %s23 = scalar_lea.sflag [#allocation12], 1
    %24 = vsyncpa %s23, 0
    loop: start=0, step=1, limit=4
    $region2: #{_lambda_.3} parent=1 // loop_pre_header
      _
    $region3: #{_lambda_.3} parent=1 // loop_header
      %s26 = sphi 0, %s30
      %p27 = scmp.ge.s32.totalorder %s26, 4
      %s36 = sphi 0, %s38
      %s39 = sphi 0, %s36
      %s40 = sphi 0, %s39
      %s56 = sphi 0, %s40
      %s62 = sphi 0, %s64
      %s65 = sphi 0, %s62
      %s66 = sphi 0, %s65
      %s82 = sphi 0, %s66
      %s86 = sphi 0, %s86
      %s88 = sphi 0, %s86
      %s89 = sphi 0, %s88
      %s103 = sphi 0, %s89
      %s107 = sphi 0, %s107
      %s109 = sphi 0, %s107
      %s110 = sphi 0, %s109
      %s124 = sphi 0, %s110
      %s130 = sphi 0, %s132
      %s133 = sphi 0, %s130
      %s134 = sphi 0, %s133
      %s150 = sphi 0, %s134
      %s156 = sphi 0, %s158
      %s159 = sphi 0, %s156
      %s160 = sphi 0, %s159
      %s176 = sphi 0, %s160
      %s182 = sphi 0, %s184
      %s185 = sphi 0, %s182
      %s186 = sphi 0, %s185
      %s202 = sphi 0, %s186
    $region4: #{_lambda_.3} parent=1 // loop_header_branch
      %29 = sbr.rel (%p27) target = $region8
    $region5: #{_lambda_.3} parent=1 // loop_body
      %s31 = ssub.s32 %s26, 1
      %s32 = ssub.s32 %s26, 2
      %s33 = sadd.s32 %s26, 1
      %s34 = ssub.s32 %s26, %s33
      %p35 = scmp.eq.s32.totalorder %s34, 0
      %s37 = sadd.s32 %s36, 1
      %s38 = scalar_select %p35, %s36, %s37
      %p41 = pneg %p35
      %p42 = scmp.eq.s32.totalorder %s26, 1
      %p43 = por %p41, %p42
      %p44 = scmp.ne.s32.totalorder %s36, %s39
      %p45 = scmp.eq.s32.totalorder %s26, 0
      %p46 = por %p44, %p45
      %p47 = scmp.ne.s32.totalorder %s36, %s39
      %p48 = scmp.eq.s32.totalorder %s31, 1
      %p49 = por %p47, %p48
      %p50 = scmp.ne.s32.totalorder %s39, %s40
      %p51 = scmp.eq.s32.totalorder %s31, 0
      %p52 = por %p50, %p51
      %p53 = scmp.ne.s32.totalorder %s39, %s40
      %p54 = scmp.eq.s32.totalorder %s32, 1
      %p55 = por %p53, %p54
      %p57 = scmp.ne.s32.totalorder %s40, %s56
      %p58 = scmp.eq.s32.totalorder %s32, 0
      %p59 = por %p57, %p58
      %s60 = ssub.s32 %s26, %s33
      %p61 = scmp.eq.s32.totalorder %s60, 0
      %s63 = sadd.s32 %s62, 1
      %s64 = scalar_select %p61, %s62, %s63
      %p67 = pneg %p61
      %p68 = scmp.eq.s32.totalorder %s26, 1
      %p69 = por %p67, %p68
      %p70 = scmp.ne.s32.totalorder %s62, %s65
      %p71 = scmp.eq.s32.totalorder %s26, 0
      %p72 = por %p70, %p71
      %p73 = scmp.ne.s32.totalorder %s62, %s65
      %p74 = scmp.eq.s32.totalorder %s31, 1
      %p75 = por %p73, %p74
      %p76 = scmp.ne.s32.totalorder %s65, %s66
      %p77 = scmp.eq.s32.totalorder %s31, 0
      %p78 = por %p76, %p77
      %p79 = scmp.ne.s32.totalorder %s65, %s66
      %p80 = scmp.eq.s32.totalorder %s32, 1
      %p81 = por %p79, %p80
      %p83 = scmp.ne.s32.totalorder %s66, %s82
      %p84 = scmp.eq.s32.totalorder %s32, 0
      %p85 = por %p83, %p84
      %s87 = sadd.s32 %s86, 1
      %p90 = scmp.eq.s32.totalorder %s26, 1
      %p91 = scmp.ne.s32.totalorder %s86, %s88
      %p92 = scmp.eq.s32.totalorder %s26, 0
      %p93 = por %p91, %p92
      %p94 = scmp.ne.s32.totalorder %s86, %s88
      %p95 = scmp.eq.s32.totalorder %s31, 1
      %p96 = por %p94, %p95
      %p97 = scmp.ne.s32.totalorder %s88, %s89
      %p98 = scmp.eq.s32.totalorder %s31, 0
      %p99 = por %p97, %p98
      %p100 = scmp.ne.s32.totalorder %s88, %s89
      %p101 = scmp.eq.s32.totalorder %s32, 1
      %p102 = por %p100, %p101
      %p104 = scmp.ne.s32.totalorder %s89, %s103
      %p105 = scmp.eq.s32.totalorder %s32, 0
      %p106 = por %p104, %p105
      %s108 = sadd.s32 %s107, 1
      %p111 = scmp.eq.s32.totalorder %s26, 1
      %p112 = scmp.ne.s32.totalorder %s107, %s109
      %p113 = scmp.eq.s32.totalorder %s26, 0
      %p114 = por %p112, %p113
      %p115 = scmp.ne.s32.totalorder %s107, %s109
      %p116 = scmp.eq.s32.totalorder %s31, 1
      %p117 = por %p115, %p116
      %p118 = scmp.ne.s32.totalorder %s109, %s110
      %p119 = scmp.eq.s32.totalorder %s31, 0
      %p120 = por %p118, %p119
      %p121 = scmp.ne.s32.totalorder %s109, %s110
      %p122 = scmp.eq.s32.totalorder %s32, 1
      %p123 = por %p121, %p122
      %p125 = scmp.ne.s32.totalorder %s110, %s124
      %p126 = scmp.eq.s32.totalorder %s32, 0
      %p127 = por %p125, %p126
      %s128 = ssub.s32 %s26, %s33
      %p129 = scmp.eq.s32.totalorder %s128, 0
      %s131 = sadd.s32 %s130, 1
      %s132 = scalar_select %p129, %s130, %s131
      %p135 = pneg %p129
      %p136 = scmp.eq.s32.totalorder %s26, 1
      %p137 = por %p135, %p136
      %p138 = scmp.ne.s32.totalorder %s130, %s133
      %p139 = scmp.eq.s32.totalorder %s26, 0
      %p140 = por %p138, %p139
      %p141 = scmp.ne.s32.totalorder %s130, %s133
      %p142 = scmp.eq.s32.totalorder %s31, 1
      %p143 = por %p141, %p142
      %p144 = scmp.ne.s32.totalorder %s133, %s134
      %p145 = scmp.eq.s32.totalorder %s31, 0
      %p146 = por %p144, %p145
      %p147 = scmp.ne.s32.totalorder %s133, %s134
      %p148 = scmp.eq.s32.totalorder %s32, 1
      %p149 = por %p147, %p148
      %p151 = scmp.ne.s32.totalorder %s134, %s150
      %p152 = scmp.eq.s32.totalorder %s32, 0
      %p153 = por %p151, %p152
      %s154 = ssub.s32 %s26, %s33
      %p155 = scmp.eq.s32.totalorder %s154, 0
      %s157 = sadd.s32 %s156, 1
      %s158 = scalar_select %p155, %s156, %s157
      %p161 = pneg %p155
      %p162 = scmp.eq.s32.totalorder %s26, 1
      %p163 = por %p161, %p162
      %p164 = scmp.ne.s32.totalorder %s156, %s159
      %p165 = scmp.eq.s32.totalorder %s26, 0
      %p166 = por %p164, %p165
      %p167 = scmp.ne.s32.totalorder %s156, %s159
      %p168 = scmp.eq.s32.totalorder %s31, 1
      %p169 = por %p167, %p168
      %p170 = scmp.ne.s32.totalorder %s159, %s160
      %p171 = scmp.eq.s32.totalorder %s31, 0
      %p172 = por %p170, %p171
      %p173 = scmp.ne.s32.totalorder %s159, %s160
      %p174 = scmp.eq.s32.totalorder %s32, 1
      %p175 = por %p173, %p174
      %p177 = scmp.ne.s32.totalorder %s160, %s176
      %p178 = scmp.eq.s32.totalorder %s32, 0
      %p179 = por %p177, %p178
      %s180 = ssub.s32 %s26, %s33
      %p181 = scmp.eq.s32.totalorder %s180, 0
      %s183 = sadd.s32 %s182, 1
      %s184 = scalar_select %p181, %s182, %s183
      %p187 = pneg %p181
      %p188 = scmp.eq.s32.totalorder %s26, 1
      %p189 = por %p187, %p188
      %p190 = scmp.ne.s32.totalorder %s182, %s185
      %p191 = scmp.eq.s32.totalorder %s26, 0
      %p192 = por %p190, %p191
      %p193 = scmp.ne.s32.totalorder %s182, %s185
      %p194 = scmp.eq.s32.totalorder %s31, 1
      %p195 = por %p193, %p194
      %p196 = scmp.ne.s32.totalorder %s185, %s186
      %p197 = scmp.eq.s32.totalorder %s31, 0
      %p198 = por %p196, %p197
      %p199 = scmp.ne.s32.totalorder %s185, %s186
      %p200 = scmp.eq.s32.totalorder %s32, 1
      %p201 = por %p199, %p200
      %p203 = scmp.ne.s32.totalorder %s186, %s202
      %p204 = scmp.eq.s32.totalorder %s32, 0
      %p205 = por %p203, %p204
      %p206 = scmp.le.s32.totalorder 1, %s26
      %p207 = scmp.lt.s32.totalorder %s26, 3
      %p208 = pnand %p206, %p207
      %p209 = pneg %p208
      // Predicated region
      $region9: #{_lambda_.3} parent=5 // pred_check
        _
      $region10: #{_lambda_.3} parent=5 // pred_check_branch
        %211 = sbr.rel (%p208) target = $region12
      $region11: #{_lambda_.3} parent=5 // pred_region
        %s212 = ssub.s32 %s26, 1
        // Predicated region
        $region13: #{_lambda_.3} parent=11 // pred_check
          %p213 = pneg %p99
        $region14: #{_lambda_.3} parent=11 // pred_check_branch
          %215 = sbr.rel (%p213) target = $region16
        $region15: #{_lambda_.3} parent=11 // pred_region
          %s217 = ssub.s32 128, 128
          %218 = vsyncadd [#allocation6], %s217
          %s220 = sshll.u32 [#allocation7], 4
          %s221 = int_to_ptr.vmem [resolvable:$true] %s220
          %223 = dma.hbm_to_vmem [thread:$0]  %s2, 128, %s221, [#allocation6]
        $region16: #{_lambda_.3} parent=11 // pred_fallthru
          _
        // Predicated region
        $region17: #{_lambda_.3} parent=11 // pred_check
          %p224 = pneg %p120
        $region18: #{_lambda_.3} parent=11 // pred_check_branch
          %226 = sbr.rel (%p224) target = $region20
        $region19: #{_lambda_.3} parent=11 // pred_region
          %s228 = ssub.s32 1024, 1024
          %229 = vsyncadd [#allocation9], %s228
          %s230 = sshll.u32 [#allocation8], 4
          %s231 = int_to_ptr.vmem [resolvable:$true] %s230
          %236 = dma.hbm_to_vmem [thread:$0]  %s3, 1024, %s231, [#allocation9], 64, 64, 4
        $region20: #{_lambda_.3} parent=11 // pred_fallthru
          _
      $region12: #{_lambda_.3} parent=5 // pred_fallthru
        _
      %p237 = scmp.lt.s32.totalorder %s26, 2
      // Predicated region
      $region21: #{_lambda_.3} parent=5 // pred_check
        %p238 = pneg %p237
      $region22: #{_lambda_.3} parent=5 // pred_check_branch
        %240 = sbr.rel (%p238) target = $region24
      $region23: #{_lambda_.3} parent=5 // pred_region
        // Predicated region
        $region25: #{_lambda_.3} parent=23 // pred_check
          %p241 = pneg %p46
        $region26: #{_lambda_.3} parent=23 // pred_check_branch
          %243 = sbr.rel (%p241) target = $region28
        $region27: #{_lambda_.3} parent=23 // pred_region
          %s244 = sand.u32 %s36, 1
          %s245 = scalar_lea.sflag [#allocation3], %s244
          %s246 = sand.u32 %s36, 1
          %s247 = smul.addr %s246, 256
          %s248 = scalar_lea.vmem [#allocation2], %s247
          %s249 = smul.u32 32, %s26
          %s251 = ssub.s32 4096, 4096
          %252 = vsyncadd %s245, %s251
          %s253 = smul.addr %s249, 128
          %s254 = scalar_lea.hbm %s0, %s253
          %s255 = sshll.u32 %s248, 4
          %s256 = int_to_ptr.vmem [resolvable:$true] %s255
          %261 = dma.hbm_to_vmem [thread:$0]  %s254, 4096, %s256, %s245, 128, 128, 8
        $region28: #{_lambda_.3} parent=23 // pred_fallthru
          _
        // Predicated region
        $region29: #{_lambda_.3} parent=23 // pred_check
          %p262 = pneg %p72
        $region30: #{_lambda_.3} parent=23 // pred_check_branch
          %264 = sbr.rel (%p262) target = $region32
        $region31: #{_lambda_.3} parent=23 // pred_region
          %s265 = sand.u32 %s26, 1
          %s266 = scalar_lea.sflag [#allocation6], %s265
          %s267 = sand.u32 %s62, 1
          %s268 = smul.addr %s267, 256
          %s269 = scalar_lea.vmem [#allocation5], %s268
          %s270 = smul.u32 32, %s26
          %s272 = ssub.s32 4096, 4096
          %273 = vsyncadd %s266, %s272
          %s274 = smul.addr %s270, 128
          %s275 = scalar_lea.hbm %s1, %s274
          %s276 = sshll.u32 %s269, 4
          %s277 = int_to_ptr.vmem [resolvable:$true] %s276
          %282 = dma.hbm_to_vmem [thread:$0]  %s275, 4096, %s277, %s266, 128, 128, 8
        $region32: #{_lambda_.3} parent=23 // pred_fallthru
          _
      $region24: #{_lambda_.3} parent=5 // pred_fallthru
        _
      %p283 = scmp.le.s32.totalorder 1, %s26
      %p284 = scmp.lt.s32.totalorder %s26, 3
      %p285 = pnand %p283, %p284
      %p286 = pneg %p285
      // Predicated region
      $region33: #{_lambda_.3} parent=5 // pred_check
        _
      $region34: #{_lambda_.3} parent=5 // pred_check_branch
        %288 = sbr.rel (%p285) target = $region36
      $region35: #{_lambda_.3} parent=5 // pred_region
        %s289 = ssub.s32 %s26, 1
        %s290 = sand.u32 %s39, 1
        %s291 = scalar_lea.sflag [#allocation3], %s290
        %s292 = sand.u32 %s39, 1
        %s293 = smul.addr %s292, 256
        %s294 = scalar_lea.vmem [#allocation2], %s293
        // Predicated region
        $region37: #{_lambda_.3} parent=35 // pred_check
          %p295 = pneg %p52
        $region38: #{_lambda_.3} parent=35 // pred_check_branch
          %297 = sbr.rel (%p295) target = $region40
        $region39: #{_lambda_.3} parent=35 // pred_region
          %298 = dma.done %s291, 4096
        $region40: #{_lambda_.3} parent=35 // pred_fallthru
          _
        %s299 = sand.u32 %s31, 1
        %s300 = scalar_lea.sflag [#allocation6], %s299
        %s301 = sand.u32 %s65, 1
        %s302 = smul.addr %s301, 256
        %s303 = scalar_lea.vmem [#allocation5], %s302
        // Predicated region
        $region41: #{_lambda_.3} parent=35 // pred_check
          %p304 = pneg %p78
        $region42: #{_lambda_.3} parent=35 // pred_check_branch
          %306 = sbr.rel (%p304) target = $region44
        $region43: #{_lambda_.3} parent=35 // pred_region
          %307 = dma.done %s300, 4096
        $region44: #{_lambda_.3} parent=35 // pred_fallthru
          _
        // Predicated region
        $region45: #{_lambda_.3} parent=35 // pred_check
          %p308 = pneg %p99
        $region46: #{_lambda_.3} parent=35 // pred_check_branch
          %310 = sbr.rel (%p308) target = $region48
        $region47: #{_lambda_.3} parent=35 // pred_region
          %311 = dma.done [#allocation6], 128
        $region48: #{_lambda_.3} parent=35 // pred_fallthru
          _
        // Predicated region
        $region49: #{_lambda_.3} parent=35 // pred_check
          %p312 = pneg %p120
        $region50: #{_lambda_.3} parent=35 // pred_check_branch
          %314 = sbr.rel (%p312) target = $region52
        $region51: #{_lambda_.3} parent=35 // pred_region
          %315 = dma.done [#allocation9], 1024
        $region52: #{_lambda_.3} parent=35 // pred_fallthru
          _
        %s316 = sand.u32 %s39, 1
        %s317 = scalar_lea.sflag [#allocation3], %s316
        %s318 = sand.u32 %s39, 1
        %s319 = smul.addr %s318, 256
        %s320 = scalar_lea.vmem [#allocation2], %s319
        %p321 = pneg %p52
        %p322 = pneg %p49
        %s323 = sand.u32 %s31, 1
        %s324 = scalar_lea.sflag [#allocation6], %s323
        %s325 = sand.u32 %s65, 1
        %s326 = smul.addr %s325, 256
        %s327 = scalar_lea.vmem [#allocation5], %s326
        %p328 = pneg %p78
        %p329 = pneg %p75
        %p330 = pneg %p99
        %p331 = pneg %p96
        %p332 = pneg %p120
        %p333 = pneg %p117
        %p334 = pneg %p146
        %p335 = pneg %p143
        %s336 = sand.u32 %s133, 1
        %s337 = scalar_lea.sflag [#allocation4], %s336
        %s338 = sand.u32 %s133, 1
        %s339 = smul.addr %s338, 128
        %s340 = scalar_lea.vmem [#allocation10], %s339
        %p341 = pneg %p172
        %p342 = pneg %p169
        %s343 = sand.u32 %s31, 1
        %s344 = scalar_lea.sflag [#allocation12], %s343
        %s345 = sand.u32 %s159, 1
        %s346 = scalar_lea.vmem [#allocation11], %s345
        %p347 = pneg %p198
        %p348 = pneg %p195
        %s349 = sand.u32 %s31, 1
        %s350 = scalar_lea.sflag [#allocation12], %s349
        %s351 = sand.u32 %s185, 1
        %s352 = smul.addr %s351, 128
        %s353 = scalar_lea.vmem [#allocation13], %s352
        %s354 = smul.u32 32, %s31
        %s355 = smul.u32 32, %s31
        %s356 = smul.u32 32, %s31
        %v358 = vld [vmem:[%s294] sm:$0xff]
        %v359 = vld [vmem:[%s294 + $0x8] sm:$0xff]
        %v360 = vld [vmem:[%s294 + $0x10] sm:$0xff]
        %v361 = vld [vmem:[%s294 + $0x18] sm:$0xff]
        %v362 = vld [vmem:[%s294 + $0x20] sm:$0xff]
        %v363 = vld [vmem:[%s294 + $0x28] sm:$0xff]
        %v364 = vld [vmem:[%s294 + $0x30] sm:$0xff]
        %v365 = vld [vmem:[%s294 + $0x38] sm:$0xff]
        %v366 = vld [vmem:[%s294 + $0x40] sm:$0xff]
        %v367 = vld [vmem:[%s294 + $0x48] sm:$0xff]
        %v368 = vld [vmem:[%s294 + $0x50] sm:$0xff]
        %v369 = vld [vmem:[%s294 + $0x58] sm:$0xff]
        %v370 = vld [vmem:[%s294 + $0x60] sm:$0xff]
        %v371 = vld [vmem:[%s294 + $0x68] sm:$0xff]
        %v372 = vld [vmem:[%s294 + $0x70] sm:$0xff]
        %v373 = vld [vmem:[%s294 + $0x78] sm:$0xff]
        %v374 = vld [vmem:[%s294 + $0x80] sm:$0xff]
        %v375 = vld [vmem:[%s294 + $0x88] sm:$0xff]
        %v376 = vld [vmem:[%s294 + $0x90] sm:$0xff]
        %v377 = vld [vmem:[%s294 + $0x98] sm:$0xff]
        %v378 = vld [vmem:[%s294 + $0xa0] sm:$0xff]
        %v379 = vld [vmem:[%s294 + $0xa8] sm:$0xff]
        %v380 = vld [vmem:[%s294 + $0xb0] sm:$0xff]
        %v381 = vld [vmem:[%s294 + $0xb8] sm:$0xff]
        %v382 = vld [vmem:[%s294 + $0xc0] sm:$0xff]
        %v383 = vld [vmem:[%s294 + $0xc8] sm:$0xff]
        %v384 = vld [vmem:[%s294 + $0xd0] sm:$0xff]
        %v385 = vld [vmem:[%s294 + $0xd8] sm:$0xff]
        %v386 = vld [vmem:[%s294 + $0xe0] sm:$0xff]
        %v387 = vld [vmem:[%s294 + $0xe8] sm:$0xff]
        %v388 = vld [vmem:[%s294 + $0xf0] sm:$0xff]
        %v389 = vld [vmem:[%s294 + $0xf8] sm:$0xff]
        %v390 = vld [vmem:[#allocation7] sm:$0x1]
        %392 = vset.pattern.permute.xlu0 0
        %393 = vperm.xlu0 %392, %v358
        %v394 = vpop.permute.xlu0 %393
        %397 = vset.pattern.permute.xlu0 0
        %398 = vperm.xlu0 %397, %v359
        %v399 = vpop.permute.xlu0 %398
        %402 = vset.pattern.permute.xlu0 0
        %403 = vperm.xlu0 %402, %v360
        %v404 = vpop.permute.xlu0 %403
        %407 = vset.pattern.permute.xlu0 0
        %408 = vperm.xlu0 %407, %v361
        %v409 = vpop.permute.xlu0 %408
        %412 = vset.pattern.permute.xlu0 0
        %413 = vperm.xlu0 %412, %v362
        %v414 = vpop.permute.xlu0 %413
        %417 = vset.pattern.permute.xlu0 0
        %418 = vperm.xlu0 %417, %v363
        %v419 = vpop.permute.xlu0 %418
        %422 = vset.pattern.permute.xlu0 0
        %423 = vperm.xlu0 %422, %v364
        %v424 = vpop.permute.xlu0 %423
        %427 = vset.pattern.permute.xlu0 0
        %428 = vperm.xlu0 %427, %v365
        %v429 = vpop.permute.xlu0 %428
        %432 = vset.pattern.permute.xlu0 0
        %433 = vperm.xlu0 %432, %v366
        %v434 = vpop.permute.xlu0 %433
        %437 = vset.pattern.permute.xlu0 0
        %438 = vperm.xlu0 %437, %v367
        %v439 = vpop.permute.xlu0 %438
        %442 = vset.pattern.permute.xlu0 0
        %443 = vperm.xlu0 %442, %v368
        %v444 = vpop.permute.xlu0 %443
        %447 = vset.pattern.permute.xlu0 0
        %448 = vperm.xlu0 %447, %v369
        %v449 = vpop.permute.xlu0 %448
        %452 = vset.pattern.permute.xlu0 0
        %453 = vperm.xlu0 %452, %v370
        %v454 = vpop.permute.xlu0 %453
        %457 = vset.pattern.permute.xlu0 0
        %458 = vperm.xlu0 %457, %v371
        %v459 = vpop.permute.xlu0 %458
        %462 = vset.pattern.permute.xlu0 0
        %463 = vperm.xlu0 %462, %v372
        %v464 = vpop.permute.xlu0 %463
        %467 = vset.pattern.permute.xlu0 0
        %468 = vperm.xlu0 %467, %v373
        %v469 = vpop.permute.xlu0 %468
        %472 = vset.pattern.permute.xlu0 0
        %473 = vperm.xlu0 %472, %v374
        %v474 = vpop.permute.xlu0 %473
        %477 = vset.pattern.permute.xlu0 0
        %478 = vperm.xlu0 %477, %v375
        %v479 = vpop.permute.xlu0 %478
        %482 = vset.pattern.permute.xlu0 0
        %483 = vperm.xlu0 %482, %v376
        %v484 = vpop.permute.xlu0 %483
        %487 = vset.pattern.permute.xlu0 0
        %488 = vperm.xlu0 %487, %v377
        %v489 = vpop.permute.xlu0 %488
        %492 = vset.pattern.permute.xlu0 0
        %493 = vperm.xlu0 %492, %v378
        %v494 = vpop.permute.xlu0 %493
        %497 = vset.pattern.permute.xlu0 0
        %498 = vperm.xlu0 %497, %v379
        %v499 = vpop.permute.xlu0 %498
        %502 = vset.pattern.permute.xlu0 0
        %503 = vperm.xlu0 %502, %v380
        %v504 = vpop.permute.xlu0 %503
        %507 = vset.pattern.permute.xlu0 0
        %508 = vperm.xlu0 %507, %v381
        %v509 = vpop.permute.xlu0 %508
        %512 = vset.pattern.permute.xlu0 0
        %513 = vperm.xlu0 %512, %v382
        %v514 = vpop.permute.xlu0 %513
        %517 = vset.pattern.permute.xlu0 0
        %518 = vperm.xlu0 %517, %v383
        %v519 = vpop.permute.xlu0 %518
        %522 = vset.pattern.permute.xlu0 0
        %523 = vperm.xlu0 %522, %v384
        %v524 = vpop.permute.xlu0 %523
        %527 = vset.pattern.permute.xlu0 0
        %528 = vperm.xlu0 %527, %v385
        %v529 = vpop.permute.xlu0 %528
        %532 = vset.pattern.permute.xlu0 0
        %533 = vperm.xlu0 %532, %v386
        %v534 = vpop.permute.xlu0 %533
        %537 = vset.pattern.permute.xlu0 0
        %538 = vperm.xlu0 %537, %v387
        %v539 = vpop.permute.xlu0 %538
        %542 = vset.pattern.permute.xlu0 0
        %543 = vperm.xlu0 %542, %v388
        %v544 = vpop.permute.xlu0 %543
        %547 = vset.pattern.permute.xlu0 0
        %548 = vperm.xlu0 %547, %v389
        %v549 = vpop.permute.xlu0 %548
        %v551 = vlaneseq
        %v552 = vshrl.u32 %v551, 7
        %v553 = vsub.s32 0, %v552
        %v554 = vrot.slane %v390, %v553
        %v555 = vsub.f32 %v394, %v554
        %v556 = vsub.f32 %v399, %v554
        %v557 = vsub.f32 %v404, %v554
        %v558 = vsub.f32 %v409, %v554
        %v559 = vsub.f32 %v414, %v554
        %v560 = vsub.f32 %v419, %v554
        %v561 = vsub.f32 %v424, %v554
        %v562 = vsub.f32 %v429, %v554
        %v563 = vsub.f32 %v434, %v554
        %v564 = vsub.f32 %v439, %v554
        %v565 = vsub.f32 %v444, %v554
        %v566 = vsub.f32 %v449, %v554
        %v567 = vsub.f32 %v454, %v554
        %v568 = vsub.f32 %v459, %v554
        %v569 = vsub.f32 %v464, %v554
        %v570 = vsub.f32 %v469, %v554
        %v571 = vsub.f32 %v474, %v554
        %v572 = vsub.f32 %v479, %v554
        %v573 = vsub.f32 %v484, %v554
        %v574 = vsub.f32 %v489, %v554
        %v575 = vsub.f32 %v494, %v554
        %v576 = vsub.f32 %v499, %v554
        %v577 = vsub.f32 %v504, %v554
        %v578 = vsub.f32 %v509, %v554
        %v579 = vsub.f32 %v514, %v554
        %v580 = vsub.f32 %v519, %v554
        %v581 = vsub.f32 %v524, %v554
        %v582 = vsub.f32 %v529, %v554
        %v583 = vsub.f32 %v534, %v554
        %v584 = vsub.f32 %v539, %v554
        %v585 = vsub.f32 %v544, %v554
        %v586 = vsub.f32 %v549, %v554
        %v587 = vmul.f32 %v555, %v555
        %v588 = vmul.f32 %v556, %v556
        %v589 = vmul.f32 %v557, %v557
        %v590 = vmul.f32 %v558, %v558
        %v591 = vmul.f32 %v559, %v559
        %v592 = vmul.f32 %v560, %v560
        %v593 = vmul.f32 %v561, %v561
        %v594 = vmul.f32 %v562, %v562
        %v595 = vmul.f32 %v563, %v563
        %v596 = vmul.f32 %v564, %v564
        %v597 = vmul.f32 %v565, %v565
        %v598 = vmul.f32 %v566, %v566
        %v599 = vmul.f32 %v567, %v567
        %v600 = vmul.f32 %v568, %v568
        %v601 = vmul.f32 %v569, %v569
        %v602 = vmul.f32 %v570, %v570
        %v603 = vmul.f32 %v571, %v571
        %v604 = vmul.f32 %v572, %v572
        %v605 = vmul.f32 %v573, %v573
        %v606 = vmul.f32 %v574, %v574
        %v607 = vmul.f32 %v575, %v575
        %v608 = vmul.f32 %v576, %v576
        %v609 = vmul.f32 %v577, %v577
        %v610 = vmul.f32 %v578, %v578
        %v611 = vmul.f32 %v579, %v579
        %v612 = vmul.f32 %v580, %v580
        %v613 = vmul.f32 %v581, %v581
        %v614 = vmul.f32 %v582, %v582
        %v615 = vmul.f32 %v583, %v583
        %v616 = vmul.f32 %v584, %v584
        %v617 = vmul.f32 %v585, %v585
        %v618 = vmul.f32 %v586, %v586
        %v619 = vadd.f32 %v587, 0.0
        %v620 = vadd.f32 %v588, 0.0
        %v621 = vadd.f32 %v589, 0.0
        %v622 = vadd.f32 %v590, 0.0
        %v623 = vadd.f32 %v591, 0.0
        %v624 = vadd.f32 %v592, 0.0
        %v625 = vadd.f32 %v593, 0.0
        %v626 = vadd.f32 %v594, 0.0
        %v627 = vadd.f32 %v595, 0.0
        %v628 = vadd.f32 %v596, 0.0
        %v629 = vadd.f32 %v597, 0.0
        %v630 = vadd.f32 %v598, 0.0
        %v631 = vadd.f32 %v599, 0.0
        %v632 = vadd.f32 %v600, 0.0
        %v633 = vadd.f32 %v601, 0.0
        %v634 = vadd.f32 %v602, 0.0
        %v635 = vadd.f32 %v603, 0.0
        %v636 = vadd.f32 %v604, 0.0
        %v637 = vadd.f32 %v605, 0.0
        %v638 = vadd.f32 %v606, 0.0
        %v639 = vadd.f32 %v607, 0.0
        %v640 = vadd.f32 %v608, 0.0
        %v641 = vadd.f32 %v609, 0.0
        %v642 = vadd.f32 %v610, 0.0
        %v643 = vadd.f32 %v611, 0.0
        %v644 = vadd.f32 %v612, 0.0
        %v645 = vadd.f32 %v613, 0.0
        %v646 = vadd.f32 %v614, 0.0
        %v647 = vadd.f32 %v615, 0.0
        %v648 = vadd.f32 %v616, 0.0
        %v649 = vadd.f32 %v617, 0.0
        %v650 = vadd.f32 %v618, 0.0
        %v651 = vld [vmem:[#allocation7 + $0x1] sm:$0x1]
        %652 = vset.pattern.permute.xlu0 1
        %653 = vperm.xlu0 %652, %v358
        %v654 = vpop.permute.xlu0 %653
        %656 = vset.pattern.permute.xlu0 1
        %657 = vperm.xlu0 %656, %v359
        %v658 = vpop.permute.xlu0 %657
        %660 = vset.pattern.permute.xlu0 1
        %661 = vperm.xlu0 %660, %v360
        %v662 = vpop.permute.xlu0 %661
        %664 = vset.pattern.permute.xlu0 1
        %665 = vperm.xlu0 %664, %v361
        %v666 = vpop.permute.xlu0 %665
        %668 = vset.pattern.permute.xlu0 1
        %669 = vperm.xlu0 %668, %v362
        %v670 = vpop.permute.xlu0 %669
        %672 = vset.pattern.permute.xlu0 1
        %673 = vperm.xlu0 %672, %v363
        %v674 = vpop.permute.xlu0 %673
        %676 = vset.pattern.permute.xlu0 1
        %677 = vperm.xlu0 %676, %v364
        %v678 = vpop.permute.xlu0 %677
        %680 = vset.pattern.permute.xlu0 1
        %681 = vperm.xlu0 %680, %v365
        %v682 = vpop.permute.xlu0 %681
        %684 = vset.pattern.permute.xlu0 1
        %685 = vperm.xlu0 %684, %v366
        %v686 = vpop.permute.xlu0 %685
        %688 = vset.pattern.permute.xlu0 1
        %689 = vperm.xlu0 %688, %v367
        %v690 = vpop.permute.xlu0 %689
        %692 = vset.pattern.permute.xlu0 1
        %693 = vperm.xlu0 %692, %v368
        %v694 = vpop.permute.xlu0 %693
        %696 = vset.pattern.permute.xlu0 1
        %697 = vperm.xlu0 %696, %v369
        %v698 = vpop.permute.xlu0 %697
        %700 = vset.pattern.permute.xlu0 1
        %701 = vperm.xlu0 %700, %v370
        %v702 = vpop.permute.xlu0 %701
        %704 = vset.pattern.permute.xlu0 1
        %705 = vperm.xlu0 %704, %v371
        %v706 = vpop.permute.xlu0 %705
        %708 = vset.pattern.permute.xlu0 1
        %709 = vperm.xlu0 %708, %v372
        %v710 = vpop.permute.xlu0 %709
        %712 = vset.pattern.permute.xlu0 1
        %713 = vperm.xlu0 %712, %v373
        %v714 = vpop.permute.xlu0 %713
        %716 = vset.pattern.permute.xlu0 1
        %717 = vperm.xlu0 %716, %v374
        %v718 = vpop.permute.xlu0 %717
        %720 = vset.pattern.permute.xlu0 1
        %721 = vperm.xlu0 %720, %v375
        %v722 = vpop.permute.xlu0 %721
        %724 = vset.pattern.permute.xlu0 1
        %725 = vperm.xlu0 %724, %v376
        %v726 = vpop.permute.xlu0 %725
        %728 = vset.pattern.permute.xlu0 1
        %729 = vperm.xlu0 %728, %v377
        %v730 = vpop.permute.xlu0 %729
        %732 = vset.pattern.permute.xlu0 1
        %733 = vperm.xlu0 %732, %v378
        %v734 = vpop.permute.xlu0 %733
        %736 = vset.pattern.permute.xlu0 1
        %737 = vperm.xlu0 %736, %v379
        %v738 = vpop.permute.xlu0 %737
        %740 = vset.pattern.permute.xlu0 1
        %741 = vperm.xlu0 %740, %v380
        %v742 = vpop.permute.xlu0 %741
        %744 = vset.pattern.permute.xlu0 1
        %745 = vperm.xlu0 %744, %v381
        %v746 = vpop.permute.xlu0 %745
        %748 = vset.pattern.permute.xlu0 1
        %749 = vperm.xlu0 %748, %v382
        %v750 = vpop.permute.xlu0 %749
        %752 = vset.pattern.permute.xlu0 1
        %753 = vperm.xlu0 %752, %v383
        %v754 = vpop.permute.xlu0 %753
        %756 = vset.pattern.permute.xlu0 1
        %757 = vperm.xlu0 %756, %v384
        %v758 = vpop.permute.xlu0 %757
        %760 = vset.pattern.permute.xlu0 1
        %761 = vperm.xlu0 %760, %v385
        %v762 = vpop.permute.xlu0 %761
        %764 = vset.pattern.permute.xlu0 1
        %765 = vperm.xlu0 %764, %v386
        %v766 = vpop.permute.xlu0 %765
        %768 = vset.pattern.permute.xlu0 1
        %769 = vperm.xlu0 %768, %v387
        %v770 = vpop.permute.xlu0 %769
        %772 = vset.pattern.permute.xlu0 1
        %773 = vperm.xlu0 %772, %v388
        %v774 = vpop.permute.xlu0 %773
        %776 = vset.pattern.permute.xlu0 1
        %777 = vperm.xlu0 %776, %v389
        %v778 = vpop.permute.xlu0 %777
        %v780 = vlaneseq
        %v781 = vshrl.u32 %v780, 7
        %v782 = vsub.s32 0, %v781
        %v783 = vrot.slane %v651, %v782
        %v784 = vsub.f32 %v654, %v783
        %v785 = vsub.f32 %v658, %v783
        %v786 = vsub.f32 %v662, %v783
        %v787 = vsub.f32 %v666, %v783
        %v788 = vsub.f32 %v670, %v783
        %v789 = vsub.f32 %v674, %v783
        %v790 = vsub.f32 %v678, %v783
        %v791 = vsub.f32 %v682, %v783
        %v792 = vsub.f32 %v686, %v783
        %v793 = vsub.f32 %v690, %v783
        %v794 = vsub.f32 %v694, %v783
        %v795 = vsub.f32 %v698, %v783
        %v796 = vsub.f32 %v702, %v783
        %v797 = vsub.f32 %v706, %v783
        %v798 = vsub.f32 %v710, %v783
        %v799 = vsub.f32 %v714, %v783
        %v800 = vsub.f32 %v718, %v783
        %v801 = vsub.f32 %v722, %v783
        %v802 = vsub.f32 %v726, %v783
        %v803 = vsub.f32 %v730, %v783
        %v804 = vsub.f32 %v734, %v783
        %v805 = vsub.f32 %v738, %v783
        %v806 = vsub.f32 %v742, %v783
        %v807 = vsub.f32 %v746, %v783
        %v808 = vsub.f32 %v750, %v783
        %v809 = vsub.f32 %v754, %v783
        %v810 = vsub.f32 %v758, %v783
        %v811 = vsub.f32 %v762, %v783
        %v812 = vsub.f32 %v766, %v783
        %v813 = vsub.f32 %v770, %v783
        %v814 = vsub.f32 %v774, %v783
        %v815 = vsub.f32 %v778, %v783
        %v816 = vmul.f32 %v784, %v784
        %v817 = vmul.f32 %v785, %v785
        %v818 = vmul.f32 %v786, %v786
        %v819 = vmul.f32 %v787, %v787
        %v820 = vmul.f32 %v788, %v788
        %v821 = vmul.f32 %v789, %v789
        %v822 = vmul.f32 %v790, %v790
        %v823 = vmul.f32 %v791, %v791
        %v824 = vmul.f32 %v792, %v792
        %v825 = vmul.f32 %v793, %v793
        %v826 = vmul.f32 %v794, %v794
        %v827 = vmul.f32 %v795, %v795
        %v828 = vmul.f32 %v796, %v796
        %v829 = vmul.f32 %v797, %v797
        %v830 = vmul.f32 %v798, %v798
        %v831 = vmul.f32 %v799, %v799
        %v832 = vmul.f32 %v800, %v800
        %v833 = vmul.f32 %v801, %v801
        %v834 = vmul.f32 %v802, %v802
        %v835 = vmul.f32 %v803, %v803
        %v836 = vmul.f32 %v804, %v804
        %v837 = vmul.f32 %v805, %v805
        %v838 = vmul.f32 %v806, %v806
        %v839 = vmul.f32 %v807, %v807
        %v840 = vmul.f32 %v808, %v808
        %v841 = vmul.f32 %v809, %v809
        %v842 = vmul.f32 %v810, %v810
        %v843 = vmul.f32 %v811, %v811
        %v844 = vmul.f32 %v812, %v812
        %v845 = vmul.f32 %v813, %v813
        %v846 = vmul.f32 %v814, %v814
        %v847 = vmul.f32 %v815, %v815
        %v848 = vadd.f32 %v619, %v816
        %v849 = vadd.f32 %v620, %v817
        %v850 = vadd.f32 %v621, %v818
        %v851 = vadd.f32 %v622, %v819
        %v852 = vadd.f32 %v623, %v820
        %v853 = vadd.f32 %v624, %v821
        %v854 = vadd.f32 %v625, %v822
        %v855 = vadd.f32 %v626, %v823
        %v856 = vadd.f32 %v627, %v824
        %v857 = vadd.f32 %v628, %v825
        %v858 = vadd.f32 %v629, %v826
        %v859 = vadd.f32 %v630, %v827
        %v860 = vadd.f32 %v631, %v828
        %v861 = vadd.f32 %v632, %v829
        %v862 = vadd.f32 %v633, %v830
        %v863 = vadd.f32 %v634, %v831
        %v864 = vadd.f32 %v635, %v832
        %v865 = vadd.f32 %v636, %v833
        %v866 = vadd.f32 %v637, %v834
        %v867 = vadd.f32 %v638, %v835
        %v868 = vadd.f32 %v639, %v836
        %v869 = vadd.f32 %v640, %v837
        %v870 = vadd.f32 %v641, %v838
        %v871 = vadd.f32 %v642, %v839
        %v872 = vadd.f32 %v643, %v840
        %v873 = vadd.f32 %v644, %v841
        %v874 = vadd.f32 %v645, %v842
        %v875 = vadd.f32 %v646, %v843
        %v876 = vadd.f32 %v647, %v844
        %v877 = vadd.f32 %v648, %v845
        %v878 = vadd.f32 %v649, %v846
        %v879 = vadd.f32 %v650, %v847
        %v880 = vld [vmem:[#allocation7 + $0x2] sm:$0x1]
        %881 = vset.pattern.permute.xlu0 2
        %882 = vperm.xlu0 %881, %v358
        %v883 = vpop.permute.xlu0 %882
        %885 = vset.pattern.permute.xlu0 2
        %886 = vperm.xlu0 %885, %v359
        %v887 = vpop.permute.xlu0 %886
        %889 = vset.pattern.permute.xlu0 2
        %890 = vperm.xlu0 %889, %v360
        %v891 = vpop.permute.xlu0 %890
        %893 = vset.pattern.permute.xlu0 2
        %894 = vperm.xlu0 %893, %v361
        %v895 = vpop.permute.xlu0 %894
        %897 = vset.pattern.permute.xlu0 2
        %898 = vperm.xlu0 %897, %v362
        %v899 = vpop.permute.xlu0 %898
        %901 = vset.pattern.permute.xlu0 2
        %902 = vperm.xlu0 %901, %v363
        %v903 = vpop.permute.xlu0 %902
        %905 = vset.pattern.permute.xlu0 2
        %906 = vperm.xlu0 %905, %v364
        %v907 = vpop.permute.xlu0 %906
        %909 = vset.pattern.permute.xlu0 2
        %910 = vperm.xlu0 %909, %v365
        %v911 = vpop.permute.xlu0 %910
        %913 = vset.pattern.permute.xlu0 2
        %914 = vperm.xlu0 %913, %v366
        %v915 = vpop.permute.xlu0 %914
        %917 = vset.pattern.permute.xlu0 2
        %918 = vperm.xlu0 %917, %v367
        %v919 = vpop.permute.xlu0 %918
        %921 = vset.pattern.permute.xlu0 2
        %922 = vperm.xlu0 %921, %v368
        %v923 = vpop.permute.xlu0 %922
        %925 = vset.pattern.permute.xlu0 2
        %926 = vperm.xlu0 %925, %v369
        %v927 = vpop.permute.xlu0 %926
        %929 = vset.pattern.permute.xlu0 2
        %930 = vperm.xlu0 %929, %v370
        %v931 = vpop.permute.xlu0 %930
        %933 = vset.pattern.permute.xlu0 2
        %934 = vperm.xlu0 %933, %v371
        %v935 = vpop.permute.xlu0 %934
        %937 = vset.pattern.permute.xlu0 2
        %938 = vperm.xlu0 %937, %v372
        %v939 = vpop.permute.xlu0 %938
        %941 = vset.pattern.permute.xlu0 2
        %942 = vperm.xlu0 %941, %v373
        %v943 = vpop.permute.xlu0 %942
        %945 = vset.pattern.permute.xlu0 2
        %946 = vperm.xlu0 %945, %v374
        %v947 = vpop.permute.xlu0 %946
        %949 = vset.pattern.permute.xlu0 2
        %950 = vperm.xlu0 %949, %v375
        %v951 = vpop.permute.xlu0 %950
        %953 = vset.pattern.permute.xlu0 2
        %954 = vperm.xlu0 %953, %v376
        %v955 = vpop.permute.xlu0 %954
        %957 = vset.pattern.permute.xlu0 2
        %958 = vperm.xlu0 %957, %v377
        %v959 = vpop.permute.xlu0 %958
        %961 = vset.pattern.permute.xlu0 2
        %962 = vperm.xlu0 %961, %v378
        %v963 = vpop.permute.xlu0 %962
        %965 = vset.pattern.permute.xlu0 2
        %966 = vperm.xlu0 %965, %v379
        %v967 = vpop.permute.xlu0 %966
        %969 = vset.pattern.permute.xlu0 2
        %970 = vperm.xlu0 %969, %v380
        %v971 = vpop.permute.xlu0 %970
        %973 = vset.pattern.permute.xlu0 2
        %974 = vperm.xlu0 %973, %v381
        %v975 = vpop.permute.xlu0 %974
        %977 = vset.pattern.permute.xlu0 2
        %978 = vperm.xlu0 %977, %v382
        %v979 = vpop.permute.xlu0 %978
        %981 = vset.pattern.permute.xlu0 2
        %982 = vperm.xlu0 %981, %v383
        %v983 = vpop.permute.xlu0 %982
        %985 = vset.pattern.permute.xlu0 2
        %986 = vperm.xlu0 %985, %v384
        %v987 = vpop.permute.xlu0 %986
        %989 = vset.pattern.permute.xlu0 2
        %990 = vperm.xlu0 %989, %v385
        %v991 = vpop.permute.xlu0 %990
        %993 = vset.pattern.permute.xlu0 2
        %994 = vperm.xlu0 %993, %v386
        %v995 = vpop.permute.xlu0 %994
        %997 = vset.pattern.permute.xlu0 2
        %998 = vperm.xlu0 %997, %v387
        %v999 = vpop.permute.xlu0 %998
        %1001 = vset.pattern.permute.xlu0 2
        %1002 = vperm.xlu0 %1001, %v388
        %v1003 = vpop.permute.xlu0 %1002
        %1005 = vset.pattern.permute.xlu0 2
        %1006 = vperm.xlu0 %1005, %v389
        %v1007 = vpop.permute.xlu0 %1006
        %v1009 = vlaneseq
        %v1010 = vshrl.u32 %v1009, 7
        %v1011 = vsub.s32 0, %v1010
        %v1012 = vrot.slane %v880, %v1011
        %v1013 = vsub.f32 %v883, %v1012
        %v1014 = vsub.f32 %v887, %v1012
        %v1015 = vsub.f32 %v891, %v1012
        %v1016 = vsub.f32 %v895, %v1012
        %v1017 = vsub.f32 %v899, %v1012
        %v1018 = vsub.f32 %v903, %v1012
        %v1019 = vsub.f32 %v907, %v1012
        %v1020 = vsub.f32 %v911, %v1012
        %v1021 = vsub.f32 %v915, %v1012
        %v1022 = vsub.f32 %v919, %v1012
        %v1023 = vsub.f32 %v923, %v1012
        %v1024 = vsub.f32 %v927, %v1012
        %v1025 = vsub.f32 %v931, %v1012
        %v1026 = vsub.f32 %v935, %v1012
        %v1027 = vsub.f32 %v939, %v1012
        %v1028 = vsub.f32 %v943, %v1012
        %v1029 = vsub.f32 %v947, %v1012
        %v1030 = vsub.f32 %v951, %v1012
        %v1031 = vsub.f32 %v955, %v1012
        %v1032 = vsub.f32 %v959, %v1012
        %v1033 = vsub.f32 %v963, %v1012
        %v1034 = vsub.f32 %v967, %v1012
        %v1035 = vsub.f32 %v971, %v1012
        %v1036 = vsub.f32 %v975, %v1012
        %v1037 = vsub.f32 %v979, %v1012
        %v1038 = vsub.f32 %v983, %v1012
        %v1039 = vsub.f32 %v987, %v1012
        %v1040 = vsub.f32 %v991, %v1012
        %v1041 = vsub.f32 %v995, %v1012
        %v1042 = vsub.f32 %v999, %v1012
        %v1043 = vsub.f32 %v1003, %v1012
        %v1044 = vsub.f32 %v1007, %v1012
        %v1045 = vmul.f32 %v1013, %v1013
        %v1046 = vmul.f32 %v1014, %v1014
        %v1047 = vmul.f32 %v1015, %v1015
        %v1048 = vmul.f32 %v1016, %v1016
        %v1049 = vmul.f32 %v1017, %v1017
        %v1050 = vmul.f32 %v1018, %v1018
        %v1051 = vmul.f32 %v1019, %v1019
        %v1052 = vmul.f32 %v1020, %v1020
        %v1053 = vmul.f32 %v1021, %v1021
        %v1054 = vmul.f32 %v1022, %v1022
        %v1055 = vmul.f32 %v1023, %v1023
        %v1056 = vmul.f32 %v1024, %v1024
        %v1057 = vmul.f32 %v1025, %v1025
        %v1058 = vmul.f32 %v1026, %v1026
        %v1059 = vmul.f32 %v1027, %v1027
        %v1060 = vmul.f32 %v1028, %v1028
        %v1061 = vmul.f32 %v1029, %v1029
        %v1062 = vmul.f32 %v1030, %v1030
        %v1063 = vmul.f32 %v1031, %v1031
        %v1064 = vmul.f32 %v1032, %v1032
        %v1065 = vmul.f32 %v1033, %v1033
        %v1066 = vmul.f32 %v1034, %v1034
        %v1067 = vmul.f32 %v1035, %v1035
        %v1068 = vmul.f32 %v1036, %v1036
        %v1069 = vmul.f32 %v1037, %v1037
        %v1070 = vmul.f32 %v1038, %v1038
        %v1071 = vmul.f32 %v1039, %v1039
        %v1072 = vmul.f32 %v1040, %v1040
        %v1073 = vmul.f32 %v1041, %v1041
        %v1074 = vmul.f32 %v1042, %v1042
        %v1075 = vmul.f32 %v1043, %v1043
        %v1076 = vmul.f32 %v1044, %v1044
        %v1077 = vadd.f32 %v848, %v1045
        %v1078 = vadd.f32 %v849, %v1046
        %v1079 = vadd.f32 %v850, %v1047
        %v1080 = vadd.f32 %v851, %v1048
        %v1081 = vadd.f32 %v852, %v1049
        %v1082 = vadd.f32 %v853, %v1050
        %v1083 = vadd.f32 %v854, %v1051
        %v1084 = vadd.f32 %v855, %v1052
        %v1085 = vadd.f32 %v856, %v1053
        %v1086 = vadd.f32 %v857, %v1054
        %v1087 = vadd.f32 %v858, %v1055
        %v1088 = vadd.f32 %v859, %v1056
        %v1089 = vadd.f32 %v860, %v1057
        %v1090 = vadd.f32 %v861, %v1058
        %v1091 = vadd.f32 %v862, %v1059
        %v1092 = vadd.f32 %v863, %v1060
        %v1093 = vadd.f32 %v864, %v1061
        %v1094 = vadd.f32 %v865, %v1062
        %v1095 = vadd.f32 %v866, %v1063
        %v1096 = vadd.f32 %v867, %v1064
        %v1097 = vadd.f32 %v868, %v1065
        %v1098 = vadd.f32 %v869, %v1066
        %v1099 = vadd.f32 %v870, %v1067
        %v1100 = vadd.f32 %v871, %v1068
        %v1101 = vadd.f32 %v872, %v1069
        %v1102 = vadd.f32 %v873, %v1070
        %v1103 = vadd.f32 %v874, %v1071
        %v1104 = vadd.f32 %v875, %v1072
        %v1105 = vadd.f32 %v876, %v1073
        %v1106 = vadd.f32 %v877, %v1074
        %v1107 = vadd.f32 %v878, %v1075
        %v1108 = vadd.f32 %v879, %v1076
        %v1109 = vlaneseq
        %v1110 = vand.u32 %v1109, 127
        %v1143 = vand.u32 %v1077, 4294963200
        %v1144 = vand.u32 %v1078, 4294963200
        %v1145 = vand.u32 %v1079, 4294963200
        %v1146 = vand.u32 %v1080, 4294963200
        %v1147 = vand.u32 %v1081, 4294963200
        %v1148 = vand.u32 %v1082, 4294963200
        %v1149 = vand.u32 %v1083, 4294963200
        %v1150 = vand.u32 %v1084, 4294963200
        %v1151 = vand.u32 %v1085, 4294963200
        %v1152 = vand.u32 %v1086, 4294963200
        %v1153 = vand.u32 %v1087, 4294963200
        %v1154 = vand.u32 %v1088, 4294963200
        %v1155 = vand.u32 %v1089, 4294963200
        %v1156 = vand.u32 %v1090, 4294963200
        %v1157 = vand.u32 %v1091, 4294963200
        %v1158 = vand.u32 %v1092, 4294963200
        %v1159 = vand.u32 %v1093, 4294963200
        %v1160 = vand.u32 %v1094, 4294963200
        %v1161 = vand.u32 %v1095, 4294963200
        %v1162 = vand.u32 %v1096, 4294963200
        %v1163 = vand.u32 %v1097, 4294963200
        %v1164 = vand.u32 %v1098, 4294963200
        %v1165 = vand.u32 %v1099, 4294963200
        %v1166 = vand.u32 %v1100, 4294963200
        %v1167 = vand.u32 %v1101, 4294963200
        %v1168 = vand.u32 %v1102, 4294963200
        %v1169 = vand.u32 %v1103, 4294963200
        %v1170 = vand.u32 %v1104, 4294963200
        %v1171 = vand.u32 %v1105, 4294963200
        %v1172 = vand.u32 %v1106, 4294963200
        %v1173 = vand.u32 %v1107, 4294963200
        %v1174 = vand.u32 %v1108, 4294963200
        %v1175 = vor.u32 %v1143, %v1110
        %v1176 = vor.u32 %v1144, %v1110
        %v1177 = vor.u32 %v1145, %v1110
        %v1178 = vor.u32 %v1146, %v1110
        %v1179 = vor.u32 %v1147, %v1110
        %v1180 = vor.u32 %v1148, %v1110
        %v1181 = vor.u32 %v1149, %v1110
        %v1182 = vor.u32 %v1150, %v1110
        %v1183 = vor.u32 %v1151, %v1110
        %v1184 = vor.u32 %v1152, %v1110
        %v1185 = vor.u32 %v1153, %v1110
        %v1186 = vor.u32 %v1154, %v1110
        %v1187 = vor.u32 %v1155, %v1110
        %v1188 = vor.u32 %v1156, %v1110
        %v1189 = vor.u32 %v1157, %v1110
        %v1190 = vor.u32 %v1158, %v1110
        %v1191 = vor.u32 %v1159, %v1110
        %v1192 = vor.u32 %v1160, %v1110
        %v1193 = vor.u32 %v1161, %v1110
        %v1194 = vor.u32 %v1162, %v1110
        %v1195 = vor.u32 %v1163, %v1110
        %v1196 = vor.u32 %v1164, %v1110
        %v1197 = vor.u32 %v1165, %v1110
        %v1198 = vor.u32 %v1166, %v1110
        %v1199 = vor.u32 %v1167, %v1110
        %v1200 = vor.u32 %v1168, %v1110
        %v1201 = vor.u32 %v1169, %v1110
        %v1202 = vor.u32 %v1170, %v1110
        %v1203 = vor.u32 %v1171, %v1110
        %v1204 = vor.u32 %v1172, %v1110
        %v1205 = vor.u32 %v1173, %v1110
        %v1206 = vor.u32 %v1174, %v1110
        %v1207 = vand.u32 %v1175, 65535
        %v1208 = vshra.s32 %v1175, 16
        %v1209 = vcvt.s32.f32 %v1207
        %v1210 = vcvt.s32.f32 %v1208
        %1211 = vmin.xlane.f32.xlu0 %v1210
        %v1212 = vpop.xlane.xlu0 %1211
        %vm1213 = vcmp.eq.f32.partialorder %v1210, %v1212
        %v1214 = vsel %vm1213, %v1209, inf
        %1215 = vmin.xlane.f32.xlu0 %v1214
        %v1216 = vpop.xlane.xlu0 %1215
        %v1217 = vcvt.f32.s32 %v1216
        %v1218 = vcvt.f32.s32 %v1212
        %v1219 = vshll.u32 %v1218, 16
        %v1220 = vadd.s32 %v1219, %v1217
        %v1221 = vand.u32 %v1176, 65535
        %v1222 = vshra.s32 %v1176, 16
        %v1223 = vcvt.s32.f32 %v1221
        %v1224 = vcvt.s32.f32 %v1222
        %1225 = vmin.xlane.f32.xlu0 %v1224
        %v1226 = vpop.xlane.xlu0 %1225
        %vm1227 = vcmp.eq.f32.partialorder %v1224, %v1226
        %v1228 = vsel %vm1227, %v1223, inf
        %1229 = vmin.xlane.f32.xlu0 %v1228
        %v1230 = vpop.xlane.xlu0 %1229
        %v1231 = vcvt.f32.s32 %v1230
        %v1232 = vcvt.f32.s32 %v1226
        %v1233 = vshll.u32 %v1232, 16
        %v1234 = vadd.s32 %v1233, %v1231
        %v1235 = vand.u32 %v1177, 65535
        %v1236 = vshra.s32 %v1177, 16
        %v1237 = vcvt.s32.f32 %v1235
        %v1238 = vcvt.s32.f32 %v1236
        %1239 = vmin.xlane.f32.xlu0 %v1238
        %v1240 = vpop.xlane.xlu0 %1239
        %vm1241 = vcmp.eq.f32.partialorder %v1238, %v1240
        %v1242 = vsel %vm1241, %v1237, inf
        %1243 = vmin.xlane.f32.xlu0 %v1242
        %v1244 = vpop.xlane.xlu0 %1243
        %v1245 = vcvt.f32.s32 %v1244
        %v1246 = vcvt.f32.s32 %v1240
        %v1247 = vshll.u32 %v1246, 16
        %v1248 = vadd.s32 %v1247, %v1245
        %v1249 = vand.u32 %v1178, 65535
        %v1250 = vshra.s32 %v1178, 16
        %v1251 = vcvt.s32.f32 %v1249
        %v1252 = vcvt.s32.f32 %v1250
        %1253 = vmin.xlane.f32.xlu0 %v1252
        %v1254 = vpop.xlane.xlu0 %1253
        %vm1255 = vcmp.eq.f32.partialorder %v1252, %v1254
        %v1256 = vsel %vm1255, %v1251, inf
        %1257 = vmin.xlane.f32.xlu0 %v1256
        %v1258 = vpop.xlane.xlu0 %1257
        %v1259 = vcvt.f32.s32 %v1258
        %v1260 = vcvt.f32.s32 %v1254
        %v1261 = vshll.u32 %v1260, 16
        %v1262 = vadd.s32 %v1261, %v1259
        %v1263 = vand.u32 %v1179, 65535
        %v1264 = vshra.s32 %v1179, 16
        %v1265 = vcvt.s32.f32 %v1263
        %v1266 = vcvt.s32.f32 %v1264
        %1267 = vmin.xlane.f32.xlu0 %v1266
        %v1268 = vpop.xlane.xlu0 %1267
        %vm1269 = vcmp.eq.f32.partialorder %v1266, %v1268
        %v1270 = vsel %vm1269, %v1265, inf
        %1271 = vmin.xlane.f32.xlu0 %v1270
        %v1272 = vpop.xlane.xlu0 %1271
        %v1273 = vcvt.f32.s32 %v1272
        %v1274 = vcvt.f32.s32 %v1268
        %v1275 = vshll.u32 %v1274, 16
        %v1276 = vadd.s32 %v1275, %v1273
        %v1277 = vand.u32 %v1180, 65535
        %v1278 = vshra.s32 %v1180, 16
        %v1279 = vcvt.s32.f32 %v1277
        %v1280 = vcvt.s32.f32 %v1278
        %1281 = vmin.xlane.f32.xlu0 %v1280
        %v1282 = vpop.xlane.xlu0 %1281
        %vm1283 = vcmp.eq.f32.partialorder %v1280, %v1282
        %v1284 = vsel %vm1283, %v1279, inf
        %1285 = vmin.xlane.f32.xlu0 %v1284
        %v1286 = vpop.xlane.xlu0 %1285
        %v1287 = vcvt.f32.s32 %v1286
        %v1288 = vcvt.f32.s32 %v1282
        %v1289 = vshll.u32 %v1288, 16
        %v1290 = vadd.s32 %v1289, %v1287
        %v1291 = vand.u32 %v1181, 65535
        %v1292 = vshra.s32 %v1181, 16
        %v1293 = vcvt.s32.f32 %v1291
        %v1294 = vcvt.s32.f32 %v1292
        %1295 = vmin.xlane.f32.xlu0 %v1294
        %v1296 = vpop.xlane.xlu0 %1295
        %vm1297 = vcmp.eq.f32.partialorder %v1294, %v1296
        %v1298 = vsel %vm1297, %v1293, inf
        %1299 = vmin.xlane.f32.xlu0 %v1298
        %v1300 = vpop.xlane.xlu0 %1299
        %v1301 = vcvt.f32.s32 %v1300
        %v1302 = vcvt.f32.s32 %v1296
        %v1303 = vshll.u32 %v1302, 16
        %v1304 = vadd.s32 %v1303, %v1301
        %v1305 = vand.u32 %v1182, 65535
        %v1306 = vshra.s32 %v1182, 16
        %v1307 = vcvt.s32.f32 %v1305
        %v1308 = vcvt.s32.f32 %v1306
        %1309 = vmin.xlane.f32.xlu0 %v1308
        %v1310 = vpop.xlane.xlu0 %1309
        %vm1311 = vcmp.eq.f32.partialorder %v1308, %v1310
        %v1312 = vsel %vm1311, %v1307, inf
        %1313 = vmin.xlane.f32.xlu0 %v1312
        %v1314 = vpop.xlane.xlu0 %1313
        %v1315 = vcvt.f32.s32 %v1314
        %v1316 = vcvt.f32.s32 %v1310
        %v1317 = vshll.u32 %v1316, 16
        %v1318 = vadd.s32 %v1317, %v1315
        %v1319 = vand.u32 %v1183, 65535
        %v1320 = vshra.s32 %v1183, 16
        %v1321 = vcvt.s32.f32 %v1319
        %v1322 = vcvt.s32.f32 %v1320
        %1323 = vmin.xlane.f32.xlu0 %v1322
        %v1324 = vpop.xlane.xlu0 %1323
        %vm1325 = vcmp.eq.f32.partialorder %v1322, %v1324
        %v1326 = vsel %vm1325, %v1321, inf
        %1327 = vmin.xlane.f32.xlu0 %v1326
        %v1328 = vpop.xlane.xlu0 %1327
        %v1329 = vcvt.f32.s32 %v1328
        %v1330 = vcvt.f32.s32 %v1324
        %v1331 = vshll.u32 %v1330, 16
        %v1332 = vadd.s32 %v1331, %v1329
        %v1333 = vand.u32 %v1184, 65535
        %v1334 = vshra.s32 %v1184, 16
        %v1335 = vcvt.s32.f32 %v1333
        %v1336 = vcvt.s32.f32 %v1334
        %1337 = vmin.xlane.f32.xlu0 %v1336
        %v1338 = vpop.xlane.xlu0 %1337
        %vm1339 = vcmp.eq.f32.partialorder %v1336, %v1338
        %v1340 = vsel %vm1339, %v1335, inf
        %1341 = vmin.xlane.f32.xlu0 %v1340
        %v1342 = vpop.xlane.xlu0 %1341
        %v1343 = vcvt.f32.s32 %v1342
        %v1344 = vcvt.f32.s32 %v1338
        %v1345 = vshll.u32 %v1344, 16
        %v1346 = vadd.s32 %v1345, %v1343
        %v1347 = vand.u32 %v1185, 65535
        %v1348 = vshra.s32 %v1185, 16
        %v1349 = vcvt.s32.f32 %v1347
        %v1350 = vcvt.s32.f32 %v1348
        %1351 = vmin.xlane.f32.xlu0 %v1350
        %v1352 = vpop.xlane.xlu0 %1351
        %vm1353 = vcmp.eq.f32.partialorder %v1350, %v1352
        %v1354 = vsel %vm1353, %v1349, inf
        %1355 = vmin.xlane.f32.xlu0 %v1354
        %v1356 = vpop.xlane.xlu0 %1355
        %v1357 = vcvt.f32.s32 %v1356
        %v1358 = vcvt.f32.s32 %v1352
        %v1359 = vshll.u32 %v1358, 16
        %v1360 = vadd.s32 %v1359, %v1357
        %v1361 = vand.u32 %v1186, 65535
        %v1362 = vshra.s32 %v1186, 16
        %v1363 = vcvt.s32.f32 %v1361
        %v1364 = vcvt.s32.f32 %v1362
        %1365 = vmin.xlane.f32.xlu0 %v1364
        %v1366 = vpop.xlane.xlu0 %1365
        %vm1367 = vcmp.eq.f32.partialorder %v1364, %v1366
        %v1368 = vsel %vm1367, %v1363, inf
        %1369 = vmin.xlane.f32.xlu0 %v1368
        %v1370 = vpop.xlane.xlu0 %1369
        %v1371 = vcvt.f32.s32 %v1370
        %v1372 = vcvt.f32.s32 %v1366
        %v1373 = vshll.u32 %v1372, 16
        %v1374 = vadd.s32 %v1373, %v1371
        %v1375 = vand.u32 %v1187, 65535
        %v1376 = vshra.s32 %v1187, 16
        %v1377 = vcvt.s32.f32 %v1375
        %v1378 = vcvt.s32.f32 %v1376
        %1379 = vmin.xlane.f32.xlu0 %v1378
        %v1380 = vpop.xlane.xlu0 %1379
        %vm1381 = vcmp.eq.f32.partialorder %v1378, %v1380
        %v1382 = vsel %vm1381, %v1377, inf
        %1383 = vmin.xlane.f32.xlu0 %v1382
        %v1384 = vpop.xlane.xlu0 %1383
        %v1385 = vcvt.f32.s32 %v1384
        %v1386 = vcvt.f32.s32 %v1380
        %v1387 = vshll.u32 %v1386, 16
        %v1388 = vadd.s32 %v1387, %v1385
        %v1389 = vand.u32 %v1188, 65535
        %v1390 = vshra.s32 %v1188, 16
        %v1391 = vcvt.s32.f32 %v1389
        %v1392 = vcvt.s32.f32 %v1390
        %1393 = vmin.xlane.f32.xlu0 %v1392
        %v1394 = vpop.xlane.xlu0 %1393
        %vm1395 = vcmp.eq.f32.partialorder %v1392, %v1394
        %v1396 = vsel %vm1395, %v1391, inf
        %1397 = vmin.xlane.f32.xlu0 %v1396
        %v1398 = vpop.xlane.xlu0 %1397
        %v1399 = vcvt.f32.s32 %v1398
        %v1400 = vcvt.f32.s32 %v1394
        %v1401 = vshll.u32 %v1400, 16
        %v1402 = vadd.s32 %v1401, %v1399
        %v1403 = vand.u32 %v1189, 65535
        %v1404 = vshra.s32 %v1189, 16
        %v1405 = vcvt.s32.f32 %v1403
        %v1406 = vcvt.s32.f32 %v1404
        %1407 = vmin.xlane.f32.xlu0 %v1406
        %v1408 = vpop.xlane.xlu0 %1407
        %vm1409 = vcmp.eq.f32.partialorder %v1406, %v1408
        %v1410 = vsel %vm1409, %v1405, inf
        %1411 = vmin.xlane.f32.xlu0 %v1410
        %v1412 = vpop.xlane.xlu0 %1411
        %v1413 = vcvt.f32.s32 %v1412
        %v1414 = vcvt.f32.s32 %v1408
        %v1415 = vshll.u32 %v1414, 16
        %v1416 = vadd.s32 %v1415, %v1413
        %v1417 = vand.u32 %v1190, 65535
        %v1418 = vshra.s32 %v1190, 16
        %v1419 = vcvt.s32.f32 %v1417
        %v1420 = vcvt.s32.f32 %v1418
        %1421 = vmin.xlane.f32.xlu0 %v1420
        %v1422 = vpop.xlane.xlu0 %1421
        %vm1423 = vcmp.eq.f32.partialorder %v1420, %v1422
        %v1424 = vsel %vm1423, %v1419, inf
        %1425 = vmin.xlane.f32.xlu0 %v1424
        %v1426 = vpop.xlane.xlu0 %1425
        %v1427 = vcvt.f32.s32 %v1426
        %v1428 = vcvt.f32.s32 %v1422
        %v1429 = vshll.u32 %v1428, 16
        %v1430 = vadd.s32 %v1429, %v1427
        %v1431 = vand.u32 %v1191, 65535
        %v1432 = vshra.s32 %v1191, 16
        %v1433 = vcvt.s32.f32 %v1431
        %v1434 = vcvt.s32.f32 %v1432
        %1435 = vmin.xlane.f32.xlu0 %v1434
        %v1436 = vpop.xlane.xlu0 %1435
        %vm1437 = vcmp.eq.f32.partialorder %v1434, %v1436
        %v1438 = vsel %vm1437, %v1433, inf
        %1439 = vmin.xlane.f32.xlu0 %v1438
        %v1440 = vpop.xlane.xlu0 %1439
        %v1441 = vcvt.f32.s32 %v1440
        %v1442 = vcvt.f32.s32 %v1436
        %v1443 = vshll.u32 %v1442, 16
        %v1444 = vadd.s32 %v1443, %v1441
        %v1445 = vand.u32 %v1192, 65535
        %v1446 = vshra.s32 %v1192, 16
        %v1447 = vcvt.s32.f32 %v1445
        %v1448 = vcvt.s32.f32 %v1446
        %1449 = vmin.xlane.f32.xlu0 %v1448
        %v1450 = vpop.xlane.xlu0 %1449
        %vm1451 = vcmp.eq.f32.partialorder %v1448, %v1450
        %v1452 = vsel %vm1451, %v1447, inf
        %1453 = vmin.xlane.f32.xlu0 %v1452
        %v1454 = vpop.xlane.xlu0 %1453
        %v1455 = vcvt.f32.s32 %v1454
        %v1456 = vcvt.f32.s32 %v1450
        %v1457 = vshll.u32 %v1456, 16
        %v1458 = vadd.s32 %v1457, %v1455
        %v1459 = vand.u32 %v1193, 65535
        %v1460 = vshra.s32 %v1193, 16
        %v1461 = vcvt.s32.f32 %v1459
        %v1462 = vcvt.s32.f32 %v1460
        %1463 = vmin.xlane.f32.xlu0 %v1462
        %v1464 = vpop.xlane.xlu0 %1463
        %vm1465 = vcmp.eq.f32.partialorder %v1462, %v1464
        %v1466 = vsel %vm1465, %v1461, inf
        %1467 = vmin.xlane.f32.xlu0 %v1466
        %v1468 = vpop.xlane.xlu0 %1467
        %v1469 = vcvt.f32.s32 %v1468
        %v1470 = vcvt.f32.s32 %v1464
        %v1471 = vshll.u32 %v1470, 16
        %v1472 = vadd.s32 %v1471, %v1469
        %v1473 = vand.u32 %v1194, 65535
        %v1474 = vshra.s32 %v1194, 16
        %v1475 = vcvt.s32.f32 %v1473
        %v1476 = vcvt.s32.f32 %v1474
        %1477 = vmin.xlane.f32.xlu0 %v1476
        %v1478 = vpop.xlane.xlu0 %1477
        %vm1479 = vcmp.eq.f32.partialorder %v1476, %v1478
        %v1480 = vsel %vm1479, %v1475, inf
        %1481 = vmin.xlane.f32.xlu0 %v1480
        %v1482 = vpop.xlane.xlu0 %1481
        %v1483 = vcvt.f32.s32 %v1482
        %v1484 = vcvt.f32.s32 %v1478
        %v1485 = vshll.u32 %v1484, 16
        %v1486 = vadd.s32 %v1485, %v1483
        %v1487 = vand.u32 %v1195, 65535
        %v1488 = vshra.s32 %v1195, 16
        %v1489 = vcvt.s32.f32 %v1487
        %v1490 = vcvt.s32.f32 %v1488
        %1491 = vmin.xlane.f32.xlu0 %v1490
        %v1492 = vpop.xlane.xlu0 %1491
        %vm1493 = vcmp.eq.f32.partialorder %v1490, %v1492
        %v1494 = vsel %vm1493, %v1489, inf
        %1495 = vmin.xlane.f32.xlu0 %v1494
        %v1496 = vpop.xlane.xlu0 %1495
        %v1497 = vcvt.f32.s32 %v1496
        %v1498 = vcvt.f32.s32 %v1492
        %v1499 = vshll.u32 %v1498, 16
        %v1500 = vadd.s32 %v1499, %v1497
        %v1501 = vand.u32 %v1196, 65535
        %v1502 = vshra.s32 %v1196, 16
        %v1503 = vcvt.s32.f32 %v1501
        %v1504 = vcvt.s32.f32 %v1502
        %1505 = vmin.xlane.f32.xlu0 %v1504
        %v1506 = vpop.xlane.xlu0 %1505
        %vm1507 = vcmp.eq.f32.partialorder %v1504, %v1506
        %v1508 = vsel %vm1507, %v1503, inf
        %1509 = vmin.xlane.f32.xlu0 %v1508
        %v1510 = vpop.xlane.xlu0 %1509
        %v1511 = vcvt.f32.s32 %v1510
        %v1512 = vcvt.f32.s32 %v1506
        %v1513 = vshll.u32 %v1512, 16
        %v1514 = vadd.s32 %v1513, %v1511
        %v1515 = vand.u32 %v1197, 65535
        %v1516 = vshra.s32 %v1197, 16
        %v1517 = vcvt.s32.f32 %v1515
        %v1518 = vcvt.s32.f32 %v1516
        %1519 = vmin.xlane.f32.xlu0 %v1518
        %v1520 = vpop.xlane.xlu0 %1519
        %vm1521 = vcmp.eq.f32.partialorder %v1518, %v1520
        %v1522 = vsel %vm1521, %v1517, inf
        %1523 = vmin.xlane.f32.xlu0 %v1522
        %v1524 = vpop.xlane.xlu0 %1523
        %v1525 = vcvt.f32.s32 %v1524
        %v1526 = vcvt.f32.s32 %v1520
        %v1527 = vshll.u32 %v1526, 16
        %v1528 = vadd.s32 %v1527, %v1525
        %v1529 = vand.u32 %v1198, 65535
        %v1530 = vshra.s32 %v1198, 16
        %v1531 = vcvt.s32.f32 %v1529
        %v1532 = vcvt.s32.f32 %v1530
        %1533 = vmin.xlane.f32.xlu0 %v1532
        %v1534 = vpop.xlane.xlu0 %1533
        %vm1535 = vcmp.eq.f32.partialorder %v1532, %v1534
        %v1536 = vsel %vm1535, %v1531, inf
        %1537 = vmin.xlane.f32.xlu0 %v1536
        %v1538 = vpop.xlane.xlu0 %1537
        %v1539 = vcvt.f32.s32 %v1538
        %v1540 = vcvt.f32.s32 %v1534
        %v1541 = vshll.u32 %v1540, 16
        %v1542 = vadd.s32 %v1541, %v1539
        %v1543 = vand.u32 %v1199, 65535
        %v1544 = vshra.s32 %v1199, 16
        %v1545 = vcvt.s32.f32 %v1543
        %v1546 = vcvt.s32.f32 %v1544
        %1547 = vmin.xlane.f32.xlu0 %v1546
        %v1548 = vpop.xlane.xlu0 %1547
        %vm1549 = vcmp.eq.f32.partialorder %v1546, %v1548
        %v1550 = vsel %vm1549, %v1545, inf
        %1551 = vmin.xlane.f32.xlu0 %v1550
        %v1552 = vpop.xlane.xlu0 %1551
        %v1553 = vcvt.f32.s32 %v1552
        %v1554 = vcvt.f32.s32 %v1548
        %v1555 = vshll.u32 %v1554, 16
        %v1556 = vadd.s32 %v1555, %v1553
        %v1557 = vand.u32 %v1200, 65535
        %v1558 = vshra.s32 %v1200, 16
        %v1559 = vcvt.s32.f32 %v1557
        %v1560 = vcvt.s32.f32 %v1558
        %1561 = vmin.xlane.f32.xlu0 %v1560
        %v1562 = vpop.xlane.xlu0 %1561
        %vm1563 = vcmp.eq.f32.partialorder %v1560, %v1562
        %v1564 = vsel %vm1563, %v1559, inf
        %1565 = vmin.xlane.f32.xlu0 %v1564
        %v1566 = vpop.xlane.xlu0 %1565
        %v1567 = vcvt.f32.s32 %v1566
        %v1568 = vcvt.f32.s32 %v1562
        %v1569 = vshll.u32 %v1568, 16
        %v1570 = vadd.s32 %v1569, %v1567
        %v1571 = vand.u32 %v1201, 65535
        %v1572 = vshra.s32 %v1201, 16
        %v1573 = vcvt.s32.f32 %v1571
        %v1574 = vcvt.s32.f32 %v1572
        %1575 = vmin.xlane.f32.xlu0 %v1574
        %v1576 = vpop.xlane.xlu0 %1575
        %vm1577 = vcmp.eq.f32.partialorder %v1574, %v1576
        %v1578 = vsel %vm1577, %v1573, inf
        %1579 = vmin.xlane.f32.xlu0 %v1578
        %v1580 = vpop.xlane.xlu0 %1579
        %v1581 = vcvt.f32.s32 %v1580
        %v1582 = vcvt.f32.s32 %v1576
        %v1583 = vshll.u32 %v1582, 16
        %v1584 = vadd.s32 %v1583, %v1581
        %v1585 = vand.u32 %v1202, 65535
        %v1586 = vshra.s32 %v1202, 16
        %v1587 = vcvt.s32.f32 %v1585
        %v1588 = vcvt.s32.f32 %v1586
        %1589 = vmin.xlane.f32.xlu0 %v1588
        %v1590 = vpop.xlane.xlu0 %1589
        %vm1591 = vcmp.eq.f32.partialorder %v1588, %v1590
        %v1592 = vsel %vm1591, %v1587, inf
        %1593 = vmin.xlane.f32.xlu0 %v1592
        %v1594 = vpop.xlane.xlu0 %1593
        %v1595 = vcvt.f32.s32 %v1594
        %v1596 = vcvt.f32.s32 %v1590
        %v1597 = vshll.u32 %v1596, 16
        %v1598 = vadd.s32 %v1597, %v1595
        %v1599 = vand.u32 %v1203, 65535
        %v1600 = vshra.s32 %v1203, 16
        %v1601 = vcvt.s32.f32 %v1599
        %v1602 = vcvt.s32.f32 %v1600
        %1603 = vmin.xlane.f32.xlu0 %v1602
        %v1604 = vpop.xlane.xlu0 %1603
        %vm1605 = vcmp.eq.f32.partialorder %v1602, %v1604
        %v1606 = vsel %vm1605, %v1601, inf
        %1607 = vmin.xlane.f32.xlu0 %v1606
        %v1608 = vpop.xlane.xlu0 %1607
        %v1609 = vcvt.f32.s32 %v1608
        %v1610 = vcvt.f32.s32 %v1604
        %v1611 = vshll.u32 %v1610, 16
        %v1612 = vadd.s32 %v1611, %v1609
        %v1613 = vand.u32 %v1204, 65535
        %v1614 = vshra.s32 %v1204, 16
        %v1615 = vcvt.s32.f32 %v1613
        %v1616 = vcvt.s32.f32 %v1614
        %1617 = vmin.xlane.f32.xlu0 %v1616
        %v1618 = vpop.xlane.xlu0 %1617
        %vm1619 = vcmp.eq.f32.partialorder %v1616, %v1618
        %v1620 = vsel %vm1619, %v1615, inf
        %1621 = vmin.xlane.f32.xlu0 %v1620
        %v1622 = vpop.xlane.xlu0 %1621
        %v1623 = vcvt.f32.s32 %v1622
        %v1624 = vcvt.f32.s32 %v1618
        %v1625 = vshll.u32 %v1624, 16
        %v1626 = vadd.s32 %v1625, %v1623
        %v1627 = vand.u32 %v1205, 65535
        %v1628 = vshra.s32 %v1205, 16
        %v1629 = vcvt.s32.f32 %v1627
        %v1630 = vcvt.s32.f32 %v1628
        %1631 = vmin.xlane.f32.xlu0 %v1630
        %v1632 = vpop.xlane.xlu0 %1631
        %vm1633 = vcmp.eq.f32.partialorder %v1630, %v1632
        %v1634 = vsel %vm1633, %v1629, inf
        %1635 = vmin.xlane.f32.xlu0 %v1634
        %v1636 = vpop.xlane.xlu0 %1635
        %v1637 = vcvt.f32.s32 %v1636
        %v1638 = vcvt.f32.s32 %v1632
        %v1639 = vshll.u32 %v1638, 16
        %v1640 = vadd.s32 %v1639, %v1637
        %v1641 = vand.u32 %v1206, 65535
        %v1642 = vshra.s32 %v1206, 16
        %v1643 = vcvt.s32.f32 %v1641
        %v1644 = vcvt.s32.f32 %v1642
        %1645 = vmin.xlane.f32.xlu0 %v1644
        %v1646 = vpop.xlane.xlu0 %1645
        %vm1647 = vcmp.eq.f32.partialorder %v1644, %v1646
        %v1648 = vsel %vm1647, %v1643, inf
        %1649 = vmin.xlane.f32.xlu0 %v1648
        %v1650 = vpop.xlane.xlu0 %1649
        %v1651 = vcvt.f32.s32 %v1650
        %v1652 = vcvt.f32.s32 %v1646
        %v1653 = vshll.u32 %v1652, 16
        %v1654 = vadd.s32 %v1653, %v1651
        %v1655 = vand.u32 %v1220, 4095
        %v1656 = vand.u32 %v1234, 4095
        %v1657 = vand.u32 %v1248, 4095
        %v1658 = vand.u32 %v1262, 4095
        %v1659 = vand.u32 %v1276, 4095
        %v1660 = vand.u32 %v1290, 4095
        %v1661 = vand.u32 %v1304, 4095
        %v1662 = vand.u32 %v1318, 4095
        %v1663 = vand.u32 %v1332, 4095
        %v1664 = vand.u32 %v1346, 4095
        %v1665 = vand.u32 %v1360, 4095
        %v1666 = vand.u32 %v1374, 4095
        %v1667 = vand.u32 %v1388, 4095
        %v1668 = vand.u32 %v1402, 4095
        %v1669 = vand.u32 %v1416, 4095
        %v1670 = vand.u32 %v1430, 4095
        %v1671 = vand.u32 %v1444, 4095
        %v1672 = vand.u32 %v1458, 4095
        %v1673 = vand.u32 %v1472, 4095
        %v1674 = vand.u32 %v1486, 4095
        %v1675 = vand.u32 %v1500, 4095
        %v1676 = vand.u32 %v1514, 4095
        %v1677 = vand.u32 %v1528, 4095
        %v1678 = vand.u32 %v1542, 4095
        %v1679 = vand.u32 %v1556, 4095
        %v1680 = vand.u32 %v1570, 4095
        %v1681 = vand.u32 %v1584, 4095
        %v1682 = vand.u32 %v1598, 4095
        %v1683 = vand.u32 %v1612, 4095
        %v1684 = vand.u32 %v1626, 4095
        %v1685 = vand.u32 %v1640, 4095
        %v1686 = vand.u32 %v1654, 4095
        %vm1687 = vcmp.eq.s32.totalorder %v1110, %v1655
        %vm1688 = vcmp.eq.s32.totalorder %v1110, %v1656
        %vm1689 = vcmp.eq.s32.totalorder %v1110, %v1657
        %vm1690 = vcmp.eq.s32.totalorder %v1110, %v1658
        %vm1691 = vcmp.eq.s32.totalorder %v1110, %v1659
        %vm1692 = vcmp.eq.s32.totalorder %v1110, %v1660
        %vm1693 = vcmp.eq.s32.totalorder %v1110, %v1661
        %vm1694 = vcmp.eq.s32.totalorder %v1110, %v1662
        %vm1695 = vcmp.eq.s32.totalorder %v1110, %v1663
        %vm1696 = vcmp.eq.s32.totalorder %v1110, %v1664
        %vm1697 = vcmp.eq.s32.totalorder %v1110, %v1665
        %vm1698 = vcmp.eq.s32.totalorder %v1110, %v1666
        %vm1699 = vcmp.eq.s32.totalorder %v1110, %v1667
        %vm1700 = vcmp.eq.s32.totalorder %v1110, %v1668
        %vm1701 = vcmp.eq.s32.totalorder %v1110, %v1669
        %vm1702 = vcmp.eq.s32.totalorder %v1110, %v1670
        %vm1703 = vcmp.eq.s32.totalorder %v1110, %v1671
        %vm1704 = vcmp.eq.s32.totalorder %v1110, %v1672
        %vm1705 = vcmp.eq.s32.totalorder %v1110, %v1673
        %vm1706 = vcmp.eq.s32.totalorder %v1110, %v1674
        %vm1707 = vcmp.eq.s32.totalorder %v1110, %v1675
        %vm1708 = vcmp.eq.s32.totalorder %v1110, %v1676
        %vm1709 = vcmp.eq.s32.totalorder %v1110, %v1677
        %vm1710 = vcmp.eq.s32.totalorder %v1110, %v1678
        %vm1711 = vcmp.eq.s32.totalorder %v1110, %v1679
        %vm1712 = vcmp.eq.s32.totalorder %v1110, %v1680
        %vm1713 = vcmp.eq.s32.totalorder %v1110, %v1681
        %vm1714 = vcmp.eq.s32.totalorder %v1110, %v1682
        %vm1715 = vcmp.eq.s32.totalorder %v1110, %v1683
        %vm1716 = vcmp.eq.s32.totalorder %v1110, %v1684
        %vm1717 = vcmp.eq.s32.totalorder %v1110, %v1685
        %vm1718 = vcmp.eq.s32.totalorder %v1110, %v1686
        %v1719 = vand.u32 %v1220, 4294963200
        %v1720 = vand.u32 %v1234, 4294963200
        %v1721 = vand.u32 %v1248, 4294963200
        %v1722 = vand.u32 %v1262, 4294963200
        %v1723 = vand.u32 %v1276, 4294963200
        %v1724 = vand.u32 %v1290, 4294963200
        %v1725 = vand.u32 %v1304, 4294963200
        %v1726 = vand.u32 %v1318, 4294963200
        %v1727 = vand.u32 %v1332, 4294963200
        %v1728 = vand.u32 %v1346, 4294963200
        %v1729 = vand.u32 %v1360, 4294963200
        %v1730 = vand.u32 %v1374, 4294963200
        %v1731 = vand.u32 %v1388, 4294963200
        %v1732 = vand.u32 %v1402, 4294963200
        %v1733 = vand.u32 %v1416, 4294963200
        %v1734 = vand.u32 %v1430, 4294963200
        %v1735 = vand.u32 %v1444, 4294963200
        %v1736 = vand.u32 %v1458, 4294963200
        %v1737 = vand.u32 %v1472, 4294963200
        %v1738 = vand.u32 %v1486, 4294963200
        %v1739 = vand.u32 %v1500, 4294963200
        %v1740 = vand.u32 %v1514, 4294963200
        %v1741 = vand.u32 %v1528, 4294963200
        %v1742 = vand.u32 %v1542, 4294963200
        %v1743 = vand.u32 %v1556, 4294963200
        %v1744 = vand.u32 %v1570, 4294963200
        %v1745 = vand.u32 %v1584, 4294963200
        %v1746 = vand.u32 %v1598, 4294963200
        %v1747 = vand.u32 %v1612, 4294963200
        %v1748 = vand.u32 %v1626, 4294963200
        %v1749 = vand.u32 %v1640, 4294963200
        %v1750 = vand.u32 %v1654, 4294963200
        %v1783 = vadd.f32 %v1719, 1e-06
        %v1784 = vadd.f32 %v1720, 1e-06
        %v1785 = vadd.f32 %v1721, 1e-06
        %v1786 = vadd.f32 %v1722, 1e-06
        %v1787 = vadd.f32 %v1723, 1e-06
        %v1788 = vadd.f32 %v1724, 1e-06
        %v1789 = vadd.f32 %v1725, 1e-06
        %v1790 = vadd.f32 %v1726, 1e-06
        %v1791 = vadd.f32 %v1727, 1e-06
        %v1792 = vadd.f32 %v1728, 1e-06
        %v1793 = vadd.f32 %v1729, 1e-06
        %v1794 = vadd.f32 %v1730, 1e-06
        %v1795 = vadd.f32 %v1731, 1e-06
        %v1796 = vadd.f32 %v1732, 1e-06
        %v1797 = vadd.f32 %v1733, 1e-06
        %v1798 = vadd.f32 %v1734, 1e-06
        %v1799 = vadd.f32 %v1735, 1e-06
        %v1800 = vadd.f32 %v1736, 1e-06
        %v1801 = vadd.f32 %v1737, 1e-06
        %v1802 = vadd.f32 %v1738, 1e-06
        %v1803 = vadd.f32 %v1739, 1e-06
        %v1804 = vadd.f32 %v1740, 1e-06
        %v1805 = vadd.f32 %v1741, 1e-06
        %v1806 = vadd.f32 %v1742, 1e-06
        %v1807 = vadd.f32 %v1743, 1e-06
        %v1808 = vadd.f32 %v1744, 1e-06
        %v1809 = vadd.f32 %v1745, 1e-06
        %v1810 = vadd.f32 %v1746, 1e-06
        %v1811 = vadd.f32 %v1747, 1e-06
        %v1812 = vadd.f32 %v1748, 1e-06
        %v1813 = vadd.f32 %v1749, 1e-06
        %v1814 = vadd.f32 %v1750, 1e-06
        %v1815 = vrcp.pop %v1783
        %v1816 = vrcp.pop %v1784
        %v1817 = vrcp.pop %v1785
        %v1818 = vrcp.pop %v1786
        %v1819 = vrcp.pop %v1787
        %v1820 = vrcp.pop %v1788
        %v1821 = vrcp.pop %v1789
        %v1822 = vrcp.pop %v1790
        %v1823 = vrcp.pop %v1791
        %v1824 = vrcp.pop %v1792
        %v1825 = vrcp.pop %v1793
        %v1826 = vrcp.pop %v1794
        %v1827 = vrcp.pop %v1795
        %v1828 = vrcp.pop %v1796
        %v1829 = vrcp.pop %v1797
        %v1830 = vrcp.pop %v1798
        %v1831 = vrcp.pop %v1799
        %v1832 = vrcp.pop %v1800
        %v1833 = vrcp.pop %v1801
        %v1834 = vrcp.pop %v1802
        %v1835 = vrcp.pop %v1803
        %v1836 = vrcp.pop %v1804
        %v1837 = vrcp.pop %v1805
        %v1838 = vrcp.pop %v1806
        %v1839 = vrcp.pop %v1807
        %v1840 = vrcp.pop %v1808
        %v1841 = vrcp.pop %v1809
        %v1842 = vrcp.pop %v1810
        %v1843 = vrcp.pop %v1811
        %v1844 = vrcp.pop %v1812
        %v1845 = vrcp.pop %v1813
        %v1846 = vrcp.pop %v1814
        %v1847 = vsel %vm1687, %v1815, 0.0
        %v1848 = vsel %vm1688, %v1816, 0.0
        %v1849 = vsel %vm1689, %v1817, 0.0
        %v1850 = vsel %vm1690, %v1818, 0.0
        %v1851 = vsel %vm1691, %v1819, 0.0
        %v1852 = vsel %vm1692, %v1820, 0.0
        %v1853 = vsel %vm1693, %v1821, 0.0
        %v1854 = vsel %vm1694, %v1822, 0.0
        %v1855 = vsel %vm1695, %v1823, 0.0
        %v1856 = vsel %vm1696, %v1824, 0.0
        %v1857 = vsel %vm1697, %v1825, 0.0
        %v1858 = vsel %vm1698, %v1826, 0.0
        %v1859 = vsel %vm1699, %v1827, 0.0
        %v1860 = vsel %vm1700, %v1828, 0.0
        %v1861 = vsel %vm1701, %v1829, 0.0
        %v1862 = vsel %vm1702, %v1830, 0.0
        %v1863 = vsel %vm1703, %v1831, 0.0
        %v1864 = vsel %vm1704, %v1832, 0.0
        %v1865 = vsel %vm1705, %v1833, 0.0
        %v1866 = vsel %vm1706, %v1834, 0.0
        %v1867 = vsel %vm1707, %v1835, 0.0
        %v1868 = vsel %vm1708, %v1836, 0.0
        %v1869 = vsel %vm1709, %v1837, 0.0
        %v1870 = vsel %vm1710, %v1838, 0.0
        %v1871 = vsel %vm1711, %v1839, 0.0
        %v1872 = vsel %vm1712, %v1840, 0.0
        %v1873 = vsel %vm1713, %v1841, 0.0
        %v1874 = vsel %vm1714, %v1842, 0.0
        %v1875 = vsel %vm1715, %v1843, 0.0
        %v1876 = vsel %vm1716, %v1844, 0.0
        %v1877 = vsel %vm1717, %v1845, 0.0
        %v1878 = vsel %vm1718, %v1846, 0.0
        %v1879 = vadd.f32 %v1847, 0.0
        %v1880 = vadd.f32 %v1848, 0.0
        %v1881 = vadd.f32 %v1849, 0.0
        %v1882 = vadd.f32 %v1850, 0.0
        %v1883 = vadd.f32 %v1851, 0.0
        %v1884 = vadd.f32 %v1852, 0.0
        %v1885 = vadd.f32 %v1853, 0.0
        %v1886 = vadd.f32 %v1854, 0.0
        %v1887 = vadd.f32 %v1855, 0.0
        %v1888 = vadd.f32 %v1856, 0.0
        %v1889 = vadd.f32 %v1857, 0.0
        %v1890 = vadd.f32 %v1858, 0.0
        %v1891 = vadd.f32 %v1859, 0.0
        %v1892 = vadd.f32 %v1860, 0.0
        %v1893 = vadd.f32 %v1861, 0.0
        %v1894 = vadd.f32 %v1862, 0.0
        %v1895 = vadd.f32 %v1863, 0.0
        %v1896 = vadd.f32 %v1864, 0.0
        %v1897 = vadd.f32 %v1865, 0.0
        %v1898 = vadd.f32 %v1866, 0.0
        %v1899 = vadd.f32 %v1867, 0.0
        %v1900 = vadd.f32 %v1868, 0.0
        %v1901 = vadd.f32 %v1869, 0.0
        %v1902 = vadd.f32 %v1870, 0.0
        %v1903 = vadd.f32 %v1871, 0.0
        %v1904 = vadd.f32 %v1872, 0.0
        %v1905 = vadd.f32 %v1873, 0.0
        %v1906 = vadd.f32 %v1874, 0.0
        %v1907 = vadd.f32 %v1875, 0.0
        %v1908 = vadd.f32 %v1876, 0.0
        %v1909 = vadd.f32 %v1877, 0.0
        %v1910 = vadd.f32 %v1878, 0.0
        %v1911 = vadd.f32 %v1815, 0.0
        %v1912 = vadd.f32 %v1816, 0.0
        %v1913 = vadd.f32 %v1817, 0.0
        %v1914 = vadd.f32 %v1818, 0.0
        %v1915 = vadd.f32 %v1819, 0.0
        %v1916 = vadd.f32 %v1820, 0.0
        %v1917 = vadd.f32 %v1821, 0.0
        %v1918 = vadd.f32 %v1822, 0.0
        %v1919 = vadd.f32 %v1823, 0.0
        %v1920 = vadd.f32 %v1824, 0.0
        %v1921 = vadd.f32 %v1825, 0.0
        %v1922 = vadd.f32 %v1826, 0.0
        %v1923 = vadd.f32 %v1827, 0.0
        %v1924 = vadd.f32 %v1828, 0.0
        %v1925 = vadd.f32 %v1829, 0.0
        %v1926 = vadd.f32 %v1830, 0.0
        %v1927 = vadd.f32 %v1831, 0.0
        %v1928 = vadd.f32 %v1832, 0.0
        %v1929 = vadd.f32 %v1833, 0.0
        %v1930 = vadd.f32 %v1834, 0.0
        %v1931 = vadd.f32 %v1835, 0.0
        %v1932 = vadd.f32 %v1836, 0.0
        %v1933 = vadd.f32 %v1837, 0.0
        %v1934 = vadd.f32 %v1838, 0.0
        %v1935 = vadd.f32 %v1839, 0.0
        %v1936 = vadd.f32 %v1840, 0.0
        %v1937 = vadd.f32 %v1841, 0.0
        %v1938 = vadd.f32 %v1842, 0.0
        %v1939 = vadd.f32 %v1843, 0.0
        %v1940 = vadd.f32 %v1844, 0.0
        %v1941 = vadd.f32 %v1845, 0.0
        %v1942 = vadd.f32 %v1846, 0.0
        %v1943 = vsel %vm1687, 2147483647, %v1175
        %v1944 = vsel %vm1688, 2147483647, %v1176
        %v1945 = vsel %vm1689, 2147483647, %v1177
        %v1946 = vsel %vm1690, 2147483647, %v1178
        %v1947 = vsel %vm1691, 2147483647, %v1179
        %v1948 = vsel %vm1692, 2147483647, %v1180
        %v1949 = vsel %vm1693, 2147483647, %v1181
        %v1950 = vsel %vm1694, 2147483647, %v1182
        %v1951 = vsel %vm1695, 2147483647, %v1183
        %v1952 = vsel %vm1696, 2147483647, %v1184
        %v1953 = vsel %vm1697, 2147483647, %v1185
        %v1954 = vsel %vm1698, 2147483647, %v1186
        %v1955 = vsel %vm1699, 2147483647, %v1187
        %v1956 = vsel %vm1700, 2147483647, %v1188
        %v1957 = vsel %vm1701, 2147483647, %v1189
        %v1958 = vsel %vm1702, 2147483647, %v1190
        %v1959 = vsel %vm1703, 2147483647, %v1191
        %v1960 = vsel %vm1704, 2147483647, %v1192
        %v1961 = vsel %vm1705, 2147483647, %v1193
        %v1962 = vsel %vm1706, 2147483647, %v1194
        %v1963 = vsel %vm1707, 2147483647, %v1195
        %v1964 = vsel %vm1708, 2147483647, %v1196
        %v1965 = vsel %vm1709, 2147483647, %v1197
        %v1966 = vsel %vm1710, 2147483647, %v1198
        %v1967 = vsel %vm1711, 2147483647, %v1199
        %v1968 = vsel %vm1712, 2147483647, %v1200
        %v1969 = vsel %vm1713, 2147483647, %v1201
        %v1970 = vsel %vm1714, 2147483647, %v1202
        %v1971 = vsel %vm1715, 2147483647, %v1203
        %v1972 = vsel %vm1716, 2147483647, %v1204
        %v1973 = vsel %vm1717, 2147483647, %v1205
        %v1974 = vsel %vm1718, 2147483647, %v1206
        %v1975 = vand.u32 %v1943, 65535
        %v1976 = vshra.s32 %v1943, 16
        %v1977 = vcvt.s32.f32 %v1975
        %v1978 = vcvt.s32.f32 %v1976
        %1979 = vmin.xlane.f32.xlu0 %v1978
        %v1980 = vpop.xlane.xlu0 %1979
        %vm1981 = vcmp.eq.f32.partialorder %v1978, %v1980
        %v1982 = vsel %vm1981, %v1977, inf
        %1983 = vmin.xlane.f32.xlu0 %v1982
        %v1984 = vpop.xlane.xlu0 %1983
        %v1985 = vcvt.f32.s32 %v1984
        %v1986 = vcvt.f32.s32 %v1980
        %v1987 = vshll.u32 %v1986, 16
        %v1988 = vadd.s32 %v1987, %v1985
        %v1989 = vand.u32 %v1944, 65535
        %v1990 = vshra.s32 %v1944, 16
        %v1991 = vcvt.s32.f32 %v1989
        %v1992 = vcvt.s32.f32 %v1990
        %1993 = vmin.xlane.f32.xlu0 %v1992
        %v1994 = vpop.xlane.xlu0 %1993
        %vm1995 = vcmp.eq.f32.partialorder %v1992, %v1994
        %v1996 = vsel %vm1995, %v1991, inf
        %1997 = vmin.xlane.f32.xlu0 %v1996
        %v1998 = vpop.xlane.xlu0 %1997
        %v1999 = vcvt.f32.s32 %v1998
        %v2000 = vcvt.f32.s32 %v1994
        %v2001 = vshll.u32 %v2000, 16
        %v2002 = vadd.s32 %v2001, %v1999
        %v2003 = vand.u32 %v1945, 65535
        %v2004 = vshra.s32 %v1945, 16
        %v2005 = vcvt.s32.f32 %v2003
        %v2006 = vcvt.s32.f32 %v2004
        %2007 = vmin.xlane.f32.xlu0 %v2006
        %v2008 = vpop.xlane.xlu0 %2007
        %vm2009 = vcmp.eq.f32.partialorder %v2006, %v2008
        %v2010 = vsel %vm2009, %v2005, inf
        %2011 = vmin.xlane.f32.xlu0 %v2010
        %v2012 = vpop.xlane.xlu0 %2011
        %v2013 = vcvt.f32.s32 %v2012
        %v2014 = vcvt.f32.s32 %v2008
        %v2015 = vshll.u32 %v2014, 16
        %v2016 = vadd.s32 %v2015, %v2013
        %v2017 = vand.u32 %v1946, 65535
        %v2018 = vshra.s32 %v1946, 16
        %v2019 = vcvt.s32.f32 %v2017
        %v2020 = vcvt.s32.f32 %v2018
        %2021 = vmin.xlane.f32.xlu0 %v2020
        %v2022 = vpop.xlane.xlu0 %2021
        %vm2023 = vcmp.eq.f32.partialorder %v2020, %v2022
        %v2024 = vsel %vm2023, %v2019, inf
        %2025 = vmin.xlane.f32.xlu0 %v2024
        %v2026 = vpop.xlane.xlu0 %2025
        %v2027 = vcvt.f32.s32 %v2026
        %v2028 = vcvt.f32.s32 %v2022
        %v2029 = vshll.u32 %v2028, 16
        %v2030 = vadd.s32 %v2029, %v2027
        %v2031 = vand.u32 %v1947, 65535
        %v2032 = vshra.s32 %v1947, 16
        %v2033 = vcvt.s32.f32 %v2031
        %v2034 = vcvt.s32.f32 %v2032
        %2035 = vmin.xlane.f32.xlu0 %v2034
        %v2036 = vpop.xlane.xlu0 %2035
        %vm2037 = vcmp.eq.f32.partialorder %v2034, %v2036
        %v2038 = vsel %vm2037, %v2033, inf
        %2039 = vmin.xlane.f32.xlu0 %v2038
        %v2040 = vpop.xlane.xlu0 %2039
        %v2041 = vcvt.f32.s32 %v2040
        %v2042 = vcvt.f32.s32 %v2036
        %v2043 = vshll.u32 %v2042, 16
        %v2044 = vadd.s32 %v2043, %v2041
        %v2045 = vand.u32 %v1948, 65535
        %v2046 = vshra.s32 %v1948, 16
        %v2047 = vcvt.s32.f32 %v2045
        %v2048 = vcvt.s32.f32 %v2046
        %2049 = vmin.xlane.f32.xlu0 %v2048
        %v2050 = vpop.xlane.xlu0 %2049
        %vm2051 = vcmp.eq.f32.partialorder %v2048, %v2050
        %v2052 = vsel %vm2051, %v2047, inf
        %2053 = vmin.xlane.f32.xlu0 %v2052
        %v2054 = vpop.xlane.xlu0 %2053
        %v2055 = vcvt.f32.s32 %v2054
        %v2056 = vcvt.f32.s32 %v2050
        %v2057 = vshll.u32 %v2056, 16
        %v2058 = vadd.s32 %v2057, %v2055
        %v2059 = vand.u32 %v1949, 65535
        %v2060 = vshra.s32 %v1949, 16
        %v2061 = vcvt.s32.f32 %v2059
        %v2062 = vcvt.s32.f32 %v2060
        %2063 = vmin.xlane.f32.xlu0 %v2062
        %v2064 = vpop.xlane.xlu0 %2063
        %vm2065 = vcmp.eq.f32.partialorder %v2062, %v2064
        %v2066 = vsel %vm2065, %v2061, inf
        %2067 = vmin.xlane.f32.xlu0 %v2066
        %v2068 = vpop.xlane.xlu0 %2067
        %v2069 = vcvt.f32.s32 %v2068
        %v2070 = vcvt.f32.s32 %v2064
        %v2071 = vshll.u32 %v2070, 16
        %v2072 = vadd.s32 %v2071, %v2069
        %v2073 = vand.u32 %v1950, 65535
        %v2074 = vshra.s32 %v1950, 16
        %v2075 = vcvt.s32.f32 %v2073
        %v2076 = vcvt.s32.f32 %v2074
        %2077 = vmin.xlane.f32.xlu0 %v2076
        %v2078 = vpop.xlane.xlu0 %2077
        %vm2079 = vcmp.eq.f32.partialorder %v2076, %v2078
        %v2080 = vsel %vm2079, %v2075, inf
        %2081 = vmin.xlane.f32.xlu0 %v2080
        %v2082 = vpop.xlane.xlu0 %2081
        %v2083 = vcvt.f32.s32 %v2082
        %v2084 = vcvt.f32.s32 %v2078
        %v2085 = vshll.u32 %v2084, 16
        %v2086 = vadd.s32 %v2085, %v2083
        %v2087 = vand.u32 %v1951, 65535
        %v2088 = vshra.s32 %v1951, 16
        %v2089 = vcvt.s32.f32 %v2087
        %v2090 = vcvt.s32.f32 %v2088
        %2091 = vmin.xlane.f32.xlu0 %v2090
        %v2092 = vpop.xlane.xlu0 %2091
        %vm2093 = vcmp.eq.f32.partialorder %v2090, %v2092
        %v2094 = vsel %vm2093, %v2089, inf
        %2095 = vmin.xlane.f32.xlu0 %v2094
        %v2096 = vpop.xlane.xlu0 %2095
        %v2097 = vcvt.f32.s32 %v2096
        %v2098 = vcvt.f32.s32 %v2092
        %v2099 = vshll.u32 %v2098, 16
        %v2100 = vadd.s32 %v2099, %v2097
        %v2101 = vand.u32 %v1952, 65535
        %v2102 = vshra.s32 %v1952, 16
        %v2103 = vcvt.s32.f32 %v2101
        %v2104 = vcvt.s32.f32 %v2102
        %2105 = vmin.xlane.f32.xlu0 %v2104
        %v2106 = vpop.xlane.xlu0 %2105
        %vm2107 = vcmp.eq.f32.partialorder %v2104, %v2106
        %v2108 = vsel %vm2107, %v2103, inf
        %2109 = vmin.xlane.f32.xlu0 %v2108
        %v2110 = vpop.xlane.xlu0 %2109
        %v2111 = vcvt.f32.s32 %v2110
        %v2112 = vcvt.f32.s32 %v2106
        %v2113 = vshll.u32 %v2112, 16
        %v2114 = vadd.s32 %v2113, %v2111
        %v2115 = vand.u32 %v1953, 65535
        %v2116 = vshra.s32 %v1953, 16
        %v2117 = vcvt.s32.f32 %v2115
        %v2118 = vcvt.s32.f32 %v2116
        %2119 = vmin.xlane.f32.xlu0 %v2118
        %v2120 = vpop.xlane.xlu0 %2119
        %vm2121 = vcmp.eq.f32.partialorder %v2118, %v2120
        %v2122 = vsel %vm2121, %v2117, inf
        %2123 = vmin.xlane.f32.xlu0 %v2122
        %v2124 = vpop.xlane.xlu0 %2123
        %v2125 = vcvt.f32.s32 %v2124
        %v2126 = vcvt.f32.s32 %v2120
        %v2127 = vshll.u32 %v2126, 16
        %v2128 = vadd.s32 %v2127, %v2125
        %v2129 = vand.u32 %v1954, 65535
        %v2130 = vshra.s32 %v1954, 16
        %v2131 = vcvt.s32.f32 %v2129
        %v2132 = vcvt.s32.f32 %v2130
        %2133 = vmin.xlane.f32.xlu0 %v2132
        %v2134 = vpop.xlane.xlu0 %2133
        %vm2135 = vcmp.eq.f32.partialorder %v2132, %v2134
        %v2136 = vsel %vm2135, %v2131, inf
        %2137 = vmin.xlane.f32.xlu0 %v2136
        %v2138 = vpop.xlane.xlu0 %2137
        %v2139 = vcvt.f32.s32 %v2138
        %v2140 = vcvt.f32.s32 %v2134
        %v2141 = vshll.u32 %v2140, 16
        %v2142 = vadd.s32 %v2141, %v2139
        %v2143 = vand.u32 %v1955, 65535
        %v2144 = vshra.s32 %v1955, 16
        %v2145 = vcvt.s32.f32 %v2143
        %v2146 = vcvt.s32.f32 %v2144
        %2147 = vmin.xlane.f32.xlu0 %v2146
        %v2148 = vpop.xlane.xlu0 %2147
        %vm2149 = vcmp.eq.f32.partialorder %v2146, %v2148
        %v2150 = vsel %vm2149, %v2145, inf
        %2151 = vmin.xlane.f32.xlu0 %v2150
        %v2152 = vpop.xlane.xlu0 %2151
        %v2153 = vcvt.f32.s32 %v2152
        %v2154 = vcvt.f32.s32 %v2148
        %v2155 = vshll.u32 %v2154, 16
        %v2156 = vadd.s32 %v2155, %v2153
        %v2157 = vand.u32 %v1956, 65535
        %v2158 = vshra.s32 %v1956, 16
        %v2159 = vcvt.s32.f32 %v2157
        %v2160 = vcvt.s32.f32 %v2158
        %2161 = vmin.xlane.f32.xlu0 %v2160
        %v2162 = vpop.xlane.xlu0 %2161
        %vm2163 = vcmp.eq.f32.partialorder %v2160, %v2162
        %v2164 = vsel %vm2163, %v2159, inf
        %2165 = vmin.xlane.f32.xlu0 %v2164
        %v2166 = vpop.xlane.xlu0 %2165
        %v2167 = vcvt.f32.s32 %v2166
        %v2168 = vcvt.f32.s32 %v2162
        %v2169 = vshll.u32 %v2168, 16
        %v2170 = vadd.s32 %v2169, %v2167
        %v2171 = vand.u32 %v1957, 65535
        %v2172 = vshra.s32 %v1957, 16
        %v2173 = vcvt.s32.f32 %v2171
        %v2174 = vcvt.s32.f32 %v2172
        %2175 = vmin.xlane.f32.xlu0 %v2174
        %v2176 = vpop.xlane.xlu0 %2175
        %vm2177 = vcmp.eq.f32.partialorder %v2174, %v2176
        %v2178 = vsel %vm2177, %v2173, inf
        %2179 = vmin.xlane.f32.xlu0 %v2178
        %v2180 = vpop.xlane.xlu0 %2179
        %v2181 = vcvt.f32.s32 %v2180
        %v2182 = vcvt.f32.s32 %v2176
        %v2183 = vshll.u32 %v2182, 16
        %v2184 = vadd.s32 %v2183, %v2181
        %v2185 = vand.u32 %v1958, 65535
        %v2186 = vshra.s32 %v1958, 16
        %v2187 = vcvt.s32.f32 %v2185
        %v2188 = vcvt.s32.f32 %v2186
        %2189 = vmin.xlane.f32.xlu0 %v2188
        %v2190 = vpop.xlane.xlu0 %2189
        %vm2191 = vcmp.eq.f32.partialorder %v2188, %v2190
        %v2192 = vsel %vm2191, %v2187, inf
        %2193 = vmin.xlane.f32.xlu0 %v2192
        %v2194 = vpop.xlane.xlu0 %2193
        %v2195 = vcvt.f32.s32 %v2194
        %v2196 = vcvt.f32.s32 %v2190
        %v2197 = vshll.u32 %v2196, 16
        %v2198 = vadd.s32 %v2197, %v2195
        %v2199 = vand.u32 %v1959, 65535
        %v2200 = vshra.s32 %v1959, 16
        %v2201 = vcvt.s32.f32 %v2199
        %v2202 = vcvt.s32.f32 %v2200
        %2203 = vmin.xlane.f32.xlu0 %v2202
        %v2204 = vpop.xlane.xlu0 %2203
        %vm2205 = vcmp.eq.f32.partialorder %v2202, %v2204
        %v2206 = vsel %vm2205, %v2201, inf
        %2207 = vmin.xlane.f32.xlu0 %v2206
        %v2208 = vpop.xlane.xlu0 %2207
        %v2209 = vcvt.f32.s32 %v2208
        %v2210 = vcvt.f32.s32 %v2204
        %v2211 = vshll.u32 %v2210, 16
        %v2212 = vadd.s32 %v2211, %v2209
        %v2213 = vand.u32 %v1960, 65535
        %v2214 = vshra.s32 %v1960, 16
        %v2215 = vcvt.s32.f32 %v2213
        %v2216 = vcvt.s32.f32 %v2214
        %2217 = vmin.xlane.f32.xlu0 %v2216
        %v2218 = vpop.xlane.xlu0 %2217
        %vm2219 = vcmp.eq.f32.partialorder %v2216, %v2218
        %v2220 = vsel %vm2219, %v2215, inf
        %2221 = vmin.xlane.f32.xlu0 %v2220
        %v2222 = vpop.xlane.xlu0 %2221
        %v2223 = vcvt.f32.s32 %v2222
        %v2224 = vcvt.f32.s32 %v2218
        %v2225 = vshll.u32 %v2224, 16
        %v2226 = vadd.s32 %v2225, %v2223
        %v2227 = vand.u32 %v1961, 65535
        %v2228 = vshra.s32 %v1961, 16
        %v2229 = vcvt.s32.f32 %v2227
        %v2230 = vcvt.s32.f32 %v2228
        %2231 = vmin.xlane.f32.xlu0 %v2230
        %v2232 = vpop.xlane.xlu0 %2231
        %vm2233 = vcmp.eq.f32.partialorder %v2230, %v2232
        %v2234 = vsel %vm2233, %v2229, inf
        %2235 = vmin.xlane.f32.xlu0 %v2234
        %v2236 = vpop.xlane.xlu0 %2235
        %v2237 = vcvt.f32.s32 %v2236
        %v2238 = vcvt.f32.s32 %v2232
        %v2239 = vshll.u32 %v2238, 16
        %v2240 = vadd.s32 %v2239, %v2237
        %v2241 = vand.u32 %v1962, 65535
        %v2242 = vshra.s32 %v1962, 16
        %v2243 = vcvt.s32.f32 %v2241
        %v2244 = vcvt.s32.f32 %v2242
        %2245 = vmin.xlane.f32.xlu0 %v2244
        %v2246 = vpop.xlane.xlu0 %2245
        %vm2247 = vcmp.eq.f32.partialorder %v2244, %v2246
        %v2248 = vsel %vm2247, %v2243, inf
        %2249 = vmin.xlane.f32.xlu0 %v2248
        %v2250 = vpop.xlane.xlu0 %2249
        %v2251 = vcvt.f32.s32 %v2250
        %v2252 = vcvt.f32.s32 %v2246
        %v2253 = vshll.u32 %v2252, 16
        %v2254 = vadd.s32 %v2253, %v2251
        %v2255 = vand.u32 %v1963, 65535
        %v2256 = vshra.s32 %v1963, 16
        %v2257 = vcvt.s32.f32 %v2255
        %v2258 = vcvt.s32.f32 %v2256
        %2259 = vmin.xlane.f32.xlu0 %v2258
        %v2260 = vpop.xlane.xlu0 %2259
        %vm2261 = vcmp.eq.f32.partialorder %v2258, %v2260
        %v2262 = vsel %vm2261, %v2257, inf
        %2263 = vmin.xlane.f32.xlu0 %v2262
        %v2264 = vpop.xlane.xlu0 %2263
        %v2265 = vcvt.f32.s32 %v2264
        %v2266 = vcvt.f32.s32 %v2260
        %v2267 = vshll.u32 %v2266, 16
        %v2268 = vadd.s32 %v2267, %v2265
        %v2269 = vand.u32 %v1964, 65535
        %v2270 = vshra.s32 %v1964, 16
        %v2271 = vcvt.s32.f32 %v2269
        %v2272 = vcvt.s32.f32 %v2270
        %2273 = vmin.xlane.f32.xlu0 %v2272
        %v2274 = vpop.xlane.xlu0 %2273
        %vm2275 = vcmp.eq.f32.partialorder %v2272, %v2274
        %v2276 = vsel %vm2275, %v2271, inf
        %2277 = vmin.xlane.f32.xlu0 %v2276
        %v2278 = vpop.xlane.xlu0 %2277
        %v2279 = vcvt.f32.s32 %v2278
        %v2280 = vcvt.f32.s32 %v2274
        %v2281 = vshll.u32 %v2280, 16
        %v2282 = vadd.s32 %v2281, %v2279
        %v2283 = vand.u32 %v1965, 65535
        %v2284 = vshra.s32 %v1965, 16
        %v2285 = vcvt.s32.f32 %v2283
        %v2286 = vcvt.s32.f32 %v2284
        %2287 = vmin.xlane.f32.xlu0 %v2286
        %v2288 = vpop.xlane.xlu0 %2287
        %vm2289 = vcmp.eq.f32.partialorder %v2286, %v2288
        %v2290 = vsel %vm2289, %v2285, inf
        %2291 = vmin.xlane.f32.xlu0 %v2290
        %v2292 = vpop.xlane.xlu0 %2291
        %v2293 = vcvt.f32.s32 %v2292
        %v2294 = vcvt.f32.s32 %v2288
        %v2295 = vshll.u32 %v2294, 16
        %v2296 = vadd.s32 %v2295, %v2293
        %v2297 = vand.u32 %v1966, 65535
        %v2298 = vshra.s32 %v1966, 16
        %v2299 = vcvt.s32.f32 %v2297
        %v2300 = vcvt.s32.f32 %v2298
        %2301 = vmin.xlane.f32.xlu0 %v2300
        %v2302 = vpop.xlane.xlu0 %2301
        %vm2303 = vcmp.eq.f32.partialorder %v2300, %v2302
        %v2304 = vsel %vm2303, %v2299, inf
        %2305 = vmin.xlane.f32.xlu0 %v2304
        %v2306 = vpop.xlane.xlu0 %2305
        %v2307 = vcvt.f32.s32 %v2306
        %v2308 = vcvt.f32.s32 %v2302
        %v2309 = vshll.u32 %v2308, 16
        %v2310 = vadd.s32 %v2309, %v2307
        %v2311 = vand.u32 %v1967, 65535
        %v2312 = vshra.s32 %v1967, 16
        %v2313 = vcvt.s32.f32 %v2311
        %v2314 = vcvt.s32.f32 %v2312
        %2315 = vmin.xlane.f32.xlu0 %v2314
        %v2316 = vpop.xlane.xlu0 %2315
        %vm2317 = vcmp.eq.f32.partialorder %v2314, %v2316
        %v2318 = vsel %vm2317, %v2313, inf
        %2319 = vmin.xlane.f32.xlu0 %v2318
        %v2320 = vpop.xlane.xlu0 %2319
        %v2321 = vcvt.f32.s32 %v2320
        %v2322 = vcvt.f32.s32 %v2316
        %v2323 = vshll.u32 %v2322, 16
        %v2324 = vadd.s32 %v2323, %v2321
        %v2325 = vand.u32 %v1968, 65535
        %v2326 = vshra.s32 %v1968, 16
        %v2327 = vcvt.s32.f32 %v2325
        %v2328 = vcvt.s32.f32 %v2326
        %2329 = vmin.xlane.f32.xlu0 %v2328
        %v2330 = vpop.xlane.xlu0 %2329
        %vm2331 = vcmp.eq.f32.partialorder %v2328, %v2330
        %v2332 = vsel %vm2331, %v2327, inf
        %2333 = vmin.xlane.f32.xlu0 %v2332
        %v2334 = vpop.xlane.xlu0 %2333
        %v2335 = vcvt.f32.s32 %v2334
        %v2336 = vcvt.f32.s32 %v2330
        %v2337 = vshll.u32 %v2336, 16
        %v2338 = vadd.s32 %v2337, %v2335
        %v2339 = vand.u32 %v1969, 65535
        %v2340 = vshra.s32 %v1969, 16
        %v2341 = vcvt.s32.f32 %v2339
        %v2342 = vcvt.s32.f32 %v2340
        %2343 = vmin.xlane.f32.xlu0 %v2342
        %v2344 = vpop.xlane.xlu0 %2343
        %vm2345 = vcmp.eq.f32.partialorder %v2342, %v2344
        %v2346 = vsel %vm2345, %v2341, inf
        %2347 = vmin.xlane.f32.xlu0 %v2346
        %v2348 = vpop.xlane.xlu0 %2347
        %v2349 = vcvt.f32.s32 %v2348
        %v2350 = vcvt.f32.s32 %v2344
        %v2351 = vshll.u32 %v2350, 16
        %v2352 = vadd.s32 %v2351, %v2349
        %v2353 = vand.u32 %v1970, 65535
        %v2354 = vshra.s32 %v1970, 16
        %v2355 = vcvt.s32.f32 %v2353
        %v2356 = vcvt.s32.f32 %v2354
        %2357 = vmin.xlane.f32.xlu0 %v2356
        %v2358 = vpop.xlane.xlu0 %2357
        %vm2359 = vcmp.eq.f32.partialorder %v2356, %v2358
        %v2360 = vsel %vm2359, %v2355, inf
        %2361 = vmin.xlane.f32.xlu0 %v2360
        %v2362 = vpop.xlane.xlu0 %2361
        %v2363 = vcvt.f32.s32 %v2362
        %v2364 = vcvt.f32.s32 %v2358
        %v2365 = vshll.u32 %v2364, 16
        %v2366 = vadd.s32 %v2365, %v2363
        %v2367 = vand.u32 %v1971, 65535
        %v2368 = vshra.s32 %v1971, 16
        %v2369 = vcvt.s32.f32 %v2367
        %v2370 = vcvt.s32.f32 %v2368
        %2371 = vmin.xlane.f32.xlu0 %v2370
        %v2372 = vpop.xlane.xlu0 %2371
        %vm2373 = vcmp.eq.f32.partialorder %v2370, %v2372
        %v2374 = vsel %vm2373, %v2369, inf
        %2375 = vmin.xlane.f32.xlu0 %v2374
        %v2376 = vpop.xlane.xlu0 %2375
        %v2377 = vcvt.f32.s32 %v2376
        %v2378 = vcvt.f32.s32 %v2372
        %v2379 = vshll.u32 %v2378, 16
        %v2380 = vadd.s32 %v2379, %v2377
        %v2381 = vand.u32 %v1972, 65535
        %v2382 = vshra.s32 %v1972, 16
        %v2383 = vcvt.s32.f32 %v2381
        %v2384 = vcvt.s32.f32 %v2382
        %2385 = vmin.xlane.f32.xlu0 %v2384
        %v2386 = vpop.xlane.xlu0 %2385
        %vm2387 = vcmp.eq.f32.partialorder %v2384, %v2386
        %v2388 = vsel %vm2387, %v2383, inf
        %2389 = vmin.xlane.f32.xlu0 %v2388
        %v2390 = vpop.xlane.xlu0 %2389
        %v2391 = vcvt.f32.s32 %v2390
        %v2392 = vcvt.f32.s32 %v2386
        %v2393 = vshll.u32 %v2392, 16
        %v2394 = vadd.s32 %v2393, %v2391
        %v2395 = vand.u32 %v1973, 65535
        %v2396 = vshra.s32 %v1973, 16
        %v2397 = vcvt.s32.f32 %v2395
        %v2398 = vcvt.s32.f32 %v2396
        %2399 = vmin.xlane.f32.xlu0 %v2398
        %v2400 = vpop.xlane.xlu0 %2399
        %vm2401 = vcmp.eq.f32.partialorder %v2398, %v2400
        %v2402 = vsel %vm2401, %v2397, inf
        %2403 = vmin.xlane.f32.xlu0 %v2402
        %v2404 = vpop.xlane.xlu0 %2403
        %v2405 = vcvt.f32.s32 %v2404
        %v2406 = vcvt.f32.s32 %v2400
        %v2407 = vshll.u32 %v2406, 16
        %v2408 = vadd.s32 %v2407, %v2405
        %v2409 = vand.u32 %v1974, 65535
        %v2410 = vshra.s32 %v1974, 16
        %v2411 = vcvt.s32.f32 %v2409
        %v2412 = vcvt.s32.f32 %v2410
        %2413 = vmin.xlane.f32.xlu0 %v2412
        %v2414 = vpop.xlane.xlu0 %2413
        %vm2415 = vcmp.eq.f32.partialorder %v2412, %v2414
        %v2416 = vsel %vm2415, %v2411, inf
        %2417 = vmin.xlane.f32.xlu0 %v2416
        %v2418 = vpop.xlane.xlu0 %2417
        %v2419 = vcvt.f32.s32 %v2418
        %v2420 = vcvt.f32.s32 %v2414
        %v2421 = vshll.u32 %v2420, 16
        %v2422 = vadd.s32 %v2421, %v2419
        %v2423 = vand.u32 %v1988, 4095
        %v2424 = vand.u32 %v2002, 4095
        %v2425 = vand.u32 %v2016, 4095
        %v2426 = vand.u32 %v2030, 4095
        %v2427 = vand.u32 %v2044, 4095
        %v2428 = vand.u32 %v2058, 4095
        %v2429 = vand.u32 %v2072, 4095
        %v2430 = vand.u32 %v2086, 4095
        %v2431 = vand.u32 %v2100, 4095
        %v2432 = vand.u32 %v2114, 4095
        %v2433 = vand.u32 %v2128, 4095
        %v2434 = vand.u32 %v2142, 4095
        %v2435 = vand.u32 %v2156, 4095
        %v2436 = vand.u32 %v2170, 4095
        %v2437 = vand.u32 %v2184, 4095
        %v2438 = vand.u32 %v2198, 4095
        %v2439 = vand.u32 %v2212, 4095
        %v2440 = vand.u32 %v2226, 4095
        %v2441 = vand.u32 %v2240, 4095
        %v2442 = vand.u32 %v2254, 4095
        %v2443 = vand.u32 %v2268, 4095
        %v2444 = vand.u32 %v2282, 4095
        %v2445 = vand.u32 %v2296, 4095
        %v2446 = vand.u32 %v2310, 4095
        %v2447 = vand.u32 %v2324, 4095
        %v2448 = vand.u32 %v2338, 4095
        %v2449 = vand.u32 %v2352, 4095
        %v2450 = vand.u32 %v2366, 4095
        %v2451 = vand.u32 %v2380, 4095
        %v2452 = vand.u32 %v2394, 4095
        %v2453 = vand.u32 %v2408, 4095
        %v2454 = vand.u32 %v2422, 4095
        %vm2455 = vcmp.eq.s32.totalorder %v1110, %v2423
        %vm2456 = vcmp.eq.s32.totalorder %v1110, %v2424
        %vm2457 = vcmp.eq.s32.totalorder %v1110, %v2425
        %vm2458 = vcmp.eq.s32.totalorder %v1110, %v2426
        %vm2459 = vcmp.eq.s32.totalorder %v1110, %v2427
        %vm2460 = vcmp.eq.s32.totalorder %v1110, %v2428
        %vm2461 = vcmp.eq.s32.totalorder %v1110, %v2429
        %vm2462 = vcmp.eq.s32.totalorder %v1110, %v2430
        %vm2463 = vcmp.eq.s32.totalorder %v1110, %v2431
        %vm2464 = vcmp.eq.s32.totalorder %v1110, %v2432
        %vm2465 = vcmp.eq.s32.totalorder %v1110, %v2433
        %vm2466 = vcmp.eq.s32.totalorder %v1110, %v2434
        %vm2467 = vcmp.eq.s32.totalorder %v1110, %v2435
        %vm2468 = vcmp.eq.s32.totalorder %v1110, %v2436
        %vm2469 = vcmp.eq.s32.totalorder %v1110, %v2437
        %vm2470 = vcmp.eq.s32.totalorder %v1110, %v2438
        %vm2471 = vcmp.eq.s32.totalorder %v1110, %v2439
        %vm2472 = vcmp.eq.s32.totalorder %v1110, %v2440
        %vm2473 = vcmp.eq.s32.totalorder %v1110, %v2441
        %vm2474 = vcmp.eq.s32.totalorder %v1110, %v2442
        %vm2475 = vcmp.eq.s32.totalorder %v1110, %v2443
        %vm2476 = vcmp.eq.s32.totalorder %v1110, %v2444
        %vm2477 = vcmp.eq.s32.totalorder %v1110, %v2445
        %vm2478 = vcmp.eq.s32.totalorder %v1110, %v2446
        %vm2479 = vcmp.eq.s32.totalorder %v1110, %v2447
        %vm2480 = vcmp.eq.s32.totalorder %v1110, %v2448
        %vm2481 = vcmp.eq.s32.totalorder %v1110, %v2449
        %vm2482 = vcmp.eq.s32.totalorder %v1110, %v2450
        %vm2483 = vcmp.eq.s32.totalorder %v1110, %v2451
        %vm2484 = vcmp.eq.s32.totalorder %v1110, %v2452
        %vm2485 = vcmp.eq.s32.totalorder %v1110, %v2453
        %vm2486 = vcmp.eq.s32.totalorder %v1110, %v2454
        %v2487 = vand.u32 %v1988, 4294963200
        %v2488 = vand.u32 %v2002, 4294963200
        %v2489 = vand.u32 %v2016, 4294963200
        %v2490 = vand.u32 %v2030, 4294963200
        %v2491 = vand.u32 %v2044, 4294963200
        %v2492 = vand.u32 %v2058, 4294963200
        %v2493 = vand.u32 %v2072, 4294963200
        %v2494 = vand.u32 %v2086, 4294963200
        %v2495 = vand.u32 %v2100, 4294963200
        %v2496 = vand.u32 %v2114, 4294963200
        %v2497 = vand.u32 %v2128, 4294963200
        %v2498 = vand.u32 %v2142, 4294963200
        %v2499 = vand.u32 %v2156, 4294963200
        %v2500 = vand.u32 %v2170, 4294963200
        %v2501 = vand.u32 %v2184, 4294963200
        %v2502 = vand.u32 %v2198, 4294963200
        %v2503 = vand.u32 %v2212, 4294963200
        %v2504 = vand.u32 %v2226, 4294963200
        %v2505 = vand.u32 %v2240, 4294963200
        %v2506 = vand.u32 %v2254, 4294963200
        %v2507 = vand.u32 %v2268, 4294963200
        %v2508 = vand.u32 %v2282, 4294963200
        %v2509 = vand.u32 %v2296, 4294963200
        %v2510 = vand.u32 %v2310, 4294963200
        %v2511 = vand.u32 %v2324, 4294963200
        %v2512 = vand.u32 %v2338, 4294963200
        %v2513 = vand.u32 %v2352, 4294963200
        %v2514 = vand.u32 %v2366, 4294963200
        %v2515 = vand.u32 %v2380, 4294963200
        %v2516 = vand.u32 %v2394, 4294963200
        %v2517 = vand.u32 %v2408, 4294963200
        %v2518 = vand.u32 %v2422, 4294963200
        %v2551 = vadd.f32 %v2487, 1e-06
        %v2552 = vadd.f32 %v2488, 1e-06
        %v2553 = vadd.f32 %v2489, 1e-06
        %v2554 = vadd.f32 %v2490, 1e-06
        %v2555 = vadd.f32 %v2491, 1e-06
        %v2556 = vadd.f32 %v2492, 1e-06
        %v2557 = vadd.f32 %v2493, 1e-06
        %v2558 = vadd.f32 %v2494, 1e-06
        %v2559 = vadd.f32 %v2495, 1e-06
        %v2560 = vadd.f32 %v2496, 1e-06
        %v2561 = vadd.f32 %v2497, 1e-06
        %v2562 = vadd.f32 %v2498, 1e-06
        %v2563 = vadd.f32 %v2499, 1e-06
        %v2564 = vadd.f32 %v2500, 1e-06
        %v2565 = vadd.f32 %v2501, 1e-06
        %v2566 = vadd.f32 %v2502, 1e-06
        %v2567 = vadd.f32 %v2503, 1e-06
        %v2568 = vadd.f32 %v2504, 1e-06
        %v2569 = vadd.f32 %v2505, 1e-06
        %v2570 = vadd.f32 %v2506, 1e-06
        %v2571 = vadd.f32 %v2507, 1e-06
        %v2572 = vadd.f32 %v2508, 1e-06
        %v2573 = vadd.f32 %v2509, 1e-06
        %v2574 = vadd.f32 %v2510, 1e-06
        %v2575 = vadd.f32 %v2511, 1e-06
        %v2576 = vadd.f32 %v2512, 1e-06
        %v2577 = vadd.f32 %v2513, 1e-06
        %v2578 = vadd.f32 %v2514, 1e-06
        %v2579 = vadd.f32 %v2515, 1e-06
        %v2580 = vadd.f32 %v2516, 1e-06
        %v2581 = vadd.f32 %v2517, 1e-06
        %v2582 = vadd.f32 %v2518, 1e-06
        %v2583 = vrcp.pop %v2551
        %v2584 = vrcp.pop %v2552
        %v2585 = vrcp.pop %v2553
        %v2586 = vrcp.pop %v2554
        %v2587 = vrcp.pop %v2555
        %v2588 = vrcp.pop %v2556
        %v2589 = vrcp.pop %v2557
        %v2590 = vrcp.pop %v2558
        %v2591 = vrcp.pop %v2559
        %v2592 = vrcp.pop %v2560
        %v2593 = vrcp.pop %v2561
        %v2594 = vrcp.pop %v2562
        %v2595 = vrcp.pop %v2563
        %v2596 = vrcp.pop %v2564
        %v2597 = vrcp.pop %v2565
        %v2598 = vrcp.pop %v2566
        %v2599 = vrcp.pop %v2567
        %v2600 = vrcp.pop %v2568
        %v2601 = vrcp.pop %v2569
        %v2602 = vrcp.pop %v2570
        %v2603 = vrcp.pop %v2571
        %v2604 = vrcp.pop %v2572
        %v2605 = vrcp.pop %v2573
        %v2606 = vrcp.pop %v2574
        %v2607 = vrcp.pop %v2575
        %v2608 = vrcp.pop %v2576
        %v2609 = vrcp.pop %v2577
        %v2610 = vrcp.pop %v2578
        %v2611 = vrcp.pop %v2579
        %v2612 = vrcp.pop %v2580
        %v2613 = vrcp.pop %v2581
        %v2614 = vrcp.pop %v2582
        %v2615 = vsel %vm2455, %v2583, 0.0
        %v2616 = vsel %vm2456, %v2584, 0.0
        %v2617 = vsel %vm2457, %v2585, 0.0
        %v2618 = vsel %vm2458, %v2586, 0.0
        %v2619 = vsel %vm2459, %v2587, 0.0
        %v2620 = vsel %vm2460, %v2588, 0.0
        %v2621 = vsel %vm2461, %v2589, 0.0
        %v2622 = vsel %vm2462, %v2590, 0.0
        %v2623 = vsel %vm2463, %v2591, 0.0
        %v2624 = vsel %vm2464, %v2592, 0.0
        %v2625 = vsel %vm2465, %v2593, 0.0
        %v2626 = vsel %vm2466, %v2594, 0.0
        %v2627 = vsel %vm2467, %v2595, 0.0
        %v2628 = vsel %vm2468, %v2596, 0.0
        %v2629 = vsel %vm2469, %v2597, 0.0
        %v2630 = vsel %vm2470, %v2598, 0.0
        %v2631 = vsel %vm2471, %v2599, 0.0
        %v2632 = vsel %vm2472, %v2600, 0.0
        %v2633 = vsel %vm2473, %v2601, 0.0
        %v2634 = vsel %vm2474, %v2602, 0.0
        %v2635 = vsel %vm2475, %v2603, 0.0
        %v2636 = vsel %vm2476, %v2604, 0.0
        %v2637 = vsel %vm2477, %v2605, 0.0
        %v2638 = vsel %vm2478, %v2606, 0.0
        %v2639 = vsel %vm2479, %v2607, 0.0
        %v2640 = vsel %vm2480, %v2608, 0.0
        %v2641 = vsel %vm2481, %v2609, 0.0
        %v2642 = vsel %vm2482, %v2610, 0.0
        %v2643 = vsel %vm2483, %v2611, 0.0
        %v2644 = vsel %vm2484, %v2612, 0.0
        %v2645 = vsel %vm2485, %v2613, 0.0
        %v2646 = vsel %vm2486, %v2614, 0.0
        %v2647 = vadd.f32 %v1879, %v2615
        %v2648 = vadd.f32 %v1880, %v2616
        %v2649 = vadd.f32 %v1881, %v2617
        %v2650 = vadd.f32 %v1882, %v2618
        %v2651 = vadd.f32 %v1883, %v2619
        %v2652 = vadd.f32 %v1884, %v2620
        %v2653 = vadd.f32 %v1885, %v2621
        %v2654 = vadd.f32 %v1886, %v2622
        %v2655 = vadd.f32 %v1887, %v2623
        %v2656 = vadd.f32 %v1888, %v2624
        %v2657 = vadd.f32 %v1889, %v2625
        %v2658 = vadd.f32 %v1890, %v2626
        %v2659 = vadd.f32 %v1891, %v2627
        %v2660 = vadd.f32 %v1892, %v2628
        %v2661 = vadd.f32 %v1893, %v2629
        %v2662 = vadd.f32 %v1894, %v2630
        %v2663 = vadd.f32 %v1895, %v2631
        %v2664 = vadd.f32 %v1896, %v2632
        %v2665 = vadd.f32 %v1897, %v2633
        %v2666 = vadd.f32 %v1898, %v2634
        %v2667 = vadd.f32 %v1899, %v2635
        %v2668 = vadd.f32 %v1900, %v2636
        %v2669 = vadd.f32 %v1901, %v2637
        %v2670 = vadd.f32 %v1902, %v2638
        %v2671 = vadd.f32 %v1903, %v2639
        %v2672 = vadd.f32 %v1904, %v2640
        %v2673 = vadd.f32 %v1905, %v2641
        %v2674 = vadd.f32 %v1906, %v2642
        %v2675 = vadd.f32 %v1907, %v2643
        %v2676 = vadd.f32 %v1908, %v2644
        %v2677 = vadd.f32 %v1909, %v2645
        %v2678 = vadd.f32 %v1910, %v2646
        %v2679 = vadd.f32 %v1911, %v2583
        %v2680 = vadd.f32 %v1912, %v2584
        %v2681 = vadd.f32 %v1913, %v2585
        %v2682 = vadd.f32 %v1914, %v2586
        %v2683 = vadd.f32 %v1915, %v2587
        %v2684 = vadd.f32 %v1916, %v2588
        %v2685 = vadd.f32 %v1917, %v2589
        %v2686 = vadd.f32 %v1918, %v2590
        %v2687 = vadd.f32 %v1919, %v2591
        %v2688 = vadd.f32 %v1920, %v2592
        %v2689 = vadd.f32 %v1921, %v2593
        %v2690 = vadd.f32 %v1922, %v2594
        %v2691 = vadd.f32 %v1923, %v2595
        %v2692 = vadd.f32 %v1924, %v2596
        %v2693 = vadd.f32 %v1925, %v2597
        %v2694 = vadd.f32 %v1926, %v2598
        %v2695 = vadd.f32 %v1927, %v2599
        %v2696 = vadd.f32 %v1928, %v2600
        %v2697 = vadd.f32 %v1929, %v2601
        %v2698 = vadd.f32 %v1930, %v2602
        %v2699 = vadd.f32 %v1931, %v2603
        %v2700 = vadd.f32 %v1932, %v2604
        %v2701 = vadd.f32 %v1933, %v2605
        %v2702 = vadd.f32 %v1934, %v2606
        %v2703 = vadd.f32 %v1935, %v2607
        %v2704 = vadd.f32 %v1936, %v2608
        %v2705 = vadd.f32 %v1937, %v2609
        %v2706 = vadd.f32 %v1938, %v2610
        %v2707 = vadd.f32 %v1939, %v2611
        %v2708 = vadd.f32 %v1940, %v2612
        %v2709 = vadd.f32 %v1941, %v2613
        %v2710 = vadd.f32 %v1942, %v2614
        %v2711 = vsel %vm2455, 2147483647, %v1943
        %v2712 = vsel %vm2456, 2147483647, %v1944
        %v2713 = vsel %vm2457, 2147483647, %v1945
        %v2714 = vsel %vm2458, 2147483647, %v1946
        %v2715 = vsel %vm2459, 2147483647, %v1947
        %v2716 = vsel %vm2460, 2147483647, %v1948
        %v2717 = vsel %vm2461, 2147483647, %v1949
        %v2718 = vsel %vm2462, 2147483647, %v1950
        %v2719 = vsel %vm2463, 2147483647, %v1951
        %v2720 = vsel %vm2464, 2147483647, %v1952
        %v2721 = vsel %vm2465, 2147483647, %v1953
        %v2722 = vsel %vm2466, 2147483647, %v1954
        %v2723 = vsel %vm2467, 2147483647, %v1955
        %v2724 = vsel %vm2468, 2147483647, %v1956
        %v2725 = vsel %vm2469, 2147483647, %v1957
        %v2726 = vsel %vm2470, 2147483647, %v1958
        %v2727 = vsel %vm2471, 2147483647, %v1959
        %v2728 = vsel %vm2472, 2147483647, %v1960
        %v2729 = vsel %vm2473, 2147483647, %v1961
        %v2730 = vsel %vm2474, 2147483647, %v1962
        %v2731 = vsel %vm2475, 2147483647, %v1963
        %v2732 = vsel %vm2476, 2147483647, %v1964
        %v2733 = vsel %vm2477, 2147483647, %v1965
        %v2734 = vsel %vm2478, 2147483647, %v1966
        %v2735 = vsel %vm2479, 2147483647, %v1967
        %v2736 = vsel %vm2480, 2147483647, %v1968
        %v2737 = vsel %vm2481, 2147483647, %v1969
        %v2738 = vsel %vm2482, 2147483647, %v1970
        %v2739 = vsel %vm2483, 2147483647, %v1971
        %v2740 = vsel %vm2484, 2147483647, %v1972
        %v2741 = vsel %vm2485, 2147483647, %v1973
        %v2742 = vsel %vm2486, 2147483647, %v1974
        %v2743 = vand.u32 %v2711, 65535
        %v2744 = vshra.s32 %v2711, 16
        %v2745 = vcvt.s32.f32 %v2743
        %v2746 = vcvt.s32.f32 %v2744
        %2747 = vmin.xlane.f32.xlu0 %v2746
        %v2748 = vpop.xlane.xlu0 %2747
        %vm2749 = vcmp.eq.f32.partialorder %v2746, %v2748
        %v2750 = vsel %vm2749, %v2745, inf
        %2751 = vmin.xlane.f32.xlu0 %v2750
        %v2752 = vpop.xlane.xlu0 %2751
        %v2753 = vcvt.f32.s32 %v2752
        %v2754 = vcvt.f32.s32 %v2748
        %v2755 = vshll.u32 %v2754, 16
        %v2756 = vadd.s32 %v2755, %v2753
        %v2757 = vand.u32 %v2712, 65535
        %v2758 = vshra.s32 %v2712, 16
        %v2759 = vcvt.s32.f32 %v2757
        %v2760 = vcvt.s32.f32 %v2758
        %2761 = vmin.xlane.f32.xlu0 %v2760
        %v2762 = vpop.xlane.xlu0 %2761
        %vm2763 = vcmp.eq.f32.partialorder %v2760, %v2762
        %v2764 = vsel %vm2763, %v2759, inf
        %2765 = vmin.xlane.f32.xlu0 %v2764
        %v2766 = vpop.xlane.xlu0 %2765
        %v2767 = vcvt.f32.s32 %v2766
        %v2768 = vcvt.f32.s32 %v2762
        %v2769 = vshll.u32 %v2768, 16
        %v2770 = vadd.s32 %v2769, %v2767
        %v2771 = vand.u32 %v2713, 65535
        %v2772 = vshra.s32 %v2713, 16
        %v2773 = vcvt.s32.f32 %v2771
        %v2774 = vcvt.s32.f32 %v2772
        %2775 = vmin.xlane.f32.xlu0 %v2774
        %v2776 = vpop.xlane.xlu0 %2775
        %vm2777 = vcmp.eq.f32.partialorder %v2774, %v2776
        %v2778 = vsel %vm2777, %v2773, inf
        %2779 = vmin.xlane.f32.xlu0 %v2778
        %v2780 = vpop.xlane.xlu0 %2779
        %v2781 = vcvt.f32.s32 %v2780
        %v2782 = vcvt.f32.s32 %v2776
        %v2783 = vshll.u32 %v2782, 16
        %v2784 = vadd.s32 %v2783, %v2781
        %v2785 = vand.u32 %v2714, 65535
        %v2786 = vshra.s32 %v2714, 16
        %v2787 = vcvt.s32.f32 %v2785
        %v2788 = vcvt.s32.f32 %v2786
        %2789 = vmin.xlane.f32.xlu0 %v2788
        %v2790 = vpop.xlane.xlu0 %2789
        %vm2791 = vcmp.eq.f32.partialorder %v2788, %v2790
        %v2792 = vsel %vm2791, %v2787, inf
        %2793 = vmin.xlane.f32.xlu0 %v2792
        %v2794 = vpop.xlane.xlu0 %2793
        %v2795 = vcvt.f32.s32 %v2794
        %v2796 = vcvt.f32.s32 %v2790
        %v2797 = vshll.u32 %v2796, 16
        %v2798 = vadd.s32 %v2797, %v2795
        %v2799 = vand.u32 %v2715, 65535
        %v2800 = vshra.s32 %v2715, 16
        %v2801 = vcvt.s32.f32 %v2799
        %v2802 = vcvt.s32.f32 %v2800
        %2803 = vmin.xlane.f32.xlu0 %v2802
        %v2804 = vpop.xlane.xlu0 %2803
        %vm2805 = vcmp.eq.f32.partialorder %v2802, %v2804
        %v2806 = vsel %vm2805, %v2801, inf
        %2807 = vmin.xlane.f32.xlu0 %v2806
        %v2808 = vpop.xlane.xlu0 %2807
        %v2809 = vcvt.f32.s32 %v2808
        %v2810 = vcvt.f32.s32 %v2804
        %v2811 = vshll.u32 %v2810, 16
        %v2812 = vadd.s32 %v2811, %v2809
        %v2813 = vand.u32 %v2716, 65535
        %v2814 = vshra.s32 %v2716, 16
        %v2815 = vcvt.s32.f32 %v2813
        %v2816 = vcvt.s32.f32 %v2814
        %2817 = vmin.xlane.f32.xlu0 %v2816
        %v2818 = vpop.xlane.xlu0 %2817
        %vm2819 = vcmp.eq.f32.partialorder %v2816, %v2818
        %v2820 = vsel %vm2819, %v2815, inf
        %2821 = vmin.xlane.f32.xlu0 %v2820
        %v2822 = vpop.xlane.xlu0 %2821
        %v2823 = vcvt.f32.s32 %v2822
        %v2824 = vcvt.f32.s32 %v2818
        %v2825 = vshll.u32 %v2824, 16
        %v2826 = vadd.s32 %v2825, %v2823
        %v2827 = vand.u32 %v2717, 65535
        %v2828 = vshra.s32 %v2717, 16
        %v2829 = vcvt.s32.f32 %v2827
        %v2830 = vcvt.s32.f32 %v2828
        %2831 = vmin.xlane.f32.xlu0 %v2830
        %v2832 = vpop.xlane.xlu0 %2831
        %vm2833 = vcmp.eq.f32.partialorder %v2830, %v2832
        %v2834 = vsel %vm2833, %v2829, inf
        %2835 = vmin.xlane.f32.xlu0 %v2834
        %v2836 = vpop.xlane.xlu0 %2835
        %v2837 = vcvt.f32.s32 %v2836
        %v2838 = vcvt.f32.s32 %v2832
        %v2839 = vshll.u32 %v2838, 16
        %v2840 = vadd.s32 %v2839, %v2837
        %v2841 = vand.u32 %v2718, 65535
        %v2842 = vshra.s32 %v2718, 16
        %v2843 = vcvt.s32.f32 %v2841
        %v2844 = vcvt.s32.f32 %v2842
        %2845 = vmin.xlane.f32.xlu0 %v2844
        %v2846 = vpop.xlane.xlu0 %2845
        %vm2847 = vcmp.eq.f32.partialorder %v2844, %v2846
        %v2848 = vsel %vm2847, %v2843, inf
        %2849 = vmin.xlane.f32.xlu0 %v2848
        %v2850 = vpop.xlane.xlu0 %2849
        %v2851 = vcvt.f32.s32 %v2850
        %v2852 = vcvt.f32.s32 %v2846
        %v2853 = vshll.u32 %v2852, 16
        %v2854 = vadd.s32 %v2853, %v2851
        %v2855 = vand.u32 %v2719, 65535
        %v2856 = vshra.s32 %v2719, 16
        %v2857 = vcvt.s32.f32 %v2855
        %v2858 = vcvt.s32.f32 %v2856
        %2859 = vmin.xlane.f32.xlu0 %v2858
        %v2860 = vpop.xlane.xlu0 %2859
        %vm2861 = vcmp.eq.f32.partialorder %v2858, %v2860
        %v2862 = vsel %vm2861, %v2857, inf
        %2863 = vmin.xlane.f32.xlu0 %v2862
        %v2864 = vpop.xlane.xlu0 %2863
        %v2865 = vcvt.f32.s32 %v2864
        %v2866 = vcvt.f32.s32 %v2860
        %v2867 = vshll.u32 %v2866, 16
        %v2868 = vadd.s32 %v2867, %v2865
        %v2869 = vand.u32 %v2720, 65535
        %v2870 = vshra.s32 %v2720, 16
        %v2871 = vcvt.s32.f32 %v2869
        %v2872 = vcvt.s32.f32 %v2870
        %2873 = vmin.xlane.f32.xlu0 %v2872
        %v2874 = vpop.xlane.xlu0 %2873
        %vm2875 = vcmp.eq.f32.partialorder %v2872, %v2874
        %v2876 = vsel %vm2875, %v2871, inf
        %2877 = vmin.xlane.f32.xlu0 %v2876
        %v2878 = vpop.xlane.xlu0 %2877
        %v2879 = vcvt.f32.s32 %v2878
        %v2880 = vcvt.f32.s32 %v2874
        %v2881 = vshll.u32 %v2880, 16
        %v2882 = vadd.s32 %v2881, %v2879
        %v2883 = vand.u32 %v2721, 65535
        %v2884 = vshra.s32 %v2721, 16
        %v2885 = vcvt.s32.f32 %v2883
        %v2886 = vcvt.s32.f32 %v2884
        %2887 = vmin.xlane.f32.xlu0 %v2886
        %v2888 = vpop.xlane.xlu0 %2887
        %vm2889 = vcmp.eq.f32.partialorder %v2886, %v2888
        %v2890 = vsel %vm2889, %v2885, inf
        %2891 = vmin.xlane.f32.xlu0 %v2890
        %v2892 = vpop.xlane.xlu0 %2891
        %v2893 = vcvt.f32.s32 %v2892
        %v2894 = vcvt.f32.s32 %v2888
        %v2895 = vshll.u32 %v2894, 16
        %v2896 = vadd.s32 %v2895, %v2893
        %v2897 = vand.u32 %v2722, 65535
        %v2898 = vshra.s32 %v2722, 16
        %v2899 = vcvt.s32.f32 %v2897
        %v2900 = vcvt.s32.f32 %v2898
        %2901 = vmin.xlane.f32.xlu0 %v2900
        %v2902 = vpop.xlane.xlu0 %2901
        %vm2903 = vcmp.eq.f32.partialorder %v2900, %v2902
        %v2904 = vsel %vm2903, %v2899, inf
        %2905 = vmin.xlane.f32.xlu0 %v2904
        %v2906 = vpop.xlane.xlu0 %2905
        %v2907 = vcvt.f32.s32 %v2906
        %v2908 = vcvt.f32.s32 %v2902
        %v2909 = vshll.u32 %v2908, 16
        %v2910 = vadd.s32 %v2909, %v2907
        %v2911 = vand.u32 %v2723, 65535
        %v2912 = vshra.s32 %v2723, 16
        %v2913 = vcvt.s32.f32 %v2911
        %v2914 = vcvt.s32.f32 %v2912
        %2915 = vmin.xlane.f32.xlu0 %v2914
        %v2916 = vpop.xlane.xlu0 %2915
        %vm2917 = vcmp.eq.f32.partialorder %v2914, %v2916
        %v2918 = vsel %vm2917, %v2913, inf
        %2919 = vmin.xlane.f32.xlu0 %v2918
        %v2920 = vpop.xlane.xlu0 %2919
        %v2921 = vcvt.f32.s32 %v2920
        %v2922 = vcvt.f32.s32 %v2916
        %v2923 = vshll.u32 %v2922, 16
        %v2924 = vadd.s32 %v2923, %v2921
        %v2925 = vand.u32 %v2724, 65535
        %v2926 = vshra.s32 %v2724, 16
        %v2927 = vcvt.s32.f32 %v2925
        %v2928 = vcvt.s32.f32 %v2926
        %2929 = vmin.xlane.f32.xlu0 %v2928
        %v2930 = vpop.xlane.xlu0 %2929
        %vm2931 = vcmp.eq.f32.partialorder %v2928, %v2930
        %v2932 = vsel %vm2931, %v2927, inf
        %2933 = vmin.xlane.f32.xlu0 %v2932
        %v2934 = vpop.xlane.xlu0 %2933
        %v2935 = vcvt.f32.s32 %v2934
        %v2936 = vcvt.f32.s32 %v2930
        %v2937 = vshll.u32 %v2936, 16
        %v2938 = vadd.s32 %v2937, %v2935
        %v2939 = vand.u32 %v2725, 65535
        %v2940 = vshra.s32 %v2725, 16
        %v2941 = vcvt.s32.f32 %v2939
        %v2942 = vcvt.s32.f32 %v2940
        %2943 = vmin.xlane.f32.xlu0 %v2942
        %v2944 = vpop.xlane.xlu0 %2943
        %vm2945 = vcmp.eq.f32.partialorder %v2942, %v2944
        %v2946 = vsel %vm2945, %v2941, inf
        %2947 = vmin.xlane.f32.xlu0 %v2946
        %v2948 = vpop.xlane.xlu0 %2947
        %v2949 = vcvt.f32.s32 %v2948
        %v2950 = vcvt.f32.s32 %v2944
        %v2951 = vshll.u32 %v2950, 16
        %v2952 = vadd.s32 %v2951, %v2949
        %v2953 = vand.u32 %v2726, 65535
        %v2954 = vshra.s32 %v2726, 16
        %v2955 = vcvt.s32.f32 %v2953
        %v2956 = vcvt.s32.f32 %v2954
        %2957 = vmin.xlane.f32.xlu0 %v2956
        %v2958 = vpop.xlane.xlu0 %2957
        %vm2959 = vcmp.eq.f32.partialorder %v2956, %v2958
        %v2960 = vsel %vm2959, %v2955, inf
        %2961 = vmin.xlane.f32.xlu0 %v2960
        %v2962 = vpop.xlane.xlu0 %2961
        %v2963 = vcvt.f32.s32 %v2962
        %v2964 = vcvt.f32.s32 %v2958
        %v2965 = vshll.u32 %v2964, 16
        %v2966 = vadd.s32 %v2965, %v2963
        %v2967 = vand.u32 %v2727, 65535
        %v2968 = vshra.s32 %v2727, 16
        %v2969 = vcvt.s32.f32 %v2967
        %v2970 = vcvt.s32.f32 %v2968
        %2971 = vmin.xlane.f32.xlu0 %v2970
        %v2972 = vpop.xlane.xlu0 %2971
        %vm2973 = vcmp.eq.f32.partialorder %v2970, %v2972
        %v2974 = vsel %vm2973, %v2969, inf
        %2975 = vmin.xlane.f32.xlu0 %v2974
        %v2976 = vpop.xlane.xlu0 %2975
        %v2977 = vcvt.f32.s32 %v2976
        %v2978 = vcvt.f32.s32 %v2972
        %v2979 = vshll.u32 %v2978, 16
        %v2980 = vadd.s32 %v2979, %v2977
        %v2981 = vand.u32 %v2728, 65535
        %v2982 = vshra.s32 %v2728, 16
        %v2983 = vcvt.s32.f32 %v2981
        %v2984 = vcvt.s32.f32 %v2982
        %2985 = vmin.xlane.f32.xlu0 %v2984
        %v2986 = vpop.xlane.xlu0 %2985
        %vm2987 = vcmp.eq.f32.partialorder %v2984, %v2986
        %v2988 = vsel %vm2987, %v2983, inf
        %2989 = vmin.xlane.f32.xlu0 %v2988
        %v2990 = vpop.xlane.xlu0 %2989
        %v2991 = vcvt.f32.s32 %v2990
        %v2992 = vcvt.f32.s32 %v2986
        %v2993 = vshll.u32 %v2992, 16
        %v2994 = vadd.s32 %v2993, %v2991
        %v2995 = vand.u32 %v2729, 65535
        %v2996 = vshra.s32 %v2729, 16
        %v2997 = vcvt.s32.f32 %v2995
        %v2998 = vcvt.s32.f32 %v2996
        %2999 = vmin.xlane.f32.xlu0 %v2998
        %v3000 = vpop.xlane.xlu0 %2999
        %vm3001 = vcmp.eq.f32.partialorder %v2998, %v3000
        %v3002 = vsel %vm3001, %v2997, inf
        %3003 = vmin.xlane.f32.xlu0 %v3002
        %v3004 = vpop.xlane.xlu0 %3003
        %v3005 = vcvt.f32.s32 %v3004
        %v3006 = vcvt.f32.s32 %v3000
        %v3007 = vshll.u32 %v3006, 16
        %v3008 = vadd.s32 %v3007, %v3005
        %v3009 = vand.u32 %v2730, 65535
        %v3010 = vshra.s32 %v2730, 16
        %v3011 = vcvt.s32.f32 %v3009
        %v3012 = vcvt.s32.f32 %v3010
        %3013 = vmin.xlane.f32.xlu0 %v3012
        %v3014 = vpop.xlane.xlu0 %3013
        %vm3015 = vcmp.eq.f32.partialorder %v3012, %v3014
        %v3016 = vsel %vm3015, %v3011, inf
        %3017 = vmin.xlane.f32.xlu0 %v3016
        %v3018 = vpop.xlane.xlu0 %3017
        %v3019 = vcvt.f32.s32 %v3018
        %v3020 = vcvt.f32.s32 %v3014
        %v3021 = vshll.u32 %v3020, 16
        %v3022 = vadd.s32 %v3021, %v3019
        %v3023 = vand.u32 %v2731, 65535
        %v3024 = vshra.s32 %v2731, 16
        %v3025 = vcvt.s32.f32 %v3023
        %v3026 = vcvt.s32.f32 %v3024
        %3027 = vmin.xlane.f32.xlu0 %v3026
        %v3028 = vpop.xlane.xlu0 %3027
        %vm3029 = vcmp.eq.f32.partialorder %v3026, %v3028
        %v3030 = vsel %vm3029, %v3025, inf
        %3031 = vmin.xlane.f32.xlu0 %v3030
        %v3032 = vpop.xlane.xlu0 %3031
        %v3033 = vcvt.f32.s32 %v3032
        %v3034 = vcvt.f32.s32 %v3028
        %v3035 = vshll.u32 %v3034, 16
        %v3036 = vadd.s32 %v3035, %v3033
        %v3037 = vand.u32 %v2732, 65535
        %v3038 = vshra.s32 %v2732, 16
        %v3039 = vcvt.s32.f32 %v3037
        %v3040 = vcvt.s32.f32 %v3038
        %3041 = vmin.xlane.f32.xlu0 %v3040
        %v3042 = vpop.xlane.xlu0 %3041
        %vm3043 = vcmp.eq.f32.partialorder %v3040, %v3042
        %v3044 = vsel %vm3043, %v3039, inf
        %3045 = vmin.xlane.f32.xlu0 %v3044
        %v3046 = vpop.xlane.xlu0 %3045
        %v3047 = vcvt.f32.s32 %v3046
        %v3048 = vcvt.f32.s32 %v3042
        %v3049 = vshll.u32 %v3048, 16
        %v3050 = vadd.s32 %v3049, %v3047
        %v3051 = vand.u32 %v2733, 65535
        %v3052 = vshra.s32 %v2733, 16
        %v3053 = vcvt.s32.f32 %v3051
        %v3054 = vcvt.s32.f32 %v3052
        %3055 = vmin.xlane.f32.xlu0 %v3054
        %v3056 = vpop.xlane.xlu0 %3055
        %vm3057 = vcmp.eq.f32.partialorder %v3054, %v3056
        %v3058 = vsel %vm3057, %v3053, inf
        %3059 = vmin.xlane.f32.xlu0 %v3058
        %v3060 = vpop.xlane.xlu0 %3059
        %v3061 = vcvt.f32.s32 %v3060
        %v3062 = vcvt.f32.s32 %v3056
        %v3063 = vshll.u32 %v3062, 16
        %v3064 = vadd.s32 %v3063, %v3061
        %v3065 = vand.u32 %v2734, 65535
        %v3066 = vshra.s32 %v2734, 16
        %v3067 = vcvt.s32.f32 %v3065
        %v3068 = vcvt.s32.f32 %v3066
        %3069 = vmin.xlane.f32.xlu0 %v3068
        %v3070 = vpop.xlane.xlu0 %3069
        %vm3071 = vcmp.eq.f32.partialorder %v3068, %v3070
        %v3072 = vsel %vm3071, %v3067, inf
        %3073 = vmin.xlane.f32.xlu0 %v3072
        %v3074 = vpop.xlane.xlu0 %3073
        %v3075 = vcvt.f32.s32 %v3074
        %v3076 = vcvt.f32.s32 %v3070
        %v3077 = vshll.u32 %v3076, 16
        %v3078 = vadd.s32 %v3077, %v3075
        %v3079 = vand.u32 %v2735, 65535
        %v3080 = vshra.s32 %v2735, 16
        %v3081 = vcvt.s32.f32 %v3079
        %v3082 = vcvt.s32.f32 %v3080
        %3083 = vmin.xlane.f32.xlu0 %v3082
        %v3084 = vpop.xlane.xlu0 %3083
        %vm3085 = vcmp.eq.f32.partialorder %v3082, %v3084
        %v3086 = vsel %vm3085, %v3081, inf
        %3087 = vmin.xlane.f32.xlu0 %v3086
        %v3088 = vpop.xlane.xlu0 %3087
        %v3089 = vcvt.f32.s32 %v3088
        %v3090 = vcvt.f32.s32 %v3084
        %v3091 = vshll.u32 %v3090, 16
        %v3092 = vadd.s32 %v3091, %v3089
        %v3093 = vand.u32 %v2736, 65535
        %v3094 = vshra.s32 %v2736, 16
        %v3095 = vcvt.s32.f32 %v3093
        %v3096 = vcvt.s32.f32 %v3094
        %3097 = vmin.xlane.f32.xlu0 %v3096
        %v3098 = vpop.xlane.xlu0 %3097
        %vm3099 = vcmp.eq.f32.partialorder %v3096, %v3098
        %v3100 = vsel %vm3099, %v3095, inf
        %3101 = vmin.xlane.f32.xlu0 %v3100
        %v3102 = vpop.xlane.xlu0 %3101
        %v3103 = vcvt.f32.s32 %v3102
        %v3104 = vcvt.f32.s32 %v3098
        %v3105 = vshll.u32 %v3104, 16
        %v3106 = vadd.s32 %v3105, %v3103
        %v3107 = vand.u32 %v2737, 65535
        %v3108 = vshra.s32 %v2737, 16
        %v3109 = vcvt.s32.f32 %v3107
        %v3110 = vcvt.s32.f32 %v3108
        %3111 = vmin.xlane.f32.xlu0 %v3110
        %v3112 = vpop.xlane.xlu0 %3111
        %vm3113 = vcmp.eq.f32.partialorder %v3110, %v3112
        %v3114 = vsel %vm3113, %v3109, inf
        %3115 = vmin.xlane.f32.xlu0 %v3114
        %v3116 = vpop.xlane.xlu0 %3115
        %v3117 = vcvt.f32.s32 %v3116
        %v3118 = vcvt.f32.s32 %v3112
        %v3119 = vshll.u32 %v3118, 16
        %v3120 = vadd.s32 %v3119, %v3117
        %v3121 = vand.u32 %v2738, 65535
        %v3122 = vshra.s32 %v2738, 16
        %v3123 = vcvt.s32.f32 %v3121
        %v3124 = vcvt.s32.f32 %v3122
        %3125 = vmin.xlane.f32.xlu0 %v3124
        %v3126 = vpop.xlane.xlu0 %3125
        %vm3127 = vcmp.eq.f32.partialorder %v3124, %v3126
        %v3128 = vsel %vm3127, %v3123, inf
        %3129 = vmin.xlane.f32.xlu0 %v3128
        %v3130 = vpop.xlane.xlu0 %3129
        %v3131 = vcvt.f32.s32 %v3130
        %v3132 = vcvt.f32.s32 %v3126
        %v3133 = vshll.u32 %v3132, 16
        %v3134 = vadd.s32 %v3133, %v3131
        %v3135 = vand.u32 %v2739, 65535
        %v3136 = vshra.s32 %v2739, 16
        %v3137 = vcvt.s32.f32 %v3135
        %v3138 = vcvt.s32.f32 %v3136
        %3139 = vmin.xlane.f32.xlu0 %v3138
        %v3140 = vpop.xlane.xlu0 %3139
        %vm3141 = vcmp.eq.f32.partialorder %v3138, %v3140
        %v3142 = vsel %vm3141, %v3137, inf
        %3143 = vmin.xlane.f32.xlu0 %v3142
        %v3144 = vpop.xlane.xlu0 %3143
        %v3145 = vcvt.f32.s32 %v3144
        %v3146 = vcvt.f32.s32 %v3140
        %v3147 = vshll.u32 %v3146, 16
        %v3148 = vadd.s32 %v3147, %v3145
        %v3149 = vand.u32 %v2740, 65535
        %v3150 = vshra.s32 %v2740, 16
        %v3151 = vcvt.s32.f32 %v3149
        %v3152 = vcvt.s32.f32 %v3150
        %3153 = vmin.xlane.f32.xlu0 %v3152
        %v3154 = vpop.xlane.xlu0 %3153
        %vm3155 = vcmp.eq.f32.partialorder %v3152, %v3154
        %v3156 = vsel %vm3155, %v3151, inf
        %3157 = vmin.xlane.f32.xlu0 %v3156
        %v3158 = vpop.xlane.xlu0 %3157
        %v3159 = vcvt.f32.s32 %v3158
        %v3160 = vcvt.f32.s32 %v3154
        %v3161 = vshll.u32 %v3160, 16
        %v3162 = vadd.s32 %v3161, %v3159
        %v3163 = vand.u32 %v2741, 65535
        %v3164 = vshra.s32 %v2741, 16
        %v3165 = vcvt.s32.f32 %v3163
        %v3166 = vcvt.s32.f32 %v3164
        %3167 = vmin.xlane.f32.xlu0 %v3166
        %v3168 = vpop.xlane.xlu0 %3167
        %vm3169 = vcmp.eq.f32.partialorder %v3166, %v3168
        %v3170 = vsel %vm3169, %v3165, inf
        %3171 = vmin.xlane.f32.xlu0 %v3170
        %v3172 = vpop.xlane.xlu0 %3171
        %v3173 = vcvt.f32.s32 %v3172
        %v3174 = vcvt.f32.s32 %v3168
        %v3175 = vshll.u32 %v3174, 16
        %v3176 = vadd.s32 %v3175, %v3173
        %v3177 = vand.u32 %v2742, 65535
        %v3178 = vshra.s32 %v2742, 16
        %v3179 = vcvt.s32.f32 %v3177
        %v3180 = vcvt.s32.f32 %v3178
        %3181 = vmin.xlane.f32.xlu0 %v3180
        %v3182 = vpop.xlane.xlu0 %3181
        %vm3183 = vcmp.eq.f32.partialorder %v3180, %v3182
        %v3184 = vsel %vm3183, %v3179, inf
        %3185 = vmin.xlane.f32.xlu0 %v3184
        %v3186 = vpop.xlane.xlu0 %3185
        %v3187 = vcvt.f32.s32 %v3186
        %v3188 = vcvt.f32.s32 %v3182
        %v3189 = vshll.u32 %v3188, 16
        %v3190 = vadd.s32 %v3189, %v3187
        %v3191 = vand.u32 %v2756, 4095
        %v3192 = vand.u32 %v2770, 4095
        %v3193 = vand.u32 %v2784, 4095
        %v3194 = vand.u32 %v2798, 4095
        %v3195 = vand.u32 %v2812, 4095
        %v3196 = vand.u32 %v2826, 4095
        %v3197 = vand.u32 %v2840, 4095
        %v3198 = vand.u32 %v2854, 4095
        %v3199 = vand.u32 %v2868, 4095
        %v3200 = vand.u32 %v2882, 4095
        %v3201 = vand.u32 %v2896, 4095
        %v3202 = vand.u32 %v2910, 4095
        %v3203 = vand.u32 %v2924, 4095
        %v3204 = vand.u32 %v2938, 4095
        %v3205 = vand.u32 %v2952, 4095
        %v3206 = vand.u32 %v2966, 4095
        %v3207 = vand.u32 %v2980, 4095
        %v3208 = vand.u32 %v2994, 4095
        %v3209 = vand.u32 %v3008, 4095
        %v3210 = vand.u32 %v3022, 4095
        %v3211 = vand.u32 %v3036, 4095
        %v3212 = vand.u32 %v3050, 4095
        %v3213 = vand.u32 %v3064, 4095
        %v3214 = vand.u32 %v3078, 4095
        %v3215 = vand.u32 %v3092, 4095
        %v3216 = vand.u32 %v3106, 4095
        %v3217 = vand.u32 %v3120, 4095
        %v3218 = vand.u32 %v3134, 4095
        %v3219 = vand.u32 %v3148, 4095
        %v3220 = vand.u32 %v3162, 4095
        %v3221 = vand.u32 %v3176, 4095
        %v3222 = vand.u32 %v3190, 4095
        %vm3223 = vcmp.eq.s32.totalorder %v1110, %v3191
        %vm3224 = vcmp.eq.s32.totalorder %v1110, %v3192
        %vm3225 = vcmp.eq.s32.totalorder %v1110, %v3193
        %vm3226 = vcmp.eq.s32.totalorder %v1110, %v3194
        %vm3227 = vcmp.eq.s32.totalorder %v1110, %v3195
        %vm3228 = vcmp.eq.s32.totalorder %v1110, %v3196
        %vm3229 = vcmp.eq.s32.totalorder %v1110, %v3197
        %vm3230 = vcmp.eq.s32.totalorder %v1110, %v3198
        %vm3231 = vcmp.eq.s32.totalorder %v1110, %v3199
        %vm3232 = vcmp.eq.s32.totalorder %v1110, %v3200
        %vm3233 = vcmp.eq.s32.totalorder %v1110, %v3201
        %vm3234 = vcmp.eq.s32.totalorder %v1110, %v3202
        %vm3235 = vcmp.eq.s32.totalorder %v1110, %v3203
        %vm3236 = vcmp.eq.s32.totalorder %v1110, %v3204
        %vm3237 = vcmp.eq.s32.totalorder %v1110, %v3205
        %vm3238 = vcmp.eq.s32.totalorder %v1110, %v3206
        %vm3239 = vcmp.eq.s32.totalorder %v1110, %v3207
        %vm3240 = vcmp.eq.s32.totalorder %v1110, %v3208
        %vm3241 = vcmp.eq.s32.totalorder %v1110, %v3209
        %vm3242 = vcmp.eq.s32.totalorder %v1110, %v3210
        %vm3243 = vcmp.eq.s32.totalorder %v1110, %v3211
        %vm3244 = vcmp.eq.s32.totalorder %v1110, %v3212
        %vm3245 = vcmp.eq.s32.totalorder %v1110, %v3213
        %vm3246 = vcmp.eq.s32.totalorder %v1110, %v3214
        %vm3247 = vcmp.eq.s32.totalorder %v1110, %v3215
        %vm3248 = vcmp.eq.s32.totalorder %v1110, %v3216
        %vm3249 = vcmp.eq.s32.totalorder %v1110, %v3217
        %vm3250 = vcmp.eq.s32.totalorder %v1110, %v3218
        %vm3251 = vcmp.eq.s32.totalorder %v1110, %v3219
        %vm3252 = vcmp.eq.s32.totalorder %v1110, %v3220
        %vm3253 = vcmp.eq.s32.totalorder %v1110, %v3221
        %vm3254 = vcmp.eq.s32.totalorder %v1110, %v3222
        %v3255 = vand.u32 %v2756, 4294963200
        %v3256 = vand.u32 %v2770, 4294963200
        %v3257 = vand.u32 %v2784, 4294963200
        %v3258 = vand.u32 %v2798, 4294963200
        %v3259 = vand.u32 %v2812, 4294963200
        %v3260 = vand.u32 %v2826, 4294963200
        %v3261 = vand.u32 %v2840, 4294963200
        %v3262 = vand.u32 %v2854, 4294963200
        %v3263 = vand.u32 %v2868, 4294963200
        %v3264 = vand.u32 %v2882, 4294963200
        %v3265 = vand.u32 %v2896, 4294963200
        %v3266 = vand.u32 %v2910, 4294963200
        %v3267 = vand.u32 %v2924, 4294963200
        %v3268 = vand.u32 %v2938, 4294963200
        %v3269 = vand.u32 %v2952, 4294963200
        %v3270 = vand.u32 %v2966, 4294963200
        %v3271 = vand.u32 %v2980, 4294963200
        %v3272 = vand.u32 %v2994, 4294963200
        %v3273 = vand.u32 %v3008, 4294963200
        %v3274 = vand.u32 %v3022, 4294963200
        %v3275 = vand.u32 %v3036, 4294963200
        %v3276 = vand.u32 %v3050, 4294963200
        %v3277 = vand.u32 %v3064, 4294963200
        %v3278 = vand.u32 %v3078, 4294963200
        %v3279 = vand.u32 %v3092, 4294963200
        %v3280 = vand.u32 %v3106, 4294963200
        %v3281 = vand.u32 %v3120, 4294963200
        %v3282 = vand.u32 %v3134, 4294963200
        %v3283 = vand.u32 %v3148, 4294963200
        %v3284 = vand.u32 %v3162, 4294963200
        %v3285 = vand.u32 %v3176, 4294963200
        %v3286 = vand.u32 %v3190, 4294963200
        %v3319 = vadd.f32 %v3255, 1e-06
        %v3320 = vadd.f32 %v3256, 1e-06
        %v3321 = vadd.f32 %v3257, 1e-06
        %v3322 = vadd.f32 %v3258, 1e-06
        %v3323 = vadd.f32 %v3259, 1e-06
        %v3324 = vadd.f32 %v3260, 1e-06
        %v3325 = vadd.f32 %v3261, 1e-06
        %v3326 = vadd.f32 %v3262, 1e-06
        %v3327 = vadd.f32 %v3263, 1e-06
        %v3328 = vadd.f32 %v3264, 1e-06
        %v3329 = vadd.f32 %v3265, 1e-06
        %v3330 = vadd.f32 %v3266, 1e-06
        %v3331 = vadd.f32 %v3267, 1e-06
        %v3332 = vadd.f32 %v3268, 1e-06
        %v3333 = vadd.f32 %v3269, 1e-06
        %v3334 = vadd.f32 %v3270, 1e-06
        %v3335 = vadd.f32 %v3271, 1e-06
        %v3336 = vadd.f32 %v3272, 1e-06
        %v3337 = vadd.f32 %v3273, 1e-06
        %v3338 = vadd.f32 %v3274, 1e-06
        %v3339 = vadd.f32 %v3275, 1e-06
        %v3340 = vadd.f32 %v3276, 1e-06
        %v3341 = vadd.f32 %v3277, 1e-06
        %v3342 = vadd.f32 %v3278, 1e-06
        %v3343 = vadd.f32 %v3279, 1e-06
        %v3344 = vadd.f32 %v3280, 1e-06
        %v3345 = vadd.f32 %v3281, 1e-06
        %v3346 = vadd.f32 %v3282, 1e-06
        %v3347 = vadd.f32 %v3283, 1e-06
        %v3348 = vadd.f32 %v3284, 1e-06
        %v3349 = vadd.f32 %v3285, 1e-06
        %v3350 = vadd.f32 %v3286, 1e-06
        %v3351 = vrcp.pop %v3319
        %v3352 = vrcp.pop %v3320
        %v3353 = vrcp.pop %v3321
        %v3354 = vrcp.pop %v3322
        %v3355 = vrcp.pop %v3323
        %v3356 = vrcp.pop %v3324
        %v3357 = vrcp.pop %v3325
        %v3358 = vrcp.pop %v3326
        %v3359 = vrcp.pop %v3327
        %v3360 = vrcp.pop %v3328
        %v3361 = vrcp.pop %v3329
        %v3362 = vrcp.pop %v3330
        %v3363 = vrcp.pop %v3331
        %v3364 = vrcp.pop %v3332
        %v3365 = vrcp.pop %v3333
        %v3366 = vrcp.pop %v3334
        %v3367 = vrcp.pop %v3335
        %v3368 = vrcp.pop %v3336
        %v3369 = vrcp.pop %v3337
        %v3370 = vrcp.pop %v3338
        %v3371 = vrcp.pop %v3339
        %v3372 = vrcp.pop %v3340
        %v3373 = vrcp.pop %v3341
        %v3374 = vrcp.pop %v3342
        %v3375 = vrcp.pop %v3343
        %v3376 = vrcp.pop %v3344
        %v3377 = vrcp.pop %v3345
        %v3378 = vrcp.pop %v3346
        %v3379 = vrcp.pop %v3347
        %v3380 = vrcp.pop %v3348
        %v3381 = vrcp.pop %v3349
        %v3382 = vrcp.pop %v3350
        %v3383 = vsel %vm3223, %v3351, 0.0
        %v3384 = vsel %vm3224, %v3352, 0.0
        %v3385 = vsel %vm3225, %v3353, 0.0
        %v3386 = vsel %vm3226, %v3354, 0.0
        %v3387 = vsel %vm3227, %v3355, 0.0
        %v3388 = vsel %vm3228, %v3356, 0.0
        %v3389 = vsel %vm3229, %v3357, 0.0
        %v3390 = vsel %vm3230, %v3358, 0.0
        %v3391 = vsel %vm3231, %v3359, 0.0
        %v3392 = vsel %vm3232, %v3360, 0.0
        %v3393 = vsel %vm3233, %v3361, 0.0
        %v3394 = vsel %vm3234, %v3362, 0.0
        %v3395 = vsel %vm3235, %v3363, 0.0
        %v3396 = vsel %vm3236, %v3364, 0.0
        %v3397 = vsel %vm3237, %v3365, 0.0
        %v3398 = vsel %vm3238, %v3366, 0.0
        %v3399 = vsel %vm3239, %v3367, 0.0
        %v3400 = vsel %vm3240, %v3368, 0.0
        %v3401 = vsel %vm3241, %v3369, 0.0
        %v3402 = vsel %vm3242, %v3370, 0.0
        %v3403 = vsel %vm3243, %v3371, 0.0
        %v3404 = vsel %vm3244, %v3372, 0.0
        %v3405 = vsel %vm3245, %v3373, 0.0
        %v3406 = vsel %vm3246, %v3374, 0.0
        %v3407 = vsel %vm3247, %v3375, 0.0
        %v3408 = vsel %vm3248, %v3376, 0.0
        %v3409 = vsel %vm3249, %v3377, 0.0
        %v3410 = vsel %vm3250, %v3378, 0.0
        %v3411 = vsel %vm3251, %v3379, 0.0
        %v3412 = vsel %vm3252, %v3380, 0.0
        %v3413 = vsel %vm3253, %v3381, 0.0
        %v3414 = vsel %vm3254, %v3382, 0.0
        %v3415 = vadd.f32 %v2647, %v3383
        %v3416 = vadd.f32 %v2648, %v3384
        %v3417 = vadd.f32 %v2649, %v3385
        %v3418 = vadd.f32 %v2650, %v3386
        %v3419 = vadd.f32 %v2651, %v3387
        %v3420 = vadd.f32 %v2652, %v3388
        %v3421 = vadd.f32 %v2653, %v3389
        %v3422 = vadd.f32 %v2654, %v3390
        %v3423 = vadd.f32 %v2655, %v3391
        %v3424 = vadd.f32 %v2656, %v3392
        %v3425 = vadd.f32 %v2657, %v3393
        %v3426 = vadd.f32 %v2658, %v3394
        %v3427 = vadd.f32 %v2659, %v3395
        %v3428 = vadd.f32 %v2660, %v3396
        %v3429 = vadd.f32 %v2661, %v3397
        %v3430 = vadd.f32 %v2662, %v3398
        %v3431 = vadd.f32 %v2663, %v3399
        %v3432 = vadd.f32 %v2664, %v3400
        %v3433 = vadd.f32 %v2665, %v3401
        %v3434 = vadd.f32 %v2666, %v3402
        %v3435 = vadd.f32 %v2667, %v3403
        %v3436 = vadd.f32 %v2668, %v3404
        %v3437 = vadd.f32 %v2669, %v3405
        %v3438 = vadd.f32 %v2670, %v3406
        %v3439 = vadd.f32 %v2671, %v3407
        %v3440 = vadd.f32 %v2672, %v3408
        %v3441 = vadd.f32 %v2673, %v3409
        %v3442 = vadd.f32 %v2674, %v3410
        %v3443 = vadd.f32 %v2675, %v3411
        %v3444 = vadd.f32 %v2676, %v3412
        %v3445 = vadd.f32 %v2677, %v3413
        %v3446 = vadd.f32 %v2678, %v3414
        %v3447 = vadd.f32 %v2679, %v3351
        %v3448 = vadd.f32 %v2680, %v3352
        %v3449 = vadd.f32 %v2681, %v3353
        %v3450 = vadd.f32 %v2682, %v3354
        %v3451 = vadd.f32 %v2683, %v3355
        %v3452 = vadd.f32 %v2684, %v3356
        %v3453 = vadd.f32 %v2685, %v3357
        %v3454 = vadd.f32 %v2686, %v3358
        %v3455 = vadd.f32 %v2687, %v3359
        %v3456 = vadd.f32 %v2688, %v3360
        %v3457 = vadd.f32 %v2689, %v3361
        %v3458 = vadd.f32 %v2690, %v3362
        %v3459 = vadd.f32 %v2691, %v3363
        %v3460 = vadd.f32 %v2692, %v3364
        %v3461 = vadd.f32 %v2693, %v3365
        %v3462 = vadd.f32 %v2694, %v3366
        %v3463 = vadd.f32 %v2695, %v3367
        %v3464 = vadd.f32 %v2696, %v3368
        %v3465 = vadd.f32 %v2697, %v3369
        %v3466 = vadd.f32 %v2698, %v3370
        %v3467 = vadd.f32 %v2699, %v3371
        %v3468 = vadd.f32 %v2700, %v3372
        %v3469 = vadd.f32 %v2701, %v3373
        %v3470 = vadd.f32 %v2702, %v3374
        %v3471 = vadd.f32 %v2703, %v3375
        %v3472 = vadd.f32 %v2704, %v3376
        %v3473 = vadd.f32 %v2705, %v3377
        %v3474 = vadd.f32 %v2706, %v3378
        %v3475 = vadd.f32 %v2707, %v3379
        %v3476 = vadd.f32 %v2708, %v3380
        %v3477 = vadd.f32 %v2709, %v3381
        %v3478 = vadd.f32 %v2710, %v3382
        %v3479 = vrcp.pop %v3447
        %v3480 = vmul.f32 1.0, %v3479
        %v3481 = vrcp.pop %v3448
        %v3482 = vmul.f32 1.0, %v3481
        %v3483 = vrcp.pop %v3449
        %v3484 = vmul.f32 1.0, %v3483
        %v3485 = vrcp.pop %v3450
        %v3486 = vmul.f32 1.0, %v3485
        %v3487 = vrcp.pop %v3451
        %v3488 = vmul.f32 1.0, %v3487
        %v3489 = vrcp.pop %v3452
        %v3490 = vmul.f32 1.0, %v3489
        %v3491 = vrcp.pop %v3453
        %v3492 = vmul.f32 1.0, %v3491
        %v3493 = vrcp.pop %v3454
        %v3494 = vmul.f32 1.0, %v3493
        %v3495 = vrcp.pop %v3455
        %v3496 = vmul.f32 1.0, %v3495
        %v3497 = vrcp.pop %v3456
        %v3498 = vmul.f32 1.0, %v3497
        %v3499 = vrcp.pop %v3457
        %v3500 = vmul.f32 1.0, %v3499
        %v3501 = vrcp.pop %v3458
        %v3502 = vmul.f32 1.0, %v3501
        %v3503 = vrcp.pop %v3459
        %v3504 = vmul.f32 1.0, %v3503
        %v3505 = vrcp.pop %v3460
        %v3506 = vmul.f32 1.0, %v3505
        %v3507 = vrcp.pop %v3461
        %v3508 = vmul.f32 1.0, %v3507
        %v3509 = vrcp.pop %v3462
        %v3510 = vmul.f32 1.0, %v3509
        %v3511 = vrcp.pop %v3463
        %v3512 = vmul.f32 1.0, %v3511
        %v3513 = vrcp.pop %v3464
        %v3514 = vmul.f32 1.0, %v3513
        %v3515 = vrcp.pop %v3465
        %v3516 = vmul.f32 1.0, %v3515
        %v3517 = vrcp.pop %v3466
        %v3518 = vmul.f32 1.0, %v3517
        %v3519 = vrcp.pop %v3467
        %v3520 = vmul.f32 1.0, %v3519
        %v3521 = vrcp.pop %v3468
        %v3522 = vmul.f32 1.0, %v3521
        %v3523 = vrcp.pop %v3469
        %v3524 = vmul.f32 1.0, %v3523
        %v3525 = vrcp.pop %v3470
        %v3526 = vmul.f32 1.0, %v3525
        %v3527 = vrcp.pop %v3471
        %v3528 = vmul.f32 1.0, %v3527
        %v3529 = vrcp.pop %v3472
        %v3530 = vmul.f32 1.0, %v3529
        %v3531 = vrcp.pop %v3473
        %v3532 = vmul.f32 1.0, %v3531
        %v3533 = vrcp.pop %v3474
        %v3534 = vmul.f32 1.0, %v3533
        %v3535 = vrcp.pop %v3475
        %v3536 = vmul.f32 1.0, %v3535
        %v3537 = vrcp.pop %v3476
        %v3538 = vmul.f32 1.0, %v3537
        %v3539 = vrcp.pop %v3477
        %v3540 = vmul.f32 1.0, %v3539
        %v3541 = vrcp.pop %v3478
        %v3542 = vmul.f32 1.0, %v3541
        %v3543 = vmul.f32 %v3415, %v3480
        %v3544 = vmul.f32 %v3416, %v3482
        %v3545 = vmul.f32 %v3417, %v3484
        %v3546 = vmul.f32 %v3418, %v3486
        %v3547 = vmul.f32 %v3419, %v3488
        %v3548 = vmul.f32 %v3420, %v3490
        %v3549 = vmul.f32 %v3421, %v3492
        %v3550 = vmul.f32 %v3422, %v3494
        %v3551 = vmul.f32 %v3423, %v3496
        %v3552 = vmul.f32 %v3424, %v3498
        %v3553 = vmul.f32 %v3425, %v3500
        %v3554 = vmul.f32 %v3426, %v3502
        %v3555 = vmul.f32 %v3427, %v3504
        %v3556 = vmul.f32 %v3428, %v3506
        %v3557 = vmul.f32 %v3429, %v3508
        %v3558 = vmul.f32 %v3430, %v3510
        %v3559 = vmul.f32 %v3431, %v3512
        %v3560 = vmul.f32 %v3432, %v3514
        %v3561 = vmul.f32 %v3433, %v3516
        %v3562 = vmul.f32 %v3434, %v3518
        %v3563 = vmul.f32 %v3435, %v3520
        %v3564 = vmul.f32 %v3436, %v3522
        %v3565 = vmul.f32 %v3437, %v3524
        %v3566 = vmul.f32 %v3438, %v3526
        %v3567 = vmul.f32 %v3439, %v3528
        %v3568 = vmul.f32 %v3440, %v3530
        %v3569 = vmul.f32 %v3441, %v3532
        %v3570 = vmul.f32 %v3442, %v3534
        %v3571 = vmul.f32 %v3443, %v3536
        %v3572 = vmul.f32 %v3444, %v3538
        %v3573 = vmul.f32 %v3445, %v3540
        %v3574 = vmul.f32 %v3446, %v3542
        %v3575 = vpack.c.bf16 %v3544, %v3543
        %v3576 = vpack.c.bf16 %v3546, %v3545
        %v3577 = vpack.c.bf16 %v3548, %v3547
        %v3578 = vpack.c.bf16 %v3550, %v3549
        %v3579 = vpack.c.bf16 %v3552, %v3551
        %v3580 = vpack.c.bf16 %v3554, %v3553
        %v3581 = vpack.c.bf16 %v3556, %v3555
        %v3582 = vpack.c.bf16 %v3558, %v3557
        %v3583 = vpack.c.bf16 %v3560, %v3559
        %v3584 = vpack.c.bf16 %v3562, %v3561
        %v3585 = vpack.c.bf16 %v3564, %v3563
        %v3586 = vpack.c.bf16 %v3566, %v3565
        %v3587 = vpack.c.bf16 %v3568, %v3567
        %v3588 = vpack.c.bf16 %v3570, %v3569
        %v3589 = vpack.c.bf16 %v3572, %v3571
        %v3590 = vpack.c.bf16 %v3574, %v3573
        %v3591 = vld [vmem:[#allocation8] sm:$0xf]
        %v3592 = vld [vmem:[#allocation8 + $0x4] sm:$0xf]
        %v3593 = vld [vmem:[#allocation8 + $0x8] sm:$0xf]
        %v3594 = vld [vmem:[#allocation8 + $0xc] sm:$0xf]
        %v3595 = vld [vmem:[#allocation8 + $0x10] sm:$0xf]
        %v3596 = vld [vmem:[#allocation8 + $0x14] sm:$0xf]
        %v3597 = vld [vmem:[#allocation8 + $0x18] sm:$0xf]
        %v3598 = vld [vmem:[#allocation8 + $0x1c] sm:$0xf]
        %v3599 = vld [vmem:[#allocation8 + $0x20] sm:$0xf]
        %v3600 = vld [vmem:[#allocation8 + $0x24] sm:$0xf]
        %v3601 = vld [vmem:[#allocation8 + $0x28] sm:$0xf]
        %v3602 = vld [vmem:[#allocation8 + $0x2c] sm:$0xf]
        %v3603 = vld [vmem:[#allocation8 + $0x30] sm:$0xf]
        %v3604 = vld [vmem:[#allocation8 + $0x34] sm:$0xf]
        %v3605 = vld [vmem:[#allocation8 + $0x38] sm:$0xf]
        %v3606 = vld [vmem:[#allocation8 + $0x3c] sm:$0xf]
        %v3623 = vunpack.c.l.b16 %v3591
        %v3624 = vunpack.c.l.b16 %v3592
        %v3625 = vunpack.c.l.b16 %v3593
        %v3626 = vunpack.c.l.b16 %v3594
        %v3627 = vunpack.c.l.b16 %v3595
        %v3628 = vunpack.c.l.b16 %v3596
        %v3629 = vunpack.c.l.b16 %v3597
        %v3630 = vunpack.c.l.b16 %v3598
        %v3631 = vunpack.c.l.b16 %v3599
        %v3632 = vunpack.c.l.b16 %v3600
        %v3633 = vunpack.c.l.b16 %v3601
        %v3634 = vunpack.c.l.b16 %v3602
        %v3635 = vunpack.c.l.b16 %v3603
        %v3636 = vunpack.c.l.b16 %v3604
        %v3637 = vunpack.c.l.b16 %v3605
        %v3638 = vunpack.c.l.b16 %v3606
        %v3639 = vpack.c.b16 %v3624, %v3623
        %v3640 = vpack.c.b16 %v3626, %v3625
        %v3641 = vpack.c.b16 %v3628, %v3627
        %v3642 = vpack.c.b16 %v3630, %v3629
        %v3643 = vpack.c.b16 %v3632, %v3631
        %v3644 = vpack.c.b16 %v3634, %v3633
        %v3645 = vpack.c.b16 %v3636, %v3635
        %v3646 = vpack.c.b16 %v3638, %v3637
        %3655 = vmatprep.subr.bf16.mxu0 0
        %3656 = vmatpush1.bf16.msra.mxu0 %v3639
        %3657 = vmatprep.subr.bf16.mxu0 0
        %3658 = vmatpush1.bf16.msra.mxu0 %v3640
        %3659 = vmatprep.subr.bf16.mxu0 0
        %3660 = vmatpush1.bf16.msra.mxu0 %v3641
        %3661 = vmatprep.subr.bf16.mxu0 0
        %3662 = vmatpush1.bf16.msra.mxu0 %v3642
        %3663 = vmatprep.subr.bf16.mxu0 0
        %3664 = vmatpush1.bf16.msra.mxu0 %v3643
        %3665 = vmatprep.subr.bf16.mxu0 0
        %3666 = vmatpush1.bf16.msra.mxu0 %v3644
        %3667 = vmatprep.subr.bf16.mxu0 0
        %3668 = vmatpush1.bf16.msra.mxu0 %v3645
        %3669 = vmatprep.subr.bf16.mxu0 0
        %3670 = vmatpush1.bf16.msra.mxu0 %v3646
        %3671 = vmatprep.subr.bf16.mxu0 0
        %3672 = vmatpush1.bf16.msra.mxu0 0
        %3673 = vmatprep.subr.bf16.mxu0 0
        %3674 = vmatpush1.bf16.msra.mxu0 0
        %3675 = vmatprep.subr.bf16.mxu0 0
        %3676 = vmatpush1.bf16.msra.mxu0 0
        %3677 = vmatprep.subr.bf16.mxu0 0
        %3678 = vmatpush1.bf16.msra.mxu0 0
        %3679 = vmatprep.subr.bf16.mxu0 0
        %3680 = vmatpush1.bf16.msra.mxu0 0
        %3681 = vmatprep.subr.bf16.mxu0 0
        %3682 = vmatpush1.bf16.msra.mxu0 0
        %3683 = vmatprep.subr.bf16.mxu0 0
        %3684 = vmatpush1.bf16.msra.mxu0 0
        %3685 = vmatprep.subr.bf16.mxu0 0
        %3686 = vmatpush1.bf16.msra.mxu0 0
        %3687 = vmatprep.mubr.bf16.mxu0 0
        %3688 = vmatmul.mubr.bf16.gmra.mrb[0].mxu0 %v3575
        %v3689 = vpop.f32.mrb[0].mxu0
        %v3690 = vadd.f32 0.0, %v3689
        %v3691 = vpop.f32.mrb[0].mxu0
        %v3692 = vpop.f32.mrb[0].mxu0
        %v3693 = vadd.f32 0.0, %v3692
        %v3694 = vpop.f32.mrb[0].mxu0
        %3695 = vmatprep.mubr.bf16.mxu0 0
        %3696 = vmatmul.mubr.bf16.gmra.mrb[0].mxu0 %v3576
        %v3697 = vpop.f32.mrb[0].mxu0
        %v3698 = vadd.f32 0.0, %v3697
        %v3699 = vpop.f32.mrb[0].mxu0
        %v3700 = vpop.f32.mrb[0].mxu0
        %v3701 = vadd.f32 0.0, %v3700
        %v3702 = vpop.f32.mrb[0].mxu0
        %3703 = vmatprep.mubr.bf16.mxu0 0
        %3704 = vmatmul.mubr.bf16.gmra.mrb[0].mxu0 %v3577
        %v3705 = vpop.f32.mrb[0].mxu0
        %v3706 = vadd.f32 0.0, %v3705
        %v3707 = vpop.f32.mrb[0].mxu0
        %v3708 = vpop.f32.mrb[0].mxu0
        %v3709 = vadd.f32 0.0, %v3708
        %v3710 = vpop.f32.mrb[0].mxu0
        %3711 = vmatprep.mubr.bf16.mxu0 0
        %3712 = vmatmul.mubr.bf16.gmra.mrb[0].mxu0 %v3578
        %v3713 = vpop.f32.mrb[0].mxu0
        %v3714 = vadd.f32 0.0, %v3713
        %v3715 = vpop.f32.mrb[0].mxu0
        %v3716 = vpop.f32.mrb[0].mxu0
        %v3717 = vadd.f32 0.0, %v3716
        %v3718 = vpop.f32.mrb[0].mxu0
        %3719 = vmatprep.mubr.bf16.mxu0 0
        %3720 = vmatmul.mubr.bf16.gmra.mrb[0].mxu0 %v3579
        %v3721 = vpop.f32.mrb[0].mxu0
        %v3722 = vadd.f32 0.0, %v3721
        %v3723 = vpop.f32.mrb[0].mxu0
        %v3724 = vpop.f32.mrb[0].mxu0
        %v3725 = vadd.f32 0.0, %v3724
        %v3726 = vpop.f32.mrb[0].mxu0
        %3727 = vmatprep.mubr.bf16.mxu0 0
        %3728 = vmatmul.mubr.bf16.gmra.mrb[0].mxu0 %v3580
        %v3729 = vpop.f32.mrb[0].mxu0
        %v3730 = vadd.f32 0.0, %v3729
        %v3731 = vpop.f32.mrb[0].mxu0
        %v3732 = vpop.f32.mrb[0].mxu0
        %v3733 = vadd.f32 0.0, %v3732
        %v3734 = vpop.f32.mrb[0].mxu0
        %3735 = vmatprep.mubr.bf16.mxu0 0
        %3736 = vmatmul.mubr.bf16.gmra.mrb[0].mxu0 %v3581
        %v3737 = vpop.f32.mrb[0].mxu0
        %v3738 = vadd.f32 0.0, %v3737
        %v3739 = vpop.f32.mrb[0].mxu0
        %v3740 = vpop.f32.mrb[0].mxu0
        %v3741 = vadd.f32 0.0, %v3740
        %v3742 = vpop.f32.mrb[0].mxu0
        %3743 = vmatprep.mubr.bf16.mxu0 0
        %3744 = vmatmul.mubr.bf16.gmra.mrb[0].mxu0 %v3582
        %v3745 = vpop.f32.mrb[0].mxu0
        %v3746 = vadd.f32 0.0, %v3745
        %v3747 = vpop.f32.mrb[0].mxu0
        %v3748 = vpop.f32.mrb[0].mxu0
        %v3749 = vadd.f32 0.0, %v3748
        %v3750 = vpop.f32.mrb[0].mxu0
        %3751 = vmatprep.mubr.bf16.mxu0 0
        %3752 = vmatmul.mubr.bf16.gmra.mrb[0].mxu0 %v3583
        %v3753 = vpop.f32.mrb[0].mxu0
        %v3754 = vadd.f32 0.0, %v3753
        %v3755 = vpop.f32.mrb[0].mxu0
        %v3756 = vpop.f32.mrb[0].mxu0
        %v3757 = vadd.f32 0.0, %v3756
        %v3758 = vpop.f32.mrb[0].mxu0
        %3759 = vmatprep.mubr.bf16.mxu0 0
        %3760 = vmatmul.mubr.bf16.gmra.mrb[0].mxu0 %v3584
        %v3761 = vpop.f32.mrb[0].mxu0
        %v3762 = vadd.f32 0.0, %v3761
        %v3763 = vpop.f32.mrb[0].mxu0
        %v3764 = vpop.f32.mrb[0].mxu0
        %v3765 = vadd.f32 0.0, %v3764
        %v3766 = vpop.f32.mrb[0].mxu0
        %3767 = vmatprep.mubr.bf16.mxu0 0
        %3768 = vmatmul.mubr.bf16.gmra.mrb[0].mxu0 %v3585
        %v3769 = vpop.f32.mrb[0].mxu0
        %v3770 = vadd.f32 0.0, %v3769
        %v3771 = vpop.f32.mrb[0].mxu0
        %v3772 = vpop.f32.mrb[0].mxu0
        %v3773 = vadd.f32 0.0, %v3772
        %v3774 = vpop.f32.mrb[0].mxu0
        %3775 = vmatprep.mubr.bf16.mxu0 0
        %3776 = vmatmul.mubr.bf16.gmra.mrb[0].mxu0 %v3586
        %v3777 = vpop.f32.mrb[0].mxu0
        %v3778 = vadd.f32 0.0, %v3777
        %v3779 = vpop.f32.mrb[0].mxu0
        %v3780 = vpop.f32.mrb[0].mxu0
        %v3781 = vadd.f32 0.0, %v3780
        %v3782 = vpop.f32.mrb[0].mxu0
        %3783 = vmatprep.mubr.bf16.mxu0 0
        %3784 = vmatmul.mubr.bf16.gmra.mrb[0].mxu0 %v3587
        %v3785 = vpop.f32.mrb[0].mxu0
        %v3786 = vadd.f32 0.0, %v3785
        %v3787 = vpop.f32.mrb[0].mxu0
        %v3788 = vpop.f32.mrb[0].mxu0
        %v3789 = vadd.f32 0.0, %v3788
        %v3790 = vpop.f32.mrb[0].mxu0
        %3791 = vmatprep.mubr.bf16.mxu0 0
        %3792 = vmatmul.mubr.bf16.gmra.mrb[0].mxu0 %v3588
        %v3793 = vpop.f32.mrb[0].mxu0
        %v3794 = vadd.f32 0.0, %v3793
        %v3795 = vpop.f32.mrb[0].mxu0
        %v3796 = vpop.f32.mrb[0].mxu0
        %v3797 = vadd.f32 0.0, %v3796
        %v3798 = vpop.f32.mrb[0].mxu0
        %3799 = vmatprep.mubr.bf16.mxu0 0
        %3800 = vmatmul.mubr.bf16.gmra.mrb[0].mxu0 %v3589
        %v3801 = vpop.f32.mrb[0].mxu0
        %v3802 = vadd.f32 0.0, %v3801
        %v3803 = vpop.f32.mrb[0].mxu0
        %v3804 = vpop.f32.mrb[0].mxu0
        %v3805 = vadd.f32 0.0, %v3804
        %v3806 = vpop.f32.mrb[0].mxu0
        %3807 = vmatprep.mubr.bf16.mxu0 0
        %3808 = vmatmul.mubr.bf16.gmra.mrb[0].mxu0 %v3590
        %v3809 = vpop.f32.mrb[0].mxu0
        %v3810 = vadd.f32 0.0, %v3809
        %v3811 = vpop.f32.mrb[0].mxu0
        %v3812 = vpop.f32.mrb[0].mxu0
        %v3813 = vadd.f32 0.0, %v3812
        %v3814 = vpop.f32.mrb[0].mxu0
        %3815 = vdwg.mxu0
        %v3816 = vld [vmem:[%s303] sm:$0xff]
        %v3817 = vld [vmem:[%s303 + $0x8] sm:$0xff]
        %v3818 = vld [vmem:[%s303 + $0x10] sm:$0xff]
        %v3819 = vld [vmem:[%s303 + $0x18] sm:$0xff]
        %v3820 = vld [vmem:[%s303 + $0x20] sm:$0xff]
        %v3821 = vld [vmem:[%s303 + $0x28] sm:$0xff]
        %v3822 = vld [vmem:[%s303 + $0x30] sm:$0xff]
        %v3823 = vld [vmem:[%s303 + $0x38] sm:$0xff]
        %v3824 = vld [vmem:[%s303 + $0x40] sm:$0xff]
        %v3825 = vld [vmem:[%s303 + $0x48] sm:$0xff]
        %v3826 = vld [vmem:[%s303 + $0x50] sm:$0xff]
        %v3827 = vld [vmem:[%s303 + $0x58] sm:$0xff]
        %v3828 = vld [vmem:[%s303 + $0x60] sm:$0xff]
        %v3829 = vld [vmem:[%s303 + $0x68] sm:$0xff]
        %v3830 = vld [vmem:[%s303 + $0x70] sm:$0xff]
        %v3831 = vld [vmem:[%s303 + $0x78] sm:$0xff]
        %v3832 = vld [vmem:[%s303 + $0x80] sm:$0xff]
        %v3833 = vld [vmem:[%s303 + $0x88] sm:$0xff]
        %v3834 = vld [vmem:[%s303 + $0x90] sm:$0xff]
        %v3835 = vld [vmem:[%s303 + $0x98] sm:$0xff]
        %v3836 = vld [vmem:[%s303 + $0xa0] sm:$0xff]
        %v3837 = vld [vmem:[%s303 + $0xa8] sm:$0xff]
        %v3838 = vld [vmem:[%s303 + $0xb0] sm:$0xff]
        %v3839 = vld [vmem:[%s303 + $0xb8] sm:$0xff]
        %v3840 = vld [vmem:[%s303 + $0xc0] sm:$0xff]
        %v3841 = vld [vmem:[%s303 + $0xc8] sm:$0xff]
        %v3842 = vld [vmem:[%s303 + $0xd0] sm:$0xff]
        %v3843 = vld [vmem:[%s303 + $0xd8] sm:$0xff]
        %v3844 = vld [vmem:[%s303 + $0xe0] sm:$0xff]
        %v3845 = vld [vmem:[%s303 + $0xe8] sm:$0xff]
        %v3846 = vld [vmem:[%s303 + $0xf0] sm:$0xff]
        %v3847 = vld [vmem:[%s303 + $0xf8] sm:$0xff]
        %3849 = vset.pattern.permute.xlu0 0
        %3850 = vperm.xlu0 %3849, %v3816
        %v3851 = vpop.permute.xlu0 %3850
        %3854 = vset.pattern.permute.xlu0 0
        %3855 = vperm.xlu0 %3854, %v3817
        %v3856 = vpop.permute.xlu0 %3855
        %3859 = vset.pattern.permute.xlu0 0
        %3860 = vperm.xlu0 %3859, %v3818
        %v3861 = vpop.permute.xlu0 %3860
        %3864 = vset.pattern.permute.xlu0 0
        %3865 = vperm.xlu0 %3864, %v3819
        %v3866 = vpop.permute.xlu0 %3865
        %3869 = vset.pattern.permute.xlu0 0
        %3870 = vperm.xlu0 %3869, %v3820
        %v3871 = vpop.permute.xlu0 %3870
        %3874 = vset.pattern.permute.xlu0 0
        %3875 = vperm.xlu0 %3874, %v3821
        %v3876 = vpop.permute.xlu0 %3875
        %3879 = vset.pattern.permute.xlu0 0
        %3880 = vperm.xlu0 %3879, %v3822
        %v3881 = vpop.permute.xlu0 %3880
        %3884 = vset.pattern.permute.xlu0 0
        %3885 = vperm.xlu0 %3884, %v3823
        %v3886 = vpop.permute.xlu0 %3885
        %3889 = vset.pattern.permute.xlu0 0
        %3890 = vperm.xlu0 %3889, %v3824
        %v3891 = vpop.permute.xlu0 %3890
        %3894 = vset.pattern.permute.xlu0 0
        %3895 = vperm.xlu0 %3894, %v3825
        %v3896 = vpop.permute.xlu0 %3895
        %3899 = vset.pattern.permute.xlu0 0
        %3900 = vperm.xlu0 %3899, %v3826
        %v3901 = vpop.permute.xlu0 %3900
        %3904 = vset.pattern.permute.xlu0 0
        %3905 = vperm.xlu0 %3904, %v3827
        %v3906 = vpop.permute.xlu0 %3905
        %3909 = vset.pattern.permute.xlu0 0
        %3910 = vperm.xlu0 %3909, %v3828
        %v3911 = vpop.permute.xlu0 %3910
        %3914 = vset.pattern.permute.xlu0 0
        %3915 = vperm.xlu0 %3914, %v3829
        %v3916 = vpop.permute.xlu0 %3915
        %3919 = vset.pattern.permute.xlu0 0
        %3920 = vperm.xlu0 %3919, %v3830
        %v3921 = vpop.permute.xlu0 %3920
        %3924 = vset.pattern.permute.xlu0 0
        %3925 = vperm.xlu0 %3924, %v3831
        %v3926 = vpop.permute.xlu0 %3925
        %3929 = vset.pattern.permute.xlu0 0
        %3930 = vperm.xlu0 %3929, %v3832
        %v3931 = vpop.permute.xlu0 %3930
        %3934 = vset.pattern.permute.xlu0 0
        %3935 = vperm.xlu0 %3934, %v3833
        %v3936 = vpop.permute.xlu0 %3935
        %3939 = vset.pattern.permute.xlu0 0
        %3940 = vperm.xlu0 %3939, %v3834
        %v3941 = vpop.permute.xlu0 %3940
        %3944 = vset.pattern.permute.xlu0 0
        %3945 = vperm.xlu0 %3944, %v3835
        %v3946 = vpop.permute.xlu0 %3945
        %3949 = vset.pattern.permute.xlu0 0
        %3950 = vperm.xlu0 %3949, %v3836
        %v3951 = vpop.permute.xlu0 %3950
        %3954 = vset.pattern.permute.xlu0 0
        %3955 = vperm.xlu0 %3954, %v3837
        %v3956 = vpop.permute.xlu0 %3955
        %3959 = vset.pattern.permute.xlu0 0
        %3960 = vperm.xlu0 %3959, %v3838
        %v3961 = vpop.permute.xlu0 %3960
        %3964 = vset.pattern.permute.xlu0 0
        %3965 = vperm.xlu0 %3964, %v3839
        %v3966 = vpop.permute.xlu0 %3965
        %3969 = vset.pattern.permute.xlu0 0
        %3970 = vperm.xlu0 %3969, %v3840
        %v3971 = vpop.permute.xlu0 %3970
        %3974 = vset.pattern.permute.xlu0 0
        %3975 = vperm.xlu0 %3974, %v3841
        %v3976 = vpop.permute.xlu0 %3975
        %3979 = vset.pattern.permute.xlu0 0
        %3980 = vperm.xlu0 %3979, %v3842
        %v3981 = vpop.permute.xlu0 %3980
        %3984 = vset.pattern.permute.xlu0 0
        %3985 = vperm.xlu0 %3984, %v3843
        %v3986 = vpop.permute.xlu0 %3985
        %3989 = vset.pattern.permute.xlu0 0
        %3990 = vperm.xlu0 %3989, %v3844
        %v3991 = vpop.permute.xlu0 %3990
        %3994 = vset.pattern.permute.xlu0 0
        %3995 = vperm.xlu0 %3994, %v3845
        %v3996 = vpop.permute.xlu0 %3995
        %3999 = vset.pattern.permute.xlu0 0
        %4000 = vperm.xlu0 %3999, %v3846
        %v4001 = vpop.permute.xlu0 %4000
        %4004 = vset.pattern.permute.xlu0 0
        %4005 = vperm.xlu0 %4004, %v3847
        %v4006 = vpop.permute.xlu0 %4005
        %v4008 = vmul.f32 %v3690, %v3851
        %v4009 = vmul.f32 %v3693, %v3856
        %v4010 = vmul.f32 %v3698, %v3861
        %v4011 = vmul.f32 %v3701, %v3866
        %v4012 = vmul.f32 %v3706, %v3871
        %v4013 = vmul.f32 %v3709, %v3876
        %v4014 = vmul.f32 %v3714, %v3881
        %v4015 = vmul.f32 %v3717, %v3886
        %v4016 = vmul.f32 %v3722, %v3891
        %v4017 = vmul.f32 %v3725, %v3896
        %v4018 = vmul.f32 %v3730, %v3901
        %v4019 = vmul.f32 %v3733, %v3906
        %v4020 = vmul.f32 %v3738, %v3911
        %v4021 = vmul.f32 %v3741, %v3916
        %v4022 = vmul.f32 %v3746, %v3921
        %v4023 = vmul.f32 %v3749, %v3926
        %v4024 = vmul.f32 %v3754, %v3931
        %v4025 = vmul.f32 %v3757, %v3936
        %v4026 = vmul.f32 %v3762, %v3941
        %v4027 = vmul.f32 %v3765, %v3946
        %v4028 = vmul.f32 %v3770, %v3951
        %v4029 = vmul.f32 %v3773, %v3956
        %v4030 = vmul.f32 %v3778, %v3961
        %v4031 = vmul.f32 %v3781, %v3966
        %v4032 = vmul.f32 %v3786, %v3971
        %v4033 = vmul.f32 %v3789, %v3976
        %v4034 = vmul.f32 %v3794, %v3981
        %v4035 = vmul.f32 %v3797, %v3986
        %v4036 = vmul.f32 %v3802, %v3991
        %v4037 = vmul.f32 %v3805, %v3996
        %v4038 = vmul.f32 %v3810, %v4001
        %v4039 = vmul.f32 %v3813, %v4006
        %v4040 = vpack.c.bf16 %v4009, %v4008
        %v4041 = vpack.c.bf16 %v4011, %v4010
        %v4042 = vpack.c.bf16 %v4013, %v4012
        %v4043 = vpack.c.bf16 %v4015, %v4014
        %v4044 = vpack.c.bf16 %v4017, %v4016
        %v4045 = vpack.c.bf16 %v4019, %v4018
        %v4046 = vpack.c.bf16 %v4021, %v4020
        %v4047 = vpack.c.bf16 %v4023, %v4022
        %v4048 = vpack.c.bf16 %v4025, %v4024
        %v4049 = vpack.c.bf16 %v4027, %v4026
        %v4050 = vpack.c.bf16 %v4029, %v4028
        %v4051 = vpack.c.bf16 %v4031, %v4030
        %v4052 = vpack.c.bf16 %v4033, %v4032
        %v4053 = vpack.c.bf16 %v4035, %v4034
        %v4054 = vpack.c.bf16 %v4037, %v4036
        %v4055 = vpack.c.bf16 %v4039, %v4038
        %v4072 = vunpack.c.l.b16 %v4040
        %v4073 = vunpack.c.h.b16 %v4040
        %v4074 = vunpack.c.l.b16 %v4041
        %v4075 = vunpack.c.h.b16 %v4041
        %v4076 = vunpack.c.l.b16 %v4042
        %v4077 = vunpack.c.h.b16 %v4042
        %v4078 = vunpack.c.l.b16 %v4043
        %v4079 = vunpack.c.h.b16 %v4043
        %v4080 = vunpack.c.l.b16 %v4044
        %v4081 = vunpack.c.h.b16 %v4044
        %v4082 = vunpack.c.l.b16 %v4045
        %v4083 = vunpack.c.h.b16 %v4045
        %v4084 = vunpack.c.l.b16 %v4046
        %v4085 = vunpack.c.h.b16 %v4046
        %v4086 = vunpack.c.l.b16 %v4047
        %v4087 = vunpack.c.h.b16 %v4047
        %v4088 = vunpack.c.l.b16 %v4048
        %v4089 = vunpack.c.h.b16 %v4048
        %v4090 = vunpack.c.l.b16 %v4049
        %v4091 = vunpack.c.h.b16 %v4049
        %v4092 = vunpack.c.l.b16 %v4050
        %v4093 = vunpack.c.h.b16 %v4050
        %v4094 = vunpack.c.l.b16 %v4051
        %v4095 = vunpack.c.h.b16 %v4051
        %v4096 = vunpack.c.l.b16 %v4052
        %v4097 = vunpack.c.h.b16 %v4052
        %v4098 = vunpack.c.l.b16 %v4053
        %v4099 = vunpack.c.h.b16 %v4053
        %v4100 = vunpack.c.l.b16 %v4054
        %v4101 = vunpack.c.h.b16 %v4054
        %v4102 = vunpack.c.l.b16 %v4055
        %v4103 = vunpack.c.h.b16 %v4055
        %v4104 = vpack.c.b16 %v4072, %v4072
        %v4105 = vpack.c.b16 %v4073, %v4073
        %v4106 = vpack.c.b16 %v4074, %v4074
        %v4107 = vpack.c.b16 %v4075, %v4075
        %v4108 = vpack.c.b16 %v4076, %v4076
        %v4109 = vpack.c.b16 %v4077, %v4077
        %v4110 = vpack.c.b16 %v4078, %v4078
        %v4111 = vpack.c.b16 %v4079, %v4079
        %v4112 = vpack.c.b16 %v4080, %v4080
        %v4113 = vpack.c.b16 %v4081, %v4081
        %v4114 = vpack.c.b16 %v4082, %v4082
        %v4115 = vpack.c.b16 %v4083, %v4083
        %v4116 = vpack.c.b16 %v4084, %v4084
        %v4117 = vpack.c.b16 %v4085, %v4085
        %v4118 = vpack.c.b16 %v4086, %v4086
        %v4119 = vpack.c.b16 %v4087, %v4087
        %v4120 = vpack.c.b16 %v4088, %v4088
        %v4121 = vpack.c.b16 %v4089, %v4089
        %v4122 = vpack.c.b16 %v4090, %v4090
        %v4123 = vpack.c.b16 %v4091, %v4091
        %v4124 = vpack.c.b16 %v4092, %v4092
        %v4125 = vpack.c.b16 %v4093, %v4093
        %v4126 = vpack.c.b16 %v4094, %v4094
        %v4127 = vpack.c.b16 %v4095, %v4095
        %v4128 = vpack.c.b16 %v4096, %v4096
        %v4129 = vpack.c.b16 %v4097, %v4097
        %v4130 = vpack.c.b16 %v4098, %v4098
        %v4131 = vpack.c.b16 %v4099, %v4099
        %v4132 = vpack.c.b16 %v4100, %v4100
        %v4133 = vpack.c.b16 %v4101, %v4101
        %v4134 = vpack.c.b16 %v4102, %v4102
        %v4135 = vpack.c.b16 %v4103, %v4103
        %4168 = vst [vmem:[%s340] sm:$0xf] %v4104
        %4169 = vst [vmem:[%s340 + $0x4] sm:$0xf] %v4105
        %4170 = vst [vmem:[%s340 + $0x8] sm:$0xf] %v4106
        %4171 = vst [vmem:[%s340 + $0xc] sm:$0xf] %v4107
        %4172 = vst [vmem:[%s340 + $0x10] sm:$0xf] %v4108
        %4173 = vst [vmem:[%s340 + $0x14] sm:$0xf] %v4109
        %4174 = vst [vmem:[%s340 + $0x18] sm:$0xf] %v4110
        %4175 = vst [vmem:[%s340 + $0x1c] sm:$0xf] %v4111
        %4176 = vst [vmem:[%s340 + $0x20] sm:$0xf] %v4112
        %4177 = vst [vmem:[%s340 + $0x24] sm:$0xf] %v4113
        %4178 = vst [vmem:[%s340 + $0x28] sm:$0xf] %v4114
        %4179 = vst [vmem:[%s340 + $0x2c] sm:$0xf] %v4115
        %4180 = vst [vmem:[%s340 + $0x30] sm:$0xf] %v4116
        %4181 = vst [vmem:[%s340 + $0x34] sm:$0xf] %v4117
        %4182 = vst [vmem:[%s340 + $0x38] sm:$0xf] %v4118
        %4183 = vst [vmem:[%s340 + $0x3c] sm:$0xf] %v4119
        %4184 = vst [vmem:[%s340 + $0x40] sm:$0xf] %v4120
        %4185 = vst [vmem:[%s340 + $0x44] sm:$0xf] %v4121
        %4186 = vst [vmem:[%s340 + $0x48] sm:$0xf] %v4122
        %4187 = vst [vmem:[%s340 + $0x4c] sm:$0xf] %v4123
        %4188 = vst [vmem:[%s340 + $0x50] sm:$0xf] %v4124
        %4189 = vst [vmem:[%s340 + $0x54] sm:$0xf] %v4125
        %4190 = vst [vmem:[%s340 + $0x58] sm:$0xf] %v4126
        %4191 = vst [vmem:[%s340 + $0x5c] sm:$0xf] %v4127
        %4192 = vst [vmem:[%s340 + $0x60] sm:$0xf] %v4128
        %4193 = vst [vmem:[%s340 + $0x64] sm:$0xf] %v4129
        %4194 = vst [vmem:[%s340 + $0x68] sm:$0xf] %v4130
        %4195 = vst [vmem:[%s340 + $0x6c] sm:$0xf] %v4131
        %4196 = vst [vmem:[%s340 + $0x70] sm:$0xf] %v4132
        %4197 = vst [vmem:[%s340 + $0x74] sm:$0xf] %v4133
        %4198 = vst [vmem:[%s340 + $0x78] sm:$0xf] %v4134
        %4199 = vst [vmem:[%s340 + $0x7c] sm:$0xf] %v4135
        %v4200 = vunpack.c.l.bf16 %v4040
        %v4201 = vunpack.c.h.bf16 %v4040
        %v4202 = vunpack.c.l.bf16 %v4041
        %v4203 = vunpack.c.h.bf16 %v4041
        %v4204 = vunpack.c.l.bf16 %v4042
        %v4205 = vunpack.c.h.bf16 %v4042
        %v4206 = vunpack.c.l.bf16 %v4043
        %v4207 = vunpack.c.h.bf16 %v4043
        %v4208 = vunpack.c.l.bf16 %v4044
        %v4209 = vunpack.c.h.bf16 %v4044
        %v4210 = vunpack.c.l.bf16 %v4045
        %v4211 = vunpack.c.h.bf16 %v4045
        %v4212 = vunpack.c.l.bf16 %v4046
        %v4213 = vunpack.c.h.bf16 %v4046
        %v4214 = vunpack.c.l.bf16 %v4047
        %v4215 = vunpack.c.h.bf16 %v4047
        %v4216 = vunpack.c.l.bf16 %v4048
        %v4217 = vunpack.c.h.bf16 %v4048
        %v4218 = vunpack.c.l.bf16 %v4049
        %v4219 = vunpack.c.h.bf16 %v4049
        %v4220 = vunpack.c.l.bf16 %v4050
        %v4221 = vunpack.c.h.bf16 %v4050
        %v4222 = vunpack.c.l.bf16 %v4051
        %v4223 = vunpack.c.h.bf16 %v4051
        %v4224 = vunpack.c.l.bf16 %v4052
        %v4225 = vunpack.c.h.bf16 %v4052
        %v4226 = vunpack.c.l.bf16 %v4053
        %v4227 = vunpack.c.h.bf16 %v4053
        %v4228 = vunpack.c.l.bf16 %v4054
        %v4229 = vunpack.c.h.bf16 %v4054
        %v4230 = vunpack.c.l.bf16 %v4055
        %v4231 = vunpack.c.h.bf16 %v4055
        %v4232 = vadd.f32 %v4200, %v4201
        %v4233 = vadd.f32 %v4232, %v4202
        %v4234 = vadd.f32 %v4233, %v4203
        %v4235 = vadd.f32 %v4234, %v4204
        %v4236 = vadd.f32 %v4235, %v4205
        %v4237 = vadd.f32 %v4236, %v4206
        %v4238 = vadd.f32 %v4237, %v4207
        %v4239 = vadd.f32 %v4238, %v4208
        %v4240 = vadd.f32 %v4239, %v4209
        %v4241 = vadd.f32 %v4240, %v4210
        %v4242 = vadd.f32 %v4241, %v4211
        %v4243 = vadd.f32 %v4242, %v4212
        %v4244 = vadd.f32 %v4243, %v4213
        %v4245 = vadd.f32 %v4244, %v4214
        %v4246 = vadd.f32 %v4245, %v4215
        %v4247 = vadd.f32 %v4246, %v4216
        %v4248 = vadd.f32 %v4247, %v4217
        %v4249 = vadd.f32 %v4248, %v4218
        %v4250 = vadd.f32 %v4249, %v4219
        %v4251 = vadd.f32 %v4250, %v4220
        %v4252 = vadd.f32 %v4251, %v4221
        %v4253 = vadd.f32 %v4252, %v4222
        %v4254 = vadd.f32 %v4253, %v4223
        %v4255 = vadd.f32 %v4254, %v4224
        %v4256 = vadd.f32 %v4255, %v4225
        %v4257 = vadd.f32 %v4256, %v4226
        %v4258 = vadd.f32 %v4257, %v4227
        %v4259 = vadd.f32 %v4258, %v4228
        %v4260 = vadd.f32 %v4259, %v4229
        %v4261 = vadd.f32 %v4260, %v4230
        %v4262 = vadd.f32 %v4261, %v4231
        %v4263 = vrot.slane %v4262, 4
        %v4264 = vadd.f32 %v4262, %v4263
        %v4265 = vrot.slane %v4264, 2
        %v4266 = vadd.f32 %v4264, %v4265
        %v4267 = vrot.slane %v4266, 1
        %v4268 = vadd.f32 %v4266, %v4267
        %4269 = vst [vmem:[%s346] sm:$0x1] %v4268
        %4270 = vxpose.xlu0.c.b16.start [1/8] %v4040, 128
        %4271 = vxpose.xlu0.c.b16.cont [2/8] %v4041, 128
        %4272 = vxpose.xlu0.c.b16.cont [3/8] %v4042, 128
        %4273 = vxpose.xlu0.c.b16.cont [4/8] %v4043, 128
        %4274 = vxpose.xlu0.c.b16.cont [5/8] %v4044, 128
        %4275 = vxpose.xlu0.c.b16.cont [6/8] %v4045, 128
        %4276 = vxpose.xlu0.c.b16.cont [7/8] %v4046, 128
        %4277 = vxpose.xlu0.c.b16.end [8/8] %v4047, 128
        %v4278 = vpop.trf.xlu0
        %v4279 = vpop.trf.xlu0
        %v4280 = vpop.trf.xlu0
        %v4281 = vpop.trf.xlu0
        %v4282 = vpop.trf.xlu0
        %v4283 = vpop.trf.xlu0
        %v4284 = vpop.trf.xlu0
        %v4285 = vpop.trf.xlu0
        %4286 = vxpose.xlu0.c.b16.start [1/8] %v4048, 128
        %4287 = vxpose.xlu0.c.b16.cont [2/8] %v4049, 128
        %4288 = vxpose.xlu0.c.b16.cont [3/8] %v4050, 128
        %4289 = vxpose.xlu0.c.b16.cont [4/8] %v4051, 128
        %4290 = vxpose.xlu0.c.b16.cont [5/8] %v4052, 128
        %4291 = vxpose.xlu0.c.b16.cont [6/8] %v4053, 128
        %4292 = vxpose.xlu0.c.b16.cont [7/8] %v4054, 128
        %4293 = vxpose.xlu0.c.b16.end [8/8] %v4055, 128
        %v4294 = vpop.trf.xlu0
        %v4295 = vpop.trf.xlu0
        %v4296 = vpop.trf.xlu0
        %v4297 = vpop.trf.xlu0
        %v4298 = vpop.trf.xlu0
        %v4299 = vpop.trf.xlu0
        %v4300 = vpop.trf.xlu0
        %v4301 = vpop.trf.xlu0
        %4302 = vmatprep.subr.bf16.mxu0 0
        %4303 = vmatpush1.bf16.msra.mxu0 %v4040
        %4304 = vmatprep.subr.bf16.mxu0 0
        %4305 = vmatpush1.bf16.msra.mxu0 %v4041
        %4306 = vmatprep.subr.bf16.mxu0 0
        %4307 = vmatpush1.bf16.msra.mxu0 %v4042
        %4308 = vmatprep.subr.bf16.mxu0 0
        %4309 = vmatpush1.bf16.msra.mxu0 %v4043
        %4310 = vmatprep.subr.bf16.mxu0 0
        %4311 = vmatpush1.bf16.msra.mxu0 %v4044
        %4312 = vmatprep.subr.bf16.mxu0 0
        %4313 = vmatpush1.bf16.msra.mxu0 %v4045
        %4314 = vmatprep.subr.bf16.mxu0 0
        %4315 = vmatpush1.bf16.msra.mxu0 %v4046
        %4316 = vmatprep.subr.bf16.mxu0 0
        %4317 = vmatpush1.bf16.msra.mxu0 %v4047
        %4318 = vmatprep.subr.bf16.mxu0 0
        %4319 = vmatpush1.bf16.msra.mxu0 %v4048
        %4320 = vmatprep.subr.bf16.mxu0 0
        %4321 = vmatpush1.bf16.msra.mxu0 %v4049
        %4322 = vmatprep.subr.bf16.mxu0 0
        %4323 = vmatpush1.bf16.msra.mxu0 %v4050
        %4324 = vmatprep.subr.bf16.mxu0 0
        %4325 = vmatpush1.bf16.msra.mxu0 %v4051
        %4326 = vmatprep.subr.bf16.mxu0 0
        %4327 = vmatpush1.bf16.msra.mxu0 %v4052
        %4328 = vmatprep.subr.bf16.mxu0 0
        %4329 = vmatpush1.bf16.msra.mxu0 %v4053
        %4330 = vmatprep.subr.bf16.mxu0 0
        %4331 = vmatpush1.bf16.msra.mxu0 %v4054
        %4332 = vmatprep.subr.bf16.mxu0 0
        %4333 = vmatpush1.bf16.msra.mxu0 %v4055
        %4334 = vmatprep.mubr.bf16.mxu0 %v4294
        %4335 = vmatmul.mubr.bf16.gmra.mrb[0].mxu0 %v4278
        %v4336 = vpop.f32.mrb[0].mxu0
        %v4337 = vadd.f32 0.0, %v4336
        %v4338 = vpop.f32.mrb[0].mxu0
        %v4339 = vpop.f32.mrb[0].mxu0
        %v4340 = vadd.f32 0.0, %v4339
        %v4341 = vpop.f32.mrb[0].mxu0
        %4342 = vmatprep.mubr.bf16.mxu0 %v4295
        %4343 = vmatmul.mubr.bf16.gmra.mrb[0].mxu0 %v4279
        %v4344 = vpop.f32.mrb[0].mxu0
        %v4345 = vadd.f32 0.0, %v4344
        %v4346 = vpop.f32.mrb[0].mxu0
        %v4347 = vpop.f32.mrb[0].mxu0
        %v4348 = vadd.f32 0.0, %v4347
        %v4349 = vpop.f32.mrb[0].mxu0
        %4350 = vmatprep.mubr.bf16.mxu0 %v4296
        %4351 = vmatmul.mubr.bf16.gmra.mrb[0].mxu0 %v4280
        %v4352 = vpop.f32.mrb[0].mxu0
        %v4353 = vadd.f32 0.0, %v4352
        %v4354 = vpop.f32.mrb[0].mxu0
        %v4355 = vpop.f32.mrb[0].mxu0
        %v4356 = vadd.f32 0.0, %v4355
        %v4357 = vpop.f32.mrb[0].mxu0
        %4358 = vmatprep.mubr.bf16.mxu0 %v4297
        %4359 = vmatmul.mubr.bf16.gmra.mrb[0].mxu0 %v4281
        %v4360 = vpop.f32.mrb[0].mxu0
        %v4361 = vadd.f32 0.0, %v4360
        %v4362 = vpop.f32.mrb[0].mxu0
        %v4363 = vpop.f32.mrb[0].mxu0
        %v4364 = vadd.f32 0.0, %v4363
        %v4365 = vpop.f32.mrb[0].mxu0
        %4366 = vmatprep.mubr.bf16.mxu0 %v4298
        %4367 = vmatmul.mubr.bf16.gmra.mrb[0].mxu0 %v4282
        %v4368 = vpop.f32.mrb[0].mxu0
        %v4369 = vadd.f32 0.0, %v4368
        %v4370 = vpop.f32.mrb[0].mxu0
        %v4371 = vpop.f32.mrb[0].mxu0
        %v4372 = vadd.f32 0.0, %v4371
        %v4373 = vpop.f32.mrb[0].mxu0
        %4374 = vmatprep.mubr.bf16.mxu0 %v4299
        %4375 = vmatmul.mubr.bf16.gmra.mrb[0].mxu0 %v4283
        %v4376 = vpop.f32.mrb[0].mxu0
        %v4377 = vadd.f32 0.0, %v4376
        %v4378 = vpop.f32.mrb[0].mxu0
        %v4379 = vpop.f32.mrb[0].mxu0
        %v4380 = vadd.f32 0.0, %v4379
        %v4381 = vpop.f32.mrb[0].mxu0
        %4382 = vmatprep.mubr.bf16.mxu0 %v4300
        %4383 = vmatmul.mubr.bf16.gmra.mrb[0].mxu0 %v4284
        %v4384 = vpop.f32.mrb[0].mxu0
        %v4385 = vadd.f32 0.0, %v4384
        %v4386 = vpop.f32.mrb[0].mxu0
        %v4387 = vpop.f32.mrb[0].mxu0
        %v4388 = vadd.f32 0.0, %v4387
        %v4389 = vpop.f32.mrb[0].mxu0
        %4390 = vmatprep.mubr.bf16.mxu0 %v4301
        %4391 = vmatmul.mubr.bf16.gmra.mrb[0].mxu0 %v4285
        %v4392 = vpop.f32.mrb[0].mxu0
        %v4393 = vadd.f32 0.0, %v4392
        %v4394 = vpop.f32.mrb[0].mxu0
        %v4395 = vpop.f32.mrb[0].mxu0
        %v4396 = vadd.f32 0.0, %v4395
        %v4397 = vpop.f32.mrb[0].mxu0
        %4398 = vdwg.mxu0
        %4399 = vst [vmem:[%s353] sm:$0xff] %v4337
        %4400 = vst [vmem:[%s353 + $0x8] sm:$0xff] %v4340
        %4401 = vst [vmem:[%s353 + $0x10] sm:$0xff] %v4345
        %4402 = vst [vmem:[%s353 + $0x18] sm:$0xff] %v4348
        %4403 = vst [vmem:[%s353 + $0x20] sm:$0xff] %v4353
        %4404 = vst [vmem:[%s353 + $0x28] sm:$0xff] %v4356
        %4405 = vst [vmem:[%s353 + $0x30] sm:$0xff] %v4361
        %4406 = vst [vmem:[%s353 + $0x38] sm:$0xff] %v4364
        %4407 = vst [vmem:[%s353 + $0x40] sm:$0xff] %v4369
        %4408 = vst [vmem:[%s353 + $0x48] sm:$0xff] %v4372
        %4409 = vst [vmem:[%s353 + $0x50] sm:$0xff] %v4377
        %4410 = vst [vmem:[%s353 + $0x58] sm:$0xff] %v4380
        %4411 = vst [vmem:[%s353 + $0x60] sm:$0xff] %v4385
        %4412 = vst [vmem:[%s353 + $0x68] sm:$0xff] %v4388
        %4413 = vst [vmem:[%s353 + $0x70] sm:$0xff] %v4393
        %4414 = vst [vmem:[%s353 + $0x78] sm:$0xff] %v4396
        %s4415 = sand.u32 %s133, 1
        %s4416 = scalar_lea.sflag [#allocation4], %s4415
        %s4417 = sand.u32 %s133, 1
        %s4418 = smul.addr %s4417, 128
        %s4419 = scalar_lea.vmem [#allocation10], %s4418
        %s4420 = sand.u32 %s31, 1
        %s4421 = scalar_lea.sflag [#allocation12], %s4420
        %s4422 = sand.u32 %s159, 1
        %s4423 = scalar_lea.vmem [#allocation11], %s4422
        %s4424 = sand.u32 %s31, 1
        %s4425 = scalar_lea.sflag [#allocation12], %s4424
        %s4426 = sand.u32 %s185, 1
        %s4427 = smul.addr %s4426, 128
        %s4428 = scalar_lea.vmem [#allocation13], %s4427
        // Predicated region
        $region53: #{_lambda_.3} parent=35 // pred_check
          %p4429 = pneg %p143
        $region54: #{_lambda_.3} parent=35 // pred_check_branch
          %4431 = sbr.rel (%p4429) target = $region56
        $region55: #{_lambda_.3} parent=35 // pred_region
          %s4432 = smul.u32 32, %s31
          %s4434 = ssub.s32 2048, 2048
          %4435 = vsyncadd %s4416, %s4434
          %s4436 = smul.addr %s4432, 64
          %s4437 = scalar_lea.hbm %s4, %s4436
          %s4438 = sshll.u32 %s4419, 4
          %s4439 = int_to_ptr.vmem [resolvable:$true] %s4438
          %4444 = dma.vmem_to_hbm [thread:$0]  %s4439, 2048, %s4437, %s4416, 64, 64, 4
        $region56: #{_lambda_.3} parent=35 // pred_fallthru
          _
        // Predicated region
        $region57: #{_lambda_.3} parent=35 // pred_check
          %p4445 = pneg %p169
        $region58: #{_lambda_.3} parent=35 // pred_check_branch
          %4447 = sbr.rel (%p4445) target = $region60
        $region59: #{_lambda_.3} parent=35 // pred_region
          %s4449 = ssub.s32 16, 16
          %4450 = vsyncadd %s4421, %s4449
          %s4451 = smul.addr %s31, 16
          %s4452 = scalar_lea.hbm %s5, %s4451
          %s4454 = sshll.u32 %s4423, 4
          %s4455 = int_to_ptr.vmem [resolvable:$true] %s4454
          %4457 = dma.vmem_to_hbm [thread:$0]  %s4455, 16, %s4452, %s4421
        $region60: #{_lambda_.3} parent=35 // pred_fallthru
          _
        // Predicated region
        $region61: #{_lambda_.3} parent=35 // pred_check
          %p4458 = pneg %p195
        $region62: #{_lambda_.3} parent=35 // pred_check_branch
          %4460 = sbr.rel (%p4458) target = $region64
        $region63: #{_lambda_.3} parent=35 // pred_region
          %s4462 = ssub.s32 2048, 2048
          %4463 = vsyncadd %s4425, %s4462
          %s4464 = smul.addr %s31, 16
          %s4465 = smul.addr %s4464, 128
          %s4466 = scalar_lea.hbm %s6, %s4465
          %s4467 = sshll.u32 %s4428, 4
          %s4468 = int_to_ptr.vmem [resolvable:$true] %s4467
          %4473 = dma.vmem_to_hbm [thread:$0]  %s4468, 2048, %s4466, %s4425, 128, 128, 8
        $region64: #{_lambda_.3} parent=35 // pred_fallthru
          _
      $region36: #{_lambda_.3} parent=5 // pred_fallthru
        _
      %p4474 = scmp.le.s32.totalorder 2, %s26
      // Predicated region
      $region65: #{_lambda_.3} parent=5 // pred_check
        %p4475 = pneg %p4474
      $region66: #{_lambda_.3} parent=5 // pred_check_branch
        %4477 = sbr.rel (%p4475) target = $region68
      $region67: #{_lambda_.3} parent=5 // pred_region
        %s4478 = ssub.s32 %s26, 2
        // Predicated region
        $region69: #{_lambda_.3} parent=67 // pred_check
          %p4479 = pneg %p149
        $region70: #{_lambda_.3} parent=67 // pred_check_branch
          %4481 = sbr.rel (%p4479) target = $region72
        $region71: #{_lambda_.3} parent=67 // pred_region
          %s4482 = sand.u32 %s134, 1
          %s4483 = scalar_lea.sflag [#allocation4], %s4482
          %s4484 = sand.u32 %s134, 1
          %s4485 = smul.addr %s4484, 128
          %s4486 = scalar_lea.vmem [#allocation10], %s4485
          %4487 = dma.done %s4483, 2048
        $region72: #{_lambda_.3} parent=67 // pred_fallthru
          _
        // Predicated region
        $region73: #{_lambda_.3} parent=67 // pred_check
          %p4488 = pneg %p175
        $region74: #{_lambda_.3} parent=67 // pred_check_branch
          %4490 = sbr.rel (%p4488) target = $region76
        $region75: #{_lambda_.3} parent=67 // pred_region
          %s4491 = sand.u32 %s32, 1
          %s4492 = scalar_lea.sflag [#allocation12], %s4491
          %s4493 = sand.u32 %s160, 1
          %s4494 = scalar_lea.vmem [#allocation11], %s4493
          %4495 = dma.done %s4492, 16
        $region76: #{_lambda_.3} parent=67 // pred_fallthru
          _
        // Predicated region
        $region77: #{_lambda_.3} parent=67 // pred_check
          %p4496 = pneg %p201
        $region78: #{_lambda_.3} parent=67 // pred_check_branch
          %4498 = sbr.rel (%p4496) target = $region80
        $region79: #{_lambda_.3} parent=67 // pred_region
          %s4499 = sand.u32 %s32, 1
          %s4500 = scalar_lea.sflag [#allocation12], %s4499
          %s4501 = sand.u32 %s186, 1
          %s4502 = smul.addr %s4501, 128
          %s4503 = scalar_lea.vmem [#allocation13], %s4502
          %4504 = dma.done %s4500, 2048
        $region80: #{_lambda_.3} parent=67 // pred_fallthru
          _
      $region68: #{_lambda_.3} parent=5 // pred_fallthru
        _
    $region6: #{_lambda_.3} parent=1 // loop_footer
      %s30 = sadd.s32 1, %s26
    $region7: #{_lambda_.3} parent=1 // loop_footer_branch
      %25 = sbr.rel target = $region3
    $region8: #{_lambda_.3} parent=1 // loop_exit
      _
    %4505 = vsyncpa [#allocation3], 1
    %s4506 = scalar_lea.sflag [#allocation3], 1
    %4507 = vsyncpa %s4506, 1
    %4508 = vsyncpa [#allocation6], 1
    %s4509 = scalar_lea.sflag [#allocation6], 1
    %4510 = vsyncpa %s4509, 1
    %4511 = vsyncpa [#allocation9], 1
    %4512 = vsyncpa [#allocation4], 1
    %s4513 = scalar_lea.sflag [#allocation4], 1
    %4514 = vsyncpa %s4513, 1
    %4515 = vsyncpa [#allocation12], 1
    %s4516 = scalar_lea.sflag [#allocation12], 1
    %4517 = vsyncpa %s4516, 1

</llo_original>
